<compile_context>
chip_gen: v7x
topology: tpu7x:2x2x1
jax: 0.10.0
libtpu: 0.0.40
codegen_flags: <defaults>
</compile_context>

<pallas_src>
import functools

import jax
import jax.numpy as jnp
from jax.experimental import pallas as pl
from jax.experimental.pallas import tpu as pltpu

EPS = 1e-5
LANES = 128
CHANS = [3, 8, 16, 32, 64]


def _round_up(x, m):
    return (x + m - 1) // m * m


def _pick_tile(m, candidates=(1024, 512, 256, 128, 64, 32, 16, 8)):
    for t in candidates:
        if m % t == 0:
            return t
    return m


# ---------------------------------------------------------------------------
# Kernel A (layers 1-3): fused matmul(conv) + bias + BatchNorm(batch stats) + ReLU.
# grid = (phase=2, m_tiles): phase 0 accumulates per-channel sum / sumsq over all M tiles,
# phase 1 recomputes the (cheap) matmul and applies one scale/shift + ReLU pass per tile.
# ---------------------------------------------------------------------------
def conv_bn_relu_kernel(p_ref, w_ref, b_ref, g_ref, beta_ref, o_ref,
                        sum_ref, sq_ref, *, m_total):
    phase = pl.program_id(0)
    m = pl.program_id(1)

    y = jnp.dot(p_ref[...], w_ref[...], preferred_element_type=jnp.float32) + b_ref[...]

    @pl.when(jnp.logical_and(phase == 0, m == 0))
    def _():
        sum_ref[...] = jnp.zeros_like(sum_ref)
        sq_ref[...] = jnp.zeros_like(sq_ref)

    @pl.when(phase == 0)
    def _():
        sum_ref[...] += jnp.sum(y, axis=0, keepdims=True)
        sq_ref[...] += jnp.sum(y * y, axis=0, keepdims=True)
        o_ref[...] = y  # placeholder tile; fully overwritten in phase 1

    @pl.when(phase == 1)
    def _():
        inv_m = 1.0 / m_total
        mean = sum_ref[...] * inv_m
        var = jnp.maximum(sq_ref[...] * inv_m - mean * mean, 0.0)   # biased var (PyTorch BN)
        s = g_ref[...] * jax.lax.rsqrt(var + EPS)
        t = beta_ref[...] - mean * s
        o_ref[...] = jnp.maximum(y * s + t, 0.0)


def conv_bn_relu(patches, w, b, gamma, beta):
    M, Kp = patches.shape
    tm = _pick_tile(M)
    grid = (2, M // tm)
    kernel = functools.partial(conv_bn_relu_kernel, m_total=float(M))
    return pl.pallas_call(
        kernel,
        out_shape=jax.ShapeDtypeStruct((M, LANES), jnp.float32),
        grid=grid,
        in_specs=[
            pl.BlockSpec((tm, Kp), lambda p, m: (m, 0)),
            pl.BlockSpec((Kp, LANES), lambda p, m: (0, 0)),
            pl.BlockSpec((1, LANES), lambda p, m: (0, 0)),
            pl.BlockSpec((1, LANES), lambda p, m: (0, 0)),
            pl.BlockSpec((1, LANES), lambda p, m: (0, 0)),
        ],
        out_specs=pl.BlockSpec((tm, LANES), lambda p, m: (m, 0)),
        scratch_shapes=[pltpu.VMEM((1, LANES), jnp.float32),
                        pltpu.VMEM((1, LANES), jnp.float32)],
        compiler_params=pltpu.CompilerParams(
            dimension_semantics=("arbitrary", "arbitrary"),
            vmem_limit_bytes=32 * 1024 * 1024),
        cost_estimate=pl.CostEstimate(
            flops=2 * 2 * M * Kp * LANES,
            transcendentals=LANES,
            bytes_accessed=4 * (2 * M * Kp + Kp * LANES + 2 * M * LANES)),
    )(patches, w, b, gamma, beta)


# ---------------------------------------------------------------------------
# Kernel B (layer 4): fused conv + BN + ReLU + Linear(4096->1) + sigmoid.
# The Linear is a VPU multiply + reduction against the pre-permuted (Ho*Wo, 128) weight.
# ---------------------------------------------------------------------------
def conv4_linear_kernel(p_ref, w_ref, b_ref, g_ref, beta_ref, wl_ref, bl_ref,
                        logit_ref, prob_ref, sum_ref, sq_ref, *, m_total, batch):
    phase = pl.program_id(0)

    y = jnp.dot(p_ref[...], w_ref[...], preferred_element_type=jnp.float32) + b_ref[...]

    @pl.when(phase == 0)
    def _():
        sum_ref[...] = jnp.sum(y, axis=0, keepdims=True)
        sq_ref[...] = jnp.sum(y * y, axis=0, keepdims=True)
        logit_ref[...] = jnp.zeros_like(logit_ref)
        prob_ref[...] = jnp.zeros_like(prob_ref)

    @pl.when(phase == 1)
    def _():
        inv_m = 1.0 / m_total
        mean = sum_ref[...] * inv_m
        var = jnp.maximum(sq_ref[...] * inv_m - mean * mean, 0.0)
        s = g_ref[...] * jax.lax.rsqrt(var + EPS)
        t = beta_ref[...] - mean * s
        a = jnp.maximum(y * s + t, 0.0)                 # (B*Ho*Wo, 128), padded chans are 0
        hw = a.shape[0] // batch
        ab = a.reshape(batch, hw, a.shape[1])           # (B, Ho*Wo, 128)
        prod = ab * wl_ref[...][None, :, :]             # VPU multiply, broadcast over batch
        logits = jnp.sum(jnp.sum(prod, axis=2), axis=1, keepdims=True) + bl_ref[...]
        logit_ref[...] = logits
        z = jnp.exp(-jnp.abs(logits))                   # numerically-safe sigmoid
        prob_ref[...] = jnp.where(logits >= 0.0, 1.0 / (1.0 + z), z / (1.0 + z))


def conv4_bn_relu_linear_sigmoid(patches, w, b, gamma, beta, wl, bl, batch):
    M, Kp = patches.shape
    hw = M // batch
    kernel = functools.partial(conv4_linear_kernel, m_total=float(M), batch=batch)
    return pl.pallas_call(
        kernel,
        out_shape=(jax.ShapeDtypeStruct((batch, 1), jnp.float32),
                   jax.ShapeDtypeStruct((batch, 1), jnp.float32)),
        grid=(2,),
        in_specs=[
            pl.BlockSpec((M, Kp), lambda p: (0, 0)),
            pl.BlockSpec((Kp, LANES), lambda p: (0, 0)),
            pl.BlockSpec((1, LANES), lambda p: (0, 0)),
            pl.BlockSpec((1, LANES), lambda p: (0, 0)),
            pl.BlockSpec((1, LANES), lambda p: (0, 0)),
            pl.BlockSpec((hw, LANES), lambda p: (0, 0)),
            pl.BlockSpec((1, 1), lambda p: (0, 0)),
        ],
        out_specs=(pl.BlockSpec((batch, 1), lambda p: (0, 0)),
                   pl.BlockSpec((batch, 1), lambda p: (0, 0))),
        scratch_shapes=[pltpu.VMEM((1, LANES), jnp.float32),
                        pltpu.VMEM((1, LANES), jnp.float32)],
        compiler_params=pltpu.CompilerParams(
            dimension_semantics=("arbitrary",),
            vmem_limit_bytes=32 * 1024 * 1024),
        cost_estimate=pl.CostEstimate(
            flops=2 * 2 * M * Kp * LANES + 2 * M * LANES,
            transcendentals=LANES + 2 * batch,
            bytes_accessed=4 * (2 * M * Kp + Kp * LANES + hw * LANES)),
    )(patches, w, b, gamma, beta, wl, bl)


# ---------------------------------------------------------------------------
# Glue: im2col for 3x3, stride-2, pad-1 conv (NHWC), with the K axis zero-padded so the
# kernel sees a lane-dense (multiple of 128) patch matrix. Column order is (kh, kw, cin).
# ---------------------------------------------------------------------------
def extract_patches_s2(x, k_pad):
    B, H, W, C = x.shape
    Ho, Wo = H // 2, W // 2
    xp = jnp.pad(x, ((0, 0), (1, 1), (1, 1), (0, 0)))
    cols = [xp[:, kh:kh + 2 * Ho:2, kw:kw + 2 * Wo:2, :]
            for kh in range(3) for kw in range(3)]
    patches = jnp.concatenate(cols, axis=-1).reshape(B * Ho * Wo, 9 * C)
    if k_pad > 9 * C:
        patches = jnp.pad(patches, ((0, 0), (0, k_pad - 9 * C)))
    return patches, (B, Ho, Wo)


# ---------------------------------------------------------------------------
# Parameter init (deterministic; shapes padded to lane/sublane-friendly sizes).
# Per PyTorch _init_weights: all biases are zeroed; weights keep an init (kaiming-normal-like
# here); BatchNorm gamma=1, beta=0. Padded rows/cols/channels are zero.
# ---------------------------------------------------------------------------
def init_params(key):
    params = {"convs": [], "bns": []}
    keys = jax.random.split(key, 5)
    for i in range(4):
        cin, cout = CHANS[i], CHANS[i + 1]
        k = 9 * cin
        kpad = _round_up(k, LANES)
        w_valid = jax.random.normal(keys[i], (k, cout), jnp.float32) * jnp.sqrt(2.0 / k)
        w = jnp.zeros((kpad, LANES), jnp.float32).at[:k, :cout].set(w_valid)
        b = jnp.zeros((1, LANES), jnp.float32)
        gamma = jnp.zeros((1, LANES), jnp.float32).at[:, :cout].set(1.0)
        beta = jnp.zeros((1, LANES), jnp.float32)
        params["convs"].append((w, b))
        params["bns"].append((gamma, beta))
    # Linear(64*8*8 -> 1): weight stored pre-permuted to the NHWC flatten order:
    #   wl[h*8 + w, c] == W_pytorch[0, c*64 + h*8 + w]; channels zero-padded to 128.
    wl_valid = jax.random.normal(keys[4], (64, 64), jnp.float32) * jnp.sqrt(2.0 / (64 * 8 * 8))
    wl = jnp.zeros((64, LANES), jnp.float32).at[:, :64].set(wl_valid)
    bl = jnp.zeros((1, 1), jnp.float32)
    params["linear"] = (wl, bl)
    return params


# ---------------------------------------------------------------------------
# Forward pass (4 pallas_calls total; no NCHW transpose before the flatten — the Linear
# weight was pre-permuted instead).
# ---------------------------------------------------------------------------
def dogs_cats_forward(params, x_nchw):
    # x_nchw: (B, 3, 128, 128) float32; 128x128 spatial is required by Linear(64*8*8, 1).
    x = jnp.transpose(x_nchw, (0, 2, 3, 1))  # NHWC
    for i in range(3):
        w, b = params["convs"][i]
        g, beta = params["bns"][i]
        patches, (B, Ho, Wo) = extract_patches_s2(x, w.shape[0])
        y = conv_bn_relu(patches, w, b, g, beta)          # (B*Ho*Wo, 128) lane-dense
        cout = CHANS[i + 1]
        x = y[:, :cout].reshape(B, Ho, Wo, cout)
    w, b = params["convs"][3]
    g, beta = params["bns"][3]
    patches, (B, _, _) = extract_patches_s2(x, w.shape[0])
    wl, bl = params["linear"]
    logits, probs = conv4_bn_relu_linear_sigmoid(patches, w, b, g, beta, wl, bl, B)
    return logits, probs


if __name__ == "__main__":
    key = jax.random.PRNGKey(0)
    pkey, xkey = jax.random.split(key)
    params = init_params(pkey)
    # batch=2; spatial must be 128 so that 4 stride-2 convs yield 8x8 for the 64*8*8 Linear.
    x = jax.random.normal(xkey, (2, 3, 128, 128), jnp.float32)
    logits, probs = jax.jit(dogs_cats_forward)(params, x)
    jax.block_until_ready((logits, probs))
    assert logits.shape == (2, 1) and probs.shape == (2, 1)
    assert bool(jnp.all((probs >= 0.0) & (probs <= 1.0)))
    assert bool(jnp.all(jnp.isfinite(logits)))
    print("KERNEL_OK")
</pallas_src>

<mosaic_0001>
module attributes {stable_mosaic.version = 11 : i64} {
  func.func @conv_bn_relu_kernel(%arg0: i32, %arg1: i32, %arg2: memref<1024x128xf32, #tpu.memory_space<vmem>>, %arg3: memref<128x128xf32, #tpu.memory_space<vmem>>, %arg4: memref<1x128xf32, #tpu.memory_space<vmem>>, %arg5: memref<1x128xf32, #tpu.memory_space<vmem>>, %arg6: memref<1x128xf32, #tpu.memory_space<vmem>>, %arg7: memref<1024x128xf32, #tpu.memory_space<vmem>>, %arg8: memref<1x128xf32, #tpu.memory_space<vmem>>, %arg9: memref<1x128xf32, #tpu.memory_space<vmem>>) attributes {dimension_semantics = [#tpu.dimension_semantics<arbitrary>, #tpu.dimension_semantics<arbitrary>], iteration_bounds = array<i64: 2, 8>, scalar_prefetch = 0 : i64, scratch_operands = 2 : i64, tpu.core_type = #tpu.core_type<tc>, window_params = [{transform_indices = @transform_0, window_bounds = array<i64: 1024, 128>}, {pipeline_mode = #tpu.pipeline_mode<synchronous>, transform_indices = @transform_1, window_bounds = array<i64: 128, 128>}, {pipeline_mode = #tpu.pipeline_mode<synchronous>, transform_indices = @transform_2, window_bounds = array<i64: 1, 128>}, {pipeline_mode = #tpu.pipeline_mode<synchronous>, transform_indices = @transform_3, window_bounds = array<i64: 1, 128>}, {pipeline_mode = #tpu.pipeline_mode<synchronous>, transform_indices = @transform_4, window_bounds = array<i64: 1, 128>}, {transform_indices = @transform_5, window_bounds = array<i64: 1024, 128>}]} {
    %c0 = arith.constant 0 : index
    %c0_0 = arith.constant 0 : index
    %0 = vector.load %arg2[%c0, %c0_0] : memref<1024x128xf32, #tpu.memory_space<vmem>>, vector<1024x128xf32>
    %c0_1 = arith.constant 0 : index
    %c0_2 = arith.constant 0 : index
    %1 = vector.load %arg3[%c0_1, %c0_2] : memref<128x128xf32, #tpu.memory_space<vmem>>, vector<128x128xf32>
    %cst = arith.constant dense<0.000000e+00> : vector<1024x128xf32>
    %2 = tpu.matmul %0, %1, %cst {dimension_numbers = #tpu.dot_dimension_numbers<[1], [0], [0], [1], [0, 0, 1, 1], [], []>} : vector<1024x128xf32>, vector<128x128xf32>, vector<1024x128xf32> -> vector<1024x128xf32>
    %c0_3 = arith.constant 0 : index
    %c0_4 = arith.constant 0 : index
    %3 = vector.load %arg4[%c0_3, %c0_4] : memref<1x128xf32, #tpu.memory_space<vmem>>, vector<1x128xf32>
    %4 = vector.broadcast %3 : vector<1x128xf32> to vector<1024x128xf32>
    %5 = arith.addf %2, %4 : vector<1024x128xf32>
    %c0_i32 = arith.constant 0 : i32
    %6 = arith.cmpi eq, %arg0, %c0_i32 : i32
    %c0_i32_5 = arith.constant 0 : i32
    %7 = arith.cmpi eq, %arg1, %c0_i32_5 : i32
    %8 = arith.andi %6, %7 : i1
    %9 = arith.extui %8 : i1 to i32
    %c0_i32_6 = arith.constant 0 : i32
    %10 = arith.cmpi ne, %9, %c0_i32_6 : i32
    scf.if %10 {
      %cst_10 = arith.constant 0.000000e+00 : f32
      %17 = vector.broadcast %cst_10 : f32 to vector<1x128xf32>
      %c0_11 = arith.constant 0 : index
      %c0_12 = arith.constant 0 : index
      %18 = vector.load %arg8[%c0_11, %c0_12] : memref<1x128xf32, #tpu.memory_space<vmem>>, vector<1x128xf32>
      tpu.vector_store %arg8[%c0_11, %c0_12], %17 {strides = array<i32>} : memref<1x128xf32, #tpu.memory_space<vmem>>, vector<1x128xf32>,
      %cst_13 = arith.constant 0.000000e+00 : f32
      %19 = vector.broadcast %cst_13 : f32 to vector<1x128xf32>
      %c0_14 = arith.constant 0 : index
      %c0_15 = arith.constant 0 : index
      %20 = vector.load %arg9[%c0_14, %c0_15] : memref<1x128xf32, #tpu.memory_space<vmem>>, vector<1x128xf32>
      tpu.vector_store %arg9[%c0_14, %c0_15], %19 {strides = array<i32>} : memref<1x128xf32, #tpu.memory_space<vmem>>, vector<1x128xf32>,
    } else {
    }
    %c0_i32_7 = arith.constant 0 : i32
    %11 = arith.cmpi eq, %arg0, %c0_i32_7 : i32
    %12 = arith.extui %11 : i1 to i32
    %c0_i32_8 = arith.constant 0 : i32
    %13 = arith.cmpi ne, %12, %c0_i32_8 : i32
    scf.if %13 {
      %c0_10 = arith.constant 0 : index
      %c0_11 = arith.constant 0 : index
      %17 = vector.load %arg8[%c0_10, %c0_11] : memref<1x128xf32, #tpu.memory_space<vmem>>, vector<1x128xf32>
      %cst_12 = arith.constant dense<0.000000e+00> : vector<128xf32>
      %18 = vector.multi_reduction <add>, %5, %cst_12 [0] : vector<1024x128xf32> to vector<128xf32>
      %19 = vector.shape_cast %18 : vector<128xf32> to vector<1x128xf32>
      %20 = arith.addf %17, %19 : vector<1x128xf32>
      %c0_13 = arith.constant 0 : index
      %c0_14 = arith.constant 0 : index
      %21 = vector.load %arg8[%c0_13, %c0_14] : memref<1x128xf32, #tpu.memory_space<vmem>>, vector<1x128xf32>
      tpu.vector_store %arg8[%c0_13, %c0_14], %20 {strides = array<i32>} : memref<1x128xf32, #tpu.memory_space<vmem>>, vector<1x128xf32>,
      %c0_15 = arith.constant 0 : index
      %c0_16 = arith.constant 0 : index
      %22 = vector.load %arg9[%c0_15, %c0_16] : memref<1x128xf32, #tpu.memory_space<vmem>>, vector<1x128xf32>
      %23 = arith.mulf %5, %5 : vector<1024x128xf32>
      %cst_17 = arith.constant dense<0.000000e+00> : vector<128xf32>
      %24 = vector.multi_reduction <add>, %23, %cst_17 [0] : vector<1024x128xf32> to vector<128xf32>
      %25 = vector.shape_cast %24 : vector<128xf32> to vector<1x128xf32>
      %26 = arith.addf %22, %25 : vector<1x128xf32>
      %c0_18 = arith.constant 0 : index
      %c0_19 = arith.constant 0 : index
      %27 = vector.load %arg9[%c0_18, %c0_19] : memref<1x128xf32, #tpu.memory_space<vmem>>, vector<1x128xf32>
      tpu.vector_store %arg9[%c0_18, %c0_19], %26 {strides = array<i32>} : memref<1x128xf32, #tpu.memory_space<vmem>>, vector<1x128xf32>,
      %c0_20 = arith.constant 0 : index
      %c0_21 = arith.constant 0 : index
      %28 = vector.load %arg7[%c0_20, %c0_21] : memref<1024x128xf32, #tpu.memory_space<vmem>>, vector<1024x128xf32>
      tpu.vector_store %arg7[%c0_20, %c0_21], %5 {strides = array<i32>} : memref<1024x128xf32, #tpu.memory_space<vmem>>, vector<1024x128xf32>,
    } else {
    }
    %c1_i32 = arith.constant 1 : i32
    %14 = arith.cmpi eq, %arg0, %c1_i32 : i32
    %15 = arith.extui %14 : i1 to i32
    %c0_i32_9 = arith.constant 0 : i32
    %16 = arith.cmpi ne, %15, %c0_i32_9 : i32
    scf.if %16 {
      %c0_10 = arith.constant 0 : index
      %c0_11 = arith.constant 0 : index
      %17 = vector.load %arg8[%c0_10, %c0_11] : memref<1x128xf32, #tpu.memory_space<vmem>>, vector<1x128xf32>
      %cst_12 = arith.constant 1.22070313E-4 : f32
      %18 = vector.broadcast %cst_12 : f32 to vector<1x128xf32>
      %19 = arith.mulf %17, %18 : vector<1x128xf32>
      %c0_13 = arith.constant 0 : index
      %c0_14 = arith.constant 0 : index
      %20 = vector.load %arg9[%c0_13, %c0_14] : memref<1x128xf32, #tpu.memory_space<vmem>>, vector<1x128xf32>
      %cst_15 = arith.constant 1.22070313E-4 : f32
      %21 = vector.broadcast %cst_15 : f32 to vector<1x128xf32>
      %22 = arith.mulf %20, %21 : vector<1x128xf32>
      %23 = arith.mulf %19, %19 : vector<1x128xf32>
      %24 = arith.subf %22, %23 : vector<1x128xf32>
      %cst_16 = arith.constant 0.000000e+00 : f32
      %25 = vector.broadcast %cst_16 : f32 to vector<1x128xf32>
      %26 = arith.maximumf %24, %25 : vector<1x128xf32>
      %c0_17 = arith.constant 0 : index
      %c0_18 = arith.constant 0 : index
      %27 = vector.load %arg5[%c0_17, %c0_18] : memref<1x128xf32, #tpu.memory_space<vmem>>, vector<1x128xf32>
      %cst_19 = arith.constant 9.99999974E-6 : f32
      %28 = vector.broadcast %cst_19 : f32 to vector<1x128xf32>
      %29 = arith.addf %26, %28 : vector<1x128xf32>
      %30 = math.rsqrt %29 : vector<1x128xf32>
      %31 = arith.mulf %27, %30 : vector<1x128xf32>
      %c0_20 = arith.constant 0 : index
      %c0_21 = arith.constant 0 : index
      %32 = vector.load %arg6[%c0_20, %c0_21] : memref<1x128xf32, #tpu.memory_space<vmem>>, vector<1x128xf32>
      %33 = arith.mulf %19, %31 : vector<1x128xf32>
      %34 = arith.subf %32, %33 : vector<1x128xf32>
      %35 = vector.broadcast %31 : vector<1x128xf32> to vector<1024x128xf32>
      %36 = arith.mulf %5, %35 : vector<1024x128xf32>
      %37 = vector.broadcast %34 : vector<1x128xf32> to vector<1024x128xf32>
      %38 = arith.addf %36, %37 : vector<1024x128xf32>
      %cst_22 = arith.constant 0.000000e+00 : f32
      %39 = vector.broadcast %cst_22 : f32 to vector<1024x128xf32>
      %40 = arith.maximumf %38, %39 : vector<1024x128xf32>
      %c0_23 = arith.constant 0 : index
      %c0_24 = arith.constant 0 : index
      %41 = vector.load %arg7[%c0_23, %c0_24] : memref<1024x128xf32, #tpu.memory_space<vmem>>, vector<1024x128xf32>
      tpu.vector_store %arg7[%c0_23, %c0_24], %40 {strides = array<i32>} : memref<1024x128xf32, #tpu.memory_space<vmem>>, vector<1024x128xf32>,
    } else {
    }
    return
  }
  func.func @transform_0(%arg0: i32, %arg1: i32) -> (i32, i32) {
    %c0_i32 = arith.constant 0 : i32
    %c0_i32_0 = arith.constant 0 : i32
    return %arg1, %c0_i32 : i32, i32
  }
  func.func @transform_1(%arg0: i32, %arg1: i32) -> (i32, i32) {
    %c0_i32 = arith.constant 0 : i32
    %c0_i32_0 = arith.constant 0 : i32
    %c0_i32_1 = arith.constant 0 : i32
    return %c0_i32, %c0_i32_0 : i32, i32
  }
  func.func @transform_2(%arg0: i32, %arg1: i32) -> (i32, i32) {
    %c0_i32 = arith.constant 0 : i32
    %c0_i32_0 = arith.constant 0 : i32
    %c0_i32_1 = arith.constant 0 : i32
    return %c0_i32, %c0_i32_0 : i32, i32
  }
  func.func @transform_3(%arg0: i32, %arg1: i32) -> (i32, i32) {
    %c0_i32 = arith.constant 0 : i32
    %c0_i32_0 = arith.constant 0 : i32
    %c0_i32_1 = arith.constant 0 : i32
    return %c0_i32, %c0_i32_0 : i32, i32
  }
  func.func @transform_4(%arg0: i32, %arg1: i32) -> (i32, i32) {
    %c0_i32 = arith.constant 0 : i32
    %c0_i32_0 = arith.constant 0 : i32
    %c0_i32_1 = arith.constant 0 : i32
    return %c0_i32, %c0_i32_0 : i32, i32
  }
  func.func @transform_5(%arg0: i32, %arg1: i32) -> (i32, i32) {
    %c0_i32 = arith.constant 0 : i32
    %c0_i32_0 = arith.constant 0 : i32
    return %arg1, %c0_i32 : i32, i32
  }
}

module attributes {stable_mosaic.version = 11 : i64} {
  func.func @conv_bn_relu_kernel(%arg0: i32, %arg1: i32, %arg2: memref<1024x128xf32, #tpu.memory_space<vmem>>, %arg3: memref<128x128xf32, #tpu.memory_space<vmem>>, %arg4: memref<1x128xf32, #tpu.memory_space<vmem>>, %arg5: memref<1x128xf32, #tpu.memory_space<vmem>>, %arg6: memref<1x128xf32, #tpu.memory_space<vmem>>, %arg7: memref<1024x128xf32, #tpu.memory_space<vmem>>, %arg8: memref<1x128xf32, #tpu.memory_space<vmem>>, %arg9: memref<1x128xf32, #tpu.memory_space<vmem>>) attributes {dimension_semantics = [#tpu.dimension_semantics<arbitrary>, #tpu.dimension_semantics<arbitrary>], iteration_bounds = array<i64: 2, 2>, scalar_prefetch = 0 : i64, scratch_operands = 2 : i64, tpu.core_type = #tpu.core_type<tc>, window_params = [{transform_indices = @transform_0, window_bounds = array<i64: 1024, 128>}, {pipeline_mode = #tpu.pipeline_mode<synchronous>, transform_indices = @transform_1, window_bounds = array<i64: 128, 128>}, {pipeline_mode = #tpu.pipeline_mode<synchronous>, transform_indices = @transform_2, window_bounds = array<i64: 1, 128>}, {pipeline_mode = #tpu.pipeline_mode<synchronous>, transform_indices = @transform_3, window_bounds = array<i64: 1, 128>}, {pipeline_mode = #tpu.pipeline_mode<synchronous>, transform_indices = @transform_4, window_bounds = array<i64: 1, 128>}, {transform_indices = @transform_5, window_bounds = array<i64: 1024, 128>}]} {
    %c0 = arith.constant 0 : index
    %c0_0 = arith.constant 0 : index
    %0 = vector.load %arg2[%c0, %c0_0] : memref<1024x128xf32, #tpu.memory_space<vmem>>, vector<1024x128xf32>
    %c0_1 = arith.constant 0 : index
    %c0_2 = arith.constant 0 : index
    %1 = vector.load %arg3[%c0_1, %c0_2] : memref<128x128xf32, #tpu.memory_space<vmem>>, vector<128x128xf32>
    %cst = arith.constant dense<0.000000e+00> : vector<1024x128xf32>
    %2 = tpu.matmul %0, %1, %cst {dimension_numbers = #tpu.dot_dimension_numbers<[1], [0], [0], [1], [0, 0, 1, 1], [], []>} : vector<1024x128xf32>, vector<128x128xf32>, vector<1024x128xf32> -> vector<1024x128xf32>
    %c0_3 = arith.constant 0 : index
    %c0_4 = arith.constant 0 : index
    %3 = vector.load %arg4[%c0_3, %c0_4] : memref<1x128xf32, #tpu.memory_space<vmem>>, vector<1x128xf32>
    %4 = vector.broadcast %3 : vector<1x128xf32> to vector<1024x128xf32>
    %5 = arith.addf %2, %4 : vector<1024x128xf32>
    %c0_i32 = arith.constant 0 : i32
    %6 = arith.cmpi eq, %arg0, %c0_i32 : i32
    %c0_i32_5 = arith.constant 0 : i32
    %7 = arith.cmpi eq, %arg1, %c0_i32_5 : i32
    %8 = arith.andi %6, %7 : i1
    %9 = arith.extui %8 : i1 to i32
    %c0_i32_6 = arith.constant 0 : i32
    %10 = arith.cmpi ne, %9, %c0_i32_6 : i32
    scf.if %10 {
      %cst_10 = arith.constant 0.000000e+00 : f32
      %17 = vector.broadcast %cst_10 : f32 to vector<1x128xf32>
      %c0_11 = arith.constant 0 : index
      %c0_12 = arith.constant 0 : index
      %18 = vector.load %arg8[%c0_11, %c0_12] : memref<1x128xf32, #tpu.memory_space<vmem>>, vector<1x128xf32>
      tpu.vector_store %arg8[%c0_11, %c0_12], %17 {strides = array<i32>} : memref<1x128xf32, #tpu.memory_space<vmem>>, vector<1x128xf32>,
      %cst_13 = arith.constant 0.000000e+00 : f32
      %19 = vector.broadcast %cst_13 : f32 to vector<1x128xf32>
      %c0_14 = arith.constant 0 : index
      %c0_15 = arith.constant 0 : index
      %20 = vector.load %arg9[%c0_14, %c0_15] : memref<1x128xf32, #tpu.memory_space<vmem>>, vector<1x128xf32>
      tpu.vector_store %arg9[%c0_14, %c0_15], %19 {strides = array<i32>} : memref<1x128xf32, #tpu.memory_space<vmem>>, vector<1x128xf32>,
    } else {
    }
    %c0_i32_7 = arith.constant 0 : i32
    %11 = arith.cmpi eq, %arg0, %c0_i32_7 : i32
    %12 = arith.extui %11 : i1 to i32
    %c0_i32_8 = arith.constant 0 : i32
    %13 = arith.cmpi ne, %12, %c0_i32_8 : i32
    scf.if %13 {
      %c0_10 = arith.constant 0 : index
      %c0_11 = arith.constant 0 : index
      %17 = vector.load %arg8[%c0_10, %c0_11] : memref<1x128xf32, #tpu.memory_space<vmem>>, vector<1x128xf32>
      %cst_12 = arith.constant dense<0.000000e+00> : vector<128xf32>
      %18 = vector.multi_reduction <add>, %5, %cst_12 [0] : vector<1024x128xf32> to vector<128xf32>
      %19 = vector.shape_cast %18 : vector<128xf32> to vector<1x128xf32>
      %20 = arith.addf %17, %19 : vector<1x128xf32>
      %c0_13 = arith.constant 0 : index
      %c0_14 = arith.constant 0 : index
      %21 = vector.load %arg8[%c0_13, %c0_14] : memref<1x128xf32, #tpu.memory_space<vmem>>, vector<1x128xf32>
      tpu.vector_store %arg8[%c0_13, %c0_14], %20 {strides = array<i32>} : memref<1x128xf32, #tpu.memory_space<vmem>>, vector<1x128xf32>,
      %c0_15 = arith.constant 0 : index
      %c0_16 = arith.constant 0 : index
      %22 = vector.load %arg9[%c0_15, %c0_16] : memref<1x128xf32, #tpu.memory_space<vmem>>, vector<1x128xf32>
      %23 = arith.mulf %5, %5 : vector<1024x128xf32>
      %cst_17 = arith.constant dense<0.000000e+00> : vector<128xf32>
      %24 = vector.multi_reduction <add>, %23, %cst_17 [0] : vector<1024x128xf32> to vector<128xf32>
      %25 = vector.shape_cast %24 : vector<128xf32> to vector<1x128xf32>
      %26 = arith.addf %22, %25 : vector<1x128xf32>
      %c0_18 = arith.constant 0 : index
      %c0_19 = arith.constant 0 : index
      %27 = vector.load %arg9[%c0_18, %c0_19] : memref<1x128xf32, #tpu.memory_space<vmem>>, vector<1x128xf32>
      tpu.vector_store %arg9[%c0_18, %c0_19], %26 {strides = array<i32>} : memref<1x128xf32, #tpu.memory_space<vmem>>, vector<1x128xf32>,
      %c0_20 = arith.constant 0 : index
      %c0_21 = arith.constant 0 : index
      %28 = vector.load %arg7[%c0_20, %c0_21] : memref<1024x128xf32, #tpu.memory_space<vmem>>, vector<1024x128xf32>
      tpu.vector_store %arg7[%c0_20, %c0_21], %5 {strides = array<i32>} : memref<1024x128xf32, #tpu.memory_space<vmem>>, vector<1024x128xf32>,
    } else {
    }
    %c1_i32 = arith.constant 1 : i32
    %14 = arith.cmpi eq, %arg0, %c1_i32 : i32
    %15 = arith.extui %14 : i1 to i32
    %c0_i32_9 = arith.constant 0 : i32
    %16 = arith.cmpi ne, %15, %c0_i32_9 : i32
    scf.if %16 {
      %c0_10 = arith.constant 0 : index
      %c0_11 = arith.constant 0 : index
      %17 = vector.load %arg8[%c0_10, %c0_11] : memref<1x128xf32, #tpu.memory_space<vmem>>, vector<1x128xf32>
      %cst_12 = arith.constant 4.8828125E-4 : f32
      %18 = vector.broadcast %cst_12 : f32 to vector<1x128xf32>
      %19 = arith.mulf %17, %18 : vector<1x128xf32>
      %c0_13 = arith.constant 0 : index
      %c0_14 = arith.constant 0 : index
      %20 = vector.load %arg9[%c0_13, %c0_14] : memref<1x128xf32, #tpu.memory_space<vmem>>, vector<1x128xf32>
      %cst_15 = arith.constant 4.8828125E-4 : f32
      %21 = vector.broadcast %cst_15 : f32 to vector<1x128xf32>
      %22 = arith.mulf %20, %21 : vector<1x128xf32>
      %23 = arith.mulf %19, %19 : vector<1x128xf32>
      %24 = arith.subf %22, %23 : vector<1x128xf32>
      %cst_16 = arith.constant 0.000000e+00 : f32
      %25 = vector.broadcast %cst_16 : f32 to vector<1x128xf32>
      %26 = arith.maximumf %24, %25 : vector<1x128xf32>
      %c0_17 = arith.constant 0 : index
      %c0_18 = arith.constant 0 : index
      %27 = vector.load %arg5[%c0_17, %c0_18] : memref<1x128xf32, #tpu.memory_space<vmem>>, vector<1x128xf32>
      %cst_19 = arith.constant 9.99999974E-6 : f32
      %28 = vector.broadcast %cst_19 : f32 to vector<1x128xf32>
      %29 = arith.addf %26, %28 : vector<1x128xf32>
      %30 = math.rsqrt %29 : vector<1x128xf32>
      %31 = arith.mulf %27, %30 : vector<1x128xf32>
      %c0_20 = arith.constant 0 : index
      %c0_21 = arith.constant 0 : index
      %32 = vector.load %arg6[%c0_20, %c0_21] : memref<1x128xf32, #tpu.memory_space<vmem>>, vector<1x128xf32>
      %33 = arith.mulf %19, %31 : vector<1x128xf32>
      %34 = arith.subf %32, %33 : vector<1x128xf32>
      %35 = vector.broadcast %31 : vector<1x128xf32> to vector<1024x128xf32>
      %36 = arith.mulf %5, %35 : vector<1024x128xf32>
      %37 = vector.broadcast %34 : vector<1x128xf32> to vector<1024x128xf32>
      %38 = arith.addf %36, %37 : vector<1024x128xf32>
      %cst_22 = arith.constant 0.000000e+00 : f32
      %39 = vector.broadcast %cst_22 : f32 to vector<1024x128xf32>
      %40 = arith.maximumf %38, %39 : vector<1024x128xf32>
      %c0_23 = arith.constant 0 : index
      %c0_24 = arith.constant 0 : index
      %41 = vector.load %arg7[%c0_23, %c0_24] : memref<1024x128xf32, #tpu.memory_space<vmem>>, vector<1024x128xf32>
      tpu.vector_store %arg7[%c0_23, %c0_24], %40 {strides = array<i32>} : memref<1024x128xf32, #tpu.memory_space<vmem>>, vector<1024x128xf32>,
    } else {
    }
    return
  }
  func.func @transform_0(%arg0: i32, %arg1: i32) -> (i32, i32) {
    %c0_i32 = arith.constant 0 : i32
    %c0_i32_0 = arith.constant 0 : i32
    return %arg1, %c0_i32 : i32, i32
  }
  func.func @transform_1(%arg0: i32, %arg1: i32) -> (i32, i32) {
    %c0_i32 = arith.constant 0 : i32
    %c0_i32_0 = arith.constant 0 : i32
    %c0_i32_1 = arith.constant 0 : i32
    return %c0_i32, %c0_i32_0 : i32, i32
  }
  func.func @transform_2(%arg0: i32, %arg1: i32) -> (i32, i32) {
    %c0_i32 = arith.constant 0 : i32
    %c0_i32_0 = arith.constant 0 : i32
    %c0_i32_1 = arith.constant 0 : i32
    return %c0_i32, %c0_i32_0 : i32, i32
  }
  func.func @transform_3(%arg0: i32, %arg1: i32) -> (i32, i32) {
    %c0_i32 = arith.constant 0 : i32
    %c0_i32_0 = arith.constant 0 : i32
    %c0_i32_1 = arith.constant 0 : i32
    return %c0_i32, %c0_i32_0 : i32, i32
  }
  func.func @transform_4(%arg0: i32, %arg1: i32) -> (i32, i32) {
    %c0_i32 = arith.constant 0 : i32
    %c0_i32_0 = arith.constant 0 : i32
    %c0_i32_1 = arith.constant 0 : i32
    return %c0_i32, %c0_i32_0 : i32, i32
  }
  func.func @transform_5(%arg0: i32, %arg1: i32) -> (i32, i32) {
    %c0_i32 = arith.constant 0 : i32
    %c0_i32_0 = arith.constant 0 : i32
    return %arg1, %c0_i32 : i32, i32
  }
}

module attributes {stable_mosaic.version = 11 : i64} {
  func.func @conv_bn_relu_kernel(%arg0: i32, %arg1: i32, %arg2: memref<512x256xf32, #tpu.memory_space<vmem>>, %arg3: memref<256x128xf32, #tpu.memory_space<vmem>>, %arg4: memref<1x128xf32, #tpu.memory_space<vmem>>, %arg5: memref<1x128xf32, #tpu.memory_space<vmem>>, %arg6: memref<1x128xf32, #tpu.memory_space<vmem>>, %arg7: memref<512x128xf32, #tpu.memory_space<vmem>>, %arg8: memref<1x128xf32, #tpu.memory_space<vmem>>, %arg9: memref<1x128xf32, #tpu.memory_space<vmem>>) attributes {dimension_semantics = [#tpu.dimension_semantics<arbitrary>, #tpu.dimension_semantics<arbitrary>], iteration_bounds = array<i64: 2, 1>, scalar_prefetch = 0 : i64, scratch_operands = 2 : i64, tpu.core_type = #tpu.core_type<tc>, window_params = [{transform_indices = @transform_0, window_bounds = array<i64: 512, 256>}, {pipeline_mode = #tpu.pipeline_mode<synchronous>, transform_indices = @transform_1, window_bounds = array<i64: 256, 128>}, {pipeline_mode = #tpu.pipeline_mode<synchronous>, transform_indices = @transform_2, window_bounds = array<i64: 1, 128>}, {pipeline_mode = #tpu.pipeline_mode<synchronous>, transform_indices = @transform_3, window_bounds = array<i64: 1, 128>}, {pipeline_mode = #tpu.pipeline_mode<synchronous>, transform_indices = @transform_4, window_bounds = array<i64: 1, 128>}, {transform_indices = @transform_5, window_bounds = array<i64: 512, 128>}]} {
    %c0 = arith.constant 0 : index
    %c0_0 = arith.constant 0 : index
    %0 = vector.load %arg2[%c0, %c0_0] : memref<512x256xf32, #tpu.memory_space<vmem>>, vector<512x256xf32>
    %c0_1 = arith.constant 0 : index
    %c0_2 = arith.constant 0 : index
    %1 = vector.load %arg3[%c0_1, %c0_2] : memref<256x128xf32, #tpu.memory_space<vmem>>, vector<256x128xf32>
    %cst = arith.constant dense<0.000000e+00> : vector<512x128xf32>
    %2 = tpu.matmul %0, %1, %cst {dimension_numbers = #tpu.dot_dimension_numbers<[1], [0], [0], [1], [0, 0, 1, 1], [], []>} : vector<512x256xf32>, vector<256x128xf32>, vector<512x128xf32> -> vector<512x128xf32>
    %c0_3 = arith.constant 0 : index
    %c0_4 = arith.constant 0 : index
    %3 = vector.load %arg4[%c0_3, %c0_4] : memref<1x128xf32, #tpu.memory_space<vmem>>, vector<1x128xf32>
    %4 = vector.broadcast %3 : vector<1x128xf32> to vector<512x128xf32>
    %5 = arith.addf %2, %4 : vector<512x128xf32>
    %c0_i32 = arith.constant 0 : i32
    %6 = arith.cmpi eq, %arg0, %c0_i32 : i32
    %c0_i32_5 = arith.constant 0 : i32
    %7 = arith.cmpi eq, %arg1, %c0_i32_5 : i32
    %8 = arith.andi %6, %7 : i1
    %9 = arith.extui %8 : i1 to i32
    %c0_i32_6 = arith.constant 0 : i32
    %10 = arith.cmpi ne, %9, %c0_i32_6 : i32
    scf.if %10 {
      %cst_10 = arith.constant 0.000000e+00 : f32
      %17 = vector.broadcast %cst_10 : f32 to vector<1x128xf32>
      %c0_11 = arith.constant 0 : index
      %c0_12 = arith.constant 0 : index
      %18 = vector.load %arg8[%c0_11, %c0_12] : memref<1x128xf32, #tpu.memory_space<vmem>>, vector<1x128xf32>
      tpu.vector_store %arg8[%c0_11, %c0_12], %17 {strides = array<i32>} : memref<1x128xf32, #tpu.memory_space<vmem>>, vector<1x128xf32>,
      %cst_13 = arith.constant 0.000000e+00 : f32
      %19 = vector.broadcast %cst_13 : f32 to vector<1x128xf32>
      %c0_14 = arith.constant 0 : index
      %c0_15 = arith.constant 0 : index
      %20 = vector.load %arg9[%c0_14, %c0_15] : memref<1x128xf32, #tpu.memory_space<vmem>>, vector<1x128xf32>
      tpu.vector_store %arg9[%c0_14, %c0_15], %19 {strides = array<i32>} : memref<1x128xf32, #tpu.memory_space<vmem>>, vector<1x128xf32>,
    } else {
    }
    %c0_i32_7 = arith.constant 0 : i32
    %11 = arith.cmpi eq, %arg0, %c0_i32_7 : i32
    %12 = arith.extui %11 : i1 to i32
    %c0_i32_8 = arith.constant 0 : i32
    %13 = arith.cmpi ne, %12, %c0_i32_8 : i32
    scf.if %13 {
      %c0_10 = arith.constant 0 : index
      %c0_11 = arith.constant 0 : index
      %17 = vector.load %arg8[%c0_10, %c0_11] : memref<1x128xf32, #tpu.memory_space<vmem>>, vector<1x128xf32>
      %cst_12 = arith.constant dense<0.000000e+00> : vector<128xf32>
      %18 = vector.multi_reduction <add>, %5, %cst_12 [0] : vector<512x128xf32> to vector<128xf32>
      %19 = vector.shape_cast %18 : vector<128xf32> to vector<1x128xf32>
      %20 = arith.addf %17, %19 : vector<1x128xf32>
      %c0_13 = arith.constant 0 : index
      %c0_14 = arith.constant 0 : index
      %21 = vector.load %arg8[%c0_13, %c0_14] : memref<1x128xf32, #tpu.memory_space<vmem>>, vector<1x128xf32>
      tpu.vector_store %arg8[%c0_13, %c0_14], %20 {strides = array<i32>} : memref<1x128xf32, #tpu.memory_space<vmem>>, vector<1x128xf32>,
      %c0_15 = arith.constant 0 : index
      %c0_16 = arith.constant 0 : index
      %22 = vector.load %arg9[%c0_15, %c0_16] : memref<1x128xf32, #tpu.memory_space<vmem>>, vector<1x128xf32>
      %23 = arith.mulf %5, %5 : vector<512x128xf32>
      %cst_17 = arith.constant dense<0.000000e+00> : vector<128xf32>
      %24 = vector.multi_reduction <add>, %23, %cst_17 [0] : vector<512x128xf32> to vector<128xf32>
      %25 = vector.shape_cast %24 : vector<128xf32> to vector<1x128xf32>
      %26 = arith.addf %22, %25 : vector<1x128xf32>
      %c0_18 = arith.constant 0 : index
      %c0_19 = arith.constant 0 : index
      %27 = vector.load %arg9[%c0_18, %c0_19] : memref<1x128xf32, #tpu.memory_space<vmem>>, vector<1x128xf32>
      tpu.vector_store %arg9[%c0_18, %c0_19], %26 {strides = array<i32>} : memref<1x128xf32, #tpu.memory_space<vmem>>, vector<1x128xf32>,
      %c0_20 = arith.constant 0 : index
      %c0_21 = arith.constant 0 : index
      %28 = vector.load %arg7[%c0_20, %c0_21] : memref<512x128xf32, #tpu.memory_space<vmem>>, vector<512x128xf32>
      tpu.vector_store %arg7[%c0_20, %c0_21], %5 {strides = array<i32>} : memref<512x128xf32, #tpu.memory_space<vmem>>, vector<512x128xf32>,
    } else {
    }
    %c1_i32 = arith.constant 1 : i32
    %14 = arith.cmpi eq, %arg0, %c1_i32 : i32
    %15 = arith.extui %14 : i1 to i32
    %c0_i32_9 = arith.constant 0 : i32
    %16 = arith.cmpi ne, %15, %c0_i32_9 : i32
    scf.if %16 {
      %c0_10 = arith.constant 0 : index
      %c0_11 = arith.constant 0 : index
      %17 = vector.load %arg8[%c0_10, %c0_11] : memref<1x128xf32, #tpu.memory_space<vmem>>, vector<1x128xf32>
      %cst_12 = arith.constant 0.001953125 : f32
      %18 = vector.broadcast %cst_12 : f32 to vector<1x128xf32>
      %19 = arith.mulf %17, %18 : vector<1x128xf32>
      %c0_13 = arith.constant 0 : index
      %c0_14 = arith.constant 0 : index
      %20 = vector.load %arg9[%c0_13, %c0_14] : memref<1x128xf32, #tpu.memory_space<vmem>>, vector<1x128xf32>
      %cst_15 = arith.constant 0.001953125 : f32
      %21 = vector.broadcast %cst_15 : f32 to vector<1x128xf32>
      %22 = arith.mulf %20, %21 : vector<1x128xf32>
      %23 = arith.mulf %19, %19 : vector<1x128xf32>
      %24 = arith.subf %22, %23 : vector<1x128xf32>
      %cst_16 = arith.constant 0.000000e+00 : f32
      %25 = vector.broadcast %cst_16 : f32 to vector<1x128xf32>
      %26 = arith.maximumf %24, %25 : vector<1x128xf32>
      %c0_17 = arith.constant 0 : index
      %c0_18 = arith.constant 0 : index
      %27 = vector.load %arg5[%c0_17, %c0_18] : memref<1x128xf32, #tpu.memory_space<vmem>>, vector<1x128xf32>
      %cst_19 = arith.constant 9.99999974E-6 : f32
      %28 = vector.broadcast %cst_19 : f32 to vector<1x128xf32>
      %29 = arith.addf %26, %28 : vector<1x128xf32>
      %30 = math.rsqrt %29 : vector<1x128xf32>
      %31 = arith.mulf %27, %30 : vector<1x128xf32>
      %c0_20 = arith.constant 0 : index
      %c0_21 = arith.constant 0 : index
      %32 = vector.load %arg6[%c0_20, %c0_21] : memref<1x128xf32, #tpu.memory_space<vmem>>, vector<1x128xf32>
      %33 = arith.mulf %19, %31 : vector<1x128xf32>
      %34 = arith.subf %32, %33 : vector<1x128xf32>
      %35 = vector.broadcast %31 : vector<1x128xf32> to vector<512x128xf32>
      %36 = arith.mulf %5, %35 : vector<512x128xf32>
      %37 = vector.broadcast %34 : vector<1x128xf32> to vector<512x128xf32>
      %38 = arith.addf %36, %37 : vector<512x128xf32>
      %cst_22 = arith.constant 0.000000e+00 : f32
      %39 = vector.broadcast %cst_22 : f32 to vector<512x128xf32>
      %40 = arith.maximumf %38, %39 : vector<512x128xf32>
      %c0_23 = arith.constant 0 : index
      %c0_24 = arith.constant 0 : index
      %41 = vector.load %arg7[%c0_23, %c0_24] : memref<512x128xf32, #tpu.memory_space<vmem>>, vector<512x128xf32>
      tpu.vector_store %arg7[%c0_23, %c0_24], %40 {strides = array<i32>} : memref<512x128xf32, #tpu.memory_space<vmem>>, vector<512x128xf32>,
    } else {
    }
    return
  }
  func.func @transform_0(%arg0: i32, %arg1: i32) -> (i32, i32) {
    %c0_i32 = arith.constant 0 : i32
    %c0_i32_0 = arith.constant 0 : i32
    return %arg1, %c0_i32 : i32, i32
  }
  func.func @transform_1(%arg0: i32, %arg1: i32) -> (i32, i32) {
    %c0_i32 = arith.constant 0 : i32
    %c0_i32_0 = arith.constant 0 : i32
    %c0_i32_1 = arith.constant 0 : i32
    return %c0_i32, %c0_i32_0 : i32, i32
  }
  func.func @transform_2(%arg0: i32, %arg1: i32) -> (i32, i32) {
    %c0_i32 = arith.constant 0 : i32
    %c0_i32_0 = arith.constant 0 : i32
    %c0_i32_1 = arith.constant 0 : i32
    return %c0_i32, %c0_i32_0 : i32, i32
  }
  func.func @transform_3(%arg0: i32, %arg1: i32) -> (i32, i32) {
    %c0_i32 = arith.constant 0 : i32
    %c0_i32_0 = arith.constant 0 : i32
    %c0_i32_1 = arith.constant 0 : i32
    return %c0_i32, %c0_i32_0 : i32, i32
  }
  func.func @transform_4(%arg0: i32, %arg1: i32) -> (i32, i32) {
    %c0_i32 = arith.constant 0 : i32
    %c0_i32_0 = arith.constant 0 : i32
    %c0_i32_1 = arith.constant 0 : i32
    return %c0_i32, %c0_i32_0 : i32, i32
  }
  func.func @transform_5(%arg0: i32, %arg1: i32) -> (i32, i32) {
    %c0_i32 = arith.constant 0 : i32
    %c0_i32_0 = arith.constant 0 : i32
    return %arg1, %c0_i32 : i32, i32
  }
}

module attributes {stable_mosaic.version = 11 : i64} {
  func.func @conv4_linear_kernel(%arg0: i32, %arg1: memref<128x384xf32, #tpu.memory_space<vmem>>, %arg2: memref<384x128xf32, #tpu.memory_space<vmem>>, %arg3: memref<1x128xf32, #tpu.memory_space<vmem>>, %arg4: memref<1x128xf32, #tpu.memory_space<vmem>>, %arg5: memref<1x128xf32, #tpu.memory_space<vmem>>, %arg6: memref<64x128xf32, #tpu.memory_space<vmem>>, %arg7: memref<1x1xf32, #tpu.memory_space<vmem>>, %arg8: memref<2x1xf32, #tpu.memory_space<vmem>>, %arg9: memref<2x1xf32, #tpu.memory_space<vmem>>, %arg10: memref<1x128xf32, #tpu.memory_space<vmem>>, %arg11: memref<1x128xf32, #tpu.memory_space<vmem>>) attributes {dimension_semantics = [#tpu.dimension_semantics<arbitrary>], iteration_bounds = array<i64: 2>, scalar_prefetch = 0 : i64, scratch_operands = 2 : i64, tpu.core_type = #tpu.core_type<tc>, window_params = [{pipeline_mode = #tpu.pipeline_mode<synchronous>, transform_indices = @transform_0, window_bounds = array<i64: 128, 384>}, {pipeline_mode = #tpu.pipeline_mode<synchronous>, transform_indices = @transform_1, window_bounds = array<i64: 384, 128>}, {pipeline_mode = #tpu.pipeline_mode<synchronous>, transform_indices = @transform_2, window_bounds = array<i64: 1, 128>}, {pipeline_mode = #tpu.pipeline_mode<synchronous>, transform_indices = @transform_3, window_bounds = array<i64: 1, 128>}, {pipeline_mode = #tpu.pipeline_mode<synchronous>, transform_indices = @transform_4, window_bounds = array<i64: 1, 128>}, {pipeline_mode = #tpu.pipeline_mode<synchronous>, transform_indices = @transform_5, window_bounds = array<i64: 64, 128>}, {pipeline_mode = #tpu.pipeline_mode<synchronous>, transform_indices = @transform_6, window_bounds = array<i64: 1, 1>}, {pipeline_mode = #tpu.pipeline_mode<synchronous>, transform_indices = @transform_7, window_bounds = array<i64: 2, 1>}, {pipeline_mode = #tpu.pipeline_mode<synchronous>, transform_indices = @transform_8, window_bounds = array<i64: 2, 1>}]} {
    %c0 = arith.constant 0 : index
    %c0_0 = arith.constant 0 : index
    %0 = vector.load %arg1[%c0, %c0_0] : memref<128x384xf32, #tpu.memory_space<vmem>>, vector<128x384xf32>
    %c0_1 = arith.constant 0 : index
    %c0_2 = arith.constant 0 : index
    %1 = vector.load %arg2[%c0_1, %c0_2] : memref<384x128xf32, #tpu.memory_space<vmem>>, vector<384x128xf32>
    %cst = arith.constant dense<0.000000e+00> : vector<128x128xf32>
    %2 = tpu.matmul %0, %1, %cst {dimension_numbers = #tpu.dot_dimension_numbers<[1], [0], [0], [1], [0, 0, 1, 1], [], []>} : vector<128x384xf32>, vector<384x128xf32>, vector<128x128xf32> -> vector<128x128xf32>
    %c0_3 = arith.constant 0 : index
    %c0_4 = arith.constant 0 : index
    %3 = vector.load %arg3[%c0_3, %c0_4] : memref<1x128xf32, #tpu.memory_space<vmem>>, vector<1x128xf32>
    %4 = vector.broadcast %3 : vector<1x128xf32> to vector<128x128xf32>
    %5 = arith.addf %2, %4 : vector<128x128xf32>
    %c0_i32 = arith.constant 0 : i32
    %6 = arith.cmpi eq, %arg0, %c0_i32 : i32
    %7 = arith.extui %6 : i1 to i32
    %c0_i32_5 = arith.constant 0 : i32
    %8 = arith.cmpi ne, %7, %c0_i32_5 : i32
    scf.if %8 {
      %cst_7 = arith.constant dense<0.000000e+00> : vector<128xf32>
      %12 = vector.multi_reduction <add>, %5, %cst_7 [0] : vector<128x128xf32> to vector<128xf32>
      %13 = vector.shape_cast %12 : vector<128xf32> to vector<1x128xf32>
      %c0_8 = arith.constant 0 : index
      %c0_9 = arith.constant 0 : index
      %14 = vector.load %arg10[%c0_8, %c0_9] : memref<1x128xf32, #tpu.memory_space<vmem>>, vector<1x128xf32>
      tpu.vector_store %arg10[%c0_8, %c0_9], %13 {strides = array<i32>} : memref<1x128xf32, #tpu.memory_space<vmem>>, vector<1x128xf32>,
      %15 = arith.mulf %5, %5 : vector<128x128xf32>
      %cst_10 = arith.constant dense<0.000000e+00> : vector<128xf32>
      %16 = vector.multi_reduction <add>, %15, %cst_10 [0] : vector<128x128xf32> to vector<128xf32>
      %17 = vector.shape_cast %16 : vector<128xf32> to vector<1x128xf32>
      %c0_11 = arith.constant 0 : index
      %c0_12 = arith.constant 0 : index
      %18 = vector.load %arg11[%c0_11, %c0_12] : memref<1x128xf32, #tpu.memory_space<vmem>>, vector<1x128xf32>
      tpu.vector_store %arg11[%c0_11, %c0_12], %17 {strides = array<i32>} : memref<1x128xf32, #tpu.memory_space<vmem>>, vector<1x128xf32>,
      %cst_13 = arith.constant 0.000000e+00 : f32
      %19 = vector.broadcast %cst_13 : f32 to vector<2x1xf32>
      %c0_14 = arith.constant 0 : index
      %c0_15 = arith.constant 0 : index
      %20 = vector.load %arg8[%c0_14, %c0_15] : memref<2x1xf32, #tpu.memory_space<vmem>>, vector<2x1xf32>
      tpu.vector_store %arg8[%c0_14, %c0_15], %19 {strides = array<i32>} : memref<2x1xf32, #tpu.memory_space<vmem>>, vector<2x1xf32>,
      %cst_16 = arith.constant 0.000000e+00 : f32
      %21 = vector.broadcast %cst_16 : f32 to vector<2x1xf32>
      %c0_17 = arith.constant 0 : index
      %c0_18 = arith.constant 0 : index
      %22 = vector.load %arg9[%c0_17, %c0_18] : memref<2x1xf32, #tpu.memory_space<vmem>>, vector<2x1xf32>
      tpu.vector_store %arg9[%c0_17, %c0_18], %21 {strides = array<i32>} : memref<2x1xf32, #tpu.memory_space<vmem>>, vector<2x1xf32>,
    } else {
    }
    %c1_i32 = arith.constant 1 : i32
    %9 = arith.cmpi eq, %arg0, %c1_i32 : i32
    %10 = arith.extui %9 : i1 to i32
    %c0_i32_6 = arith.constant 0 : i32
    %11 = arith.cmpi ne, %10, %c0_i32_6 : i32
    scf.if %11 {
      %c0_7 = arith.constant 0 : index
      %c0_8 = arith.constant 0 : index
      %12 = vector.load %arg10[%c0_7, %c0_8] : memref<1x128xf32, #tpu.memory_space<vmem>>, vector<1x128xf32>
      %cst_9 = arith.constant 7.812500e-03 : f32
      %13 = vector.broadcast %cst_9 : f32 to vector<1x128xf32>
      %14 = arith.mulf %12, %13 : vector<1x128xf32>
      %c0_10 = arith.constant 0 : index
      %c0_11 = arith.constant 0 : index
      %15 = vector.load %arg11[%c0_10, %c0_11] : memref<1x128xf32, #tpu.memory_space<vmem>>, vector<1x128xf32>
      %cst_12 = arith.constant 7.812500e-03 : f32
      %16 = vector.broadcast %cst_12 : f32 to vector<1x128xf32>
      %17 = arith.mulf %15, %16 : vector<1x128xf32>
      %18 = arith.mulf %14, %14 : vector<1x128xf32>
      %19 = arith.subf %17, %18 : vector<1x128xf32>
      %cst_13 = arith.constant 0.000000e+00 : f32
      %20 = vector.broadcast %cst_13 : f32 to vector<1x128xf32>
      %21 = arith.maximumf %19, %20 : vector<1x128xf32>
      %c0_14 = arith.constant 0 : index
      %c0_15 = arith.constant 0 : index
      %22 = vector.load %arg4[%c0_14, %c0_15] : memref<1x128xf32, #tpu.memory_space<vmem>>, vector<1x128xf32>
      %cst_16 = arith.constant 9.99999974E-6 : f32
      %23 = vector.broadcast %cst_16 : f32 to vector<1x128xf32>
      %24 = arith.addf %21, %23 : vector<1x128xf32>
      %25 = math.rsqrt %24 : vector<1x128xf32>
      %26 = arith.mulf %22, %25 : vector<1x128xf32>
      %c0_17 = arith.constant 0 : index
      %c0_18 = arith.constant 0 : index
      %27 = vector.load %arg5[%c0_17, %c0_18] : memref<1x128xf32, #tpu.memory_space<vmem>>, vector<1x128xf32>
      %28 = arith.mulf %14, %26 : vector<1x128xf32>
      %29 = arith.subf %27, %28 : vector<1x128xf32>
      %30 = vector.broadcast %26 : vector<1x128xf32> to vector<128x128xf32>
      %31 = arith.mulf %5, %30 : vector<128x128xf32>
      %32 = vector.broadcast %29 : vector<1x128xf32> to vector<128x128xf32>
      %33 = arith.addf %31, %32 : vector<128x128xf32>
      %cst_19 = arith.constant 0.000000e+00 : f32
      %34 = vector.broadcast %cst_19 : f32 to vector<128x128xf32>
      %35 = arith.maximumf %33, %34 : vector<128x128xf32>
      %36 = vector.shape_cast %35 : vector<128x128xf32> to vector<2x64x128xf32>
      %c0_20 = arith.constant 0 : index
      %c0_21 = arith.constant 0 : index
      %37 = vector.load %arg6[%c0_20, %c0_21] : memref<64x128xf32, #tpu.memory_space<vmem>>, vector<64x128xf32>
      %38 = vector.shape_cast %37 : vector<64x128xf32> to vector<1x64x128xf32>
      %39 = vector.broadcast %38 : vector<1x64x128xf32> to vector<2x64x128xf32>
      %40 = arith.mulf %36, %39 : vector<2x64x128xf32>
      %cst_22 = arith.constant dense<0.000000e+00> : vector<2x64xf32>
      %41 = vector.multi_reduction <add>, %40, %cst_22 [2] : vector<2x64x128xf32> to vector<2x64xf32>
      %cst_23 = arith.constant dense<0.000000e+00> : vector<2xf32>
      %42 = vector.multi_reduction <add>, %41, %cst_23 [1] : vector<2x64xf32> to vector<2xf32>
      %43 = vector.shape_cast %42 : vector<2xf32> to vector<2x1xf32>
      %c0_24 = arith.constant 0 : index
      %c0_25 = arith.constant 0 : index
      %44 = vector.load %arg7[%c0_24, %c0_25] : memref<1x1xf32, #tpu.memory_space<vmem>>, vector<1x1xf32>
      %45 = vector.broadcast %44 : vector<1x1xf32> to vector<2x1xf32>
      %46 = arith.addf %43, %45 : vector<2x1xf32>
      %c0_26 = arith.constant 0 : index
      %c0_27 = arith.constant 0 : index
      %47 = vector.load %arg8[%c0_26, %c0_27] : memref<2x1xf32, #tpu.memory_space<vmem>>, vector<2x1xf32>
      tpu.vector_store %arg8[%c0_26, %c0_27], %46 {strides = array<i32>} : memref<2x1xf32, #tpu.memory_space<vmem>>, vector<2x1xf32>,
      %48 = math.absf %46 : vector<2x1xf32>
      %cst_28 = arith.constant 0.000000e+00 : f32
      %49 = vector.broadcast %cst_28 : f32 to vector<2x1xf32>
      %50 = arith.subf %49, %48 : vector<2x1xf32>
      %51 = math.exp %50 : vector<2x1xf32>
      %cst_29 = arith.constant 0.000000e+00 : f32
      %52 = vector.broadcast %cst_29 : f32 to vector<2x1xf32>
      %53 = arith.cmpf oge, %46, %52 : vector<2x1xf32>
      %cst_30 = arith.constant 1.000000e+00 : f32
      %54 = vector.broadcast %cst_30 : f32 to vector<2x1xf32>
      %55 = arith.addf %54, %51 : vector<2x1xf32>
      %cst_31 = arith.constant 1.000000e+00 : f32
      %56 = vector.broadcast %cst_31 : f32 to vector<2x1xf32>
      %57 = arith.divf %56, %55 : vector<2x1xf32>
      %cst_32 = arith.constant 1.000000e+00 : f32
      %58 = vector.broadcast %cst_32 : f32 to vector<2x1xf32>
      %59 = arith.addf %58, %51 : vector<2x1xf32>
      %60 = arith.divf %51, %59 : vector<2x1xf32>
      %61 = arith.select %53, %57, %60 : vector<2x1xi1>, vector<2x1xf32>
      %c0_33 = arith.constant 0 : index
      %c0_34 = arith.constant 0 : index
      %62 = vector.load %arg9[%c0_33, %c0_34] : memref<2x1xf32, #tpu.memory_space<vmem>>, vector<2x1xf32>
      tpu.vector_store %arg9[%c0_33, %c0_34], %61 {strides = array<i32>} : memref<2x1xf32, #tpu.memory_space<vmem>>, vector<2x1xf32>,
    } else {
    }
    return
  }
  func.func @transform_0(%arg0: i32) -> (i32, i32) {
    %c0_i32 = arith.constant 0 : i32
    %c0_i32_0 = arith.constant 0 : i32
    %c0_i32_1 = arith.constant 0 : i32
    return %c0_i32, %c0_i32_0 : i32, i32
  }
  func.func @transform_1(%arg0: i32) -> (i32, i32) {
    %c0_i32 = arith.constant 0 : i32
    %c0_i32_0 = arith.constant 0 : i32
    %c0_i32_1 = arith.constant 0 : i32
    return %c0_i32, %c0_i32_0 : i32, i32
  }
  func.func @transform_2(%arg0: i32) -> (i32, i32) {
    %c0_i32 = arith.constant 0 : i32
    %c0_i32_0 = arith.constant 0 : i32
    %c0_i32_1 = arith.constant 0 : i32
    return %c0_i32, %c0_i32_0 : i32, i32
  }
  func.func @transform_3(%arg0: i32) -> (i32, i32) {
    %c0_i32 = arith.constant 0 : i32
    %c0_i32_0 = arith.constant 0 : i32
    %c0_i32_1 = arith.constant 0 : i32
    return %c0_i32, %c0_i32_0 : i32, i32
  }
  func.func @transform_4(%arg0: i32) -> (i32, i32) {
    %c0_i32 = arith.constant 0 : i32
    %c0_i32_0 = arith.constant 0 : i32
    %c0_i32_1 = arith.constant 0 : i32
    return %c0_i32, %c0_i32_0 : i32, i32
  }
  func.func @transform_5(%arg0: i32) -> (i32, i32) {
    %c0_i32 = arith.constant 0 : i32
    %c0_i32_0 = arith.constant 0 : i32
    %c0_i32_1 = arith.constant 0 : i32
    return %c0_i32, %c0_i32_0 : i32, i32
  }
  func.func @transform_6(%arg0: i32) -> (i32, i32) {
    %c0_i32 = arith.constant 0 : i32
    %c0_i32_0 = arith.constant 0 : i32
    %c0_i32_1 = arith.constant 0 : i32
    return %c0_i32, %c0_i32_0 : i32, i32
  }
  func.func @transform_7(%arg0: i32) -> (i32, i32) {
    %c0_i32 = arith.constant 0 : i32
    %c0_i32_0 = arith.constant 0 : i32
    %c0_i32_1 = arith.constant 0 : i32
    return %c0_i32, %c0_i32_0 : i32, i32
  }
  func.func @transform_8(%arg0: i32) -> (i32, i32) {
    %c0_i32 = arith.constant 0 : i32
    %c0_i32_0 = arith.constant 0 : i32
    %c0_i32_1 = arith.constant 0 : i32
    return %c0_i32, %c0_i32_0 : i32, i32
  }
}

</mosaic_0001>

<llo_original>
// kernel: dogs_cats_forward.4
$region0: #{dogs_cats_forward.4}
  #allocation0 [shape = 'u32[]', space=smem, size = 0x4, offset = 0x4, fixed_abs, tag = 'smem constant byte address 0x4 - core index']
  #allocation1 [shape = 'u32[144,128]{1,0:T(1,128)}', space=vmem, size = 0x12000, scoped, tag = 'internal scratch']
  #allocation2 [shape = 'f32[1,128]{1,0:T(1,128)}', space=vmem, size = 0x200, scoped, tag = 'scratch operand']
  #allocation3 [shape = 'f32[1,128]{1,0:T(1,128)}', space=vmem, size = 0x200, scoped, tag = 'scratch operand']
  %s0 = inlined_call_operand.vmem [shape: f32[8192,128], index: 0, kind: input, shape index: {}]
  %s1 = inlined_call_operand.vmem [shape: f32[128,128], index: 1, kind: input, shape index: {}]
  %s2 = inlined_call_operand.vmem [shape: f32[1,128], index: 2, kind: input, shape index: {}]
  %s3 = inlined_call_operand.vmem [shape: f32[1,128], index: 3, kind: input, shape index: {}]
  %s4 = inlined_call_operand.vmem [shape: f32[1,128], index: 4, kind: input, shape index: {}]
  %s5 = inlined_call_operand.vmem [shape: f32[8192,128], index: 5, kind: output, shape index: {}]
  %s6 = sld [smem:[#allocation0]]
  $region65: #{dogs_cats_forward.4} parent=0
    _
  %s8 = ssub.s32 1, %s6
  %s9 = scalar_select 0, %s8, %s6
  loop: start=0, step=1, limit=18
  $region2: #{dogs_cats_forward.4} parent=0 // loop_pre_header
    _
  $region3: #{dogs_cats_forward.4} parent=0 // loop_header
    %s11 = sphi 0, %s15
    %p12 = scmp.ge.s32.totalorder %s11, 18
    %s18 = sphi 0, %s30
    %s19 = sphi 0, %s26
    %s20 = sphi 0, %s18
    %s21 = sphi 0, %s19
    %s22 = sphi 0, %s20
    %s23 = sphi 0, %s21
    %s33 = sphi 0, %s35
    %s36 = sphi 0, %s33
    %s37 = sphi 0, %s36
    %s53 = sphi 0, %s37
    %s57 = sphi 0, %s57
    %s59 = sphi 0, %s57
    %s60 = sphi 0, %s59
    %s74 = sphi 0, %s60
    %s78 = sphi 0, %s78
    %s80 = sphi 0, %s78
    %s81 = sphi 0, %s80
    %s95 = sphi 0, %s81
    %s99 = sphi 0, %s99
    %s101 = sphi 0, %s99
    %s102 = sphi 0, %s101
    %s116 = sphi 0, %s102
    %s120 = sphi 0, %s120
    %s122 = sphi 0, %s120
    %s123 = sphi 0, %s122
    %s137 = sphi 0, %s123
    %s143 = sphi 0, %s145
    %s146 = sphi 0, %s143
    %s147 = sphi 0, %s146
    %s163 = sphi 0, %s147
  $region4: #{dogs_cats_forward.4} parent=0 // loop_header_branch
    %14 = sbr.rel (%p12) target = $region8
  $region5: #{dogs_cats_forward.4} parent=0 // loop_body
    %s16 = ssub.s32 %s11, 1
    %s17 = ssub.s32 %s11, 2
    %s24 = sadd.s32 1, %s19
    %p25 = scmp.ge.s32.totalorder %s24, 8
    %s26 = scalar_select %p25, 0, %s24
    %s27 = sadd.s32 1, %s18
    %s28 = scalar_select %p25, %s27, %s18
    %p29 = scmp.ge.s32.totalorder %s28, 2
    %s30 = scalar_select %p29, 0, %s28
    %s31 = ssub.s32 %s19, %s26
    %p32 = scmp.eq.s32.totalorder %s31, 0
    %s34 = sadd.s32 %s33, 1
    %s35 = scalar_select %p32, %s33, %s34
    %p38 = pneg %p32
    %p39 = scmp.eq.s32.totalorder %s11, 15
    %p40 = por %p38, %p39
    %p41 = scmp.ne.s32.totalorder %s33, %s36
    %p42 = scmp.eq.s32.totalorder %s11, 0
    %p43 = por %p41, %p42
    %p44 = scmp.ne.s32.totalorder %s33, %s36
    %p45 = scmp.eq.s32.totalorder %s16, 15
    %p46 = por %p44, %p45
    %p47 = scmp.ne.s32.totalorder %s36, %s37
    %p48 = scmp.eq.s32.totalorder %s16, 0
    %p49 = por %p47, %p48
    %p50 = scmp.ne.s32.totalorder %s36, %s37
    %p51 = scmp.eq.s32.totalorder %s17, 15
    %p52 = por %p50, %p51
    %p54 = scmp.ne.s32.totalorder %s37, %s53
    %p55 = scmp.eq.s32.totalorder %s17, 0
    %p56 = por %p54, %p55
    %s58 = sadd.s32 %s57, 1
    %p61 = scmp.eq.s32.totalorder %s11, 15
    %p62 = scmp.ne.s32.totalorder %s57, %s59
    %p63 = scmp.eq.s32.totalorder %s11, 0
    %p64 = por %p62, %p63
    %p65 = scmp.ne.s32.totalorder %s57, %s59
    %p66 = scmp.eq.s32.totalorder %s16, 15
    %p67 = por %p65, %p66
    %p68 = scmp.ne.s32.totalorder %s59, %s60
    %p69 = scmp.eq.s32.totalorder %s16, 0
    %p70 = por %p68, %p69
    %p71 = scmp.ne.s32.totalorder %s59, %s60
    %p72 = scmp.eq.s32.totalorder %s17, 15
    %p73 = por %p71, %p72
    %p75 = scmp.ne.s32.totalorder %s60, %s74
    %p76 = scmp.eq.s32.totalorder %s17, 0
    %p77 = por %p75, %p76
    %s79 = sadd.s32 %s78, 1
    %p82 = scmp.eq.s32.totalorder %s11, 15
    %p83 = scmp.ne.s32.totalorder %s78, %s80
    %p84 = scmp.eq.s32.totalorder %s11, 0
    %p85 = por %p83, %p84
    %p86 = scmp.ne.s32.totalorder %s78, %s80
    %p87 = scmp.eq.s32.totalorder %s16, 15
    %p88 = por %p86, %p87
    %p89 = scmp.ne.s32.totalorder %s80, %s81
    %p90 = scmp.eq.s32.totalorder %s16, 0
    %p91 = por %p89, %p90
    %p92 = scmp.ne.s32.totalorder %s80, %s81
    %p93 = scmp.eq.s32.totalorder %s17, 15
    %p94 = por %p92, %p93
    %p96 = scmp.ne.s32.totalorder %s81, %s95
    %p97 = scmp.eq.s32.totalorder %s17, 0
    %p98 = por %p96, %p97
    %s100 = sadd.s32 %s99, 1
    %p103 = scmp.eq.s32.totalorder %s11, 15
    %p104 = scmp.ne.s32.totalorder %s99, %s101
    %p105 = scmp.eq.s32.totalorder %s11, 0
    %p106 = por %p104, %p105
    %p107 = scmp.ne.s32.totalorder %s99, %s101
    %p108 = scmp.eq.s32.totalorder %s16, 15
    %p109 = por %p107, %p108
    %p110 = scmp.ne.s32.totalorder %s101, %s102
    %p111 = scmp.eq.s32.totalorder %s16, 0
    %p112 = por %p110, %p111
    %p113 = scmp.ne.s32.totalorder %s101, %s102
    %p114 = scmp.eq.s32.totalorder %s17, 15
    %p115 = por %p113, %p114
    %p117 = scmp.ne.s32.totalorder %s102, %s116
    %p118 = scmp.eq.s32.totalorder %s17, 0
    %p119 = por %p117, %p118
    %s121 = sadd.s32 %s120, 1
    %p124 = scmp.eq.s32.totalorder %s11, 15
    %p125 = scmp.ne.s32.totalorder %s120, %s122
    %p126 = scmp.eq.s32.totalorder %s11, 0
    %p127 = por %p125, %p126
    %p128 = scmp.ne.s32.totalorder %s120, %s122
    %p129 = scmp.eq.s32.totalorder %s16, 15
    %p130 = por %p128, %p129
    %p131 = scmp.ne.s32.totalorder %s122, %s123
    %p132 = scmp.eq.s32.totalorder %s16, 0
    %p133 = por %p131, %p132
    %p134 = scmp.ne.s32.totalorder %s122, %s123
    %p135 = scmp.eq.s32.totalorder %s17, 15
    %p136 = por %p134, %p135
    %p138 = scmp.ne.s32.totalorder %s123, %s137
    %p139 = scmp.eq.s32.totalorder %s17, 0
    %p140 = por %p138, %p139
    %s141 = ssub.s32 %s19, %s26
    %p142 = scmp.eq.s32.totalorder %s141, 0
    %s144 = sadd.s32 %s143, 1
    %s145 = scalar_select %p142, %s143, %s144
    %p148 = pneg %p142
    %p149 = scmp.eq.s32.totalorder %s11, 15
    %p150 = por %p148, %p149
    %p151 = scmp.ne.s32.totalorder %s143, %s146
    %p152 = scmp.eq.s32.totalorder %s11, 0
    %p153 = por %p151, %p152
    %p154 = scmp.ne.s32.totalorder %s143, %s146
    %p155 = scmp.eq.s32.totalorder %s16, 15
    %p156 = por %p154, %p155
    %p157 = scmp.ne.s32.totalorder %s146, %s147
    %p158 = scmp.eq.s32.totalorder %s16, 0
    %p159 = por %p157, %p158
    %p160 = scmp.ne.s32.totalorder %s146, %s147
    %p161 = scmp.eq.s32.totalorder %s17, 15
    %p162 = por %p160, %p161
    %p164 = scmp.ne.s32.totalorder %s147, %s163
    %p165 = scmp.eq.s32.totalorder %s17, 0
    %p166 = por %p164, %p165
    %p167 = scmp.le.s32.totalorder 1, %s11
    %p168 = scmp.lt.s32.totalorder %s11, 17
    %p169 = pnand %p167, %p168
    %p170 = pneg %p169
    // Predicated region
    $region9: #{dogs_cats_forward.4} parent=5 // pred_check
      _
    $region10: #{dogs_cats_forward.4} parent=5 // pred_check_branch
      %172 = sbr.rel (%p169) target = $region12
    $region11: #{dogs_cats_forward.4} parent=5 // pred_region
      %s173 = ssub.s32 %s11, 1
      // Predicated region
      $region13: #{dogs_cats_forward.4} parent=11 // pred_check
        %p174 = pneg %p70
      $region14: #{dogs_cats_forward.4} parent=11 // pred_check_branch
        %176 = sbr.rel (%p174) target = $region16
      $region15: #{dogs_cats_forward.4} parent=11 // pred_region
        _
      $region16: #{dogs_cats_forward.4} parent=11 // pred_fallthru
        _
      // Predicated region
      $region17: #{dogs_cats_forward.4} parent=11 // pred_check
        %p177 = pneg %p91
      $region18: #{dogs_cats_forward.4} parent=11 // pred_check_branch
        %179 = sbr.rel (%p177) target = $region20
      $region19: #{dogs_cats_forward.4} parent=11 // pred_region
        _
      $region20: #{dogs_cats_forward.4} parent=11 // pred_fallthru
        _
      // Predicated region
      $region21: #{dogs_cats_forward.4} parent=11 // pred_check
        %p180 = pneg %p112
      $region22: #{dogs_cats_forward.4} parent=11 // pred_check_branch
        %182 = sbr.rel (%p180) target = $region24
      $region23: #{dogs_cats_forward.4} parent=11 // pred_region
        _
      $region24: #{dogs_cats_forward.4} parent=11 // pred_fallthru
        _
      // Predicated region
      $region25: #{dogs_cats_forward.4} parent=11 // pred_check
        %p183 = pneg %p133
      $region26: #{dogs_cats_forward.4} parent=11 // pred_check_branch
        %185 = sbr.rel (%p183) target = $region28
      $region27: #{dogs_cats_forward.4} parent=11 // pred_region
        _
      $region28: #{dogs_cats_forward.4} parent=11 // pred_fallthru
        _
    $region12: #{dogs_cats_forward.4} parent=5 // pred_fallthru
      _
    %p186 = scmp.lt.s32.totalorder %s11, 16
    // Predicated region
    $region29: #{dogs_cats_forward.4} parent=5 // pred_check
      %p187 = pneg %p186
    $region30: #{dogs_cats_forward.4} parent=5 // pred_check_branch
      %189 = sbr.rel (%p187) target = $region32
    $region31: #{dogs_cats_forward.4} parent=5 // pred_region
      // Predicated region
      $region33: #{dogs_cats_forward.4} parent=31 // pred_check
        %p190 = pneg %p43
      $region34: #{dogs_cats_forward.4} parent=31 // pred_check_branch
        %192 = sbr.rel (%p190) target = $region36
      $region35: #{dogs_cats_forward.4} parent=31 // pred_region
        %s193 = smul.u32 128, %s19
        %p194 = scmp.lt.s32.totalorder %s193, 1023
        %s195 = scalar_select %p194, %s193, 1023
        %s196 = smul.addr %s195, 8
        %s197 = scalar_lea.vmem %s0, %s196
        %s198 = smul.u32 128, %s19
      $region36: #{dogs_cats_forward.4} parent=31 // pred_fallthru
        _
    $region32: #{dogs_cats_forward.4} parent=5 // pred_fallthru
      _
    %p199 = scmp.le.s32.totalorder 1, %s11
    %p200 = scmp.lt.s32.totalorder %s11, 17
    %p201 = pnand %p199, %p200
    %p202 = pneg %p201
    // Predicated region
    $region37: #{dogs_cats_forward.4} parent=5 // pred_check
      _
    $region38: #{dogs_cats_forward.4} parent=5 // pred_check_branch
      %204 = sbr.rel (%p201) target = $region40
    $region39: #{dogs_cats_forward.4} parent=5 // pred_region
      %s205 = ssub.s32 %s11, 1
      %s206 = smul.u32 128, %s21
      %p207 = scmp.lt.s32.totalorder %s206, 1023
      %s208 = scalar_select %p207, %s206, 1023
      %s209 = smul.addr %s208, 8
      %s210 = scalar_lea.vmem %s0, %s209
      %p211 = pneg %p49
      %p212 = pneg %p46
      %p213 = pneg %p70
      %p214 = pneg %p67
      %p215 = pneg %p91
      %p216 = pneg %p88
      %p217 = pneg %p112
      %p218 = pneg %p109
      %p219 = pneg %p133
      %p220 = pneg %p130
      %p221 = pneg %p159
      %p222 = pneg %p156
      %s223 = smul.u32 128, %s21
      %p224 = scmp.lt.s32.totalorder %s223, 1023
      %s225 = scalar_select %p224, %s223, 1023
      %s226 = smul.addr %s225, 8
      %s227 = scalar_lea.vmem %s5, %s226
      %s228 = smul.u32 128, %s21
      %p229 = scmp.lt.s32.totalorder %s228, 1023
      %s230 = scalar_select %p229, %s228, 1023
      %s231 = smul.addr %s230, 8
      %s232 = scalar_lea.vmem %s0, %s231
      %s233 = smul.u32 128, %s21
      %s234 = smul.u32 128, %s21
      %p235 = scmp.lt.s32.totalorder %s234, 1023
      %s236 = scalar_select %p235, %s234, 1023
      %s237 = smul.addr %s236, 8
      %s238 = scalar_lea.vmem %s5, %s237
      %s239 = smul.u32 128, %s21
      %v240 = vld [vmem:[%s232] sm:$0xff]
      %v241 = vld [vmem:[%s232 + $0x8] sm:$0xff]
      %v242 = vld [vmem:[%s232 + $0x10] sm:$0xff]
      %v243 = vld [vmem:[%s232 + $0x18] sm:$0xff]
      %v244 = vld [vmem:[%s232 + $0x20] sm:$0xff]
      %v245 = vld [vmem:[%s232 + $0x28] sm:$0xff]
      %v246 = vld [vmem:[%s232 + $0x30] sm:$0xff]
      %v247 = vld [vmem:[%s232 + $0x38] sm:$0xff]
      %v248 = vld [vmem:[%s232 + $0x40] sm:$0xff]
      %v249 = vld [vmem:[%s232 + $0x48] sm:$0xff]
      %v250 = vld [vmem:[%s232 + $0x50] sm:$0xff]
      %v251 = vld [vmem:[%s232 + $0x58] sm:$0xff]
      %v252 = vld [vmem:[%s232 + $0x60] sm:$0xff]
      %v253 = vld [vmem:[%s232 + $0x68] sm:$0xff]
      %v254 = vld [vmem:[%s232 + $0x70] sm:$0xff]
      %v255 = vld [vmem:[%s232 + $0x78] sm:$0xff]
      %v256 = vld [vmem:[%s232 + $0x80] sm:$0xff]
      %v257 = vld [vmem:[%s232 + $0x88] sm:$0xff]
      %v258 = vld [vmem:[%s232 + $0x90] sm:$0xff]
      %v259 = vld [vmem:[%s232 + $0x98] sm:$0xff]
      %v260 = vld [vmem:[%s232 + $0xa0] sm:$0xff]
      %v261 = vld [vmem:[%s232 + $0xa8] sm:$0xff]
      %v262 = vld [vmem:[%s232 + $0xb0] sm:$0xff]
      %v263 = vld [vmem:[%s232 + $0xb8] sm:$0xff]
      %v264 = vld [vmem:[%s232 + $0xc0] sm:$0xff]
      %v265 = vld [vmem:[%s232 + $0xc8] sm:$0xff]
      %v266 = vld [vmem:[%s232 + $0xd0] sm:$0xff]
      %v267 = vld [vmem:[%s232 + $0xd8] sm:$0xff]
      %v268 = vld [vmem:[%s232 + $0xe0] sm:$0xff]
      %v269 = vld [vmem:[%s232 + $0xe8] sm:$0xff]
      %v270 = vld [vmem:[%s232 + $0xf0] sm:$0xff]
      %v271 = vld [vmem:[%s232 + $0xf8] sm:$0xff]
      %v272 = vld [vmem:[%s232 + $0x100] sm:$0xff]
      %v273 = vld [vmem:[%s232 + $0x108] sm:$0xff]
      %v274 = vld [vmem:[%s232 + $0x110] sm:$0xff]
      %v275 = vld [vmem:[%s232 + $0x118] sm:$0xff]
      %v276 = vld [vmem:[%s232 + $0x120] sm:$0xff]
      %v277 = vld [vmem:[%s232 + $0x128] sm:$0xff]
      %v278 = vld [vmem:[%s232 + $0x130] sm:$0xff]
      %v279 = vld [vmem:[%s232 + $0x138] sm:$0xff]
      %v280 = vld [vmem:[%s232 + $0x140] sm:$0xff]
      %v281 = vld [vmem:[%s232 + $0x148] sm:$0xff]
      %v282 = vld [vmem:[%s232 + $0x150] sm:$0xff]
      %v283 = vld [vmem:[%s232 + $0x158] sm:$0xff]
      %v284 = vld [vmem:[%s232 + $0x160] sm:$0xff]
      %v285 = vld [vmem:[%s232 + $0x168] sm:$0xff]
      %v286 = vld [vmem:[%s232 + $0x170] sm:$0xff]
      %v287 = vld [vmem:[%s232 + $0x178] sm:$0xff]
      %v288 = vld [vmem:[%s232 + $0x180] sm:$0xff]
      %v289 = vld [vmem:[%s232 + $0x188] sm:$0xff]
      %v290 = vld [vmem:[%s232 + $0x190] sm:$0xff]
      %v291 = vld [vmem:[%s232 + $0x198] sm:$0xff]
      %v292 = vld [vmem:[%s232 + $0x1a0] sm:$0xff]
      %v293 = vld [vmem:[%s232 + $0x1a8] sm:$0xff]
      %v294 = vld [vmem:[%s232 + $0x1b0] sm:$0xff]
      %v295 = vld [vmem:[%s232 + $0x1b8] sm:$0xff]
      %v296 = vld [vmem:[%s232 + $0x1c0] sm:$0xff]
      %v297 = vld [vmem:[%s232 + $0x1c8] sm:$0xff]
      %v298 = vld [vmem:[%s232 + $0x1d0] sm:$0xff]
      %v299 = vld [vmem:[%s232 + $0x1d8] sm:$0xff]
      %v300 = vld [vmem:[%s232 + $0x1e0] sm:$0xff]
      %v301 = vld [vmem:[%s232 + $0x1e8] sm:$0xff]
      %v302 = vld [vmem:[%s232 + $0x1f0] sm:$0xff]
      %v303 = vld [vmem:[%s232 + $0x1f8] sm:$0xff]
      %v304 = vld [vmem:[%s232 + $0x200] sm:$0xff]
      %v305 = vld [vmem:[%s232 + $0x208] sm:$0xff]
      %v306 = vld [vmem:[%s232 + $0x210] sm:$0xff]
      %v307 = vld [vmem:[%s232 + $0x218] sm:$0xff]
      %v308 = vld [vmem:[%s232 + $0x220] sm:$0xff]
      %v309 = vld [vmem:[%s232 + $0x228] sm:$0xff]
      %v310 = vld [vmem:[%s232 + $0x230] sm:$0xff]
      %v311 = vld [vmem:[%s232 + $0x238] sm:$0xff]
      %v312 = vld [vmem:[%s232 + $0x240] sm:$0xff]
      %v313 = vld [vmem:[%s232 + $0x248] sm:$0xff]
      %v314 = vld [vmem:[%s232 + $0x250] sm:$0xff]
      %v315 = vld [vmem:[%s232 + $0x258] sm:$0xff]
      %v316 = vld [vmem:[%s232 + $0x260] sm:$0xff]
      %v317 = vld [vmem:[%s232 + $0x268] sm:$0xff]
      %v318 = vld [vmem:[%s232 + $0x270] sm:$0xff]
      %v319 = vld [vmem:[%s232 + $0x278] sm:$0xff]
      %v320 = vld [vmem:[%s232 + $0x280] sm:$0xff]
      %v321 = vld [vmem:[%s232 + $0x288] sm:$0xff]
      %v322 = vld [vmem:[%s232 + $0x290] sm:$0xff]
      %v323 = vld [vmem:[%s232 + $0x298] sm:$0xff]
      %v324 = vld [vmem:[%s232 + $0x2a0] sm:$0xff]
      %v325 = vld [vmem:[%s232 + $0x2a8] sm:$0xff]
      %v326 = vld [vmem:[%s232 + $0x2b0] sm:$0xff]
      %v327 = vld [vmem:[%s232 + $0x2b8] sm:$0xff]
      %v328 = vld [vmem:[%s232 + $0x2c0] sm:$0xff]
      %v329 = vld [vmem:[%s232 + $0x2c8] sm:$0xff]
      %v330 = vld [vmem:[%s232 + $0x2d0] sm:$0xff]
      %v331 = vld [vmem:[%s232 + $0x2d8] sm:$0xff]
      %v332 = vld [vmem:[%s232 + $0x2e0] sm:$0xff]
      %v333 = vld [vmem:[%s232 + $0x2e8] sm:$0xff]
      %v334 = vld [vmem:[%s232 + $0x2f0] sm:$0xff]
      %v335 = vld [vmem:[%s232 + $0x2f8] sm:$0xff]
      %v336 = vld [vmem:[%s232 + $0x300] sm:$0xff]
      %v337 = vld [vmem:[%s232 + $0x308] sm:$0xff]
      %v338 = vld [vmem:[%s232 + $0x310] sm:$0xff]
      %v339 = vld [vmem:[%s232 + $0x318] sm:$0xff]
      %v340 = vld [vmem:[%s232 + $0x320] sm:$0xff]
      %v341 = vld [vmem:[%s232 + $0x328] sm:$0xff]
      %v342 = vld [vmem:[%s232 + $0x330] sm:$0xff]
      %v343 = vld [vmem:[%s232 + $0x338] sm:$0xff]
      %v344 = vld [vmem:[%s232 + $0x340] sm:$0xff]
      %v345 = vld [vmem:[%s232 + $0x348] sm:$0xff]
      %v346 = vld [vmem:[%s232 + $0x350] sm:$0xff]
      %v347 = vld [vmem:[%s232 + $0x358] sm:$0xff]
      %v348 = vld [vmem:[%s232 + $0x360] sm:$0xff]
      %v349 = vld [vmem:[%s232 + $0x368] sm:$0xff]
      %v350 = vld [vmem:[%s232 + $0x370] sm:$0xff]
      %v351 = vld [vmem:[%s232 + $0x378] sm:$0xff]
      %v352 = vld [vmem:[%s232 + $0x380] sm:$0xff]
      %v353 = vld [vmem:[%s232 + $0x388] sm:$0xff]
      %v354 = vld [vmem:[%s232 + $0x390] sm:$0xff]
      %v355 = vld [vmem:[%s232 + $0x398] sm:$0xff]
      %v356 = vld [vmem:[%s232 + $0x3a0] sm:$0xff]
      %v357 = vld [vmem:[%s232 + $0x3a8] sm:$0xff]
      %v358 = vld [vmem:[%s232 + $0x3b0] sm:$0xff]
      %v359 = vld [vmem:[%s232 + $0x3b8] sm:$0xff]
      %v360 = vld [vmem:[%s232 + $0x3c0] sm:$0xff]
      %v361 = vld [vmem:[%s232 + $0x3c8] sm:$0xff]
      %v362 = vld [vmem:[%s232 + $0x3d0] sm:$0xff]
      %v363 = vld [vmem:[%s232 + $0x3d8] sm:$0xff]
      %v364 = vld [vmem:[%s232 + $0x3e0] sm:$0xff]
      %v365 = vld [vmem:[%s232 + $0x3e8] sm:$0xff]
      %v366 = vld [vmem:[%s232 + $0x3f0] sm:$0xff]
      %v367 = vld [vmem:[%s232 + $0x3f8] sm:$0xff]
      %v368 = vld [vmem:[%s1] sm:$0xff]
      %v369 = vld [vmem:[%s1 + $0x8] sm:$0xff]
      %v370 = vld [vmem:[%s1 + $0x10] sm:$0xff]
      %v371 = vld [vmem:[%s1 + $0x18] sm:$0xff]
      %v372 = vld [vmem:[%s1 + $0x20] sm:$0xff]
      %v373 = vld [vmem:[%s1 + $0x28] sm:$0xff]
      %v374 = vld [vmem:[%s1 + $0x30] sm:$0xff]
      %v375 = vld [vmem:[%s1 + $0x38] sm:$0xff]
      %v376 = vld [vmem:[%s1 + $0x40] sm:$0xff]
      %v377 = vld [vmem:[%s1 + $0x48] sm:$0xff]
      %v378 = vld [vmem:[%s1 + $0x50] sm:$0xff]
      %v379 = vld [vmem:[%s1 + $0x58] sm:$0xff]
      %v380 = vld [vmem:[%s1 + $0x60] sm:$0xff]
      %v381 = vld [vmem:[%s1 + $0x68] sm:$0xff]
      %v382 = vld [vmem:[%s1 + $0x70] sm:$0xff]
      %v383 = vld [vmem:[%s1 + $0x78] sm:$0xff]
      %v384 = vld [vmem:[%s2] sm:$0x1]
      %v386 = vlaneseq
      %v387 = vshrl.u32 %v386, 7
      %v388 = vsub.s32 0, %v387
      %v389 = vrot.slane %v384, %v388
      %391 = vmatprep.subr.mxu0 0.0
      %392 = vmatpush1.msra.mxu0 %v368
      %393 = vmatprep.subr.mxu0 0.0
      %394 = vmatpush1.msra.mxu0 %v369
      %395 = vmatprep.subr.mxu0 0.0
      %396 = vmatpush1.msra.mxu0 %v370
      %397 = vmatprep.subr.mxu0 0.0
      %398 = vmatpush1.msra.mxu0 %v371
      %399 = vmatprep.subr.mxu0 0.0
      %400 = vmatpush1.msra.mxu0 %v372
      %401 = vmatprep.subr.mxu0 0.0
      %402 = vmatpush1.msra.mxu0 %v373
      %403 = vmatprep.subr.mxu0 0.0
      %404 = vmatpush1.msra.mxu0 %v374
      %405 = vmatprep.subr.mxu0 0.0
      %406 = vmatpush1.msra.mxu0 %v375
      %407 = vmatprep.subr.mxu0 0.0
      %408 = vmatpush1.msra.mxu0 %v376
      %409 = vmatprep.subr.mxu0 0.0
      %410 = vmatpush1.msra.mxu0 %v377
      %411 = vmatprep.subr.mxu0 0.0
      %412 = vmatpush1.msra.mxu0 %v378
      %413 = vmatprep.subr.mxu0 0.0
      %414 = vmatpush1.msra.mxu0 %v379
      %415 = vmatprep.subr.mxu0 0.0
      %416 = vmatpush1.msra.mxu0 %v380
      %417 = vmatprep.subr.mxu0 0.0
      %418 = vmatpush1.msra.mxu0 %v381
      %419 = vmatprep.subr.mxu0 0.0
      %420 = vmatpush1.msra.mxu0 %v382
      %421 = vmatprep.subr.mxu0 0.0
      %422 = vmatpush1.msra.mxu0 %v383
      %423 = vmatprep.subr.mxu0 0.0
      %424 = vmatpush1.msra.mxu0 0.0
      %425 = vmatprep.subr.mxu0 0.0
      %426 = vmatpush1.msra.mxu0 0.0
      %427 = vmatprep.subr.mxu0 0.0
      %428 = vmatpush1.msra.mxu0 0.0
      %429 = vmatprep.subr.mxu0 0.0
      %430 = vmatpush1.msra.mxu0 0.0
      %431 = vmatprep.subr.mxu0 0.0
      %432 = vmatpush1.msra.mxu0 0.0
      %433 = vmatprep.subr.mxu0 0.0
      %434 = vmatpush1.msra.mxu0 0.0
      %435 = vmatprep.subr.mxu0 0.0
      %436 = vmatpush1.msra.mxu0 0.0
      %437 = vmatprep.subr.mxu0 0.0
      %438 = vmatpush1.msra.mxu0 0.0
      %439 = vmatprep.subr.mxu0 0.0
      %440 = vmatpush1.msra.mxu0 0.0
      %441 = vmatprep.subr.mxu0 0.0
      %442 = vmatpush1.msra.mxu0 0.0
      %443 = vmatprep.subr.mxu0 0.0
      %444 = vmatpush1.msra.mxu0 0.0
      %445 = vmatprep.subr.mxu0 0.0
      %446 = vmatpush1.msra.mxu0 0.0
      %447 = vmatprep.subr.mxu0 0.0
      %448 = vmatpush1.msra.mxu0 0.0
      %449 = vmatprep.subr.mxu0 0.0
      %450 = vmatpush1.msra.mxu0 0.0
      %451 = vmatprep.subr.mxu0 0.0
      %452 = vmatpush1.msra.mxu0 0.0
      %453 = vmatprep.subr.mxu0 0.0
      %454 = vmatpush1.msra.mxu0 0.0
      %455 = vmatprep.mubr.f32.mxu0 0.0
      %456 = vmatmul.mubr.f32.gmra.mrb[0].mxu0 %v240
      %v457 = vpop.f32.mrb[0].mxu0
      %v458 = vadd.f32 %v389, %v457
      %v459 = vpop.f32.mrb[0].mxu0
      %460 = vmatprep.mubr.f32.mxu0 0.0
      %461 = vmatmul.mubr.f32.gmra.mrb[0].mxu0 %v241
      %v462 = vpop.f32.mrb[0].mxu0
      %v463 = vadd.f32 %v389, %v462
      %v464 = vpop.f32.mrb[0].mxu0
      %465 = vmatprep.mubr.f32.mxu0 0.0
      %466 = vmatmul.mubr.f32.gmra.mrb[0].mxu0 %v242
      %v467 = vpop.f32.mrb[0].mxu0
      %v468 = vadd.f32 %v389, %v467
      %v469 = vpop.f32.mrb[0].mxu0
      %470 = vmatprep.mubr.f32.mxu0 0.0
      %471 = vmatmul.mubr.f32.gmra.mrb[0].mxu0 %v243
      %v472 = vpop.f32.mrb[0].mxu0
      %v473 = vadd.f32 %v389, %v472
      %v474 = vpop.f32.mrb[0].mxu0
      %475 = vmatprep.mubr.f32.mxu0 0.0
      %476 = vmatmul.mubr.f32.gmra.mrb[0].mxu0 %v244
      %v477 = vpop.f32.mrb[0].mxu0
      %v478 = vadd.f32 %v389, %v477
      %v479 = vpop.f32.mrb[0].mxu0
      %480 = vmatprep.mubr.f32.mxu0 0.0
      %481 = vmatmul.mubr.f32.gmra.mrb[0].mxu0 %v245
      %v482 = vpop.f32.mrb[0].mxu0
      %v483 = vadd.f32 %v389, %v482
      %v484 = vpop.f32.mrb[0].mxu0
      %485 = vmatprep.mubr.f32.mxu0 0.0
      %486 = vmatmul.mubr.f32.gmra.mrb[0].mxu0 %v246
      %v487 = vpop.f32.mrb[0].mxu0
      %v488 = vadd.f32 %v389, %v487
      %v489 = vpop.f32.mrb[0].mxu0
      %490 = vmatprep.mubr.f32.mxu0 0.0
      %491 = vmatmul.mubr.f32.gmra.mrb[0].mxu0 %v247
      %v492 = vpop.f32.mrb[0].mxu0
      %v493 = vadd.f32 %v389, %v492
      %v494 = vpop.f32.mrb[0].mxu0
      %495 = vmatprep.mubr.f32.mxu0 0.0
      %496 = vmatmul.mubr.f32.gmra.mrb[0].mxu0 %v248
      %v497 = vpop.f32.mrb[0].mxu0
      %v498 = vadd.f32 %v389, %v497
      %v499 = vpop.f32.mrb[0].mxu0
      %500 = vmatprep.mubr.f32.mxu0 0.0
      %501 = vmatmul.mubr.f32.gmra.mrb[0].mxu0 %v249
      %v502 = vpop.f32.mrb[0].mxu0
      %v503 = vadd.f32 %v389, %v502
      %v504 = vpop.f32.mrb[0].mxu0
      %505 = vmatprep.mubr.f32.mxu0 0.0
      %506 = vmatmul.mubr.f32.gmra.mrb[0].mxu0 %v250
      %v507 = vpop.f32.mrb[0].mxu0
      %v508 = vadd.f32 %v389, %v507
      %v509 = vpop.f32.mrb[0].mxu0
      %510 = vmatprep.mubr.f32.mxu0 0.0
      %511 = vmatmul.mubr.f32.gmra.mrb[0].mxu0 %v251
      %v512 = vpop.f32.mrb[0].mxu0
      %v513 = vadd.f32 %v389, %v512
      %v514 = vpop.f32.mrb[0].mxu0
      %515 = vmatprep.mubr.f32.mxu0 0.0
      %516 = vmatmul.mubr.f32.gmra.mrb[0].mxu0 %v252
      %v517 = vpop.f32.mrb[0].mxu0
      %v518 = vadd.f32 %v389, %v517
      %v519 = vpop.f32.mrb[0].mxu0
      %520 = vmatprep.mubr.f32.mxu0 0.0
      %521 = vmatmul.mubr.f32.gmra.mrb[0].mxu0 %v253
      %v522 = vpop.f32.mrb[0].mxu0
      %v523 = vadd.f32 %v389, %v522
      %v524 = vpop.f32.mrb[0].mxu0
      %525 = vmatprep.mubr.f32.mxu0 0.0
      %526 = vmatmul.mubr.f32.gmra.mrb[0].mxu0 %v254
      %v527 = vpop.f32.mrb[0].mxu0
      %v528 = vadd.f32 %v389, %v527
      %v529 = vpop.f32.mrb[0].mxu0
      %530 = vmatprep.mubr.f32.mxu0 0.0
      %531 = vmatmul.mubr.f32.gmra.mrb[0].mxu0 %v255
      %v532 = vpop.f32.mrb[0].mxu0
      %v533 = vadd.f32 %v389, %v532
      %v534 = vpop.f32.mrb[0].mxu0
      %535 = vmatprep.mubr.f32.mxu0 0.0
      %536 = vmatmul.mubr.f32.gmra.mrb[0].mxu0 %v256
      %v537 = vpop.f32.mrb[0].mxu0
      %v538 = vadd.f32 %v389, %v537
      %v539 = vpop.f32.mrb[0].mxu0
      %540 = vmatprep.mubr.f32.mxu0 0.0
      %541 = vmatmul.mubr.f32.gmra.mrb[0].mxu0 %v257
      %v542 = vpop.f32.mrb[0].mxu0
      %v543 = vadd.f32 %v389, %v542
      %v544 = vpop.f32.mrb[0].mxu0
      %545 = vmatprep.mubr.f32.mxu0 0.0
      %546 = vmatmul.mubr.f32.gmra.mrb[0].mxu0 %v258
      %v547 = vpop.f32.mrb[0].mxu0
      %v548 = vadd.f32 %v389, %v547
      %v549 = vpop.f32.mrb[0].mxu0
      %550 = vmatprep.mubr.f32.mxu0 0.0
      %551 = vmatmul.mubr.f32.gmra.mrb[0].mxu0 %v259
      %v552 = vpop.f32.mrb[0].mxu0
      %v553 = vadd.f32 %v389, %v552
      %v554 = vpop.f32.mrb[0].mxu0
      %555 = vmatprep.mubr.f32.mxu0 0.0
      %556 = vmatmul.mubr.f32.gmra.mrb[0].mxu0 %v260
      %v557 = vpop.f32.mrb[0].mxu0
      %v558 = vadd.f32 %v389, %v557
      %v559 = vpop.f32.mrb[0].mxu0
      %560 = vmatprep.mubr.f32.mxu0 0.0
      %561 = vmatmul.mubr.f32.gmra.mrb[0].mxu0 %v261
      %v562 = vpop.f32.mrb[0].mxu0
      %v563 = vadd.f32 %v389, %v562
      %v564 = vpop.f32.mrb[0].mxu0
      %565 = vmatprep.mubr.f32.mxu0 0.0
      %566 = vmatmul.mubr.f32.gmra.mrb[0].mxu0 %v262
      %v567 = vpop.f32.mrb[0].mxu0
      %v568 = vadd.f32 %v389, %v567
      %v569 = vpop.f32.mrb[0].mxu0
      %570 = vmatprep.mubr.f32.mxu0 0.0
      %571 = vmatmul.mubr.f32.gmra.mrb[0].mxu0 %v263
      %v572 = vpop.f32.mrb[0].mxu0
      %v573 = vadd.f32 %v389, %v572
      %v574 = vpop.f32.mrb[0].mxu0
      %575 = vmatprep.mubr.f32.mxu0 0.0
      %576 = vmatmul.mubr.f32.gmra.mrb[0].mxu0 %v264
      %v577 = vpop.f32.mrb[0].mxu0
      %v578 = vadd.f32 %v389, %v577
      %v579 = vpop.f32.mrb[0].mxu0
      %580 = vmatprep.mubr.f32.mxu0 0.0
      %581 = vmatmul.mubr.f32.gmra.mrb[0].mxu0 %v265
      %v582 = vpop.f32.mrb[0].mxu0
      %v583 = vadd.f32 %v389, %v582
      %v584 = vpop.f32.mrb[0].mxu0
      %585 = vmatprep.mubr.f32.mxu0 0.0
      %586 = vmatmul.mubr.f32.gmra.mrb[0].mxu0 %v266
      %v587 = vpop.f32.mrb[0].mxu0
      %v588 = vadd.f32 %v389, %v587
      %v589 = vpop.f32.mrb[0].mxu0
      %590 = vmatprep.mubr.f32.mxu0 0.0
      %591 = vmatmul.mubr.f32.gmra.mrb[0].mxu0 %v267
      %v592 = vpop.f32.mrb[0].mxu0
      %v593 = vadd.f32 %v389, %v592
      %v594 = vpop.f32.mrb[0].mxu0
      %595 = vmatprep.mubr.f32.mxu0 0.0
      %596 = vmatmul.mubr.f32.gmra.mrb[0].mxu0 %v268
      %v597 = vpop.f32.mrb[0].mxu0
      %v598 = vadd.f32 %v389, %v597
      %v599 = vpop.f32.mrb[0].mxu0
      %600 = vmatprep.mubr.f32.mxu0 0.0
      %601 = vmatmul.mubr.f32.gmra.mrb[0].mxu0 %v269
      %v602 = vpop.f32.mrb[0].mxu0
      %v603 = vadd.f32 %v389, %v602
      %v604 = vpop.f32.mrb[0].mxu0
      %605 = vmatprep.mubr.f32.mxu0 0.0
      %606 = vmatmul.mubr.f32.gmra.mrb[0].mxu0 %v270
      %v607 = vpop.f32.mrb[0].mxu0
      %v608 = vadd.f32 %v389, %v607
      %v609 = vpop.f32.mrb[0].mxu0
      %610 = vmatprep.mubr.f32.mxu0 0.0
      %611 = vmatmul.mubr.f32.gmra.mrb[0].mxu0 %v271
      %v612 = vpop.f32.mrb[0].mxu0
      %v613 = vadd.f32 %v389, %v612
      %v614 = vpop.f32.mrb[0].mxu0
      %615 = vmatprep.mubr.f32.mxu0 0.0
      %616 = vmatmul.mubr.f32.gmra.mrb[0].mxu0 %v272
      %v617 = vpop.f32.mrb[0].mxu0
      %v618 = vadd.f32 %v389, %v617
      %v619 = vpop.f32.mrb[0].mxu0
      %620 = vmatprep.mubr.f32.mxu0 0.0
      %621 = vmatmul.mubr.f32.gmra.mrb[0].mxu0 %v273
      %v622 = vpop.f32.mrb[0].mxu0
      %v623 = vadd.f32 %v389, %v622
      %v624 = vpop.f32.mrb[0].mxu0
      %625 = vmatprep.mubr.f32.mxu0 0.0
      %626 = vmatmul.mubr.f32.gmra.mrb[0].mxu0 %v274
      %v627 = vpop.f32.mrb[0].mxu0
      %v628 = vadd.f32 %v389, %v627
      %v629 = vpop.f32.mrb[0].mxu0
      %630 = vmatprep.mubr.f32.mxu0 0.0
      %631 = vmatmul.mubr.f32.gmra.mrb[0].mxu0 %v275
      %v632 = vpop.f32.mrb[0].mxu0
      %v633 = vadd.f32 %v389, %v632
      %v634 = vpop.f32.mrb[0].mxu0
      %635 = vmatprep.mubr.f32.mxu0 0.0
      %636 = vmatmul.mubr.f32.gmra.mrb[0].mxu0 %v276
      %v637 = vpop.f32.mrb[0].mxu0
      %v638 = vadd.f32 %v389, %v637
      %v639 = vpop.f32.mrb[0].mxu0
      %640 = vmatprep.mubr.f32.mxu0 0.0
      %641 = vmatmul.mubr.f32.gmra.mrb[0].mxu0 %v277
      %v642 = vpop.f32.mrb[0].mxu0
      %v643 = vadd.f32 %v389, %v642
      %v644 = vpop.f32.mrb[0].mxu0
      %645 = vmatprep.mubr.f32.mxu0 0.0
      %646 = vmatmul.mubr.f32.gmra.mrb[0].mxu0 %v278
      %v647 = vpop.f32.mrb[0].mxu0
      %v648 = vadd.f32 %v389, %v647
      %v649 = vpop.f32.mrb[0].mxu0
      %650 = vmatprep.mubr.f32.mxu0 0.0
      %651 = vmatmul.mubr.f32.gmra.mrb[0].mxu0 %v279
      %v652 = vpop.f32.mrb[0].mxu0
      %v653 = vadd.f32 %v389, %v652
      %v654 = vpop.f32.mrb[0].mxu0
      %655 = vmatprep.mubr.f32.mxu0 0.0
      %656 = vmatmul.mubr.f32.gmra.mrb[0].mxu0 %v280
      %v657 = vpop.f32.mrb[0].mxu0
      %v658 = vadd.f32 %v389, %v657
      %v659 = vpop.f32.mrb[0].mxu0
      %660 = vmatprep.mubr.f32.mxu0 0.0
      %661 = vmatmul.mubr.f32.gmra.mrb[0].mxu0 %v281
      %v662 = vpop.f32.mrb[0].mxu0
      %v663 = vadd.f32 %v389, %v662
      %v664 = vpop.f32.mrb[0].mxu0
      %665 = vmatprep.mubr.f32.mxu0 0.0
      %666 = vmatmul.mubr.f32.gmra.mrb[0].mxu0 %v282
      %v667 = vpop.f32.mrb[0].mxu0
      %v668 = vadd.f32 %v389, %v667
      %v669 = vpop.f32.mrb[0].mxu0
      %670 = vmatprep.mubr.f32.mxu0 0.0
      %671 = vmatmul.mubr.f32.gmra.mrb[0].mxu0 %v283
      %v672 = vpop.f32.mrb[0].mxu0
      %v673 = vadd.f32 %v389, %v672
      %v674 = vpop.f32.mrb[0].mxu0
      %675 = vmatprep.mubr.f32.mxu0 0.0
      %676 = vmatmul.mubr.f32.gmra.mrb[0].mxu0 %v284
      %v677 = vpop.f32.mrb[0].mxu0
      %v678 = vadd.f32 %v389, %v677
      %v679 = vpop.f32.mrb[0].mxu0
      %680 = vmatprep.mubr.f32.mxu0 0.0
      %681 = vmatmul.mubr.f32.gmra.mrb[0].mxu0 %v285
      %v682 = vpop.f32.mrb[0].mxu0
      %v683 = vadd.f32 %v389, %v682
      %v684 = vpop.f32.mrb[0].mxu0
      %685 = vmatprep.mubr.f32.mxu0 0.0
      %686 = vmatmul.mubr.f32.gmra.mrb[0].mxu0 %v286
      %v687 = vpop.f32.mrb[0].mxu0
      %v688 = vadd.f32 %v389, %v687
      %v689 = vpop.f32.mrb[0].mxu0
      %690 = vmatprep.mubr.f32.mxu0 0.0
      %691 = vmatmul.mubr.f32.gmra.mrb[0].mxu0 %v287
      %v692 = vpop.f32.mrb[0].mxu0
      %v693 = vadd.f32 %v389, %v692
      %v694 = vpop.f32.mrb[0].mxu0
      %695 = vmatprep.mubr.f32.mxu0 0.0
      %696 = vmatmul.mubr.f32.gmra.mrb[0].mxu0 %v288
      %v697 = vpop.f32.mrb[0].mxu0
      %v698 = vadd.f32 %v389, %v697
      %v699 = vpop.f32.mrb[0].mxu0
      %700 = vmatprep.mubr.f32.mxu0 0.0
      %701 = vmatmul.mubr.f32.gmra.mrb[0].mxu0 %v289
      %v702 = vpop.f32.mrb[0].mxu0
      %v703 = vadd.f32 %v389, %v702
      %v704 = vpop.f32.mrb[0].mxu0
      %705 = vmatprep.mubr.f32.mxu0 0.0
      %706 = vmatmul.mubr.f32.gmra.mrb[0].mxu0 %v290
      %v707 = vpop.f32.mrb[0].mxu0
      %v708 = vadd.f32 %v389, %v707
      %v709 = vpop.f32.mrb[0].mxu0
      %710 = vmatprep.mubr.f32.mxu0 0.0
      %711 = vmatmul.mubr.f32.gmra.mrb[0].mxu0 %v291
      %v712 = vpop.f32.mrb[0].mxu0
      %v713 = vadd.f32 %v389, %v712
      %v714 = vpop.f32.mrb[0].mxu0
      %715 = vmatprep.mubr.f32.mxu0 0.0
      %716 = vmatmul.mubr.f32.gmra.mrb[0].mxu0 %v292
      %v717 = vpop.f32.mrb[0].mxu0
      %v718 = vadd.f32 %v389, %v717
      %v719 = vpop.f32.mrb[0].mxu0
      %720 = vmatprep.mubr.f32.mxu0 0.0
      %721 = vmatmul.mubr.f32.gmra.mrb[0].mxu0 %v293
      %v722 = vpop.f32.mrb[0].mxu0
      %v723 = vadd.f32 %v389, %v722
      %v724 = vpop.f32.mrb[0].mxu0
      %725 = vmatprep.mubr.f32.mxu0 0.0
      %726 = vmatmul.mubr.f32.gmra.mrb[0].mxu0 %v294
      %v727 = vpop.f32.mrb[0].mxu0
      %v728 = vadd.f32 %v389, %v727
      %v729 = vpop.f32.mrb[0].mxu0
      %730 = vmatprep.mubr.f32.mxu0 0.0
      %731 = vmatmul.mubr.f32.gmra.mrb[0].mxu0 %v295
      %v732 = vpop.f32.mrb[0].mxu0
      %v733 = vadd.f32 %v389, %v732
      %v734 = vpop.f32.mrb[0].mxu0
      %735 = vmatprep.mubr.f32.mxu0 0.0
      %736 = vmatmul.mubr.f32.gmra.mrb[0].mxu0 %v296
      %v737 = vpop.f32.mrb[0].mxu0
      %v738 = vadd.f32 %v389, %v737
      %v739 = vpop.f32.mrb[0].mxu0
      %740 = vmatprep.mubr.f32.mxu0 0.0
      %741 = vmatmul.mubr.f32.gmra.mrb[0].mxu0 %v297
      %v742 = vpop.f32.mrb[0].mxu0
      %v743 = vadd.f32 %v389, %v742
      %v744 = vpop.f32.mrb[0].mxu0
      %745 = vmatprep.mubr.f32.mxu0 0.0
      %746 = vmatmul.mubr.f32.gmra.mrb[0].mxu0 %v298
      %v747 = vpop.f32.mrb[0].mxu0
      %v748 = vadd.f32 %v389, %v747
      %v749 = vpop.f32.mrb[0].mxu0
      %750 = vmatprep.mubr.f32.mxu0 0.0
      %751 = vmatmul.mubr.f32.gmra.mrb[0].mxu0 %v299
      %v752 = vpop.f32.mrb[0].mxu0
      %v753 = vadd.f32 %v389, %v752
      %v754 = vpop.f32.mrb[0].mxu0
      %755 = vmatprep.mubr.f32.mxu0 0.0
      %756 = vmatmul.mubr.f32.gmra.mrb[0].mxu0 %v300
      %v757 = vpop.f32.mrb[0].mxu0
      %v758 = vadd.f32 %v389, %v757
      %v759 = vpop.f32.mrb[0].mxu0
      %760 = vmatprep.mubr.f32.mxu0 0.0
      %761 = vmatmul.mubr.f32.gmra.mrb[0].mxu0 %v301
      %v762 = vpop.f32.mrb[0].mxu0
      %v763 = vadd.f32 %v389, %v762
      %v764 = vpop.f32.mrb[0].mxu0
      %765 = vmatprep.mubr.f32.mxu0 0.0
      %766 = vmatmul.mubr.f32.gmra.mrb[0].mxu0 %v302
      %v767 = vpop.f32.mrb[0].mxu0
      %v768 = vadd.f32 %v389, %v767
      %v769 = vpop.f32.mrb[0].mxu0
      %770 = vmatprep.mubr.f32.mxu0 0.0
      %771 = vmatmul.mubr.f32.gmra.mrb[0].mxu0 %v303
      %v772 = vpop.f32.mrb[0].mxu0
      %v773 = vadd.f32 %v389, %v772
      %v774 = vpop.f32.mrb[0].mxu0
      %775 = vmatprep.mubr.f32.mxu0 0.0
      %776 = vmatmul.mubr.f32.gmra.mrb[0].mxu0 %v304
      %v777 = vpop.f32.mrb[0].mxu0
      %v778 = vadd.f32 %v389, %v777
      %v779 = vpop.f32.mrb[0].mxu0
      %780 = vmatprep.mubr.f32.mxu0 0.0
      %781 = vmatmul.mubr.f32.gmra.mrb[0].mxu0 %v305
      %v782 = vpop.f32.mrb[0].mxu0
      %v783 = vadd.f32 %v389, %v782
      %v784 = vpop.f32.mrb[0].mxu0
      %785 = vmatprep.mubr.f32.mxu0 0.0
      %786 = vmatmul.mubr.f32.gmra.mrb[0].mxu0 %v306
      %v787 = vpop.f32.mrb[0].mxu0
      %v788 = vadd.f32 %v389, %v787
      %v789 = vpop.f32.mrb[0].mxu0
      %790 = vmatprep.mubr.f32.mxu0 0.0
      %791 = vmatmul.mubr.f32.gmra.mrb[0].mxu0 %v307
      %v792 = vpop.f32.mrb[0].mxu0
      %v793 = vadd.f32 %v389, %v792
      %v794 = vpop.f32.mrb[0].mxu0
      %795 = vmatprep.mubr.f32.mxu0 0.0
      %796 = vmatmul.mubr.f32.gmra.mrb[0].mxu0 %v308
      %v797 = vpop.f32.mrb[0].mxu0
      %v798 = vadd.f32 %v389, %v797
      %v799 = vpop.f32.mrb[0].mxu0
      %800 = vmatprep.mubr.f32.mxu0 0.0
      %801 = vmatmul.mubr.f32.gmra.mrb[0].mxu0 %v309
      %v802 = vpop.f32.mrb[0].mxu0
      %v803 = vadd.f32 %v389, %v802
      %v804 = vpop.f32.mrb[0].mxu0
      %805 = vmatprep.mubr.f32.mxu0 0.0
      %806 = vmatmul.mubr.f32.gmra.mrb[0].mxu0 %v310
      %v807 = vpop.f32.mrb[0].mxu0
      %v808 = vadd.f32 %v389, %v807
      %v809 = vpop.f32.mrb[0].mxu0
      %810 = vmatprep.mubr.f32.mxu0 0.0
      %811 = vmatmul.mubr.f32.gmra.mrb[0].mxu0 %v311
      %v812 = vpop.f32.mrb[0].mxu0
      %v813 = vadd.f32 %v389, %v812
      %v814 = vpop.f32.mrb[0].mxu0
      %815 = vmatprep.mubr.f32.mxu0 0.0
      %816 = vmatmul.mubr.f32.gmra.mrb[0].mxu0 %v312
      %v817 = vpop.f32.mrb[0].mxu0
      %v818 = vadd.f32 %v389, %v817
      %v819 = vpop.f32.mrb[0].mxu0
      %820 = vmatprep.mubr.f32.mxu0 0.0
      %821 = vmatmul.mubr.f32.gmra.mrb[0].mxu0 %v313
      %v822 = vpop.f32.mrb[0].mxu0
      %v823 = vadd.f32 %v389, %v822
      %v824 = vpop.f32.mrb[0].mxu0
      %825 = vmatprep.mubr.f32.mxu0 0.0
      %826 = vmatmul.mubr.f32.gmra.mrb[0].mxu0 %v314
      %v827 = vpop.f32.mrb[0].mxu0
      %v828 = vadd.f32 %v389, %v827
      %v829 = vpop.f32.mrb[0].mxu0
      %830 = vmatprep.mubr.f32.mxu0 0.0
      %831 = vmatmul.mubr.f32.gmra.mrb[0].mxu0 %v315
      %v832 = vpop.f32.mrb[0].mxu0
      %v833 = vadd.f32 %v389, %v832
      %v834 = vpop.f32.mrb[0].mxu0
      %835 = vmatprep.mubr.f32.mxu0 0.0
      %836 = vmatmul.mubr.f32.gmra.mrb[0].mxu0 %v316
      %v837 = vpop.f32.mrb[0].mxu0
      %v838 = vadd.f32 %v389, %v837
      %v839 = vpop.f32.mrb[0].mxu0
      %840 = vmatprep.mubr.f32.mxu0 0.0
      %841 = vmatmul.mubr.f32.gmra.mrb[0].mxu0 %v317
      %v842 = vpop.f32.mrb[0].mxu0
      %v843 = vadd.f32 %v389, %v842
      %v844 = vpop.f32.mrb[0].mxu0
      %845 = vmatprep.mubr.f32.mxu0 0.0
      %846 = vmatmul.mubr.f32.gmra.mrb[0].mxu0 %v318
      %v847 = vpop.f32.mrb[0].mxu0
      %v848 = vadd.f32 %v389, %v847
      %v849 = vpop.f32.mrb[0].mxu0
      %850 = vmatprep.mubr.f32.mxu0 0.0
      %851 = vmatmul.mubr.f32.gmra.mrb[0].mxu0 %v319
      %v852 = vpop.f32.mrb[0].mxu0
      %v853 = vadd.f32 %v389, %v852
      %v854 = vpop.f32.mrb[0].mxu0
      %855 = vmatprep.mubr.f32.mxu0 0.0
      %856 = vmatmul.mubr.f32.gmra.mrb[0].mxu0 %v320
      %v857 = vpop.f32.mrb[0].mxu0
      %v858 = vadd.f32 %v389, %v857
      %v859 = vpop.f32.mrb[0].mxu0
      %860 = vmatprep.mubr.f32.mxu0 0.0
      %861 = vmatmul.mubr.f32.gmra.mrb[0].mxu0 %v321
      %v862 = vpop.f32.mrb[0].mxu0
      %v863 = vadd.f32 %v389, %v862
      %v864 = vpop.f32.mrb[0].mxu0
      %865 = vmatprep.mubr.f32.mxu0 0.0
      %866 = vmatmul.mubr.f32.gmra.mrb[0].mxu0 %v322
      %v867 = vpop.f32.mrb[0].mxu0
      %v868 = vadd.f32 %v389, %v867
      %v869 = vpop.f32.mrb[0].mxu0
      %870 = vmatprep.mubr.f32.mxu0 0.0
      %871 = vmatmul.mubr.f32.gmra.mrb[0].mxu0 %v323
      %v872 = vpop.f32.mrb[0].mxu0
      %v873 = vadd.f32 %v389, %v872
      %v874 = vpop.f32.mrb[0].mxu0
      %875 = vmatprep.mubr.f32.mxu0 0.0
      %876 = vmatmul.mubr.f32.gmra.mrb[0].mxu0 %v324
      %v877 = vpop.f32.mrb[0].mxu0
      %v878 = vadd.f32 %v389, %v877
      %v879 = vpop.f32.mrb[0].mxu0
      %880 = vmatprep.mubr.f32.mxu0 0.0
      %881 = vmatmul.mubr.f32.gmra.mrb[0].mxu0 %v325
      %v882 = vpop.f32.mrb[0].mxu0
      %v883 = vadd.f32 %v389, %v882
      %v884 = vpop.f32.mrb[0].mxu0
      %885 = vmatprep.mubr.f32.mxu0 0.0
      %886 = vmatmul.mubr.f32.gmra.mrb[0].mxu0 %v326
      %v887 = vpop.f32.mrb[0].mxu0
      %v888 = vadd.f32 %v389, %v887
      %v889 = vpop.f32.mrb[0].mxu0
      %890 = vmatprep.mubr.f32.mxu0 0.0
      %891 = vmatmul.mubr.f32.gmra.mrb[0].mxu0 %v327
      %v892 = vpop.f32.mrb[0].mxu0
      %v893 = vadd.f32 %v389, %v892
      %v894 = vpop.f32.mrb[0].mxu0
      %895 = vmatprep.mubr.f32.mxu0 0.0
      %896 = vmatmul.mubr.f32.gmra.mrb[0].mxu0 %v328
      %v897 = vpop.f32.mrb[0].mxu0
      %v898 = vadd.f32 %v389, %v897
      %v899 = vpop.f32.mrb[0].mxu0
      %900 = vmatprep.mubr.f32.mxu0 0.0
      %901 = vmatmul.mubr.f32.gmra.mrb[0].mxu0 %v329
      %v902 = vpop.f32.mrb[0].mxu0
      %v903 = vadd.f32 %v389, %v902
      %v904 = vpop.f32.mrb[0].mxu0
      %905 = vmatprep.mubr.f32.mxu0 0.0
      %906 = vmatmul.mubr.f32.gmra.mrb[0].mxu0 %v330
      %v907 = vpop.f32.mrb[0].mxu0
      %v908 = vadd.f32 %v389, %v907
      %v909 = vpop.f32.mrb[0].mxu0
      %910 = vmatprep.mubr.f32.mxu0 0.0
      %911 = vmatmul.mubr.f32.gmra.mrb[0].mxu0 %v331
      %v912 = vpop.f32.mrb[0].mxu0
      %v913 = vadd.f32 %v389, %v912
      %v914 = vpop.f32.mrb[0].mxu0
      %915 = vmatprep.mubr.f32.mxu0 0.0
      %916 = vmatmul.mubr.f32.gmra.mrb[0].mxu0 %v332
      %v917 = vpop.f32.mrb[0].mxu0
      %v918 = vadd.f32 %v389, %v917
      %v919 = vpop.f32.mrb[0].mxu0
      %920 = vmatprep.mubr.f32.mxu0 0.0
      %921 = vmatmul.mubr.f32.gmra.mrb[0].mxu0 %v333
      %v922 = vpop.f32.mrb[0].mxu0
      %v923 = vadd.f32 %v389, %v922
      %v924 = vpop.f32.mrb[0].mxu0
      %925 = vmatprep.mubr.f32.mxu0 0.0
      %926 = vmatmul.mubr.f32.gmra.mrb[0].mxu0 %v334
      %v927 = vpop.f32.mrb[0].mxu0
      %v928 = vadd.f32 %v389, %v927
      %v929 = vpop.f32.mrb[0].mxu0
      %930 = vmatprep.mubr.f32.mxu0 0.0
      %931 = vmatmul.mubr.f32.gmra.mrb[0].mxu0 %v335
      %v932 = vpop.f32.mrb[0].mxu0
      %v933 = vadd.f32 %v389, %v932
      %v934 = vpop.f32.mrb[0].mxu0
      %935 = vmatprep.mubr.f32.mxu0 0.0
      %936 = vmatmul.mubr.f32.gmra.mrb[0].mxu0 %v336
      %v937 = vpop.f32.mrb[0].mxu0
      %v938 = vadd.f32 %v389, %v937
      %v939 = vpop.f32.mrb[0].mxu0
      %940 = vmatprep.mubr.f32.mxu0 0.0
      %941 = vmatmul.mubr.f32.gmra.mrb[0].mxu0 %v337
      %v942 = vpop.f32.mrb[0].mxu0
      %v943 = vadd.f32 %v389, %v942
      %v944 = vpop.f32.mrb[0].mxu0
      %945 = vmatprep.mubr.f32.mxu0 0.0
      %946 = vmatmul.mubr.f32.gmra.mrb[0].mxu0 %v338
      %v947 = vpop.f32.mrb[0].mxu0
      %v948 = vadd.f32 %v389, %v947
      %v949 = vpop.f32.mrb[0].mxu0
      %950 = vmatprep.mubr.f32.mxu0 0.0
      %951 = vmatmul.mubr.f32.gmra.mrb[0].mxu0 %v339
      %v952 = vpop.f32.mrb[0].mxu0
      %v953 = vadd.f32 %v389, %v952
      %v954 = vpop.f32.mrb[0].mxu0
      %955 = vmatprep.mubr.f32.mxu0 0.0
      %956 = vmatmul.mubr.f32.gmra.mrb[0].mxu0 %v340
      %v957 = vpop.f32.mrb[0].mxu0
      %v958 = vadd.f32 %v389, %v957
      %v959 = vpop.f32.mrb[0].mxu0
      %960 = vmatprep.mubr.f32.mxu0 0.0
      %961 = vmatmul.mubr.f32.gmra.mrb[0].mxu0 %v341
      %v962 = vpop.f32.mrb[0].mxu0
      %v963 = vadd.f32 %v389, %v962
      %v964 = vpop.f32.mrb[0].mxu0
      %965 = vmatprep.mubr.f32.mxu0 0.0
      %966 = vmatmul.mubr.f32.gmra.mrb[0].mxu0 %v342
      %v967 = vpop.f32.mrb[0].mxu0
      %v968 = vadd.f32 %v389, %v967
      %v969 = vpop.f32.mrb[0].mxu0
      %970 = vmatprep.mubr.f32.mxu0 0.0
      %971 = vmatmul.mubr.f32.gmra.mrb[0].mxu0 %v343
      %v972 = vpop.f32.mrb[0].mxu0
      %v973 = vadd.f32 %v389, %v972
      %v974 = vpop.f32.mrb[0].mxu0
      %975 = vmatprep.mubr.f32.mxu0 0.0
      %976 = vmatmul.mubr.f32.gmra.mrb[0].mxu0 %v344
      %v977 = vpop.f32.mrb[0].mxu0
      %v978 = vadd.f32 %v389, %v977
      %v979 = vpop.f32.mrb[0].mxu0
      %980 = vmatprep.mubr.f32.mxu0 0.0
      %981 = vmatmul.mubr.f32.gmra.mrb[0].mxu0 %v345
      %v982 = vpop.f32.mrb[0].mxu0
      %v983 = vadd.f32 %v389, %v982
      %v984 = vpop.f32.mrb[0].mxu0
      %985 = vmatprep.mubr.f32.mxu0 0.0
      %986 = vmatmul.mubr.f32.gmra.mrb[0].mxu0 %v346
      %v987 = vpop.f32.mrb[0].mxu0
      %v988 = vadd.f32 %v389, %v987
      %v989 = vpop.f32.mrb[0].mxu0
      %990 = vmatprep.mubr.f32.mxu0 0.0
      %991 = vmatmul.mubr.f32.gmra.mrb[0].mxu0 %v347
      %v992 = vpop.f32.mrb[0].mxu0
      %v993 = vadd.f32 %v389, %v992
      %v994 = vpop.f32.mrb[0].mxu0
      %995 = vmatprep.mubr.f32.mxu0 0.0
      %996 = vmatmul.mubr.f32.gmra.mrb[0].mxu0 %v348
      %v997 = vpop.f32.mrb[0].mxu0
      %v998 = vadd.f32 %v389, %v997
      %v999 = vpop.f32.mrb[0].mxu0
      %1000 = vmatprep.mubr.f32.mxu0 0.0
      %1001 = vmatmul.mubr.f32.gmra.mrb[0].mxu0 %v349
      %v1002 = vpop.f32.mrb[0].mxu0
      %v1003 = vadd.f32 %v389, %v1002
      %v1004 = vpop.f32.mrb[0].mxu0
      %1005 = vmatprep.mubr.f32.mxu0 0.0
      %1006 = vmatmul.mubr.f32.gmra.mrb[0].mxu0 %v350
      %v1007 = vpop.f32.mrb[0].mxu0
      %v1008 = vadd.f32 %v389, %v1007
      %v1009 = vpop.f32.mrb[0].mxu0
      %1010 = vmatprep.mubr.f32.mxu0 0.0
      %1011 = vmatmul.mubr.f32.gmra.mrb[0].mxu0 %v351
      %v1012 = vpop.f32.mrb[0].mxu0
      %v1013 = vadd.f32 %v389, %v1012
      %v1014 = vpop.f32.mrb[0].mxu0
      %1015 = vmatprep.mubr.f32.mxu0 0.0
      %1016 = vmatmul.mubr.f32.gmra.mrb[0].mxu0 %v352
      %v1017 = vpop.f32.mrb[0].mxu0
      %v1018 = vadd.f32 %v389, %v1017
      %v1019 = vpop.f32.mrb[0].mxu0
      %1020 = vmatprep.mubr.f32.mxu0 0.0
      %1021 = vmatmul.mubr.f32.gmra.mrb[0].mxu0 %v353
      %v1022 = vpop.f32.mrb[0].mxu0
      %v1023 = vadd.f32 %v389, %v1022
      %v1024 = vpop.f32.mrb[0].mxu0
      %1025 = vmatprep.mubr.f32.mxu0 0.0
      %1026 = vmatmul.mubr.f32.gmra.mrb[0].mxu0 %v354
      %v1027 = vpop.f32.mrb[0].mxu0
      %v1028 = vadd.f32 %v389, %v1027
      %v1029 = vpop.f32.mrb[0].mxu0
      %1030 = vmatprep.mubr.f32.mxu0 0.0
      %1031 = vmatmul.mubr.f32.gmra.mrb[0].mxu0 %v355
      %v1032 = vpop.f32.mrb[0].mxu0
      %v1033 = vadd.f32 %v389, %v1032
      %v1034 = vpop.f32.mrb[0].mxu0
      %1035 = vmatprep.mubr.f32.mxu0 0.0
      %1036 = vmatmul.mubr.f32.gmra.mrb[0].mxu0 %v356
      %v1037 = vpop.f32.mrb[0].mxu0
      %v1038 = vadd.f32 %v389, %v1037
      %v1039 = vpop.f32.mrb[0].mxu0
      %1040 = vmatprep.mubr.f32.mxu0 0.0
      %1041 = vmatmul.mubr.f32.gmra.mrb[0].mxu0 %v357
      %v1042 = vpop.f32.mrb[0].mxu0
      %v1043 = vadd.f32 %v389, %v1042
      %v1044 = vpop.f32.mrb[0].mxu0
      %1045 = vmatprep.mubr.f32.mxu0 0.0
      %1046 = vmatmul.mubr.f32.gmra.mrb[0].mxu0 %v358
      %v1047 = vpop.f32.mrb[0].mxu0
      %v1048 = vadd.f32 %v389, %v1047
      %v1049 = vpop.f32.mrb[0].mxu0
      %1050 = vmatprep.mubr.f32.mxu0 0.0
      %1051 = vmatmul.mubr.f32.gmra.mrb[0].mxu0 %v359
      %v1052 = vpop.f32.mrb[0].mxu0
      %v1053 = vadd.f32 %v389, %v1052
      %v1054 = vpop.f32.mrb[0].mxu0
      %1055 = vmatprep.mubr.f32.mxu0 0.0
      %1056 = vmatmul.mubr.f32.gmra.mrb[0].mxu0 %v360
      %v1057 = vpop.f32.mrb[0].mxu0
      %v1058 = vadd.f32 %v389, %v1057
      %v1059 = vpop.f32.mrb[0].mxu0
      %1060 = vmatprep.mubr.f32.mxu0 0.0
      %1061 = vmatmul.mubr.f32.gmra.mrb[0].mxu0 %v361
      %v1062 = vpop.f32.mrb[0].mxu0
      %v1063 = vadd.f32 %v389, %v1062
      %v1064 = vpop.f32.mrb[0].mxu0
      %1065 = vmatprep.mubr.f32.mxu0 0.0
      %1066 = vmatmul.mubr.f32.gmra.mrb[0].mxu0 %v362
      %v1067 = vpop.f32.mrb[0].mxu0
      %v1068 = vadd.f32 %v389, %v1067
      %v1069 = vpop.f32.mrb[0].mxu0
      %1070 = vmatprep.mubr.f32.mxu0 0.0
      %1071 = vmatmul.mubr.f32.gmra.mrb[0].mxu0 %v363
      %v1072 = vpop.f32.mrb[0].mxu0
      %v1073 = vadd.f32 %v389, %v1072
      %v1074 = vpop.f32.mrb[0].mxu0
      %1075 = vmatprep.mubr.f32.mxu0 0.0
      %1076 = vmatmul.mubr.f32.gmra.mrb[0].mxu0 %v364
      %v1077 = vpop.f32.mrb[0].mxu0
      %v1078 = vadd.f32 %v389, %v1077
      %v1079 = vpop.f32.mrb[0].mxu0
      %1080 = vmatprep.mubr.f32.mxu0 0.0
      %1081 = vmatmul.mubr.f32.gmra.mrb[0].mxu0 %v365
      %v1082 = vpop.f32.mrb[0].mxu0
      %v1083 = vadd.f32 %v389, %v1082
      %v1084 = vpop.f32.mrb[0].mxu0
      %1085 = vmatprep.mubr.f32.mxu0 0.0
      %1086 = vmatmul.mubr.f32.gmra.mrb[0].mxu0 %v366
      %v1087 = vpop.f32.mrb[0].mxu0
      %v1088 = vadd.f32 %v389, %v1087
      %v1089 = vpop.f32.mrb[0].mxu0
      %1090 = vmatprep.mubr.f32.mxu0 0.0
      %1091 = vmatmul.mubr.f32.gmra.mrb[0].mxu0 %v367
      %v1092 = vpop.f32.mrb[0].mxu0
      %v1093 = vadd.f32 %v389, %v1092
      %v1094 = vpop.f32.mrb[0].mxu0
      %1095 = vdwg.mxu0
      %p1096 = scmp.eq.s32.totalorder %s20, 0
      %p1097 = scmp.eq.s32.totalorder %s21, 0
      %p1098 = pnand %p1096, %p1097
      %p1099 = pneg %p1098
      // Predicated region
      $region41: #{dogs_cats_forward.4} parent=39 // pred_check
        _
      $region42: #{dogs_cats_forward.4} parent=39 // pred_check_branch
        %1101 = sbr.rel (%p1098) target = $region44
      $region43: #{dogs_cats_forward.4} parent=39 // pred_region
        %1102 = vst [vmem:[#allocation2] sm:$0x1] 0.0
        %1103 = vst [vmem:[#allocation3] sm:$0x1] 0.0
      $region44: #{dogs_cats_forward.4} parent=39 // pred_fallthru
        _
      // Predicated region
      $region45: #{dogs_cats_forward.4} parent=39 // pred_check
        %p1104 = pneg %p1096
      $region46: #{dogs_cats_forward.4} parent=39 // pred_check_branch
        %1106 = sbr.rel (%p1104) target = $region48
      $region47: #{dogs_cats_forward.4} parent=39 // pred_region
        %v1107 = vld [vmem:[#allocation2] sm:$0x1]
        %v1108 = vadd.f32 %v458, %v463
        %v1109 = vadd.f32 %v1108, %v468
        %v1110 = vadd.f32 %v1109, %v473
        %v1111 = vadd.f32 %v1110, %v478
        %v1112 = vadd.f32 %v1111, %v483
        %v1113 = vadd.f32 %v1112, %v488
        %v1114 = vadd.f32 %v1113, %v493
        %v1115 = vadd.f32 %v1114, %v498
        %v1116 = vadd.f32 %v1115, %v503
        %v1117 = vadd.f32 %v1116, %v508
        %v1118 = vadd.f32 %v1117, %v513
        %v1119 = vadd.f32 %v1118, %v518
        %v1120 = vadd.f32 %v1119, %v523
        %v1121 = vadd.f32 %v1120, %v528
        %v1122 = vadd.f32 %v1121, %v533
        %v1123 = vadd.f32 %v1122, %v538
        %v1124 = vadd.f32 %v1123, %v543
        %v1125 = vadd.f32 %v1124, %v548
        %v1126 = vadd.f32 %v1125, %v553
        %v1127 = vadd.f32 %v1126, %v558
        %v1128 = vadd.f32 %v1127, %v563
        %v1129 = vadd.f32 %v1128, %v568
        %v1130 = vadd.f32 %v1129, %v573
        %v1131 = vadd.f32 %v1130, %v578
        %v1132 = vadd.f32 %v1131, %v583
        %v1133 = vadd.f32 %v1132, %v588
        %v1134 = vadd.f32 %v1133, %v593
        %v1135 = vadd.f32 %v1134, %v598
        %v1136 = vadd.f32 %v1135, %v603
        %v1137 = vadd.f32 %v1136, %v608
        %v1138 = vadd.f32 %v1137, %v613
        %v1139 = vadd.f32 %v1138, %v618
        %v1140 = vadd.f32 %v1139, %v623
        %v1141 = vadd.f32 %v1140, %v628
        %v1142 = vadd.f32 %v1141, %v633
        %v1143 = vadd.f32 %v1142, %v638
        %v1144 = vadd.f32 %v1143, %v643
        %v1145 = vadd.f32 %v1144, %v648
        %v1146 = vadd.f32 %v1145, %v653
        %v1147 = vadd.f32 %v1146, %v658
        %v1148 = vadd.f32 %v1147, %v663
        %v1149 = vadd.f32 %v1148, %v668
        %v1150 = vadd.f32 %v1149, %v673
        %v1151 = vadd.f32 %v1150, %v678
        %v1152 = vadd.f32 %v1151, %v683
        %v1153 = vadd.f32 %v1152, %v688
        %v1154 = vadd.f32 %v1153, %v693
        %v1155 = vadd.f32 %v1154, %v698
        %v1156 = vadd.f32 %v1155, %v703
        %v1157 = vadd.f32 %v1156, %v708
        %v1158 = vadd.f32 %v1157, %v713
        %v1159 = vadd.f32 %v1158, %v718
        %v1160 = vadd.f32 %v1159, %v723
        %v1161 = vadd.f32 %v1160, %v728
        %v1162 = vadd.f32 %v1161, %v733
        %v1163 = vadd.f32 %v1162, %v738
        %v1164 = vadd.f32 %v1163, %v743
        %v1165 = vadd.f32 %v1164, %v748
        %v1166 = vadd.f32 %v1165, %v753
        %v1167 = vadd.f32 %v1166, %v758
        %v1168 = vadd.f32 %v1167, %v763
        %v1169 = vadd.f32 %v1168, %v768
        %v1170 = vadd.f32 %v1169, %v773
        %v1171 = vadd.f32 %v1170, %v778
        %v1172 = vadd.f32 %v1171, %v783
        %v1173 = vadd.f32 %v1172, %v788
        %v1174 = vadd.f32 %v1173, %v793
        %v1175 = vadd.f32 %v1174, %v798
        %v1176 = vadd.f32 %v1175, %v803
        %v1177 = vadd.f32 %v1176, %v808
        %v1178 = vadd.f32 %v1177, %v813
        %v1179 = vadd.f32 %v1178, %v818
        %v1180 = vadd.f32 %v1179, %v823
        %v1181 = vadd.f32 %v1180, %v828
        %v1182 = vadd.f32 %v1181, %v833
        %v1183 = vadd.f32 %v1182, %v838
        %v1184 = vadd.f32 %v1183, %v843
        %v1185 = vadd.f32 %v1184, %v848
        %v1186 = vadd.f32 %v1185, %v853
        %v1187 = vadd.f32 %v1186, %v858
        %v1188 = vadd.f32 %v1187, %v863
        %v1189 = vadd.f32 %v1188, %v868
        %v1190 = vadd.f32 %v1189, %v873
        %v1191 = vadd.f32 %v1190, %v878
        %v1192 = vadd.f32 %v1191, %v883
        %v1193 = vadd.f32 %v1192, %v888
        %v1194 = vadd.f32 %v1193, %v893
        %v1195 = vadd.f32 %v1194, %v898
        %v1196 = vadd.f32 %v1195, %v903
        %v1197 = vadd.f32 %v1196, %v908
        %v1198 = vadd.f32 %v1197, %v913
        %v1199 = vadd.f32 %v1198, %v918
        %v1200 = vadd.f32 %v1199, %v923
        %v1201 = vadd.f32 %v1200, %v928
        %v1202 = vadd.f32 %v1201, %v933
        %v1203 = vadd.f32 %v1202, %v938
        %v1204 = vadd.f32 %v1203, %v943
        %v1205 = vadd.f32 %v1204, %v948
        %v1206 = vadd.f32 %v1205, %v953
        %v1207 = vadd.f32 %v1206, %v958
        %v1208 = vadd.f32 %v1207, %v963
        %v1209 = vadd.f32 %v1208, %v968
        %v1210 = vadd.f32 %v1209, %v973
        %v1211 = vadd.f32 %v1210, %v978
        %v1212 = vadd.f32 %v1211, %v983
        %v1213 = vadd.f32 %v1212, %v988
        %v1214 = vadd.f32 %v1213, %v993
        %v1215 = vadd.f32 %v1214, %v998
        %v1216 = vadd.f32 %v1215, %v1003
        %v1217 = vadd.f32 %v1216, %v1008
        %v1218 = vadd.f32 %v1217, %v1013
        %v1219 = vadd.f32 %v1218, %v1018
        %v1220 = vadd.f32 %v1219, %v1023
        %v1221 = vadd.f32 %v1220, %v1028
        %v1222 = vadd.f32 %v1221, %v1033
        %v1223 = vadd.f32 %v1222, %v1038
        %v1224 = vadd.f32 %v1223, %v1043
        %v1225 = vadd.f32 %v1224, %v1048
        %v1226 = vadd.f32 %v1225, %v1053
        %v1227 = vadd.f32 %v1226, %v1058
        %v1228 = vadd.f32 %v1227, %v1063
        %v1229 = vadd.f32 %v1228, %v1068
        %v1230 = vadd.f32 %v1229, %v1073
        %v1231 = vadd.f32 %v1230, %v1078
        %v1232 = vadd.f32 %v1231, %v1083
        %v1233 = vadd.f32 %v1232, %v1088
        %v1234 = vadd.f32 %v1233, %v1093
        %v1235 = vrot.slane %v1234, 4
        %v1236 = vadd.f32 %v1234, %v1235
        %v1237 = vrot.slane %v1236, 2
        %v1238 = vadd.f32 %v1236, %v1237
        %v1239 = vrot.slane %v1238, 1
        %v1240 = vadd.f32 %v1238, %v1239
        %v1241 = vadd.f32 %v1107, %v1240
        %1242 = vst [vmem:[#allocation2] sm:$0x1] %v1241
        %v1243 = vld [vmem:[#allocation3] sm:$0x1]
        %v1244 = vmul.f32 %v458, %v458
        %v1245 = vmul.f32 %v463, %v463
        %v1246 = vmul.f32 %v468, %v468
        %v1247 = vmul.f32 %v473, %v473
        %v1248 = vmul.f32 %v478, %v478
        %v1249 = vmul.f32 %v483, %v483
        %v1250 = vmul.f32 %v488, %v488
        %v1251 = vmul.f32 %v493, %v493
        %v1252 = vmul.f32 %v498, %v498
        %v1253 = vmul.f32 %v503, %v503
        %v1254 = vmul.f32 %v508, %v508
        %v1255 = vmul.f32 %v513, %v513
        %v1256 = vmul.f32 %v518, %v518
        %v1257 = vmul.f32 %v523, %v523
        %v1258 = vmul.f32 %v528, %v528
        %v1259 = vmul.f32 %v533, %v533
        %v1260 = vmul.f32 %v538, %v538
        %v1261 = vmul.f32 %v543, %v543
        %v1262 = vmul.f32 %v548, %v548
        %v1263 = vmul.f32 %v553, %v553
        %v1264 = vmul.f32 %v558, %v558
        %v1265 = vmul.f32 %v563, %v563
        %v1266 = vmul.f32 %v568, %v568
        %v1267 = vmul.f32 %v573, %v573
        %v1268 = vmul.f32 %v578, %v578
        %v1269 = vmul.f32 %v583, %v583
        %v1270 = vmul.f32 %v588, %v588
        %v1271 = vmul.f32 %v593, %v593
        %v1272 = vmul.f32 %v598, %v598
        %v1273 = vmul.f32 %v603, %v603
        %v1274 = vmul.f32 %v608, %v608
        %v1275 = vmul.f32 %v613, %v613
        %v1276 = vmul.f32 %v618, %v618
        %v1277 = vmul.f32 %v623, %v623
        %v1278 = vmul.f32 %v628, %v628
        %v1279 = vmul.f32 %v633, %v633
        %v1280 = vmul.f32 %v638, %v638
        %v1281 = vmul.f32 %v643, %v643
        %v1282 = vmul.f32 %v648, %v648
        %v1283 = vmul.f32 %v653, %v653
        %v1284 = vmul.f32 %v658, %v658
        %v1285 = vmul.f32 %v663, %v663
        %v1286 = vmul.f32 %v668, %v668
        %v1287 = vmul.f32 %v673, %v673
        %v1288 = vmul.f32 %v678, %v678
        %v1289 = vmul.f32 %v683, %v683
        %v1290 = vmul.f32 %v688, %v688
        %v1291 = vmul.f32 %v693, %v693
        %v1292 = vmul.f32 %v698, %v698
        %v1293 = vmul.f32 %v703, %v703
        %v1294 = vmul.f32 %v708, %v708
        %v1295 = vmul.f32 %v713, %v713
        %v1296 = vmul.f32 %v718, %v718
        %v1297 = vmul.f32 %v723, %v723
        %v1298 = vmul.f32 %v728, %v728
        %v1299 = vmul.f32 %v733, %v733
        %v1300 = vmul.f32 %v738, %v738
        %v1301 = vmul.f32 %v743, %v743
        %v1302 = vmul.f32 %v748, %v748
        %v1303 = vmul.f32 %v753, %v753
        %v1304 = vmul.f32 %v758, %v758
        %v1305 = vmul.f32 %v763, %v763
        %v1306 = vmul.f32 %v768, %v768
        %v1307 = vmul.f32 %v773, %v773
        %v1308 = vmul.f32 %v778, %v778
        %v1309 = vmul.f32 %v783, %v783
        %v1310 = vmul.f32 %v788, %v788
        %v1311 = vmul.f32 %v793, %v793
        %v1312 = vmul.f32 %v798, %v798
        %v1313 = vmul.f32 %v803, %v803
        %v1314 = vmul.f32 %v808, %v808
        %v1315 = vmul.f32 %v813, %v813
        %v1316 = vmul.f32 %v818, %v818
        %v1317 = vmul.f32 %v823, %v823
        %v1318 = vmul.f32 %v828, %v828
        %v1319 = vmul.f32 %v833, %v833
        %v1320 = vmul.f32 %v838, %v838
        %v1321 = vmul.f32 %v843, %v843
        %v1322 = vmul.f32 %v848, %v848
        %v1323 = vmul.f32 %v853, %v853
        %v1324 = vmul.f32 %v858, %v858
        %v1325 = vmul.f32 %v863, %v863
        %v1326 = vmul.f32 %v868, %v868
        %v1327 = vmul.f32 %v873, %v873
        %v1328 = vmul.f32 %v878, %v878
        %v1329 = vmul.f32 %v883, %v883
        %v1330 = vmul.f32 %v888, %v888
        %v1331 = vmul.f32 %v893, %v893
        %v1332 = vmul.f32 %v898, %v898
        %v1333 = vmul.f32 %v903, %v903
        %v1334 = vmul.f32 %v908, %v908
        %v1335 = vmul.f32 %v913, %v913
        %v1336 = vmul.f32 %v918, %v918
        %v1337 = vmul.f32 %v923, %v923
        %v1338 = vmul.f32 %v928, %v928
        %v1339 = vmul.f32 %v933, %v933
        %v1340 = vmul.f32 %v938, %v938
        %v1341 = vmul.f32 %v943, %v943
        %v1342 = vmul.f32 %v948, %v948
        %v1343 = vmul.f32 %v953, %v953
        %v1344 = vmul.f32 %v958, %v958
        %v1345 = vmul.f32 %v963, %v963
        %v1346 = vmul.f32 %v968, %v968
        %v1347 = vmul.f32 %v973, %v973
        %v1348 = vmul.f32 %v978, %v978
        %v1349 = vmul.f32 %v983, %v983
        %v1350 = vmul.f32 %v988, %v988
        %v1351 = vmul.f32 %v993, %v993
        %v1352 = vmul.f32 %v998, %v998
        %v1353 = vmul.f32 %v1003, %v1003
        %v1354 = vmul.f32 %v1008, %v1008
        %v1355 = vmul.f32 %v1013, %v1013
        %v1356 = vmul.f32 %v1018, %v1018
        %v1357 = vmul.f32 %v1023, %v1023
        %v1358 = vmul.f32 %v1028, %v1028
        %v1359 = vmul.f32 %v1033, %v1033
        %v1360 = vmul.f32 %v1038, %v1038
        %v1361 = vmul.f32 %v1043, %v1043
        %v1362 = vmul.f32 %v1048, %v1048
        %v1363 = vmul.f32 %v1053, %v1053
        %v1364 = vmul.f32 %v1058, %v1058
        %v1365 = vmul.f32 %v1063, %v1063
        %v1366 = vmul.f32 %v1068, %v1068
        %v1367 = vmul.f32 %v1073, %v1073
        %v1368 = vmul.f32 %v1078, %v1078
        %v1369 = vmul.f32 %v1083, %v1083
        %v1370 = vmul.f32 %v1088, %v1088
        %v1371 = vmul.f32 %v1093, %v1093
        %v1372 = vadd.f32 %v1244, %v1245
        %v1373 = vadd.f32 %v1372, %v1246
        %v1374 = vadd.f32 %v1373, %v1247
        %v1375 = vadd.f32 %v1374, %v1248
        %v1376 = vadd.f32 %v1375, %v1249
        %v1377 = vadd.f32 %v1376, %v1250
        %v1378 = vadd.f32 %v1377, %v1251
        %v1379 = vadd.f32 %v1378, %v1252
        %v1380 = vadd.f32 %v1379, %v1253
        %v1381 = vadd.f32 %v1380, %v1254
        %v1382 = vadd.f32 %v1381, %v1255
        %v1383 = vadd.f32 %v1382, %v1256
        %v1384 = vadd.f32 %v1383, %v1257
        %v1385 = vadd.f32 %v1384, %v1258
        %v1386 = vadd.f32 %v1385, %v1259
        %v1387 = vadd.f32 %v1386, %v1260
        %v1388 = vadd.f32 %v1387, %v1261
        %v1389 = vadd.f32 %v1388, %v1262
        %v1390 = vadd.f32 %v1389, %v1263
        %v1391 = vadd.f32 %v1390, %v1264
        %v1392 = vadd.f32 %v1391, %v1265
        %v1393 = vadd.f32 %v1392, %v1266
        %v1394 = vadd.f32 %v1393, %v1267
        %v1395 = vadd.f32 %v1394, %v1268
        %v1396 = vadd.f32 %v1395, %v1269
        %v1397 = vadd.f32 %v1396, %v1270
        %v1398 = vadd.f32 %v1397, %v1271
        %v1399 = vadd.f32 %v1398, %v1272
        %v1400 = vadd.f32 %v1399, %v1273
        %v1401 = vadd.f32 %v1400, %v1274
        %v1402 = vadd.f32 %v1401, %v1275
        %v1403 = vadd.f32 %v1402, %v1276
        %v1404 = vadd.f32 %v1403, %v1277
        %v1405 = vadd.f32 %v1404, %v1278
        %v1406 = vadd.f32 %v1405, %v1279
        %v1407 = vadd.f32 %v1406, %v1280
        %v1408 = vadd.f32 %v1407, %v1281
        %v1409 = vadd.f32 %v1408, %v1282
        %v1410 = vadd.f32 %v1409, %v1283
        %v1411 = vadd.f32 %v1410, %v1284
        %v1412 = vadd.f32 %v1411, %v1285
        %v1413 = vadd.f32 %v1412, %v1286
        %v1414 = vadd.f32 %v1413, %v1287
        %v1415 = vadd.f32 %v1414, %v1288
        %v1416 = vadd.f32 %v1415, %v1289
        %v1417 = vadd.f32 %v1416, %v1290
        %v1418 = vadd.f32 %v1417, %v1291
        %v1419 = vadd.f32 %v1418, %v1292
        %v1420 = vadd.f32 %v1419, %v1293
        %v1421 = vadd.f32 %v1420, %v1294
        %v1422 = vadd.f32 %v1421, %v1295
        %v1423 = vadd.f32 %v1422, %v1296
        %v1424 = vadd.f32 %v1423, %v1297
        %v1425 = vadd.f32 %v1424, %v1298
        %v1426 = vadd.f32 %v1425, %v1299
        %v1427 = vadd.f32 %v1426, %v1300
        %v1428 = vadd.f32 %v1427, %v1301
        %v1429 = vadd.f32 %v1428, %v1302
        %v1430 = vadd.f32 %v1429, %v1303
        %v1431 = vadd.f32 %v1430, %v1304
        %v1432 = vadd.f32 %v1431, %v1305
        %v1433 = vadd.f32 %v1432, %v1306
        %v1434 = vadd.f32 %v1433, %v1307
        %v1435 = vadd.f32 %v1434, %v1308
        %v1436 = vadd.f32 %v1435, %v1309
        %v1437 = vadd.f32 %v1436, %v1310
        %v1438 = vadd.f32 %v1437, %v1311
        %v1439 = vadd.f32 %v1438, %v1312
        %v1440 = vadd.f32 %v1439, %v1313
        %v1441 = vadd.f32 %v1440, %v1314
        %v1442 = vadd.f32 %v1441, %v1315
        %v1443 = vadd.f32 %v1442, %v1316
        %v1444 = vadd.f32 %v1443, %v1317
        %v1445 = vadd.f32 %v1444, %v1318
        %v1446 = vadd.f32 %v1445, %v1319
        %v1447 = vadd.f32 %v1446, %v1320
        %v1448 = vadd.f32 %v1447, %v1321
        %v1449 = vadd.f32 %v1448, %v1322
        %v1450 = vadd.f32 %v1449, %v1323
        %v1451 = vadd.f32 %v1450, %v1324
        %v1452 = vadd.f32 %v1451, %v1325
        %v1453 = vadd.f32 %v1452, %v1326
        %v1454 = vadd.f32 %v1453, %v1327
        %v1455 = vadd.f32 %v1454, %v1328
        %v1456 = vadd.f32 %v1455, %v1329
        %v1457 = vadd.f32 %v1456, %v1330
        %v1458 = vadd.f32 %v1457, %v1331
        %v1459 = vadd.f32 %v1458, %v1332
        %v1460 = vadd.f32 %v1459, %v1333
        %v1461 = vadd.f32 %v1460, %v1334
        %v1462 = vadd.f32 %v1461, %v1335
        %v1463 = vadd.f32 %v1462, %v1336
        %v1464 = vadd.f32 %v1463, %v1337
        %v1465 = vadd.f32 %v1464, %v1338
        %v1466 = vadd.f32 %v1465, %v1339
        %v1467 = vadd.f32 %v1466, %v1340
        %v1468 = vadd.f32 %v1467, %v1341
        %v1469 = vadd.f32 %v1468, %v1342
        %v1470 = vadd.f32 %v1469, %v1343
        %v1471 = vadd.f32 %v1470, %v1344
        %v1472 = vadd.f32 %v1471, %v1345
        %v1473 = vadd.f32 %v1472, %v1346
        %v1474 = vadd.f32 %v1473, %v1347
        %v1475 = vadd.f32 %v1474, %v1348
        %v1476 = vadd.f32 %v1475, %v1349
        %v1477 = vadd.f32 %v1476, %v1350
        %v1478 = vadd.f32 %v1477, %v1351
        %v1479 = vadd.f32 %v1478, %v1352
        %v1480 = vadd.f32 %v1479, %v1353
        %v1481 = vadd.f32 %v1480, %v1354
        %v1482 = vadd.f32 %v1481, %v1355
        %v1483 = vadd.f32 %v1482, %v1356
        %v1484 = vadd.f32 %v1483, %v1357
        %v1485 = vadd.f32 %v1484, %v1358
        %v1486 = vadd.f32 %v1485, %v1359
        %v1487 = vadd.f32 %v1486, %v1360
        %v1488 = vadd.f32 %v1487, %v1361
        %v1489 = vadd.f32 %v1488, %v1362
        %v1490 = vadd.f32 %v1489, %v1363
        %v1491 = vadd.f32 %v1490, %v1364
        %v1492 = vadd.f32 %v1491, %v1365
        %v1493 = vadd.f32 %v1492, %v1366
        %v1494 = vadd.f32 %v1493, %v1367
        %v1495 = vadd.f32 %v1494, %v1368
        %v1496 = vadd.f32 %v1495, %v1369
        %v1497 = vadd.f32 %v1496, %v1370
        %v1498 = vadd.f32 %v1497, %v1371
        %v1499 = vrot.slane %v1498, 4
        %v1500 = vadd.f32 %v1498, %v1499
        %v1501 = vrot.slane %v1500, 2
        %v1502 = vadd.f32 %v1500, %v1501
        %v1503 = vrot.slane %v1502, 1
        %v1504 = vadd.f32 %v1502, %v1503
        %v1505 = vadd.f32 %v1243, %v1504
        %1506 = vst [vmem:[#allocation3] sm:$0x1] %v1505
        %1507 = vst [vmem:[%s238] sm:$0xff] %v458
        %1508 = vst [vmem:[%s238 + $0x8] sm:$0xff] %v463
        %1509 = vst [vmem:[%s238 + $0x10] sm:$0xff] %v468
        %1510 = vst [vmem:[%s238 + $0x18] sm:$0xff] %v473
        %1511 = vst [vmem:[%s238 + $0x20] sm:$0xff] %v478
        %1512 = vst [vmem:[%s238 + $0x28] sm:$0xff] %v483
        %1513 = vst [vmem:[%s238 + $0x30] sm:$0xff] %v488
        %1514 = vst [vmem:[%s238 + $0x38] sm:$0xff] %v493
        %1515 = vst [vmem:[%s238 + $0x40] sm:$0xff] %v498
        %1516 = vst [vmem:[%s238 + $0x48] sm:$0xff] %v503
        %1517 = vst [vmem:[%s238 + $0x50] sm:$0xff] %v508
        %1518 = vst [vmem:[%s238 + $0x58] sm:$0xff] %v513
        %1519 = vst [vmem:[%s238 + $0x60] sm:$0xff] %v518
        %1520 = vst [vmem:[%s238 + $0x68] sm:$0xff] %v523
        %1521 = vst [vmem:[%s238 + $0x70] sm:$0xff] %v528
        %1522 = vst [vmem:[%s238 + $0x78] sm:$0xff] %v533
        %1523 = vst [vmem:[%s238 + $0x80] sm:$0xff] %v538
        %1524 = vst [vmem:[%s238 + $0x88] sm:$0xff] %v543
        %1525 = vst [vmem:[%s238 + $0x90] sm:$0xff] %v548
        %1526 = vst [vmem:[%s238 + $0x98] sm:$0xff] %v553
        %1527 = vst [vmem:[%s238 + $0xa0] sm:$0xff] %v558
        %1528 = vst [vmem:[%s238 + $0xa8] sm:$0xff] %v563
        %1529 = vst [vmem:[%s238 + $0xb0] sm:$0xff] %v568
        %1530 = vst [vmem:[%s238 + $0xb8] sm:$0xff] %v573
        %1531 = vst [vmem:[%s238 + $0xc0] sm:$0xff] %v578
        %1532 = vst [vmem:[%s238 + $0xc8] sm:$0xff] %v583
        %1533 = vst [vmem:[%s238 + $0xd0] sm:$0xff] %v588
        %1534 = vst [vmem:[%s238 + $0xd8] sm:$0xff] %v593
        %1535 = vst [vmem:[%s238 + $0xe0] sm:$0xff] %v598
        %1536 = vst [vmem:[%s238 + $0xe8] sm:$0xff] %v603
        %1537 = vst [vmem:[%s238 + $0xf0] sm:$0xff] %v608
        %1538 = vst [vmem:[%s238 + $0xf8] sm:$0xff] %v613
        %1539 = vst [vmem:[%s238 + $0x100] sm:$0xff] %v618
        %1540 = vst [vmem:[%s238 + $0x108] sm:$0xff] %v623
        %1541 = vst [vmem:[%s238 + $0x110] sm:$0xff] %v628
        %1542 = vst [vmem:[%s238 + $0x118] sm:$0xff] %v633
        %1543 = vst [vmem:[%s238 + $0x120] sm:$0xff] %v638
        %1544 = vst [vmem:[%s238 + $0x128] sm:$0xff] %v643
        %1545 = vst [vmem:[%s238 + $0x130] sm:$0xff] %v648
        %1546 = vst [vmem:[%s238 + $0x138] sm:$0xff] %v653
        %1547 = vst [vmem:[%s238 + $0x140] sm:$0xff] %v658
        %1548 = vst [vmem:[%s238 + $0x148] sm:$0xff] %v663
        %1549 = vst [vmem:[%s238 + $0x150] sm:$0xff] %v668
        %1550 = vst [vmem:[%s238 + $0x158] sm:$0xff] %v673
        %1551 = vst [vmem:[%s238 + $0x160] sm:$0xff] %v678
        %1552 = vst [vmem:[%s238 + $0x168] sm:$0xff] %v683
        %1553 = vst [vmem:[%s238 + $0x170] sm:$0xff] %v688
        %1554 = vst [vmem:[%s238 + $0x178] sm:$0xff] %v693
        %1555 = vst [vmem:[%s238 + $0x180] sm:$0xff] %v698
        %1556 = vst [vmem:[%s238 + $0x188] sm:$0xff] %v703
        %1557 = vst [vmem:[%s238 + $0x190] sm:$0xff] %v708
        %1558 = vst [vmem:[%s238 + $0x198] sm:$0xff] %v713
        %1559 = vst [vmem:[%s238 + $0x1a0] sm:$0xff] %v718
        %1560 = vst [vmem:[%s238 + $0x1a8] sm:$0xff] %v723
        %1561 = vst [vmem:[%s238 + $0x1b0] sm:$0xff] %v728
        %1562 = vst [vmem:[%s238 + $0x1b8] sm:$0xff] %v733
        %1563 = vst [vmem:[%s238 + $0x1c0] sm:$0xff] %v738
        %1564 = vst [vmem:[%s238 + $0x1c8] sm:$0xff] %v743
        %1565 = vst [vmem:[%s238 + $0x1d0] sm:$0xff] %v748
        %1566 = vst [vmem:[%s238 + $0x1d8] sm:$0xff] %v753
        %1567 = vst [vmem:[%s238 + $0x1e0] sm:$0xff] %v758
        %1568 = vst [vmem:[%s238 + $0x1e8] sm:$0xff] %v763
        %1569 = vst [vmem:[%s238 + $0x1f0] sm:$0xff] %v768
        %1570 = vst [vmem:[%s238 + $0x1f8] sm:$0xff] %v773
        %1571 = vst [vmem:[%s238 + $0x200] sm:$0xff] %v778
        %1572 = vst [vmem:[%s238 + $0x208] sm:$0xff] %v783
        %1573 = vst [vmem:[%s238 + $0x210] sm:$0xff] %v788
        %1574 = vst [vmem:[%s238 + $0x218] sm:$0xff] %v793
        %1575 = vst [vmem:[%s238 + $0x220] sm:$0xff] %v798
        %1576 = vst [vmem:[%s238 + $0x228] sm:$0xff] %v803
        %1577 = vst [vmem:[%s238 + $0x230] sm:$0xff] %v808
        %1578 = vst [vmem:[%s238 + $0x238] sm:$0xff] %v813
        %1579 = vst [vmem:[%s238 + $0x240] sm:$0xff] %v818
        %1580 = vst [vmem:[%s238 + $0x248] sm:$0xff] %v823
        %1581 = vst [vmem:[%s238 + $0x250] sm:$0xff] %v828
        %1582 = vst [vmem:[%s238 + $0x258] sm:$0xff] %v833
        %1583 = vst [vmem:[%s238 + $0x260] sm:$0xff] %v838
        %1584 = vst [vmem:[%s238 + $0x268] sm:$0xff] %v843
        %1585 = vst [vmem:[%s238 + $0x270] sm:$0xff] %v848
        %1586 = vst [vmem:[%s238 + $0x278] sm:$0xff] %v853
        %1587 = vst [vmem:[%s238 + $0x280] sm:$0xff] %v858
        %1588 = vst [vmem:[%s238 + $0x288] sm:$0xff] %v863
        %1589 = vst [vmem:[%s238 + $0x290] sm:$0xff] %v868
        %1590 = vst [vmem:[%s238 + $0x298] sm:$0xff] %v873
        %1591 = vst [vmem:[%s238 + $0x2a0] sm:$0xff] %v878
        %1592 = vst [vmem:[%s238 + $0x2a8] sm:$0xff] %v883
        %1593 = vst [vmem:[%s238 + $0x2b0] sm:$0xff] %v888
        %1594 = vst [vmem:[%s238 + $0x2b8] sm:$0xff] %v893
        %1595 = vst [vmem:[%s238 + $0x2c0] sm:$0xff] %v898
        %1596 = vst [vmem:[%s238 + $0x2c8] sm:$0xff] %v903
        %1597 = vst [vmem:[%s238 + $0x2d0] sm:$0xff] %v908
        %1598 = vst [vmem:[%s238 + $0x2d8] sm:$0xff] %v913
        %1599 = vst [vmem:[%s238 + $0x2e0] sm:$0xff] %v918
        %1600 = vst [vmem:[%s238 + $0x2e8] sm:$0xff] %v923
        %1601 = vst [vmem:[%s238 + $0x2f0] sm:$0xff] %v928
        %1602 = vst [vmem:[%s238 + $0x2f8] sm:$0xff] %v933
        %1603 = vst [vmem:[%s238 + $0x300] sm:$0xff] %v938
        %1604 = vst [vmem:[%s238 + $0x308] sm:$0xff] %v943
        %1605 = vst [vmem:[%s238 + $0x310] sm:$0xff] %v948
        %1606 = vst [vmem:[%s238 + $0x318] sm:$0xff] %v953
        %1607 = vst [vmem:[%s238 + $0x320] sm:$0xff] %v958
        %1608 = vst [vmem:[%s238 + $0x328] sm:$0xff] %v963
        %1609 = vst [vmem:[%s238 + $0x330] sm:$0xff] %v968
        %1610 = vst [vmem:[%s238 + $0x338] sm:$0xff] %v973
        %1611 = vst [vmem:[%s238 + $0x340] sm:$0xff] %v978
        %1612 = vst [vmem:[%s238 + $0x348] sm:$0xff] %v983
        %1613 = vst [vmem:[%s238 + $0x350] sm:$0xff] %v988
        %1614 = vst [vmem:[%s238 + $0x358] sm:$0xff] %v993
        %1615 = vst [vmem:[%s238 + $0x360] sm:$0xff] %v998
        %1616 = vst [vmem:[%s238 + $0x368] sm:$0xff] %v1003
        %1617 = vst [vmem:[%s238 + $0x370] sm:$0xff] %v1008
        %1618 = vst [vmem:[%s238 + $0x378] sm:$0xff] %v1013
        %1619 = vst [vmem:[%s238 + $0x380] sm:$0xff] %v1018
        %1620 = vst [vmem:[%s238 + $0x388] sm:$0xff] %v1023
        %1621 = vst [vmem:[%s238 + $0x390] sm:$0xff] %v1028
        %1622 = vst [vmem:[%s238 + $0x398] sm:$0xff] %v1033
        %1623 = vst [vmem:[%s238 + $0x3a0] sm:$0xff] %v1038
        %1624 = vst [vmem:[%s238 + $0x3a8] sm:$0xff] %v1043
        %1625 = vst [vmem:[%s238 + $0x3b0] sm:$0xff] %v1048
        %1626 = vst [vmem:[%s238 + $0x3b8] sm:$0xff] %v1053
        %1627 = vst [vmem:[%s238 + $0x3c0] sm:$0xff] %v1058
        %1628 = vst [vmem:[%s238 + $0x3c8] sm:$0xff] %v1063
        %1629 = vst [vmem:[%s238 + $0x3d0] sm:$0xff] %v1068
        %1630 = vst [vmem:[%s238 + $0x3d8] sm:$0xff] %v1073
        %1631 = vst [vmem:[%s238 + $0x3e0] sm:$0xff] %v1078
        %1632 = vst [vmem:[%s238 + $0x3e8] sm:$0xff] %v1083
        %1633 = vst [vmem:[%s238 + $0x3f0] sm:$0xff] %v1088
        %1634 = vst [vmem:[%s238 + $0x3f8] sm:$0xff] %v1093
      $region48: #{dogs_cats_forward.4} parent=39 // pred_fallthru
        _
      %p1635 = scmp.eq.s32.totalorder %s20, 1
      // Predicated region
      $region49: #{dogs_cats_forward.4} parent=39 // pred_check
        %p1636 = pneg %p1635
      $region50: #{dogs_cats_forward.4} parent=39 // pred_check_branch
        %1638 = sbr.rel (%p1636) target = $region52
      $region51: #{dogs_cats_forward.4} parent=39 // pred_region
        %v1639 = vld [vmem:[#allocation2] sm:$0x1]
        %v1640 = vmul.f32 %v1639, 0.00012207031
        %v1641 = vld [vmem:[#allocation3] sm:$0x1]
        %v1642 = vmul.f32 %v1641, 0.00012207031
        %v1643 = vmul.f32 %v1640, %v1640
        %v1644 = vsub.f32 %v1642, %v1643
        %v1645 = vmax.f32 %v1644, 0.0
        %v1646 = vld [vmem:[%s3] sm:$0x1]
        %v1647 = vadd.f32 %v1645, 1e-05
        %v1648 = vrsqrt.pop %v1647
        %v1649 = vmul.f32 %v1646, %v1648
        %v1650 = vld [vmem:[%s4] sm:$0x1]
        %v1651 = vmul.f32 %v1640, %v1649
        %v1652 = vsub.f32 %v1650, %v1651
        %v1654 = vlaneseq
        %v1655 = vshrl.u32 %v1654, 7
        %v1656 = vsub.s32 0, %v1655
        %v1657 = vrot.slane %v1649, %v1656
        %v1659 = vmul.f32 %v458, %v1657
        %v1660 = vmul.f32 %v463, %v1657
        %v1661 = vmul.f32 %v468, %v1657
        %v1662 = vmul.f32 %v473, %v1657
        %v1663 = vmul.f32 %v478, %v1657
        %v1664 = vmul.f32 %v483, %v1657
        %v1665 = vmul.f32 %v488, %v1657
        %v1666 = vmul.f32 %v493, %v1657
        %v1667 = vmul.f32 %v498, %v1657
        %v1668 = vmul.f32 %v503, %v1657
        %v1669 = vmul.f32 %v508, %v1657
        %v1670 = vmul.f32 %v513, %v1657
        %v1671 = vmul.f32 %v518, %v1657
        %v1672 = vmul.f32 %v523, %v1657
        %v1673 = vmul.f32 %v528, %v1657
        %v1674 = vmul.f32 %v533, %v1657
        %v1675 = vmul.f32 %v538, %v1657
        %v1676 = vmul.f32 %v543, %v1657
        %v1677 = vmul.f32 %v548, %v1657
        %v1678 = vmul.f32 %v553, %v1657
        %v1679 = vmul.f32 %v558, %v1657
        %v1680 = vmul.f32 %v563, %v1657
        %v1681 = vmul.f32 %v568, %v1657
        %v1682 = vmul.f32 %v573, %v1657
        %v1683 = vmul.f32 %v578, %v1657
        %v1684 = vmul.f32 %v583, %v1657
        %v1685 = vmul.f32 %v588, %v1657
        %v1686 = vmul.f32 %v593, %v1657
        %v1687 = vmul.f32 %v598, %v1657
        %v1688 = vmul.f32 %v603, %v1657
        %v1689 = vmul.f32 %v608, %v1657
        %v1690 = vmul.f32 %v613, %v1657
        %v1691 = vmul.f32 %v618, %v1657
        %v1692 = vmul.f32 %v623, %v1657
        %v1693 = vmul.f32 %v628, %v1657
        %v1694 = vmul.f32 %v633, %v1657
        %v1695 = vmul.f32 %v638, %v1657
        %v1696 = vmul.f32 %v643, %v1657
        %v1697 = vmul.f32 %v648, %v1657
        %v1698 = vmul.f32 %v653, %v1657
        %v1699 = vmul.f32 %v658, %v1657
        %v1700 = vmul.f32 %v663, %v1657
        %v1701 = vmul.f32 %v668, %v1657
        %v1702 = vmul.f32 %v673, %v1657
        %v1703 = vmul.f32 %v678, %v1657
        %v1704 = vmul.f32 %v683, %v1657
        %v1705 = vmul.f32 %v688, %v1657
        %v1706 = vmul.f32 %v693, %v1657
        %v1707 = vmul.f32 %v698, %v1657
        %v1708 = vmul.f32 %v703, %v1657
        %v1709 = vmul.f32 %v708, %v1657
        %v1710 = vmul.f32 %v713, %v1657
        %v1711 = vmul.f32 %v718, %v1657
        %v1712 = vmul.f32 %v723, %v1657
        %v1713 = vmul.f32 %v728, %v1657
        %v1714 = vmul.f32 %v733, %v1657
        %v1715 = vmul.f32 %v738, %v1657
        %v1716 = vmul.f32 %v743, %v1657
        %v1717 = vmul.f32 %v748, %v1657
        %v1718 = vmul.f32 %v753, %v1657
        %v1719 = vmul.f32 %v758, %v1657
        %v1720 = vmul.f32 %v763, %v1657
        %v1721 = vmul.f32 %v768, %v1657
        %v1722 = vmul.f32 %v773, %v1657
        %v1723 = vmul.f32 %v778, %v1657
        %v1724 = vmul.f32 %v783, %v1657
        %v1725 = vmul.f32 %v788, %v1657
        %v1726 = vmul.f32 %v793, %v1657
        %v1727 = vmul.f32 %v798, %v1657
        %v1728 = vmul.f32 %v803, %v1657
        %v1729 = vmul.f32 %v808, %v1657
        %v1730 = vmul.f32 %v813, %v1657
        %v1731 = vmul.f32 %v818, %v1657
        %v1732 = vmul.f32 %v823, %v1657
        %v1733 = vmul.f32 %v828, %v1657
        %v1734 = vmul.f32 %v833, %v1657
        %v1735 = vmul.f32 %v838, %v1657
        %v1736 = vmul.f32 %v843, %v1657
        %v1737 = vmul.f32 %v848, %v1657
        %v1738 = vmul.f32 %v853, %v1657
        %v1739 = vmul.f32 %v858, %v1657
        %v1740 = vmul.f32 %v863, %v1657
        %v1741 = vmul.f32 %v868, %v1657
        %v1742 = vmul.f32 %v873, %v1657
        %v1743 = vmul.f32 %v878, %v1657
        %v1744 = vmul.f32 %v883, %v1657
        %v1745 = vmul.f32 %v888, %v1657
        %v1746 = vmul.f32 %v893, %v1657
        %v1747 = vmul.f32 %v898, %v1657
        %v1748 = vmul.f32 %v903, %v1657
        %v1749 = vmul.f32 %v908, %v1657
        %v1750 = vmul.f32 %v913, %v1657
        %v1751 = vmul.f32 %v918, %v1657
        %v1752 = vmul.f32 %v923, %v1657
        %v1753 = vmul.f32 %v928, %v1657
        %v1754 = vmul.f32 %v933, %v1657
        %v1755 = vmul.f32 %v938, %v1657
        %v1756 = vmul.f32 %v943, %v1657
        %v1757 = vmul.f32 %v948, %v1657
        %v1758 = vmul.f32 %v953, %v1657
        %v1759 = vmul.f32 %v958, %v1657
        %v1760 = vmul.f32 %v963, %v1657
        %v1761 = vmul.f32 %v968, %v1657
        %v1762 = vmul.f32 %v973, %v1657
        %v1763 = vmul.f32 %v978, %v1657
        %v1764 = vmul.f32 %v983, %v1657
        %v1765 = vmul.f32 %v988, %v1657
        %v1766 = vmul.f32 %v993, %v1657
        %v1767 = vmul.f32 %v998, %v1657
        %v1768 = vmul.f32 %v1003, %v1657
        %v1769 = vmul.f32 %v1008, %v1657
        %v1770 = vmul.f32 %v1013, %v1657
        %v1771 = vmul.f32 %v1018, %v1657
        %v1772 = vmul.f32 %v1023, %v1657
        %v1773 = vmul.f32 %v1028, %v1657
        %v1774 = vmul.f32 %v1033, %v1657
        %v1775 = vmul.f32 %v1038, %v1657
        %v1776 = vmul.f32 %v1043, %v1657
        %v1777 = vmul.f32 %v1048, %v1657
        %v1778 = vmul.f32 %v1053, %v1657
        %v1779 = vmul.f32 %v1058, %v1657
        %v1780 = vmul.f32 %v1063, %v1657
        %v1781 = vmul.f32 %v1068, %v1657
        %v1782 = vmul.f32 %v1073, %v1657
        %v1783 = vmul.f32 %v1078, %v1657
        %v1784 = vmul.f32 %v1083, %v1657
        %v1785 = vmul.f32 %v1088, %v1657
        %v1786 = vmul.f32 %v1093, %v1657
        %v1788 = vlaneseq
        %v1789 = vshrl.u32 %v1788, 7
        %v1790 = vsub.s32 0, %v1789
        %v1791 = vrot.slane %v1652, %v1790
        %v1793 = vadd.f32 %v1659, %v1791
        %v1794 = vadd.f32 %v1660, %v1791
        %v1795 = vadd.f32 %v1661, %v1791
        %v1796 = vadd.f32 %v1662, %v1791
        %v1797 = vadd.f32 %v1663, %v1791
        %v1798 = vadd.f32 %v1664, %v1791
        %v1799 = vadd.f32 %v1665, %v1791
        %v1800 = vadd.f32 %v1666, %v1791
        %v1801 = vadd.f32 %v1667, %v1791
        %v1802 = vadd.f32 %v1668, %v1791
        %v1803 = vadd.f32 %v1669, %v1791
        %v1804 = vadd.f32 %v1670, %v1791
        %v1805 = vadd.f32 %v1671, %v1791
        %v1806 = vadd.f32 %v1672, %v1791
        %v1807 = vadd.f32 %v1673, %v1791
        %v1808 = vadd.f32 %v1674, %v1791
        %v1809 = vadd.f32 %v1675, %v1791
        %v1810 = vadd.f32 %v1676, %v1791
        %v1811 = vadd.f32 %v1677, %v1791
        %v1812 = vadd.f32 %v1678, %v1791
        %v1813 = vadd.f32 %v1679, %v1791
        %v1814 = vadd.f32 %v1680, %v1791
        %v1815 = vadd.f32 %v1681, %v1791
        %v1816 = vadd.f32 %v1682, %v1791
        %v1817 = vadd.f32 %v1683, %v1791
        %v1818 = vadd.f32 %v1684, %v1791
        %v1819 = vadd.f32 %v1685, %v1791
        %v1820 = vadd.f32 %v1686, %v1791
        %v1821 = vadd.f32 %v1687, %v1791
        %v1822 = vadd.f32 %v1688, %v1791
        %v1823 = vadd.f32 %v1689, %v1791
        %v1824 = vadd.f32 %v1690, %v1791
        %v1825 = vadd.f32 %v1691, %v1791
        %v1826 = vadd.f32 %v1692, %v1791
        %v1827 = vadd.f32 %v1693, %v1791
        %v1828 = vadd.f32 %v1694, %v1791
        %v1829 = vadd.f32 %v1695, %v1791
        %v1830 = vadd.f32 %v1696, %v1791
        %v1831 = vadd.f32 %v1697, %v1791
        %v1832 = vadd.f32 %v1698, %v1791
        %v1833 = vadd.f32 %v1699, %v1791
        %v1834 = vadd.f32 %v1700, %v1791
        %v1835 = vadd.f32 %v1701, %v1791
        %v1836 = vadd.f32 %v1702, %v1791
        %v1837 = vadd.f32 %v1703, %v1791
        %v1838 = vadd.f32 %v1704, %v1791
        %v1839 = vadd.f32 %v1705, %v1791
        %v1840 = vadd.f32 %v1706, %v1791
        %v1841 = vadd.f32 %v1707, %v1791
        %v1842 = vadd.f32 %v1708, %v1791
        %v1843 = vadd.f32 %v1709, %v1791
        %v1844 = vadd.f32 %v1710, %v1791
        %v1845 = vadd.f32 %v1711, %v1791
        %v1846 = vadd.f32 %v1712, %v1791
        %v1847 = vadd.f32 %v1713, %v1791
        %v1848 = vadd.f32 %v1714, %v1791
        %v1849 = vadd.f32 %v1715, %v1791
        %v1850 = vadd.f32 %v1716, %v1791
        %v1851 = vadd.f32 %v1717, %v1791
        %v1852 = vadd.f32 %v1718, %v1791
        %v1853 = vadd.f32 %v1719, %v1791
        %v1854 = vadd.f32 %v1720, %v1791
        %v1855 = vadd.f32 %v1721, %v1791
        %v1856 = vadd.f32 %v1722, %v1791
        %v1857 = vadd.f32 %v1723, %v1791
        %v1858 = vadd.f32 %v1724, %v1791
        %v1859 = vadd.f32 %v1725, %v1791
        %v1860 = vadd.f32 %v1726, %v1791
        %v1861 = vadd.f32 %v1727, %v1791
        %v1862 = vadd.f32 %v1728, %v1791
        %v1863 = vadd.f32 %v1729, %v1791
        %v1864 = vadd.f32 %v1730, %v1791
        %v1865 = vadd.f32 %v1731, %v1791
        %v1866 = vadd.f32 %v1732, %v1791
        %v1867 = vadd.f32 %v1733, %v1791
        %v1868 = vadd.f32 %v1734, %v1791
        %v1869 = vadd.f32 %v1735, %v1791
        %v1870 = vadd.f32 %v1736, %v1791
        %v1871 = vadd.f32 %v1737, %v1791
        %v1872 = vadd.f32 %v1738, %v1791
        %v1873 = vadd.f32 %v1739, %v1791
        %v1874 = vadd.f32 %v1740, %v1791
        %v1875 = vadd.f32 %v1741, %v1791
        %v1876 = vadd.f32 %v1742, %v1791
        %v1877 = vadd.f32 %v1743, %v1791
        %v1878 = vadd.f32 %v1744, %v1791
        %v1879 = vadd.f32 %v1745, %v1791
        %v1880 = vadd.f32 %v1746, %v1791
        %v1881 = vadd.f32 %v1747, %v1791
        %v1882 = vadd.f32 %v1748, %v1791
        %v1883 = vadd.f32 %v1749, %v1791
        %v1884 = vadd.f32 %v1750, %v1791
        %v1885 = vadd.f32 %v1751, %v1791
        %v1886 = vadd.f32 %v1752, %v1791
        %v1887 = vadd.f32 %v1753, %v1791
        %v1888 = vadd.f32 %v1754, %v1791
        %v1889 = vadd.f32 %v1755, %v1791
        %v1890 = vadd.f32 %v1756, %v1791
        %v1891 = vadd.f32 %v1757, %v1791
        %v1892 = vadd.f32 %v1758, %v1791
        %v1893 = vadd.f32 %v1759, %v1791
        %v1894 = vadd.f32 %v1760, %v1791
        %v1895 = vadd.f32 %v1761, %v1791
        %v1896 = vadd.f32 %v1762, %v1791
        %v1897 = vadd.f32 %v1763, %v1791
        %v1898 = vadd.f32 %v1764, %v1791
        %v1899 = vadd.f32 %v1765, %v1791
        %v1900 = vadd.f32 %v1766, %v1791
        %v1901 = vadd.f32 %v1767, %v1791
        %v1902 = vadd.f32 %v1768, %v1791
        %v1903 = vadd.f32 %v1769, %v1791
        %v1904 = vadd.f32 %v1770, %v1791
        %v1905 = vadd.f32 %v1771, %v1791
        %v1906 = vadd.f32 %v1772, %v1791
        %v1907 = vadd.f32 %v1773, %v1791
        %v1908 = vadd.f32 %v1774, %v1791
        %v1909 = vadd.f32 %v1775, %v1791
        %v1910 = vadd.f32 %v1776, %v1791
        %v1911 = vadd.f32 %v1777, %v1791
        %v1912 = vadd.f32 %v1778, %v1791
        %v1913 = vadd.f32 %v1779, %v1791
        %v1914 = vadd.f32 %v1780, %v1791
        %v1915 = vadd.f32 %v1781, %v1791
        %v1916 = vadd.f32 %v1782, %v1791
        %v1917 = vadd.f32 %v1783, %v1791
        %v1918 = vadd.f32 %v1784, %v1791
        %v1919 = vadd.f32 %v1785, %v1791
        %v1920 = vadd.f32 %v1786, %v1791
        %v1921 = vmax.f32 %v1793, 0.0
        %v1922 = vmax.f32 %v1794, 0.0
        %v1923 = vmax.f32 %v1795, 0.0
        %v1924 = vmax.f32 %v1796, 0.0
        %v1925 = vmax.f32 %v1797, 0.0
        %v1926 = vmax.f32 %v1798, 0.0
        %v1927 = vmax.f32 %v1799, 0.0
        %v1928 = vmax.f32 %v1800, 0.0
        %v1929 = vmax.f32 %v1801, 0.0
        %v1930 = vmax.f32 %v1802, 0.0
        %v1931 = vmax.f32 %v1803, 0.0
        %v1932 = vmax.f32 %v1804, 0.0
        %v1933 = vmax.f32 %v1805, 0.0
        %v1934 = vmax.f32 %v1806, 0.0
        %v1935 = vmax.f32 %v1807, 0.0
        %v1936 = vmax.f32 %v1808, 0.0
        %v1937 = vmax.f32 %v1809, 0.0
        %v1938 = vmax.f32 %v1810, 0.0
        %v1939 = vmax.f32 %v1811, 0.0
        %v1940 = vmax.f32 %v1812, 0.0
        %v1941 = vmax.f32 %v1813, 0.0
        %v1942 = vmax.f32 %v1814, 0.0
        %v1943 = vmax.f32 %v1815, 0.0
        %v1944 = vmax.f32 %v1816, 0.0
        %v1945 = vmax.f32 %v1817, 0.0
        %v1946 = vmax.f32 %v1818, 0.0
        %v1947 = vmax.f32 %v1819, 0.0
        %v1948 = vmax.f32 %v1820, 0.0
        %v1949 = vmax.f32 %v1821, 0.0
        %v1950 = vmax.f32 %v1822, 0.0
        %v1951 = vmax.f32 %v1823, 0.0
        %v1952 = vmax.f32 %v1824, 0.0
        %v1953 = vmax.f32 %v1825, 0.0
        %v1954 = vmax.f32 %v1826, 0.0
        %v1955 = vmax.f32 %v1827, 0.0
        %v1956 = vmax.f32 %v1828, 0.0
        %v1957 = vmax.f32 %v1829, 0.0
        %v1958 = vmax.f32 %v1830, 0.0
        %v1959 = vmax.f32 %v1831, 0.0
        %v1960 = vmax.f32 %v1832, 0.0
        %v1961 = vmax.f32 %v1833, 0.0
        %v1962 = vmax.f32 %v1834, 0.0
        %v1963 = vmax.f32 %v1835, 0.0
        %v1964 = vmax.f32 %v1836, 0.0
        %v1965 = vmax.f32 %v1837, 0.0
        %v1966 = vmax.f32 %v1838, 0.0
        %v1967 = vmax.f32 %v1839, 0.0
        %v1968 = vmax.f32 %v1840, 0.0
        %v1969 = vmax.f32 %v1841, 0.0
        %v1970 = vmax.f32 %v1842, 0.0
        %v1971 = vmax.f32 %v1843, 0.0
        %v1972 = vmax.f32 %v1844, 0.0
        %v1973 = vmax.f32 %v1845, 0.0
        %v1974 = vmax.f32 %v1846, 0.0
        %v1975 = vmax.f32 %v1847, 0.0
        %v1976 = vmax.f32 %v1848, 0.0
        %v1977 = vmax.f32 %v1849, 0.0
        %v1978 = vmax.f32 %v1850, 0.0
        %v1979 = vmax.f32 %v1851, 0.0
        %v1980 = vmax.f32 %v1852, 0.0
        %v1981 = vmax.f32 %v1853, 0.0
        %v1982 = vmax.f32 %v1854, 0.0
        %v1983 = vmax.f32 %v1855, 0.0
        %v1984 = vmax.f32 %v1856, 0.0
        %v1985 = vmax.f32 %v1857, 0.0
        %v1986 = vmax.f32 %v1858, 0.0
        %v1987 = vmax.f32 %v1859, 0.0
        %v1988 = vmax.f32 %v1860, 0.0
        %v1989 = vmax.f32 %v1861, 0.0
        %v1990 = vmax.f32 %v1862, 0.0
        %v1991 = vmax.f32 %v1863, 0.0
        %v1992 = vmax.f32 %v1864, 0.0
        %v1993 = vmax.f32 %v1865, 0.0
        %v1994 = vmax.f32 %v1866, 0.0
        %v1995 = vmax.f32 %v1867, 0.0
        %v1996 = vmax.f32 %v1868, 0.0
        %v1997 = vmax.f32 %v1869, 0.0
        %v1998 = vmax.f32 %v1870, 0.0
        %v1999 = vmax.f32 %v1871, 0.0
        %v2000 = vmax.f32 %v1872, 0.0
        %v2001 = vmax.f32 %v1873, 0.0
        %v2002 = vmax.f32 %v1874, 0.0
        %v2003 = vmax.f32 %v1875, 0.0
        %v2004 = vmax.f32 %v1876, 0.0
        %v2005 = vmax.f32 %v1877, 0.0
        %v2006 = vmax.f32 %v1878, 0.0
        %v2007 = vmax.f32 %v1879, 0.0
        %v2008 = vmax.f32 %v1880, 0.0
        %v2009 = vmax.f32 %v1881, 0.0
        %v2010 = vmax.f32 %v1882, 0.0
        %v2011 = vmax.f32 %v1883, 0.0
        %v2012 = vmax.f32 %v1884, 0.0
        %v2013 = vmax.f32 %v1885, 0.0
        %v2014 = vmax.f32 %v1886, 0.0
        %v2015 = vmax.f32 %v1887, 0.0
        %v2016 = vmax.f32 %v1888, 0.0
        %v2017 = vmax.f32 %v1889, 0.0
        %v2018 = vmax.f32 %v1890, 0.0
        %v2019 = vmax.f32 %v1891, 0.0
        %v2020 = vmax.f32 %v1892, 0.0
        %v2021 = vmax.f32 %v1893, 0.0
        %v2022 = vmax.f32 %v1894, 0.0
        %v2023 = vmax.f32 %v1895, 0.0
        %v2024 = vmax.f32 %v1896, 0.0
        %v2025 = vmax.f32 %v1897, 0.0
        %v2026 = vmax.f32 %v1898, 0.0
        %v2027 = vmax.f32 %v1899, 0.0
        %v2028 = vmax.f32 %v1900, 0.0
        %v2029 = vmax.f32 %v1901, 0.0
        %v2030 = vmax.f32 %v1902, 0.0
        %v2031 = vmax.f32 %v1903, 0.0
        %v2032 = vmax.f32 %v1904, 0.0
        %v2033 = vmax.f32 %v1905, 0.0
        %v2034 = vmax.f32 %v1906, 0.0
        %v2035 = vmax.f32 %v1907, 0.0
        %v2036 = vmax.f32 %v1908, 0.0
        %v2037 = vmax.f32 %v1909, 0.0
        %v2038 = vmax.f32 %v1910, 0.0
        %v2039 = vmax.f32 %v1911, 0.0
        %v2040 = vmax.f32 %v1912, 0.0
        %v2041 = vmax.f32 %v1913, 0.0
        %v2042 = vmax.f32 %v1914, 0.0
        %v2043 = vmax.f32 %v1915, 0.0
        %v2044 = vmax.f32 %v1916, 0.0
        %v2045 = vmax.f32 %v1917, 0.0
        %v2046 = vmax.f32 %v1918, 0.0
        %v2047 = vmax.f32 %v1919, 0.0
        %v2048 = vmax.f32 %v1920, 0.0
        %2049 = vst [vmem:[%s238] sm:$0xff] %v1921
        %2050 = vst [vmem:[%s238 + $0x8] sm:$0xff] %v1922
        %2051 = vst [vmem:[%s238 + $0x10] sm:$0xff] %v1923
        %2052 = vst [vmem:[%s238 + $0x18] sm:$0xff] %v1924
        %2053 = vst [vmem:[%s238 + $0x20] sm:$0xff] %v1925
        %2054 = vst [vmem:[%s238 + $0x28] sm:$0xff] %v1926
        %2055 = vst [vmem:[%s238 + $0x30] sm:$0xff] %v1927
        %2056 = vst [vmem:[%s238 + $0x38] sm:$0xff] %v1928
        %2057 = vst [vmem:[%s238 + $0x40] sm:$0xff] %v1929
        %2058 = vst [vmem:[%s238 + $0x48] sm:$0xff] %v1930
        %2059 = vst [vmem:[%s238 + $0x50] sm:$0xff] %v1931
        %2060 = vst [vmem:[%s238 + $0x58] sm:$0xff] %v1932
        %2061 = vst [vmem:[%s238 + $0x60] sm:$0xff] %v1933
        %2062 = vst [vmem:[%s238 + $0x68] sm:$0xff] %v1934
        %2063 = vst [vmem:[%s238 + $0x70] sm:$0xff] %v1935
        %2064 = vst [vmem:[%s238 + $0x78] sm:$0xff] %v1936
        %2065 = vst [vmem:[%s238 + $0x80] sm:$0xff] %v1937
        %2066 = vst [vmem:[%s238 + $0x88] sm:$0xff] %v1938
        %2067 = vst [vmem:[%s238 + $0x90] sm:$0xff] %v1939
        %2068 = vst [vmem:[%s238 + $0x98] sm:$0xff] %v1940
        %2069 = vst [vmem:[%s238 + $0xa0] sm:$0xff] %v1941
        %2070 = vst [vmem:[%s238 + $0xa8] sm:$0xff] %v1942
        %2071 = vst [vmem:[%s238 + $0xb0] sm:$0xff] %v1943
        %2072 = vst [vmem:[%s238 + $0xb8] sm:$0xff] %v1944
        %2073 = vst [vmem:[%s238 + $0xc0] sm:$0xff] %v1945
        %2074 = vst [vmem:[%s238 + $0xc8] sm:$0xff] %v1946
        %2075 = vst [vmem:[%s238 + $0xd0] sm:$0xff] %v1947
        %2076 = vst [vmem:[%s238 + $0xd8] sm:$0xff] %v1948
        %2077 = vst [vmem:[%s238 + $0xe0] sm:$0xff] %v1949
        %2078 = vst [vmem:[%s238 + $0xe8] sm:$0xff] %v1950
        %2079 = vst [vmem:[%s238 + $0xf0] sm:$0xff] %v1951
        %2080 = vst [vmem:[%s238 + $0xf8] sm:$0xff] %v1952
        %2081 = vst [vmem:[%s238 + $0x100] sm:$0xff] %v1953
        %2082 = vst [vmem:[%s238 + $0x108] sm:$0xff] %v1954
        %2083 = vst [vmem:[%s238 + $0x110] sm:$0xff] %v1955
        %2084 = vst [vmem:[%s238 + $0x118] sm:$0xff] %v1956
        %2085 = vst [vmem:[%s238 + $0x120] sm:$0xff] %v1957
        %2086 = vst [vmem:[%s238 + $0x128] sm:$0xff] %v1958
        %2087 = vst [vmem:[%s238 + $0x130] sm:$0xff] %v1959
        %2088 = vst [vmem:[%s238 + $0x138] sm:$0xff] %v1960
        %2089 = vst [vmem:[%s238 + $0x140] sm:$0xff] %v1961
        %2090 = vst [vmem:[%s238 + $0x148] sm:$0xff] %v1962
        %2091 = vst [vmem:[%s238 + $0x150] sm:$0xff] %v1963
        %2092 = vst [vmem:[%s238 + $0x158] sm:$0xff] %v1964
        %2093 = vst [vmem:[%s238 + $0x160] sm:$0xff] %v1965
        %2094 = vst [vmem:[%s238 + $0x168] sm:$0xff] %v1966
        %2095 = vst [vmem:[%s238 + $0x170] sm:$0xff] %v1967
        %2096 = vst [vmem:[%s238 + $0x178] sm:$0xff] %v1968
        %2097 = vst [vmem:[%s238 + $0x180] sm:$0xff] %v1969
        %2098 = vst [vmem:[%s238 + $0x188] sm:$0xff] %v1970
        %2099 = vst [vmem:[%s238 + $0x190] sm:$0xff] %v1971
        %2100 = vst [vmem:[%s238 + $0x198] sm:$0xff] %v1972
        %2101 = vst [vmem:[%s238 + $0x1a0] sm:$0xff] %v1973
        %2102 = vst [vmem:[%s238 + $0x1a8] sm:$0xff] %v1974
        %2103 = vst [vmem:[%s238 + $0x1b0] sm:$0xff] %v1975
        %2104 = vst [vmem:[%s238 + $0x1b8] sm:$0xff] %v1976
        %2105 = vst [vmem:[%s238 + $0x1c0] sm:$0xff] %v1977
        %2106 = vst [vmem:[%s238 + $0x1c8] sm:$0xff] %v1978
        %2107 = vst [vmem:[%s238 + $0x1d0] sm:$0xff] %v1979
        %2108 = vst [vmem:[%s238 + $0x1d8] sm:$0xff] %v1980
        %2109 = vst [vmem:[%s238 + $0x1e0] sm:$0xff] %v1981
        %2110 = vst [vmem:[%s238 + $0x1e8] sm:$0xff] %v1982
        %2111 = vst [vmem:[%s238 + $0x1f0] sm:$0xff] %v1983
        %2112 = vst [vmem:[%s238 + $0x1f8] sm:$0xff] %v1984
        %2113 = vst [vmem:[%s238 + $0x200] sm:$0xff] %v1985
        %2114 = vst [vmem:[%s238 + $0x208] sm:$0xff] %v1986
        %2115 = vst [vmem:[%s238 + $0x210] sm:$0xff] %v1987
        %2116 = vst [vmem:[%s238 + $0x218] sm:$0xff] %v1988
        %2117 = vst [vmem:[%s238 + $0x220] sm:$0xff] %v1989
        %2118 = vst [vmem:[%s238 + $0x228] sm:$0xff] %v1990
        %2119 = vst [vmem:[%s238 + $0x230] sm:$0xff] %v1991
        %2120 = vst [vmem:[%s238 + $0x238] sm:$0xff] %v1992
        %2121 = vst [vmem:[%s238 + $0x240] sm:$0xff] %v1993
        %2122 = vst [vmem:[%s238 + $0x248] sm:$0xff] %v1994
        %2123 = vst [vmem:[%s238 + $0x250] sm:$0xff] %v1995
        %2124 = vst [vmem:[%s238 + $0x258] sm:$0xff] %v1996
        %2125 = vst [vmem:[%s238 + $0x260] sm:$0xff] %v1997
        %2126 = vst [vmem:[%s238 + $0x268] sm:$0xff] %v1998
        %2127 = vst [vmem:[%s238 + $0x270] sm:$0xff] %v1999
        %2128 = vst [vmem:[%s238 + $0x278] sm:$0xff] %v2000
        %2129 = vst [vmem:[%s238 + $0x280] sm:$0xff] %v2001
        %2130 = vst [vmem:[%s238 + $0x288] sm:$0xff] %v2002
        %2131 = vst [vmem:[%s238 + $0x290] sm:$0xff] %v2003
        %2132 = vst [vmem:[%s238 + $0x298] sm:$0xff] %v2004
        %2133 = vst [vmem:[%s238 + $0x2a0] sm:$0xff] %v2005
        %2134 = vst [vmem:[%s238 + $0x2a8] sm:$0xff] %v2006
        %2135 = vst [vmem:[%s238 + $0x2b0] sm:$0xff] %v2007
        %2136 = vst [vmem:[%s238 + $0x2b8] sm:$0xff] %v2008
        %2137 = vst [vmem:[%s238 + $0x2c0] sm:$0xff] %v2009
        %2138 = vst [vmem:[%s238 + $0x2c8] sm:$0xff] %v2010
        %2139 = vst [vmem:[%s238 + $0x2d0] sm:$0xff] %v2011
        %2140 = vst [vmem:[%s238 + $0x2d8] sm:$0xff] %v2012
        %2141 = vst [vmem:[%s238 + $0x2e0] sm:$0xff] %v2013
        %2142 = vst [vmem:[%s238 + $0x2e8] sm:$0xff] %v2014
        %2143 = vst [vmem:[%s238 + $0x2f0] sm:$0xff] %v2015
        %2144 = vst [vmem:[%s238 + $0x2f8] sm:$0xff] %v2016
        %2145 = vst [vmem:[%s238 + $0x300] sm:$0xff] %v2017
        %2146 = vst [vmem:[%s238 + $0x308] sm:$0xff] %v2018
        %2147 = vst [vmem:[%s238 + $0x310] sm:$0xff] %v2019
        %2148 = vst [vmem:[%s238 + $0x318] sm:$0xff] %v2020
        %2149 = vst [vmem:[%s238 + $0x320] sm:$0xff] %v2021
        %2150 = vst [vmem:[%s238 + $0x328] sm:$0xff] %v2022
        %2151 = vst [vmem:[%s238 + $0x330] sm:$0xff] %v2023
        %2152 = vst [vmem:[%s238 + $0x338] sm:$0xff] %v2024
        %2153 = vst [vmem:[%s238 + $0x340] sm:$0xff] %v2025
        %2154 = vst [vmem:[%s238 + $0x348] sm:$0xff] %v2026
        %2155 = vst [vmem:[%s238 + $0x350] sm:$0xff] %v2027
        %2156 = vst [vmem:[%s238 + $0x358] sm:$0xff] %v2028
        %2157 = vst [vmem:[%s238 + $0x360] sm:$0xff] %v2029
        %2158 = vst [vmem:[%s238 + $0x368] sm:$0xff] %v2030
        %2159 = vst [vmem:[%s238 + $0x370] sm:$0xff] %v2031
        %2160 = vst [vmem:[%s238 + $0x378] sm:$0xff] %v2032
        %2161 = vst [vmem:[%s238 + $0x380] sm:$0xff] %v2033
        %2162 = vst [vmem:[%s238 + $0x388] sm:$0xff] %v2034
        %2163 = vst [vmem:[%s238 + $0x390] sm:$0xff] %v2035
        %2164 = vst [vmem:[%s238 + $0x398] sm:$0xff] %v2036
        %2165 = vst [vmem:[%s238 + $0x3a0] sm:$0xff] %v2037
        %2166 = vst [vmem:[%s238 + $0x3a8] sm:$0xff] %v2038
        %2167 = vst [vmem:[%s238 + $0x3b0] sm:$0xff] %v2039
        %2168 = vst [vmem:[%s238 + $0x3b8] sm:$0xff] %v2040
        %2169 = vst [vmem:[%s238 + $0x3c0] sm:$0xff] %v2041
        %2170 = vst [vmem:[%s238 + $0x3c8] sm:$0xff] %v2042
        %2171 = vst [vmem:[%s238 + $0x3d0] sm:$0xff] %v2043
        %2172 = vst [vmem:[%s238 + $0x3d8] sm:$0xff] %v2044
        %2173 = vst [vmem:[%s238 + $0x3e0] sm:$0xff] %v2045
        %2174 = vst [vmem:[%s238 + $0x3e8] sm:$0xff] %v2046
        %2175 = vst [vmem:[%s238 + $0x3f0] sm:$0xff] %v2047
        %2176 = vst [vmem:[%s238 + $0x3f8] sm:$0xff] %v2048
      $region52: #{dogs_cats_forward.4} parent=39 // pred_fallthru
        _
      %s2177 = smul.u32 128, %s21
      %p2178 = scmp.lt.s32.totalorder %s2177, 1023
      %s2179 = scalar_select %p2178, %s2177, 1023
      %s2180 = smul.addr %s2179, 8
      %s2181 = scalar_lea.vmem %s5, %s2180
      // Predicated region
      $region53: #{dogs_cats_forward.4} parent=39 // pred_check
        %p2182 = pneg %p156
      $region54: #{dogs_cats_forward.4} parent=39 // pred_check_branch
        %2184 = sbr.rel (%p2182) target = $region56
      $region55: #{dogs_cats_forward.4} parent=39 // pred_region
        %s2185 = smul.u32 128, %s21
      $region56: #{dogs_cats_forward.4} parent=39 // pred_fallthru
        _
    $region40: #{dogs_cats_forward.4} parent=5 // pred_fallthru
      _
    %p2186 = scmp.le.s32.totalorder 2, %s11
    // Predicated region
    $region57: #{dogs_cats_forward.4} parent=5 // pred_check
      %p2187 = pneg %p2186
    $region58: #{dogs_cats_forward.4} parent=5 // pred_check_branch
      %2189 = sbr.rel (%p2187) target = $region60
    $region59: #{dogs_cats_forward.4} parent=5 // pred_region
      %s2190 = ssub.s32 %s11, 2
      // Predicated region
      $region61: #{dogs_cats_forward.4} parent=59 // pred_check
        %p2191 = pneg %p162
      $region62: #{dogs_cats_forward.4} parent=59 // pred_check_branch
        %2193 = sbr.rel (%p2191) target = $region64
      $region63: #{dogs_cats_forward.4} parent=59 // pred_region
        %s2194 = smul.u32 128, %s23
        %p2195 = scmp.lt.s32.totalorder %s2194, 1023
        %s2196 = scalar_select %p2195, %s2194, 1023
        %s2197 = smul.addr %s2196, 8
        %s2198 = scalar_lea.vmem %s5, %s2197
      $region64: #{dogs_cats_forward.4} parent=59 // pred_fallthru
        _
    $region60: #{dogs_cats_forward.4} parent=5 // pred_fallthru
      _
  $region6: #{dogs_cats_forward.4} parent=0 // loop_footer
    %s15 = sadd.s32 1, %s11
  $region7: #{dogs_cats_forward.4} parent=0 // loop_footer_branch
    %10 = sbr.rel target = $region3
  $region8: #{dogs_cats_forward.4} parent=0 // loop_exit
    _

// kernel: dogs_cats_forward.5
$region0: #{dogs_cats_forward.5}
  #allocation0 [shape = 'u32[]', space=smem, size = 0x4, offset = 0x4, fixed_abs, tag = 'smem constant byte address 0x4 - core index']
  #allocation1 [shape = 'u32[144,128]{1,0:T(1,128)}', space=vmem, size = 0x12000, scoped, tag = 'internal scratch']
  #allocation2 [shape = 'f32[1,128]{1,0:T(1,128)}', space=vmem, size = 0x200, scoped, tag = 'scratch operand']
  #allocation3 [shape = 'f32[1,128]{1,0:T(1,128)}', space=vmem, size = 0x200, scoped, tag = 'scratch operand']
  %s0 = inlined_call_operand.vmem [shape: f32[2048,128], index: 0, kind: input, shape index: {}]
  %s1 = inlined_call_operand.vmem [shape: f32[128,128], index: 1, kind: input, shape index: {}]
  %s2 = inlined_call_operand.vmem [shape: f32[1,128], index: 2, kind: input, shape index: {}]
  %s3 = inlined_call_operand.vmem [shape: f32[1,128], index: 3, kind: input, shape index: {}]
  %s4 = inlined_call_operand.vmem [shape: f32[1,128], index: 4, kind: input, shape index: {}]
  %s5 = inlined_call_operand.vmem [shape: f32[2048,128], index: 5, kind: output, shape index: {}]
  %s6 = sld [smem:[#allocation0]]
  $region65: #{dogs_cats_forward.5} parent=0
    _
  %s8 = ssub.s32 1, %s6
  %s9 = scalar_select 0, %s8, %s6
  loop: start=0, step=1, limit=6
  $region2: #{dogs_cats_forward.5} parent=0 // loop_pre_header
    _
  $region3: #{dogs_cats_forward.5} parent=0 // loop_header
    %s11 = sphi 0, %s15
    %p12 = scmp.ge.s32.totalorder %s11, 6
    %s18 = sphi 0, %s30
    %s19 = sphi 0, %s26
    %s20 = sphi 0, %s18
    %s21 = sphi 0, %s19
    %s22 = sphi 0, %s20
    %s23 = sphi 0, %s21
    %s33 = sphi 0, %s35
    %s36 = sphi 0, %s33
    %s37 = sphi 0, %s36
    %s53 = sphi 0, %s37
    %s57 = sphi 0, %s57
    %s59 = sphi 0, %s57
    %s60 = sphi 0, %s59
    %s74 = sphi 0, %s60
    %s78 = sphi 0, %s78
    %s80 = sphi 0, %s78
    %s81 = sphi 0, %s80
    %s95 = sphi 0, %s81
    %s99 = sphi 0, %s99
    %s101 = sphi 0, %s99
    %s102 = sphi 0, %s101
    %s116 = sphi 0, %s102
    %s120 = sphi 0, %s120
    %s122 = sphi 0, %s120
    %s123 = sphi 0, %s122
    %s137 = sphi 0, %s123
    %s143 = sphi 0, %s145
    %s146 = sphi 0, %s143
    %s147 = sphi 0, %s146
    %s163 = sphi 0, %s147
  $region4: #{dogs_cats_forward.5} parent=0 // loop_header_branch
    %14 = sbr.rel (%p12) target = $region8
  $region5: #{dogs_cats_forward.5} parent=0 // loop_body
    %s16 = ssub.s32 %s11, 1
    %s17 = ssub.s32 %s11, 2
    %s24 = sadd.s32 1, %s19
    %p25 = scmp.ge.s32.totalorder %s24, 2
    %s26 = scalar_select %p25, 0, %s24
    %s27 = sadd.s32 1, %s18
    %s28 = scalar_select %p25, %s27, %s18
    %p29 = scmp.ge.s32.totalorder %s28, 2
    %s30 = scalar_select %p29, 0, %s28
    %s31 = ssub.s32 %s19, %s26
    %p32 = scmp.eq.s32.totalorder %s31, 0
    %s34 = sadd.s32 %s33, 1
    %s35 = scalar_select %p32, %s33, %s34
    %p38 = pneg %p32
    %p39 = scmp.eq.s32.totalorder %s11, 3
    %p40 = por %p38, %p39
    %p41 = scmp.ne.s32.totalorder %s33, %s36
    %p42 = scmp.eq.s32.totalorder %s11, 0
    %p43 = por %p41, %p42
    %p44 = scmp.ne.s32.totalorder %s33, %s36
    %p45 = scmp.eq.s32.totalorder %s16, 3
    %p46 = por %p44, %p45
    %p47 = scmp.ne.s32.totalorder %s36, %s37
    %p48 = scmp.eq.s32.totalorder %s16, 0
    %p49 = por %p47, %p48
    %p50 = scmp.ne.s32.totalorder %s36, %s37
    %p51 = scmp.eq.s32.totalorder %s17, 3
    %p52 = por %p50, %p51
    %p54 = scmp.ne.s32.totalorder %s37, %s53
    %p55 = scmp.eq.s32.totalorder %s17, 0
    %p56 = por %p54, %p55
    %s58 = sadd.s32 %s57, 1
    %p61 = scmp.eq.s32.totalorder %s11, 3
    %p62 = scmp.ne.s32.totalorder %s57, %s59
    %p63 = scmp.eq.s32.totalorder %s11, 0
    %p64 = por %p62, %p63
    %p65 = scmp.ne.s32.totalorder %s57, %s59
    %p66 = scmp.eq.s32.totalorder %s16, 3
    %p67 = por %p65, %p66
    %p68 = scmp.ne.s32.totalorder %s59, %s60
    %p69 = scmp.eq.s32.totalorder %s16, 0
    %p70 = por %p68, %p69
    %p71 = scmp.ne.s32.totalorder %s59, %s60
    %p72 = scmp.eq.s32.totalorder %s17, 3
    %p73 = por %p71, %p72
    %p75 = scmp.ne.s32.totalorder %s60, %s74
    %p76 = scmp.eq.s32.totalorder %s17, 0
    %p77 = por %p75, %p76
    %s79 = sadd.s32 %s78, 1
    %p82 = scmp.eq.s32.totalorder %s11, 3
    %p83 = scmp.ne.s32.totalorder %s78, %s80
    %p84 = scmp.eq.s32.totalorder %s11, 0
    %p85 = por %p83, %p84
    %p86 = scmp.ne.s32.totalorder %s78, %s80
    %p87 = scmp.eq.s32.totalorder %s16, 3
    %p88 = por %p86, %p87
    %p89 = scmp.ne.s32.totalorder %s80, %s81
    %p90 = scmp.eq.s32.totalorder %s16, 0
    %p91 = por %p89, %p90
    %p92 = scmp.ne.s32.totalorder %s80, %s81
    %p93 = scmp.eq.s32.totalorder %s17, 3
    %p94 = por %p92, %p93
    %p96 = scmp.ne.s32.totalorder %s81, %s95
    %p97 = scmp.eq.s32.totalorder %s17, 0
    %p98 = por %p96, %p97
    %s100 = sadd.s32 %s99, 1
    %p103 = scmp.eq.s32.totalorder %s11, 3
    %p104 = scmp.ne.s32.totalorder %s99, %s101
    %p105 = scmp.eq.s32.totalorder %s11, 0
    %p106 = por %p104, %p105
    %p107 = scmp.ne.s32.totalorder %s99, %s101
    %p108 = scmp.eq.s32.totalorder %s16, 3
    %p109 = por %p107, %p108
    %p110 = scmp.ne.s32.totalorder %s101, %s102
    %p111 = scmp.eq.s32.totalorder %s16, 0
    %p112 = por %p110, %p111
    %p113 = scmp.ne.s32.totalorder %s101, %s102
    %p114 = scmp.eq.s32.totalorder %s17, 3
    %p115 = por %p113, %p114
    %p117 = scmp.ne.s32.totalorder %s102, %s116
    %p118 = scmp.eq.s32.totalorder %s17, 0
    %p119 = por %p117, %p118
    %s121 = sadd.s32 %s120, 1
    %p124 = scmp.eq.s32.totalorder %s11, 3
    %p125 = scmp.ne.s32.totalorder %s120, %s122
    %p126 = scmp.eq.s32.totalorder %s11, 0
    %p127 = por %p125, %p126
    %p128 = scmp.ne.s32.totalorder %s120, %s122
    %p129 = scmp.eq.s32.totalorder %s16, 3
    %p130 = por %p128, %p129
    %p131 = scmp.ne.s32.totalorder %s122, %s123
    %p132 = scmp.eq.s32.totalorder %s16, 0
    %p133 = por %p131, %p132
    %p134 = scmp.ne.s32.totalorder %s122, %s123
    %p135 = scmp.eq.s32.totalorder %s17, 3
    %p136 = por %p134, %p135
    %p138 = scmp.ne.s32.totalorder %s123, %s137
    %p139 = scmp.eq.s32.totalorder %s17, 0
    %p140 = por %p138, %p139
    %s141 = ssub.s32 %s19, %s26
    %p142 = scmp.eq.s32.totalorder %s141, 0
    %s144 = sadd.s32 %s143, 1
    %s145 = scalar_select %p142, %s143, %s144
    %p148 = pneg %p142
    %p149 = scmp.eq.s32.totalorder %s11, 3
    %p150 = por %p148, %p149
    %p151 = scmp.ne.s32.totalorder %s143, %s146
    %p152 = scmp.eq.s32.totalorder %s11, 0
    %p153 = por %p151, %p152
    %p154 = scmp.ne.s32.totalorder %s143, %s146
    %p155 = scmp.eq.s32.totalorder %s16, 3
    %p156 = por %p154, %p155
    %p157 = scmp.ne.s32.totalorder %s146, %s147
    %p158 = scmp.eq.s32.totalorder %s16, 0
    %p159 = por %p157, %p158
    %p160 = scmp.ne.s32.totalorder %s146, %s147
    %p161 = scmp.eq.s32.totalorder %s17, 3
    %p162 = por %p160, %p161
    %p164 = scmp.ne.s32.totalorder %s147, %s163
    %p165 = scmp.eq.s32.totalorder %s17, 0
    %p166 = por %p164, %p165
    %p167 = scmp.le.s32.totalorder 1, %s11
    %p168 = scmp.lt.s32.totalorder %s11, 5
    %p169 = pnand %p167, %p168
    %p170 = pneg %p169
    // Predicated region
    $region9: #{dogs_cats_forward.5} parent=5 // pred_check
      _
    $region10: #{dogs_cats_forward.5} parent=5 // pred_check_branch
      %172 = sbr.rel (%p169) target = $region12
    $region11: #{dogs_cats_forward.5} parent=5 // pred_region
      %s173 = ssub.s32 %s11, 1
      // Predicated region
      $region13: #{dogs_cats_forward.5} parent=11 // pred_check
        %p174 = pneg %p70
      $region14: #{dogs_cats_forward.5} parent=11 // pred_check_branch
        %176 = sbr.rel (%p174) target = $region16
      $region15: #{dogs_cats_forward.5} parent=11 // pred_region
        _
      $region16: #{dogs_cats_forward.5} parent=11 // pred_fallthru
        _
      // Predicated region
      $region17: #{dogs_cats_forward.5} parent=11 // pred_check
        %p177 = pneg %p91
      $region18: #{dogs_cats_forward.5} parent=11 // pred_check_branch
        %179 = sbr.rel (%p177) target = $region20
      $region19: #{dogs_cats_forward.5} parent=11 // pred_region
        _
      $region20: #{dogs_cats_forward.5} parent=11 // pred_fallthru
        _
      // Predicated region
      $region21: #{dogs_cats_forward.5} parent=11 // pred_check
        %p180 = pneg %p112
      $region22: #{dogs_cats_forward.5} parent=11 // pred_check_branch
        %182 = sbr.rel (%p180) target = $region24
      $region23: #{dogs_cats_forward.5} parent=11 // pred_region
        _
      $region24: #{dogs_cats_forward.5} parent=11 // pred_fallthru
        _
      // Predicated region
      $region25: #{dogs_cats_forward.5} parent=11 // pred_check
        %p183 = pneg %p133
      $region26: #{dogs_cats_forward.5} parent=11 // pred_check_branch
        %185 = sbr.rel (%p183) target = $region28
      $region27: #{dogs_cats_forward.5} parent=11 // pred_region
        _
      $region28: #{dogs_cats_forward.5} parent=11 // pred_fallthru
        _
    $region12: #{dogs_cats_forward.5} parent=5 // pred_fallthru
      _
    %p186 = scmp.lt.s32.totalorder %s11, 4
    // Predicated region
    $region29: #{dogs_cats_forward.5} parent=5 // pred_check
      %p187 = pneg %p186
    $region30: #{dogs_cats_forward.5} parent=5 // pred_check_branch
      %189 = sbr.rel (%p187) target = $region32
    $region31: #{dogs_cats_forward.5} parent=5 // pred_region
      // Predicated region
      $region33: #{dogs_cats_forward.5} parent=31 // pred_check
        %p190 = pneg %p43
      $region34: #{dogs_cats_forward.5} parent=31 // pred_check_branch
        %192 = sbr.rel (%p190) target = $region36
      $region35: #{dogs_cats_forward.5} parent=31 // pred_region
        %s193 = smul.u32 128, %s19
        %p194 = scmp.lt.s32.totalorder %s193, 255
        %s195 = scalar_select %p194, %s193, 255
        %s196 = smul.addr %s195, 8
        %s197 = scalar_lea.vmem %s0, %s196
        %s198 = smul.u32 128, %s19
      $region36: #{dogs_cats_forward.5} parent=31 // pred_fallthru
        _
    $region32: #{dogs_cats_forward.5} parent=5 // pred_fallthru
      _
    %p199 = scmp.le.s32.totalorder 1, %s11
    %p200 = scmp.lt.s32.totalorder %s11, 5
    %p201 = pnand %p199, %p200
    %p202 = pneg %p201
    // Predicated region
    $region37: #{dogs_cats_forward.5} parent=5 // pred_check
      _
    $region38: #{dogs_cats_forward.5} parent=5 // pred_check_branch
      %204 = sbr.rel (%p201) target = $region40
    $region39: #{dogs_cats_forward.5} parent=5 // pred_region
      %s205 = ssub.s32 %s11, 1
      %s206 = smul.u32 128, %s21
      %p207 = scmp.lt.s32.totalorder %s206, 255
      %s208 = scalar_select %p207, %s206, 255
      %s209 = smul.addr %s208, 8
      %s210 = scalar_lea.vmem %s0, %s209
      %p211 = pneg %p49
      %p212 = pneg %p46
      %p213 = pneg %p70
      %p214 = pneg %p67
      %p215 = pneg %p91
      %p216 = pneg %p88
      %p217 = pneg %p112
      %p218 = pneg %p109
      %p219 = pneg %p133
      %p220 = pneg %p130
      %p221 = pneg %p159
      %p222 = pneg %p156
      %s223 = smul.u32 128, %s21
      %p224 = scmp.lt.s32.totalorder %s223, 255
      %s225 = scalar_select %p224, %s223, 255
      %s226 = smul.addr %s225, 8
      %s227 = scalar_lea.vmem %s5, %s226
      %s228 = smul.u32 128, %s21
      %p229 = scmp.lt.s32.totalorder %s228, 255
      %s230 = scalar_select %p229, %s228, 255
      %s231 = smul.addr %s230, 8
      %s232 = scalar_lea.vmem %s0, %s231
      %s233 = smul.u32 128, %s21
      %s234 = smul.u32 128, %s21
      %p235 = scmp.lt.s32.totalorder %s234, 255
      %s236 = scalar_select %p235, %s234, 255
      %s237 = smul.addr %s236, 8
      %s238 = scalar_lea.vmem %s5, %s237
      %s239 = smul.u32 128, %s21
      %v240 = vld [vmem:[%s232] sm:$0xff]
      %v241 = vld [vmem:[%s232 + $0x8] sm:$0xff]
      %v242 = vld [vmem:[%s232 + $0x10] sm:$0xff]
      %v243 = vld [vmem:[%s232 + $0x18] sm:$0xff]
      %v244 = vld [vmem:[%s232 + $0x20] sm:$0xff]
      %v245 = vld [vmem:[%s232 + $0x28] sm:$0xff]
      %v246 = vld [vmem:[%s232 + $0x30] sm:$0xff]
      %v247 = vld [vmem:[%s232 + $0x38] sm:$0xff]
      %v248 = vld [vmem:[%s232 + $0x40] sm:$0xff]
      %v249 = vld [vmem:[%s232 + $0x48] sm:$0xff]
      %v250 = vld [vmem:[%s232 + $0x50] sm:$0xff]
      %v251 = vld [vmem:[%s232 + $0x58] sm:$0xff]
      %v252 = vld [vmem:[%s232 + $0x60] sm:$0xff]
      %v253 = vld [vmem:[%s232 + $0x68] sm:$0xff]
      %v254 = vld [vmem:[%s232 + $0x70] sm:$0xff]
      %v255 = vld [vmem:[%s232 + $0x78] sm:$0xff]
      %v256 = vld [vmem:[%s232 + $0x80] sm:$0xff]
      %v257 = vld [vmem:[%s232 + $0x88] sm:$0xff]
      %v258 = vld [vmem:[%s232 + $0x90] sm:$0xff]
      %v259 = vld [vmem:[%s232 + $0x98] sm:$0xff]
      %v260 = vld [vmem:[%s232 + $0xa0] sm:$0xff]
      %v261 = vld [vmem:[%s232 + $0xa8] sm:$0xff]
      %v262 = vld [vmem:[%s232 + $0xb0] sm:$0xff]
      %v263 = vld [vmem:[%s232 + $0xb8] sm:$0xff]
      %v264 = vld [vmem:[%s232 + $0xc0] sm:$0xff]
      %v265 = vld [vmem:[%s232 + $0xc8] sm:$0xff]
      %v266 = vld [vmem:[%s232 + $0xd0] sm:$0xff]
      %v267 = vld [vmem:[%s232 + $0xd8] sm:$0xff]
      %v268 = vld [vmem:[%s232 + $0xe0] sm:$0xff]
      %v269 = vld [vmem:[%s232 + $0xe8] sm:$0xff]
      %v270 = vld [vmem:[%s232 + $0xf0] sm:$0xff]
      %v271 = vld [vmem:[%s232 + $0xf8] sm:$0xff]
      %v272 = vld [vmem:[%s232 + $0x100] sm:$0xff]
      %v273 = vld [vmem:[%s232 + $0x108] sm:$0xff]
      %v274 = vld [vmem:[%s232 + $0x110] sm:$0xff]
      %v275 = vld [vmem:[%s232 + $0x118] sm:$0xff]
      %v276 = vld [vmem:[%s232 + $0x120] sm:$0xff]
      %v277 = vld [vmem:[%s232 + $0x128] sm:$0xff]
      %v278 = vld [vmem:[%s232 + $0x130] sm:$0xff]
      %v279 = vld [vmem:[%s232 + $0x138] sm:$0xff]
      %v280 = vld [vmem:[%s232 + $0x140] sm:$0xff]
      %v281 = vld [vmem:[%s232 + $0x148] sm:$0xff]
      %v282 = vld [vmem:[%s232 + $0x150] sm:$0xff]
      %v283 = vld [vmem:[%s232 + $0x158] sm:$0xff]
      %v284 = vld [vmem:[%s232 + $0x160] sm:$0xff]
      %v285 = vld [vmem:[%s232 + $0x168] sm:$0xff]
      %v286 = vld [vmem:[%s232 + $0x170] sm:$0xff]
      %v287 = vld [vmem:[%s232 + $0x178] sm:$0xff]
      %v288 = vld [vmem:[%s232 + $0x180] sm:$0xff]
      %v289 = vld [vmem:[%s232 + $0x188] sm:$0xff]
      %v290 = vld [vmem:[%s232 + $0x190] sm:$0xff]
      %v291 = vld [vmem:[%s232 + $0x198] sm:$0xff]
      %v292 = vld [vmem:[%s232 + $0x1a0] sm:$0xff]
      %v293 = vld [vmem:[%s232 + $0x1a8] sm:$0xff]
      %v294 = vld [vmem:[%s232 + $0x1b0] sm:$0xff]
      %v295 = vld [vmem:[%s232 + $0x1b8] sm:$0xff]
      %v296 = vld [vmem:[%s232 + $0x1c0] sm:$0xff]
      %v297 = vld [vmem:[%s232 + $0x1c8] sm:$0xff]
      %v298 = vld [vmem:[%s232 + $0x1d0] sm:$0xff]
      %v299 = vld [vmem:[%s232 + $0x1d8] sm:$0xff]
      %v300 = vld [vmem:[%s232 + $0x1e0] sm:$0xff]
      %v301 = vld [vmem:[%s232 + $0x1e8] sm:$0xff]
      %v302 = vld [vmem:[%s232 + $0x1f0] sm:$0xff]
      %v303 = vld [vmem:[%s232 + $0x1f8] sm:$0xff]
      %v304 = vld [vmem:[%s232 + $0x200] sm:$0xff]
      %v305 = vld [vmem:[%s232 + $0x208] sm:$0xff]
      %v306 = vld [vmem:[%s232 + $0x210] sm:$0xff]
      %v307 = vld [vmem:[%s232 + $0x218] sm:$0xff]
      %v308 = vld [vmem:[%s232 + $0x220] sm:$0xff]
      %v309 = vld [vmem:[%s232 + $0x228] sm:$0xff]
      %v310 = vld [vmem:[%s232 + $0x230] sm:$0xff]
      %v311 = vld [vmem:[%s232 + $0x238] sm:$0xff]
      %v312 = vld [vmem:[%s232 + $0x240] sm:$0xff]
      %v313 = vld [vmem:[%s232 + $0x248] sm:$0xff]
      %v314 = vld [vmem:[%s232 + $0x250] sm:$0xff]
      %v315 = vld [vmem:[%s232 + $0x258] sm:$0xff]
      %v316 = vld [vmem:[%s232 + $0x260] sm:$0xff]
      %v317 = vld [vmem:[%s232 + $0x268] sm:$0xff]
      %v318 = vld [vmem:[%s232 + $0x270] sm:$0xff]
      %v319 = vld [vmem:[%s232 + $0x278] sm:$0xff]
      %v320 = vld [vmem:[%s232 + $0x280] sm:$0xff]
      %v321 = vld [vmem:[%s232 + $0x288] sm:$0xff]
      %v322 = vld [vmem:[%s232 + $0x290] sm:$0xff]
      %v323 = vld [vmem:[%s232 + $0x298] sm:$0xff]
      %v324 = vld [vmem:[%s232 + $0x2a0] sm:$0xff]
      %v325 = vld [vmem:[%s232 + $0x2a8] sm:$0xff]
      %v326 = vld [vmem:[%s232 + $0x2b0] sm:$0xff]
      %v327 = vld [vmem:[%s232 + $0x2b8] sm:$0xff]
      %v328 = vld [vmem:[%s232 + $0x2c0] sm:$0xff]
      %v329 = vld [vmem:[%s232 + $0x2c8] sm:$0xff]
      %v330 = vld [vmem:[%s232 + $0x2d0] sm:$0xff]
      %v331 = vld [vmem:[%s232 + $0x2d8] sm:$0xff]
      %v332 = vld [vmem:[%s232 + $0x2e0] sm:$0xff]
      %v333 = vld [vmem:[%s232 + $0x2e8] sm:$0xff]
      %v334 = vld [vmem:[%s232 + $0x2f0] sm:$0xff]
      %v335 = vld [vmem:[%s232 + $0x2f8] sm:$0xff]
      %v336 = vld [vmem:[%s232 + $0x300] sm:$0xff]
      %v337 = vld [vmem:[%s232 + $0x308] sm:$0xff]
      %v338 = vld [vmem:[%s232 + $0x310] sm:$0xff]
      %v339 = vld [vmem:[%s232 + $0x318] sm:$0xff]
      %v340 = vld [vmem:[%s232 + $0x320] sm:$0xff]
      %v341 = vld [vmem:[%s232 + $0x328] sm:$0xff]
      %v342 = vld [vmem:[%s232 + $0x330] sm:$0xff]
      %v343 = vld [vmem:[%s232 + $0x338] sm:$0xff]
      %v344 = vld [vmem:[%s232 + $0x340] sm:$0xff]
      %v345 = vld [vmem:[%s232 + $0x348] sm:$0xff]
      %v346 = vld [vmem:[%s232 + $0x350] sm:$0xff]
      %v347 = vld [vmem:[%s232 + $0x358] sm:$0xff]
      %v348 = vld [vmem:[%s232 + $0x360] sm:$0xff]
      %v349 = vld [vmem:[%s232 + $0x368] sm:$0xff]
      %v350 = vld [vmem:[%s232 + $0x370] sm:$0xff]
      %v351 = vld [vmem:[%s232 + $0x378] sm:$0xff]
      %v352 = vld [vmem:[%s232 + $0x380] sm:$0xff]
      %v353 = vld [vmem:[%s232 + $0x388] sm:$0xff]
      %v354 = vld [vmem:[%s232 + $0x390] sm:$0xff]
      %v355 = vld [vmem:[%s232 + $0x398] sm:$0xff]
      %v356 = vld [vmem:[%s232 + $0x3a0] sm:$0xff]
      %v357 = vld [vmem:[%s232 + $0x3a8] sm:$0xff]
      %v358 = vld [vmem:[%s232 + $0x3b0] sm:$0xff]
      %v359 = vld [vmem:[%s232 + $0x3b8] sm:$0xff]
      %v360 = vld [vmem:[%s232 + $0x3c0] sm:$0xff]
      %v361 = vld [vmem:[%s232 + $0x3c8] sm:$0xff]
      %v362 = vld [vmem:[%s232 + $0x3d0] sm:$0xff]
      %v363 = vld [vmem:[%s232 + $0x3d8] sm:$0xff]
      %v364 = vld [vmem:[%s232 + $0x3e0] sm:$0xff]
      %v365 = vld [vmem:[%s232 + $0x3e8] sm:$0xff]
      %v366 = vld [vmem:[%s232 + $0x3f0] sm:$0xff]
      %v367 = vld [vmem:[%s232 + $0x3f8] sm:$0xff]
      %v368 = vld [vmem:[%s1] sm:$0xff]
      %v369 = vld [vmem:[%s1 + $0x8] sm:$0xff]
      %v370 = vld [vmem:[%s1 + $0x10] sm:$0xff]
      %v371 = vld [vmem:[%s1 + $0x18] sm:$0xff]
      %v372 = vld [vmem:[%s1 + $0x20] sm:$0xff]
      %v373 = vld [vmem:[%s1 + $0x28] sm:$0xff]
      %v374 = vld [vmem:[%s1 + $0x30] sm:$0xff]
      %v375 = vld [vmem:[%s1 + $0x38] sm:$0xff]
      %v376 = vld [vmem:[%s1 + $0x40] sm:$0xff]
      %v377 = vld [vmem:[%s1 + $0x48] sm:$0xff]
      %v378 = vld [vmem:[%s1 + $0x50] sm:$0xff]
      %v379 = vld [vmem:[%s1 + $0x58] sm:$0xff]
      %v380 = vld [vmem:[%s1 + $0x60] sm:$0xff]
      %v381 = vld [vmem:[%s1 + $0x68] sm:$0xff]
      %v382 = vld [vmem:[%s1 + $0x70] sm:$0xff]
      %v383 = vld [vmem:[%s1 + $0x78] sm:$0xff]
      %v384 = vld [vmem:[%s2] sm:$0x1]
      %v386 = vlaneseq
      %v387 = vshrl.u32 %v386, 7
      %v388 = vsub.s32 0, %v387
      %v389 = vrot.slane %v384, %v388
      %391 = vmatprep.subr.mxu0 0.0
      %392 = vmatpush1.msra.mxu0 %v368
      %393 = vmatprep.subr.mxu0 0.0
      %394 = vmatpush1.msra.mxu0 %v369
      %395 = vmatprep.subr.mxu0 0.0
      %396 = vmatpush1.msra.mxu0 %v370
      %397 = vmatprep.subr.mxu0 0.0
      %398 = vmatpush1.msra.mxu0 %v371
      %399 = vmatprep.subr.mxu0 0.0
      %400 = vmatpush1.msra.mxu0 %v372
      %401 = vmatprep.subr.mxu0 0.0
      %402 = vmatpush1.msra.mxu0 %v373
      %403 = vmatprep.subr.mxu0 0.0
      %404 = vmatpush1.msra.mxu0 %v374
      %405 = vmatprep.subr.mxu0 0.0
      %406 = vmatpush1.msra.mxu0 %v375
      %407 = vmatprep.subr.mxu0 0.0
      %408 = vmatpush1.msra.mxu0 %v376
      %409 = vmatprep.subr.mxu0 0.0
      %410 = vmatpush1.msra.mxu0 %v377
      %411 = vmatprep.subr.mxu0 0.0
      %412 = vmatpush1.msra.mxu0 %v378
      %413 = vmatprep.subr.mxu0 0.0
      %414 = vmatpush1.msra.mxu0 %v379
      %415 = vmatprep.subr.mxu0 0.0
      %416 = vmatpush1.msra.mxu0 %v380
      %417 = vmatprep.subr.mxu0 0.0
      %418 = vmatpush1.msra.mxu0 %v381
      %419 = vmatprep.subr.mxu0 0.0
      %420 = vmatpush1.msra.mxu0 %v382
      %421 = vmatprep.subr.mxu0 0.0
      %422 = vmatpush1.msra.mxu0 %v383
      %423 = vmatprep.subr.mxu0 0.0
      %424 = vmatpush1.msra.mxu0 0.0
      %425 = vmatprep.subr.mxu0 0.0
      %426 = vmatpush1.msra.mxu0 0.0
      %427 = vmatprep.subr.mxu0 0.0
      %428 = vmatpush1.msra.mxu0 0.0
      %429 = vmatprep.subr.mxu0 0.0
      %430 = vmatpush1.msra.mxu0 0.0
      %431 = vmatprep.subr.mxu0 0.0
      %432 = vmatpush1.msra.mxu0 0.0
      %433 = vmatprep.subr.mxu0 0.0
      %434 = vmatpush1.msra.mxu0 0.0
      %435 = vmatprep.subr.mxu0 0.0
      %436 = vmatpush1.msra.mxu0 0.0
      %437 = vmatprep.subr.mxu0 0.0
      %438 = vmatpush1.msra.mxu0 0.0
      %439 = vmatprep.subr.mxu0 0.0
      %440 = vmatpush1.msra.mxu0 0.0
      %441 = vmatprep.subr.mxu0 0.0
      %442 = vmatpush1.msra.mxu0 0.0
      %443 = vmatprep.subr.mxu0 0.0
      %444 = vmatpush1.msra.mxu0 0.0
      %445 = vmatprep.subr.mxu0 0.0
      %446 = vmatpush1.msra.mxu0 0.0
      %447 = vmatprep.subr.mxu0 0.0
      %448 = vmatpush1.msra.mxu0 0.0
      %449 = vmatprep.subr.mxu0 0.0
      %450 = vmatpush1.msra.mxu0 0.0
      %451 = vmatprep.subr.mxu0 0.0
      %452 = vmatpush1.msra.mxu0 0.0
      %453 = vmatprep.subr.mxu0 0.0
      %454 = vmatpush1.msra.mxu0 0.0
      %455 = vmatprep.mubr.f32.mxu0 0.0
      %456 = vmatmul.mubr.f32.gmra.mrb[0].mxu0 %v240
      %v457 = vpop.f32.mrb[0].mxu0
      %v458 = vadd.f32 %v389, %v457
      %v459 = vpop.f32.mrb[0].mxu0
      %460 = vmatprep.mubr.f32.mxu0 0.0
      %461 = vmatmul.mubr.f32.gmra.mrb[0].mxu0 %v241
      %v462 = vpop.f32.mrb[0].mxu0
      %v463 = vadd.f32 %v389, %v462
      %v464 = vpop.f32.mrb[0].mxu0
      %465 = vmatprep.mubr.f32.mxu0 0.0
      %466 = vmatmul.mubr.f32.gmra.mrb[0].mxu0 %v242
      %v467 = vpop.f32.mrb[0].mxu0
      %v468 = vadd.f32 %v389, %v467
      %v469 = vpop.f32.mrb[0].mxu0
      %470 = vmatprep.mubr.f32.mxu0 0.0
      %471 = vmatmul.mubr.f32.gmra.mrb[0].mxu0 %v243
      %v472 = vpop.f32.mrb[0].mxu0
      %v473 = vadd.f32 %v389, %v472
      %v474 = vpop.f32.mrb[0].mxu0
      %475 = vmatprep.mubr.f32.mxu0 0.0
      %476 = vmatmul.mubr.f32.gmra.mrb[0].mxu0 %v244
      %v477 = vpop.f32.mrb[0].mxu0
      %v478 = vadd.f32 %v389, %v477
      %v479 = vpop.f32.mrb[0].mxu0
      %480 = vmatprep.mubr.f32.mxu0 0.0
      %481 = vmatmul.mubr.f32.gmra.mrb[0].mxu0 %v245
      %v482 = vpop.f32.mrb[0].mxu0
      %v483 = vadd.f32 %v389, %v482
      %v484 = vpop.f32.mrb[0].mxu0
      %485 = vmatprep.mubr.f32.mxu0 0.0
      %486 = vmatmul.mubr.f32.gmra.mrb[0].mxu0 %v246
      %v487 = vpop.f32.mrb[0].mxu0
      %v488 = vadd.f32 %v389, %v487
      %v489 = vpop.f32.mrb[0].mxu0
      %490 = vmatprep.mubr.f32.mxu0 0.0
      %491 = vmatmul.mubr.f32.gmra.mrb[0].mxu0 %v247
      %v492 = vpop.f32.mrb[0].mxu0
      %v493 = vadd.f32 %v389, %v492
      %v494 = vpop.f32.mrb[0].mxu0
      %495 = vmatprep.mubr.f32.mxu0 0.0
      %496 = vmatmul.mubr.f32.gmra.mrb[0].mxu0 %v248
      %v497 = vpop.f32.mrb[0].mxu0
      %v498 = vadd.f32 %v389, %v497
      %v499 = vpop.f32.mrb[0].mxu0
      %500 = vmatprep.mubr.f32.mxu0 0.0
      %501 = vmatmul.mubr.f32.gmra.mrb[0].mxu0 %v249
      %v502 = vpop.f32.mrb[0].mxu0
      %v503 = vadd.f32 %v389, %v502
      %v504 = vpop.f32.mrb[0].mxu0
      %505 = vmatprep.mubr.f32.mxu0 0.0
      %506 = vmatmul.mubr.f32.gmra.mrb[0].mxu0 %v250
      %v507 = vpop.f32.mrb[0].mxu0
      %v508 = vadd.f32 %v389, %v507
      %v509 = vpop.f32.mrb[0].mxu0
      %510 = vmatprep.mubr.f32.mxu0 0.0
      %511 = vmatmul.mubr.f32.gmra.mrb[0].mxu0 %v251
      %v512 = vpop.f32.mrb[0].mxu0
      %v513 = vadd.f32 %v389, %v512
      %v514 = vpop.f32.mrb[0].mxu0
      %515 = vmatprep.mubr.f32.mxu0 0.0
      %516 = vmatmul.mubr.f32.gmra.mrb[0].mxu0 %v252
      %v517 = vpop.f32.mrb[0].mxu0
      %v518 = vadd.f32 %v389, %v517
      %v519 = vpop.f32.mrb[0].mxu0
      %520 = vmatprep.mubr.f32.mxu0 0.0
      %521 = vmatmul.mubr.f32.gmra.mrb[0].mxu0 %v253
      %v522 = vpop.f32.mrb[0].mxu0
      %v523 = vadd.f32 %v389, %v522
      %v524 = vpop.f32.mrb[0].mxu0
      %525 = vmatprep.mubr.f32.mxu0 0.0
      %526 = vmatmul.mubr.f32.gmra.mrb[0].mxu0 %v254
      %v527 = vpop.f32.mrb[0].mxu0
      %v528 = vadd.f32 %v389, %v527
      %v529 = vpop.f32.mrb[0].mxu0
      %530 = vmatprep.mubr.f32.mxu0 0.0
      %531 = vmatmul.mubr.f32.gmra.mrb[0].mxu0 %v255
      %v532 = vpop.f32.mrb[0].mxu0
      %v533 = vadd.f32 %v389, %v532
      %v534 = vpop.f32.mrb[0].mxu0
      %535 = vmatprep.mubr.f32.mxu0 0.0
      %536 = vmatmul.mubr.f32.gmra.mrb[0].mxu0 %v256
      %v537 = vpop.f32.mrb[0].mxu0
      %v538 = vadd.f32 %v389, %v537
      %v539 = vpop.f32.mrb[0].mxu0
      %540 = vmatprep.mubr.f32.mxu0 0.0
      %541 = vmatmul.mubr.f32.gmra.mrb[0].mxu0 %v257
      %v542 = vpop.f32.mrb[0].mxu0
      %v543 = vadd.f32 %v389, %v542
      %v544 = vpop.f32.mrb[0].mxu0
      %545 = vmatprep.mubr.f32.mxu0 0.0
      %546 = vmatmul.mubr.f32.gmra.mrb[0].mxu0 %v258
      %v547 = vpop.f32.mrb[0].mxu0
      %v548 = vadd.f32 %v389, %v547
      %v549 = vpop.f32.mrb[0].mxu0
      %550 = vmatprep.mubr.f32.mxu0 0.0
      %551 = vmatmul.mubr.f32.gmra.mrb[0].mxu0 %v259
      %v552 = vpop.f32.mrb[0].mxu0
      %v553 = vadd.f32 %v389, %v552
      %v554 = vpop.f32.mrb[0].mxu0
      %555 = vmatprep.mubr.f32.mxu0 0.0
      %556 = vmatmul.mubr.f32.gmra.mrb[0].mxu0 %v260
      %v557 = vpop.f32.mrb[0].mxu0
      %v558 = vadd.f32 %v389, %v557
      %v559 = vpop.f32.mrb[0].mxu0
      %560 = vmatprep.mubr.f32.mxu0 0.0
      %561 = vmatmul.mubr.f32.gmra.mrb[0].mxu0 %v261
      %v562 = vpop.f32.mrb[0].mxu0
      %v563 = vadd.f32 %v389, %v562
      %v564 = vpop.f32.mrb[0].mxu0
      %565 = vmatprep.mubr.f32.mxu0 0.0
      %566 = vmatmul.mubr.f32.gmra.mrb[0].mxu0 %v262
      %v567 = vpop.f32.mrb[0].mxu0
      %v568 = vadd.f32 %v389, %v567
      %v569 = vpop.f32.mrb[0].mxu0
      %570 = vmatprep.mubr.f32.mxu0 0.0
      %571 = vmatmul.mubr.f32.gmra.mrb[0].mxu0 %v263
      %v572 = vpop.f32.mrb[0].mxu0
      %v573 = vadd.f32 %v389, %v572
      %v574 = vpop.f32.mrb[0].mxu0
      %575 = vmatprep.mubr.f32.mxu0 0.0
      %576 = vmatmul.mubr.f32.gmra.mrb[0].mxu0 %v264
      %v577 = vpop.f32.mrb[0].mxu0
      %v578 = vadd.f32 %v389, %v577
      %v579 = vpop.f32.mrb[0].mxu0
      %580 = vmatprep.mubr.f32.mxu0 0.0
      %581 = vmatmul.mubr.f32.gmra.mrb[0].mxu0 %v265
      %v582 = vpop.f32.mrb[0].mxu0
      %v583 = vadd.f32 %v389, %v582
      %v584 = vpop.f32.mrb[0].mxu0
      %585 = vmatprep.mubr.f32.mxu0 0.0
      %586 = vmatmul.mubr.f32.gmra.mrb[0].mxu0 %v266
      %v587 = vpop.f32.mrb[0].mxu0
      %v588 = vadd.f32 %v389, %v587
      %v589 = vpop.f32.mrb[0].mxu0
      %590 = vmatprep.mubr.f32.mxu0 0.0
      %591 = vmatmul.mubr.f32.gmra.mrb[0].mxu0 %v267
      %v592 = vpop.f32.mrb[0].mxu0
      %v593 = vadd.f32 %v389, %v592
      %v594 = vpop.f32.mrb[0].mxu0
      %595 = vmatprep.mubr.f32.mxu0 0.0
      %596 = vmatmul.mubr.f32.gmra.mrb[0].mxu0 %v268
      %v597 = vpop.f32.mrb[0].mxu0
      %v598 = vadd.f32 %v389, %v597
      %v599 = vpop.f32.mrb[0].mxu0
      %600 = vmatprep.mubr.f32.mxu0 0.0
      %601 = vmatmul.mubr.f32.gmra.mrb[0].mxu0 %v269
      %v602 = vpop.f32.mrb[0].mxu0
      %v603 = vadd.f32 %v389, %v602
      %v604 = vpop.f32.mrb[0].mxu0
      %605 = vmatprep.mubr.f32.mxu0 0.0
      %606 = vmatmul.mubr.f32.gmra.mrb[0].mxu0 %v270
      %v607 = vpop.f32.mrb[0].mxu0
      %v608 = vadd.f32 %v389, %v607
      %v609 = vpop.f32.mrb[0].mxu0
      %610 = vmatprep.mubr.f32.mxu0 0.0
      %611 = vmatmul.mubr.f32.gmra.mrb[0].mxu0 %v271
      %v612 = vpop.f32.mrb[0].mxu0
      %v613 = vadd.f32 %v389, %v612
      %v614 = vpop.f32.mrb[0].mxu0
      %615 = vmatprep.mubr.f32.mxu0 0.0
      %616 = vmatmul.mubr.f32.gmra.mrb[0].mxu0 %v272
      %v617 = vpop.f32.mrb[0].mxu0
      %v618 = vadd.f32 %v389, %v617
      %v619 = vpop.f32.mrb[0].mxu0
      %620 = vmatprep.mubr.f32.mxu0 0.0
      %621 = vmatmul.mubr.f32.gmra.mrb[0].mxu0 %v273
      %v622 = vpop.f32.mrb[0].mxu0
      %v623 = vadd.f32 %v389, %v622
      %v624 = vpop.f32.mrb[0].mxu0
      %625 = vmatprep.mubr.f32.mxu0 0.0
      %626 = vmatmul.mubr.f32.gmra.mrb[0].mxu0 %v274
      %v627 = vpop.f32.mrb[0].mxu0
      %v628 = vadd.f32 %v389, %v627
      %v629 = vpop.f32.mrb[0].mxu0
      %630 = vmatprep.mubr.f32.mxu0 0.0
      %631 = vmatmul.mubr.f32.gmra.mrb[0].mxu0 %v275
      %v632 = vpop.f32.mrb[0].mxu0
      %v633 = vadd.f32 %v389, %v632
      %v634 = vpop.f32.mrb[0].mxu0
      %635 = vmatprep.mubr.f32.mxu0 0.0
      %636 = vmatmul.mubr.f32.gmra.mrb[0].mxu0 %v276
      %v637 = vpop.f32.mrb[0].mxu0
      %v638 = vadd.f32 %v389, %v637
      %v639 = vpop.f32.mrb[0].mxu0
      %640 = vmatprep.mubr.f32.mxu0 0.0
      %641 = vmatmul.mubr.f32.gmra.mrb[0].mxu0 %v277
      %v642 = vpop.f32.mrb[0].mxu0
      %v643 = vadd.f32 %v389, %v642
      %v644 = vpop.f32.mrb[0].mxu0
      %645 = vmatprep.mubr.f32.mxu0 0.0
      %646 = vmatmul.mubr.f32.gmra.mrb[0].mxu0 %v278
      %v647 = vpop.f32.mrb[0].mxu0
      %v648 = vadd.f32 %v389, %v647
      %v649 = vpop.f32.mrb[0].mxu0
      %650 = vmatprep.mubr.f32.mxu0 0.0
      %651 = vmatmul.mubr.f32.gmra.mrb[0].mxu0 %v279
      %v652 = vpop.f32.mrb[0].mxu0
      %v653 = vadd.f32 %v389, %v652
      %v654 = vpop.f32.mrb[0].mxu0
      %655 = vmatprep.mubr.f32.mxu0 0.0
      %656 = vmatmul.mubr.f32.gmra.mrb[0].mxu0 %v280
      %v657 = vpop.f32.mrb[0].mxu0
      %v658 = vadd.f32 %v389, %v657
      %v659 = vpop.f32.mrb[0].mxu0
      %660 = vmatprep.mubr.f32.mxu0 0.0
      %661 = vmatmul.mubr.f32.gmra.mrb[0].mxu0 %v281
      %v662 = vpop.f32.mrb[0].mxu0
      %v663 = vadd.f32 %v389, %v662
      %v664 = vpop.f32.mrb[0].mxu0
      %665 = vmatprep.mubr.f32.mxu0 0.0
      %666 = vmatmul.mubr.f32.gmra.mrb[0].mxu0 %v282
      %v667 = vpop.f32.mrb[0].mxu0
      %v668 = vadd.f32 %v389, %v667
      %v669 = vpop.f32.mrb[0].mxu0
      %670 = vmatprep.mubr.f32.mxu0 0.0
      %671 = vmatmul.mubr.f32.gmra.mrb[0].mxu0 %v283
      %v672 = vpop.f32.mrb[0].mxu0
      %v673 = vadd.f32 %v389, %v672
      %v674 = vpop.f32.mrb[0].mxu0
      %675 = vmatprep.mubr.f32.mxu0 0.0
      %676 = vmatmul.mubr.f32.gmra.mrb[0].mxu0 %v284
      %v677 = vpop.f32.mrb[0].mxu0
      %v678 = vadd.f32 %v389, %v677
      %v679 = vpop.f32.mrb[0].mxu0
      %680 = vmatprep.mubr.f32.mxu0 0.0
      %681 = vmatmul.mubr.f32.gmra.mrb[0].mxu0 %v285
      %v682 = vpop.f32.mrb[0].mxu0
      %v683 = vadd.f32 %v389, %v682
      %v684 = vpop.f32.mrb[0].mxu0
      %685 = vmatprep.mubr.f32.mxu0 0.0
      %686 = vmatmul.mubr.f32.gmra.mrb[0].mxu0 %v286
      %v687 = vpop.f32.mrb[0].mxu0
      %v688 = vadd.f32 %v389, %v687
      %v689 = vpop.f32.mrb[0].mxu0
      %690 = vmatprep.mubr.f32.mxu0 0.0
      %691 = vmatmul.mubr.f32.gmra.mrb[0].mxu0 %v287
      %v692 = vpop.f32.mrb[0].mxu0
      %v693 = vadd.f32 %v389, %v692
      %v694 = vpop.f32.mrb[0].mxu0
      %695 = vmatprep.mubr.f32.mxu0 0.0
      %696 = vmatmul.mubr.f32.gmra.mrb[0].mxu0 %v288
      %v697 = vpop.f32.mrb[0].mxu0
      %v698 = vadd.f32 %v389, %v697
      %v699 = vpop.f32.mrb[0].mxu0
      %700 = vmatprep.mubr.f32.mxu0 0.0
      %701 = vmatmul.mubr.f32.gmra.mrb[0].mxu0 %v289
      %v702 = vpop.f32.mrb[0].mxu0
      %v703 = vadd.f32 %v389, %v702
      %v704 = vpop.f32.mrb[0].mxu0
      %705 = vmatprep.mubr.f32.mxu0 0.0
      %706 = vmatmul.mubr.f32.gmra.mrb[0].mxu0 %v290
      %v707 = vpop.f32.mrb[0].mxu0
      %v708 = vadd.f32 %v389, %v707
      %v709 = vpop.f32.mrb[0].mxu0
      %710 = vmatprep.mubr.f32.mxu0 0.0
      %711 = vmatmul.mubr.f32.gmra.mrb[0].mxu0 %v291
      %v712 = vpop.f32.mrb[0].mxu0
      %v713 = vadd.f32 %v389, %v712
      %v714 = vpop.f32.mrb[0].mxu0
      %715 = vmatprep.mubr.f32.mxu0 0.0
      %716 = vmatmul.mubr.f32.gmra.mrb[0].mxu0 %v292
      %v717 = vpop.f32.mrb[0].mxu0
      %v718 = vadd.f32 %v389, %v717
      %v719 = vpop.f32.mrb[0].mxu0
      %720 = vmatprep.mubr.f32.mxu0 0.0
      %721 = vmatmul.mubr.f32.gmra.mrb[0].mxu0 %v293
      %v722 = vpop.f32.mrb[0].mxu0
      %v723 = vadd.f32 %v389, %v722
      %v724 = vpop.f32.mrb[0].mxu0
      %725 = vmatprep.mubr.f32.mxu0 0.0
      %726 = vmatmul.mubr.f32.gmra.mrb[0].mxu0 %v294
      %v727 = vpop.f32.mrb[0].mxu0
      %v728 = vadd.f32 %v389, %v727
      %v729 = vpop.f32.mrb[0].mxu0
      %730 = vmatprep.mubr.f32.mxu0 0.0
      %731 = vmatmul.mubr.f32.gmra.mrb[0].mxu0 %v295
      %v732 = vpop.f32.mrb[0].mxu0
      %v733 = vadd.f32 %v389, %v732
      %v734 = vpop.f32.mrb[0].mxu0
      %735 = vmatprep.mubr.f32.mxu0 0.0
      %736 = vmatmul.mubr.f32.gmra.mrb[0].mxu0 %v296
      %v737 = vpop.f32.mrb[0].mxu0
      %v738 = vadd.f32 %v389, %v737
      %v739 = vpop.f32.mrb[0].mxu0
      %740 = vmatprep.mubr.f32.mxu0 0.0
      %741 = vmatmul.mubr.f32.gmra.mrb[0].mxu0 %v297
      %v742 = vpop.f32.mrb[0].mxu0
      %v743 = vadd.f32 %v389, %v742
      %v744 = vpop.f32.mrb[0].mxu0
      %745 = vmatprep.mubr.f32.mxu0 0.0
      %746 = vmatmul.mubr.f32.gmra.mrb[0].mxu0 %v298
      %v747 = vpop.f32.mrb[0].mxu0
      %v748 = vadd.f32 %v389, %v747
      %v749 = vpop.f32.mrb[0].mxu0
      %750 = vmatprep.mubr.f32.mxu0 0.0
      %751 = vmatmul.mubr.f32.gmra.mrb[0].mxu0 %v299
      %v752 = vpop.f32.mrb[0].mxu0
      %v753 = vadd.f32 %v389, %v752
      %v754 = vpop.f32.mrb[0].mxu0
      %755 = vmatprep.mubr.f32.mxu0 0.0
      %756 = vmatmul.mubr.f32.gmra.mrb[0].mxu0 %v300
      %v757 = vpop.f32.mrb[0].mxu0
      %v758 = vadd.f32 %v389, %v757
      %v759 = vpop.f32.mrb[0].mxu0
      %760 = vmatprep.mubr.f32.mxu0 0.0
      %761 = vmatmul.mubr.f32.gmra.mrb[0].mxu0 %v301
      %v762 = vpop.f32.mrb[0].mxu0
      %v763 = vadd.f32 %v389, %v762
      %v764 = vpop.f32.mrb[0].mxu0
      %765 = vmatprep.mubr.f32.mxu0 0.0
      %766 = vmatmul.mubr.f32.gmra.mrb[0].mxu0 %v302
      %v767 = vpop.f32.mrb[0].mxu0
      %v768 = vadd.f32 %v389, %v767
      %v769 = vpop.f32.mrb[0].mxu0
      %770 = vmatprep.mubr.f32.mxu0 0.0
      %771 = vmatmul.mubr.f32.gmra.mrb[0].mxu0 %v303
      %v772 = vpop.f32.mrb[0].mxu0
      %v773 = vadd.f32 %v389, %v772
      %v774 = vpop.f32.mrb[0].mxu0
      %775 = vmatprep.mubr.f32.mxu0 0.0
      %776 = vmatmul.mubr.f32.gmra.mrb[0].mxu0 %v304
      %v777 = vpop.f32.mrb[0].mxu0
      %v778 = vadd.f32 %v389, %v777
      %v779 = vpop.f32.mrb[0].mxu0
      %780 = vmatprep.mubr.f32.mxu0 0.0
      %781 = vmatmul.mubr.f32.gmra.mrb[0].mxu0 %v305
      %v782 = vpop.f32.mrb[0].mxu0
      %v783 = vadd.f32 %v389, %v782
      %v784 = vpop.f32.mrb[0].mxu0
      %785 = vmatprep.mubr.f32.mxu0 0.0
      %786 = vmatmul.mubr.f32.gmra.mrb[0].mxu0 %v306
      %v787 = vpop.f32.mrb[0].mxu0
      %v788 = vadd.f32 %v389, %v787
      %v789 = vpop.f32.mrb[0].mxu0
      %790 = vmatprep.mubr.f32.mxu0 0.0
      %791 = vmatmul.mubr.f32.gmra.mrb[0].mxu0 %v307
      %v792 = vpop.f32.mrb[0].mxu0
      %v793 = vadd.f32 %v389, %v792
      %v794 = vpop.f32.mrb[0].mxu0
      %795 = vmatprep.mubr.f32.mxu0 0.0
      %796 = vmatmul.mubr.f32.gmra.mrb[0].mxu0 %v308
      %v797 = vpop.f32.mrb[0].mxu0
      %v798 = vadd.f32 %v389, %v797
      %v799 = vpop.f32.mrb[0].mxu0
      %800 = vmatprep.mubr.f32.mxu0 0.0
      %801 = vmatmul.mubr.f32.gmra.mrb[0].mxu0 %v309
      %v802 = vpop.f32.mrb[0].mxu0
      %v803 = vadd.f32 %v389, %v802
      %v804 = vpop.f32.mrb[0].mxu0
      %805 = vmatprep.mubr.f32.mxu0 0.0
      %806 = vmatmul.mubr.f32.gmra.mrb[0].mxu0 %v310
      %v807 = vpop.f32.mrb[0].mxu0
      %v808 = vadd.f32 %v389, %v807
      %v809 = vpop.f32.mrb[0].mxu0
      %810 = vmatprep.mubr.f32.mxu0 0.0
      %811 = vmatmul.mubr.f32.gmra.mrb[0].mxu0 %v311
      %v812 = vpop.f32.mrb[0].mxu0
      %v813 = vadd.f32 %v389, %v812
      %v814 = vpop.f32.mrb[0].mxu0
      %815 = vmatprep.mubr.f32.mxu0 0.0
      %816 = vmatmul.mubr.f32.gmra.mrb[0].mxu0 %v312
      %v817 = vpop.f32.mrb[0].mxu0
      %v818 = vadd.f32 %v389, %v817
      %v819 = vpop.f32.mrb[0].mxu0
      %820 = vmatprep.mubr.f32.mxu0 0.0
      %821 = vmatmul.mubr.f32.gmra.mrb[0].mxu0 %v313
      %v822 = vpop.f32.mrb[0].mxu0
      %v823 = vadd.f32 %v389, %v822
      %v824 = vpop.f32.mrb[0].mxu0
      %825 = vmatprep.mubr.f32.mxu0 0.0
      %826 = vmatmul.mubr.f32.gmra.mrb[0].mxu0 %v314
      %v827 = vpop.f32.mrb[0].mxu0
      %v828 = vadd.f32 %v389, %v827
      %v829 = vpop.f32.mrb[0].mxu0
      %830 = vmatprep.mubr.f32.mxu0 0.0
      %831 = vmatmul.mubr.f32.gmra.mrb[0].mxu0 %v315
      %v832 = vpop.f32.mrb[0].mxu0
      %v833 = vadd.f32 %v389, %v832
      %v834 = vpop.f32.mrb[0].mxu0
      %835 = vmatprep.mubr.f32.mxu0 0.0
      %836 = vmatmul.mubr.f32.gmra.mrb[0].mxu0 %v316
      %v837 = vpop.f32.mrb[0].mxu0
      %v838 = vadd.f32 %v389, %v837
      %v839 = vpop.f32.mrb[0].mxu0
      %840 = vmatprep.mubr.f32.mxu0 0.0
      %841 = vmatmul.mubr.f32.gmra.mrb[0].mxu0 %v317
      %v842 = vpop.f32.mrb[0].mxu0
      %v843 = vadd.f32 %v389, %v842
      %v844 = vpop.f32.mrb[0].mxu0
      %845 = vmatprep.mubr.f32.mxu0 0.0
      %846 = vmatmul.mubr.f32.gmra.mrb[0].mxu0 %v318
      %v847 = vpop.f32.mrb[0].mxu0
      %v848 = vadd.f32 %v389, %v847
      %v849 = vpop.f32.mrb[0].mxu0
      %850 = vmatprep.mubr.f32.mxu0 0.0
      %851 = vmatmul.mubr.f32.gmra.mrb[0].mxu0 %v319
      %v852 = vpop.f32.mrb[0].mxu0
      %v853 = vadd.f32 %v389, %v852
      %v854 = vpop.f32.mrb[0].mxu0
      %855 = vmatprep.mubr.f32.mxu0 0.0
      %856 = vmatmul.mubr.f32.gmra.mrb[0].mxu0 %v320
      %v857 = vpop.f32.mrb[0].mxu0
      %v858 = vadd.f32 %v389, %v857
      %v859 = vpop.f32.mrb[0].mxu0
      %860 = vmatprep.mubr.f32.mxu0 0.0
      %861 = vmatmul.mubr.f32.gmra.mrb[0].mxu0 %v321
      %v862 = vpop.f32.mrb[0].mxu0
      %v863 = vadd.f32 %v389, %v862
      %v864 = vpop.f32.mrb[0].mxu0
      %865 = vmatprep.mubr.f32.mxu0 0.0
      %866 = vmatmul.mubr.f32.gmra.mrb[0].mxu0 %v322
      %v867 = vpop.f32.mrb[0].mxu0
      %v868 = vadd.f32 %v389, %v867
      %v869 = vpop.f32.mrb[0].mxu0
      %870 = vmatprep.mubr.f32.mxu0 0.0
      %871 = vmatmul.mubr.f32.gmra.mrb[0].mxu0 %v323
      %v872 = vpop.f32.mrb[0].mxu0
      %v873 = vadd.f32 %v389, %v872
      %v874 = vpop.f32.mrb[0].mxu0
      %875 = vmatprep.mubr.f32.mxu0 0.0
      %876 = vmatmul.mubr.f32.gmra.mrb[0].mxu0 %v324
      %v877 = vpop.f32.mrb[0].mxu0
      %v878 = vadd.f32 %v389, %v877
      %v879 = vpop.f32.mrb[0].mxu0
      %880 = vmatprep.mubr.f32.mxu0 0.0
      %881 = vmatmul.mubr.f32.gmra.mrb[0].mxu0 %v325
      %v882 = vpop.f32.mrb[0].mxu0
      %v883 = vadd.f32 %v389, %v882
      %v884 = vpop.f32.mrb[0].mxu0
      %885 = vmatprep.mubr.f32.mxu0 0.0
      %886 = vmatmul.mubr.f32.gmra.mrb[0].mxu0 %v326
      %v887 = vpop.f32.mrb[0].mxu0
      %v888 = vadd.f32 %v389, %v887
      %v889 = vpop.f32.mrb[0].mxu0
      %890 = vmatprep.mubr.f32.mxu0 0.0
      %891 = vmatmul.mubr.f32.gmra.mrb[0].mxu0 %v327
      %v892 = vpop.f32.mrb[0].mxu0
      %v893 = vadd.f32 %v389, %v892
      %v894 = vpop.f32.mrb[0].mxu0
      %895 = vmatprep.mubr.f32.mxu0 0.0
      %896 = vmatmul.mubr.f32.gmra.mrb[0].mxu0 %v328
      %v897 = vpop.f32.mrb[0].mxu0
      %v898 = vadd.f32 %v389, %v897
      %v899 = vpop.f32.mrb[0].mxu0
      %900 = vmatprep.mubr.f32.mxu0 0.0
      %901 = vmatmul.mubr.f32.gmra.mrb[0].mxu0 %v329
      %v902 = vpop.f32.mrb[0].mxu0
      %v903 = vadd.f32 %v389, %v902
      %v904 = vpop.f32.mrb[0].mxu0
      %905 = vmatprep.mubr.f32.mxu0 0.0
      %906 = vmatmul.mubr.f32.gmra.mrb[0].mxu0 %v330
      %v907 = vpop.f32.mrb[0].mxu0
      %v908 = vadd.f32 %v389, %v907
      %v909 = vpop.f32.mrb[0].mxu0
      %910 = vmatprep.mubr.f32.mxu0 0.0
      %911 = vmatmul.mubr.f32.gmra.mrb[0].mxu0 %v331
      %v912 = vpop.f32.mrb[0].mxu0
      %v913 = vadd.f32 %v389, %v912
      %v914 = vpop.f32.mrb[0].mxu0
      %915 = vmatprep.mubr.f32.mxu0 0.0
      %916 = vmatmul.mubr.f32.gmra.mrb[0].mxu0 %v332
      %v917 = vpop.f32.mrb[0].mxu0
      %v918 = vadd.f32 %v389, %v917
      %v919 = vpop.f32.mrb[0].mxu0
      %920 = vmatprep.mubr.f32.mxu0 0.0
      %921 = vmatmul.mubr.f32.gmra.mrb[0].mxu0 %v333
      %v922 = vpop.f32.mrb[0].mxu0
      %v923 = vadd.f32 %v389, %v922
      %v924 = vpop.f32.mrb[0].mxu0
      %925 = vmatprep.mubr.f32.mxu0 0.0
      %926 = vmatmul.mubr.f32.gmra.mrb[0].mxu0 %v334
      %v927 = vpop.f32.mrb[0].mxu0
      %v928 = vadd.f32 %v389, %v927
      %v929 = vpop.f32.mrb[0].mxu0
      %930 = vmatprep.mubr.f32.mxu0 0.0
      %931 = vmatmul.mubr.f32.gmra.mrb[0].mxu0 %v335
      %v932 = vpop.f32.mrb[0].mxu0
      %v933 = vadd.f32 %v389, %v932
      %v934 = vpop.f32.mrb[0].mxu0
      %935 = vmatprep.mubr.f32.mxu0 0.0
      %936 = vmatmul.mubr.f32.gmra.mrb[0].mxu0 %v336
      %v937 = vpop.f32.mrb[0].mxu0
      %v938 = vadd.f32 %v389, %v937
      %v939 = vpop.f32.mrb[0].mxu0
      %940 = vmatprep.mubr.f32.mxu0 0.0
      %941 = vmatmul.mubr.f32.gmra.mrb[0].mxu0 %v337
      %v942 = vpop.f32.mrb[0].mxu0
      %v943 = vadd.f32 %v389, %v942
      %v944 = vpop.f32.mrb[0].mxu0
      %945 = vmatprep.mubr.f32.mxu0 0.0
      %946 = vmatmul.mubr.f32.gmra.mrb[0].mxu0 %v338
      %v947 = vpop.f32.mrb[0].mxu0
      %v948 = vadd.f32 %v389, %v947
      %v949 = vpop.f32.mrb[0].mxu0
      %950 = vmatprep.mubr.f32.mxu0 0.0
      %951 = vmatmul.mubr.f32.gmra.mrb[0].mxu0 %v339
      %v952 = vpop.f32.mrb[0].mxu0
      %v953 = vadd.f32 %v389, %v952
      %v954 = vpop.f32.mrb[0].mxu0
      %955 = vmatprep.mubr.f32.mxu0 0.0
      %956 = vmatmul.mubr.f32.gmra.mrb[0].mxu0 %v340
      %v957 = vpop.f32.mrb[0].mxu0
      %v958 = vadd.f32 %v389, %v957
      %v959 = vpop.f32.mrb[0].mxu0
      %960 = vmatprep.mubr.f32.mxu0 0.0
      %961 = vmatmul.mubr.f32.gmra.mrb[0].mxu0 %v341
      %v962 = vpop.f32.mrb[0].mxu0
      %v963 = vadd.f32 %v389, %v962
      %v964 = vpop.f32.mrb[0].mxu0
      %965 = vmatprep.mubr.f32.mxu0 0.0
      %966 = vmatmul.mubr.f32.gmra.mrb[0].mxu0 %v342
      %v967 = vpop.f32.mrb[0].mxu0
      %v968 = vadd.f32 %v389, %v967
      %v969 = vpop.f32.mrb[0].mxu0
      %970 = vmatprep.mubr.f32.mxu0 0.0
      %971 = vmatmul.mubr.f32.gmra.mrb[0].mxu0 %v343
      %v972 = vpop.f32.mrb[0].mxu0
      %v973 = vadd.f32 %v389, %v972
      %v974 = vpop.f32.mrb[0].mxu0
      %975 = vmatprep.mubr.f32.mxu0 0.0
      %976 = vmatmul.mubr.f32.gmra.mrb[0].mxu0 %v344
      %v977 = vpop.f32.mrb[0].mxu0
      %v978 = vadd.f32 %v389, %v977
      %v979 = vpop.f32.mrb[0].mxu0
      %980 = vmatprep.mubr.f32.mxu0 0.0
      %981 = vmatmul.mubr.f32.gmra.mrb[0].mxu0 %v345
      %v982 = vpop.f32.mrb[0].mxu0
      %v983 = vadd.f32 %v389, %v982
      %v984 = vpop.f32.mrb[0].mxu0
      %985 = vmatprep.mubr.f32.mxu0 0.0
      %986 = vmatmul.mubr.f32.gmra.mrb[0].mxu0 %v346
      %v987 = vpop.f32.mrb[0].mxu0
      %v988 = vadd.f32 %v389, %v987
      %v989 = vpop.f32.mrb[0].mxu0
      %990 = vmatprep.mubr.f32.mxu0 0.0
      %991 = vmatmul.mubr.f32.gmra.mrb[0].mxu0 %v347
      %v992 = vpop.f32.mrb[0].mxu0
      %v993 = vadd.f32 %v389, %v992
      %v994 = vpop.f32.mrb[0].mxu0
      %995 = vmatprep.mubr.f32.mxu0 0.0
      %996 = vmatmul.mubr.f32.gmra.mrb[0].mxu0 %v348
      %v997 = vpop.f32.mrb[0].mxu0
      %v998 = vadd.f32 %v389, %v997
      %v999 = vpop.f32.mrb[0].mxu0
      %1000 = vmatprep.mubr.f32.mxu0 0.0
      %1001 = vmatmul.mubr.f32.gmra.mrb[0].mxu0 %v349
      %v1002 = vpop.f32.mrb[0].mxu0
      %v1003 = vadd.f32 %v389, %v1002
      %v1004 = vpop.f32.mrb[0].mxu0
      %1005 = vmatprep.mubr.f32.mxu0 0.0
      %1006 = vmatmul.mubr.f32.gmra.mrb[0].mxu0 %v350
      %v1007 = vpop.f32.mrb[0].mxu0
      %v1008 = vadd.f32 %v389, %v1007
      %v1009 = vpop.f32.mrb[0].mxu0
      %1010 = vmatprep.mubr.f32.mxu0 0.0
      %1011 = vmatmul.mubr.f32.gmra.mrb[0].mxu0 %v351
      %v1012 = vpop.f32.mrb[0].mxu0
      %v1013 = vadd.f32 %v389, %v1012
      %v1014 = vpop.f32.mrb[0].mxu0
      %1015 = vmatprep.mubr.f32.mxu0 0.0
      %1016 = vmatmul.mubr.f32.gmra.mrb[0].mxu0 %v352
      %v1017 = vpop.f32.mrb[0].mxu0
      %v1018 = vadd.f32 %v389, %v1017
      %v1019 = vpop.f32.mrb[0].mxu0
      %1020 = vmatprep.mubr.f32.mxu0 0.0
      %1021 = vmatmul.mubr.f32.gmra.mrb[0].mxu0 %v353
      %v1022 = vpop.f32.mrb[0].mxu0
      %v1023 = vadd.f32 %v389, %v1022
      %v1024 = vpop.f32.mrb[0].mxu0
      %1025 = vmatprep.mubr.f32.mxu0 0.0
      %1026 = vmatmul.mubr.f32.gmra.mrb[0].mxu0 %v354
      %v1027 = vpop.f32.mrb[0].mxu0
      %v1028 = vadd.f32 %v389, %v1027
      %v1029 = vpop.f32.mrb[0].mxu0
      %1030 = vmatprep.mubr.f32.mxu0 0.0
      %1031 = vmatmul.mubr.f32.gmra.mrb[0].mxu0 %v355
      %v1032 = vpop.f32.mrb[0].mxu0
      %v1033 = vadd.f32 %v389, %v1032
      %v1034 = vpop.f32.mrb[0].mxu0
      %1035 = vmatprep.mubr.f32.mxu0 0.0
      %1036 = vmatmul.mubr.f32.gmra.mrb[0].mxu0 %v356
      %v1037 = vpop.f32.mrb[0].mxu0
      %v1038 = vadd.f32 %v389, %v1037
      %v1039 = vpop.f32.mrb[0].mxu0
      %1040 = vmatprep.mubr.f32.mxu0 0.0
      %1041 = vmatmul.mubr.f32.gmra.mrb[0].mxu0 %v357
      %v1042 = vpop.f32.mrb[0].mxu0
      %v1043 = vadd.f32 %v389, %v1042
      %v1044 = vpop.f32.mrb[0].mxu0
      %1045 = vmatprep.mubr.f32.mxu0 0.0
      %1046 = vmatmul.mubr.f32.gmra.mrb[0].mxu0 %v358
      %v1047 = vpop.f32.mrb[0].mxu0
      %v1048 = vadd.f32 %v389, %v1047
      %v1049 = vpop.f32.mrb[0].mxu0
      %1050 = vmatprep.mubr.f32.mxu0 0.0
      %1051 = vmatmul.mubr.f32.gmra.mrb[0].mxu0 %v359
      %v1052 = vpop.f32.mrb[0].mxu0
      %v1053 = vadd.f32 %v389, %v1052
      %v1054 = vpop.f32.mrb[0].mxu0
      %1055 = vmatprep.mubr.f32.mxu0 0.0
      %1056 = vmatmul.mubr.f32.gmra.mrb[0].mxu0 %v360
      %v1057 = vpop.f32.mrb[0].mxu0
      %v1058 = vadd.f32 %v389, %v1057
      %v1059 = vpop.f32.mrb[0].mxu0
      %1060 = vmatprep.mubr.f32.mxu0 0.0
      %1061 = vmatmul.mubr.f32.gmra.mrb[0].mxu0 %v361
      %v1062 = vpop.f32.mrb[0].mxu0
      %v1063 = vadd.f32 %v389, %v1062
      %v1064 = vpop.f32.mrb[0].mxu0
      %1065 = vmatprep.mubr.f32.mxu0 0.0
      %1066 = vmatmul.mubr.f32.gmra.mrb[0].mxu0 %v362
      %v1067 = vpop.f32.mrb[0].mxu0
      %v1068 = vadd.f32 %v389, %v1067
      %v1069 = vpop.f32.mrb[0].mxu0
      %1070 = vmatprep.mubr.f32.mxu0 0.0
      %1071 = vmatmul.mubr.f32.gmra.mrb[0].mxu0 %v363
      %v1072 = vpop.f32.mrb[0].mxu0
      %v1073 = vadd.f32 %v389, %v1072
      %v1074 = vpop.f32.mrb[0].mxu0
      %1075 = vmatprep.mubr.f32.mxu0 0.0
      %1076 = vmatmul.mubr.f32.gmra.mrb[0].mxu0 %v364
      %v1077 = vpop.f32.mrb[0].mxu0
      %v1078 = vadd.f32 %v389, %v1077
      %v1079 = vpop.f32.mrb[0].mxu0
      %1080 = vmatprep.mubr.f32.mxu0 0.0
      %1081 = vmatmul.mubr.f32.gmra.mrb[0].mxu0 %v365
      %v1082 = vpop.f32.mrb[0].mxu0
      %v1083 = vadd.f32 %v389, %v1082
      %v1084 = vpop.f32.mrb[0].mxu0
      %1085 = vmatprep.mubr.f32.mxu0 0.0
      %1086 = vmatmul.mubr.f32.gmra.mrb[0].mxu0 %v366
      %v1087 = vpop.f32.mrb[0].mxu0
      %v1088 = vadd.f32 %v389, %v1087
      %v1089 = vpop.f32.mrb[0].mxu0
      %1090 = vmatprep.mubr.f32.mxu0 0.0
      %1091 = vmatmul.mubr.f32.gmra.mrb[0].mxu0 %v367
      %v1092 = vpop.f32.mrb[0].mxu0
      %v1093 = vadd.f32 %v389, %v1092
      %v1094 = vpop.f32.mrb[0].mxu0
      %1095 = vdwg.mxu0
      %p1096 = scmp.eq.s32.totalorder %s20, 0
      %p1097 = scmp.eq.s32.totalorder %s21, 0
      %p1098 = pnand %p1096, %p1097
      %p1099 = pneg %p1098
      // Predicated region
      $region41: #{dogs_cats_forward.5} parent=39 // pred_check
        _
      $region42: #{dogs_cats_forward.5} parent=39 // pred_check_branch
        %1101 = sbr.rel (%p1098) target = $region44
      $region43: #{dogs_cats_forward.5} parent=39 // pred_region
        %1102 = vst [vmem:[#allocation2] sm:$0x1] 0.0
        %1103 = vst [vmem:[#allocation3] sm:$0x1] 0.0
      $region44: #{dogs_cats_forward.5} parent=39 // pred_fallthru
        _
      // Predicated region
      $region45: #{dogs_cats_forward.5} parent=39 // pred_check
        %p1104 = pneg %p1096
      $region46: #{dogs_cats_forward.5} parent=39 // pred_check_branch
        %1106 = sbr.rel (%p1104) target = $region48
      $region47: #{dogs_cats_forward.5} parent=39 // pred_region
        %v1107 = vld [vmem:[#allocation2] sm:$0x1]
        %v1108 = vadd.f32 %v458, %v463
        %v1109 = vadd.f32 %v1108, %v468
        %v1110 = vadd.f32 %v1109, %v473
        %v1111 = vadd.f32 %v1110, %v478
        %v1112 = vadd.f32 %v1111, %v483
        %v1113 = vadd.f32 %v1112, %v488
        %v1114 = vadd.f32 %v1113, %v493
        %v1115 = vadd.f32 %v1114, %v498
        %v1116 = vadd.f32 %v1115, %v503
        %v1117 = vadd.f32 %v1116, %v508
        %v1118 = vadd.f32 %v1117, %v513
        %v1119 = vadd.f32 %v1118, %v518
        %v1120 = vadd.f32 %v1119, %v523
        %v1121 = vadd.f32 %v1120, %v528
        %v1122 = vadd.f32 %v1121, %v533
        %v1123 = vadd.f32 %v1122, %v538
        %v1124 = vadd.f32 %v1123, %v543
        %v1125 = vadd.f32 %v1124, %v548
        %v1126 = vadd.f32 %v1125, %v553
        %v1127 = vadd.f32 %v1126, %v558
        %v1128 = vadd.f32 %v1127, %v563
        %v1129 = vadd.f32 %v1128, %v568
        %v1130 = vadd.f32 %v1129, %v573
        %v1131 = vadd.f32 %v1130, %v578
        %v1132 = vadd.f32 %v1131, %v583
        %v1133 = vadd.f32 %v1132, %v588
        %v1134 = vadd.f32 %v1133, %v593
        %v1135 = vadd.f32 %v1134, %v598
        %v1136 = vadd.f32 %v1135, %v603
        %v1137 = vadd.f32 %v1136, %v608
        %v1138 = vadd.f32 %v1137, %v613
        %v1139 = vadd.f32 %v1138, %v618
        %v1140 = vadd.f32 %v1139, %v623
        %v1141 = vadd.f32 %v1140, %v628
        %v1142 = vadd.f32 %v1141, %v633
        %v1143 = vadd.f32 %v1142, %v638
        %v1144 = vadd.f32 %v1143, %v643
        %v1145 = vadd.f32 %v1144, %v648
        %v1146 = vadd.f32 %v1145, %v653
        %v1147 = vadd.f32 %v1146, %v658
        %v1148 = vadd.f32 %v1147, %v663
        %v1149 = vadd.f32 %v1148, %v668
        %v1150 = vadd.f32 %v1149, %v673
        %v1151 = vadd.f32 %v1150, %v678
        %v1152 = vadd.f32 %v1151, %v683
        %v1153 = vadd.f32 %v1152, %v688
        %v1154 = vadd.f32 %v1153, %v693
        %v1155 = vadd.f32 %v1154, %v698
        %v1156 = vadd.f32 %v1155, %v703
        %v1157 = vadd.f32 %v1156, %v708
        %v1158 = vadd.f32 %v1157, %v713
        %v1159 = vadd.f32 %v1158, %v718
        %v1160 = vadd.f32 %v1159, %v723
        %v1161 = vadd.f32 %v1160, %v728
        %v1162 = vadd.f32 %v1161, %v733
        %v1163 = vadd.f32 %v1162, %v738
        %v1164 = vadd.f32 %v1163, %v743
        %v1165 = vadd.f32 %v1164, %v748
        %v1166 = vadd.f32 %v1165, %v753
        %v1167 = vadd.f32 %v1166, %v758
        %v1168 = vadd.f32 %v1167, %v763
        %v1169 = vadd.f32 %v1168, %v768
        %v1170 = vadd.f32 %v1169, %v773
        %v1171 = vadd.f32 %v1170, %v778
        %v1172 = vadd.f32 %v1171, %v783
        %v1173 = vadd.f32 %v1172, %v788
        %v1174 = vadd.f32 %v1173, %v793
        %v1175 = vadd.f32 %v1174, %v798
        %v1176 = vadd.f32 %v1175, %v803
        %v1177 = vadd.f32 %v1176, %v808
        %v1178 = vadd.f32 %v1177, %v813
        %v1179 = vadd.f32 %v1178, %v818
        %v1180 = vadd.f32 %v1179, %v823
        %v1181 = vadd.f32 %v1180, %v828
        %v1182 = vadd.f32 %v1181, %v833
        %v1183 = vadd.f32 %v1182, %v838
        %v1184 = vadd.f32 %v1183, %v843
        %v1185 = vadd.f32 %v1184, %v848
        %v1186 = vadd.f32 %v1185, %v853
        %v1187 = vadd.f32 %v1186, %v858
        %v1188 = vadd.f32 %v1187, %v863
        %v1189 = vadd.f32 %v1188, %v868
        %v1190 = vadd.f32 %v1189, %v873
        %v1191 = vadd.f32 %v1190, %v878
        %v1192 = vadd.f32 %v1191, %v883
        %v1193 = vadd.f32 %v1192, %v888
        %v1194 = vadd.f32 %v1193, %v893
        %v1195 = vadd.f32 %v1194, %v898
        %v1196 = vadd.f32 %v1195, %v903
        %v1197 = vadd.f32 %v1196, %v908
        %v1198 = vadd.f32 %v1197, %v913
        %v1199 = vadd.f32 %v1198, %v918
        %v1200 = vadd.f32 %v1199, %v923
        %v1201 = vadd.f32 %v1200, %v928
        %v1202 = vadd.f32 %v1201, %v933
        %v1203 = vadd.f32 %v1202, %v938
        %v1204 = vadd.f32 %v1203, %v943
        %v1205 = vadd.f32 %v1204, %v948
        %v1206 = vadd.f32 %v1205, %v953
        %v1207 = vadd.f32 %v1206, %v958
        %v1208 = vadd.f32 %v1207, %v963
        %v1209 = vadd.f32 %v1208, %v968
        %v1210 = vadd.f32 %v1209, %v973
        %v1211 = vadd.f32 %v1210, %v978
        %v1212 = vadd.f32 %v1211, %v983
        %v1213 = vadd.f32 %v1212, %v988
        %v1214 = vadd.f32 %v1213, %v993
        %v1215 = vadd.f32 %v1214, %v998
        %v1216 = vadd.f32 %v1215, %v1003
        %v1217 = vadd.f32 %v1216, %v1008
        %v1218 = vadd.f32 %v1217, %v1013
        %v1219 = vadd.f32 %v1218, %v1018
        %v1220 = vadd.f32 %v1219, %v1023
        %v1221 = vadd.f32 %v1220, %v1028
        %v1222 = vadd.f32 %v1221, %v1033
        %v1223 = vadd.f32 %v1222, %v1038
        %v1224 = vadd.f32 %v1223, %v1043
        %v1225 = vadd.f32 %v1224, %v1048
        %v1226 = vadd.f32 %v1225, %v1053
        %v1227 = vadd.f32 %v1226, %v1058
        %v1228 = vadd.f32 %v1227, %v1063
        %v1229 = vadd.f32 %v1228, %v1068
        %v1230 = vadd.f32 %v1229, %v1073
        %v1231 = vadd.f32 %v1230, %v1078
        %v1232 = vadd.f32 %v1231, %v1083
        %v1233 = vadd.f32 %v1232, %v1088
        %v1234 = vadd.f32 %v1233, %v1093
        %v1235 = vrot.slane %v1234, 4
        %v1236 = vadd.f32 %v1234, %v1235
        %v1237 = vrot.slane %v1236, 2
        %v1238 = vadd.f32 %v1236, %v1237
        %v1239 = vrot.slane %v1238, 1
        %v1240 = vadd.f32 %v1238, %v1239
        %v1241 = vadd.f32 %v1107, %v1240
        %1242 = vst [vmem:[#allocation2] sm:$0x1] %v1241
        %v1243 = vld [vmem:[#allocation3] sm:$0x1]
        %v1244 = vmul.f32 %v458, %v458
        %v1245 = vmul.f32 %v463, %v463
        %v1246 = vmul.f32 %v468, %v468
        %v1247 = vmul.f32 %v473, %v473
        %v1248 = vmul.f32 %v478, %v478
        %v1249 = vmul.f32 %v483, %v483
        %v1250 = vmul.f32 %v488, %v488
        %v1251 = vmul.f32 %v493, %v493
        %v1252 = vmul.f32 %v498, %v498
        %v1253 = vmul.f32 %v503, %v503
        %v1254 = vmul.f32 %v508, %v508
        %v1255 = vmul.f32 %v513, %v513
        %v1256 = vmul.f32 %v518, %v518
        %v1257 = vmul.f32 %v523, %v523
        %v1258 = vmul.f32 %v528, %v528
        %v1259 = vmul.f32 %v533, %v533
        %v1260 = vmul.f32 %v538, %v538
        %v1261 = vmul.f32 %v543, %v543
        %v1262 = vmul.f32 %v548, %v548
        %v1263 = vmul.f32 %v553, %v553
        %v1264 = vmul.f32 %v558, %v558
        %v1265 = vmul.f32 %v563, %v563
        %v1266 = vmul.f32 %v568, %v568
        %v1267 = vmul.f32 %v573, %v573
        %v1268 = vmul.f32 %v578, %v578
        %v1269 = vmul.f32 %v583, %v583
        %v1270 = vmul.f32 %v588, %v588
        %v1271 = vmul.f32 %v593, %v593
        %v1272 = vmul.f32 %v598, %v598
        %v1273 = vmul.f32 %v603, %v603
        %v1274 = vmul.f32 %v608, %v608
        %v1275 = vmul.f32 %v613, %v613
        %v1276 = vmul.f32 %v618, %v618
        %v1277 = vmul.f32 %v623, %v623
        %v1278 = vmul.f32 %v628, %v628
        %v1279 = vmul.f32 %v633, %v633
        %v1280 = vmul.f32 %v638, %v638
        %v1281 = vmul.f32 %v643, %v643
        %v1282 = vmul.f32 %v648, %v648
        %v1283 = vmul.f32 %v653, %v653
        %v1284 = vmul.f32 %v658, %v658
        %v1285 = vmul.f32 %v663, %v663
        %v1286 = vmul.f32 %v668, %v668
        %v1287 = vmul.f32 %v673, %v673
        %v1288 = vmul.f32 %v678, %v678
        %v1289 = vmul.f32 %v683, %v683
        %v1290 = vmul.f32 %v688, %v688
        %v1291 = vmul.f32 %v693, %v693
        %v1292 = vmul.f32 %v698, %v698
        %v1293 = vmul.f32 %v703, %v703
        %v1294 = vmul.f32 %v708, %v708
        %v1295 = vmul.f32 %v713, %v713
        %v1296 = vmul.f32 %v718, %v718
        %v1297 = vmul.f32 %v723, %v723
        %v1298 = vmul.f32 %v728, %v728
        %v1299 = vmul.f32 %v733, %v733
        %v1300 = vmul.f32 %v738, %v738
        %v1301 = vmul.f32 %v743, %v743
        %v1302 = vmul.f32 %v748, %v748
        %v1303 = vmul.f32 %v753, %v753
        %v1304 = vmul.f32 %v758, %v758
        %v1305 = vmul.f32 %v763, %v763
        %v1306 = vmul.f32 %v768, %v768
        %v1307 = vmul.f32 %v773, %v773
        %v1308 = vmul.f32 %v778, %v778
        %v1309 = vmul.f32 %v783, %v783
        %v1310 = vmul.f32 %v788, %v788
        %v1311 = vmul.f32 %v793, %v793
        %v1312 = vmul.f32 %v798, %v798
        %v1313 = vmul.f32 %v803, %v803
        %v1314 = vmul.f32 %v808, %v808
        %v1315 = vmul.f32 %v813, %v813
        %v1316 = vmul.f32 %v818, %v818
        %v1317 = vmul.f32 %v823, %v823
        %v1318 = vmul.f32 %v828, %v828
        %v1319 = vmul.f32 %v833, %v833
        %v1320 = vmul.f32 %v838, %v838
        %v1321 = vmul.f32 %v843, %v843
        %v1322 = vmul.f32 %v848, %v848
        %v1323 = vmul.f32 %v853, %v853
        %v1324 = vmul.f32 %v858, %v858
        %v1325 = vmul.f32 %v863, %v863
        %v1326 = vmul.f32 %v868, %v868
        %v1327 = vmul.f32 %v873, %v873
        %v1328 = vmul.f32 %v878, %v878
        %v1329 = vmul.f32 %v883, %v883
        %v1330 = vmul.f32 %v888, %v888
        %v1331 = vmul.f32 %v893, %v893
        %v1332 = vmul.f32 %v898, %v898
        %v1333 = vmul.f32 %v903, %v903
        %v1334 = vmul.f32 %v908, %v908
        %v1335 = vmul.f32 %v913, %v913
        %v1336 = vmul.f32 %v918, %v918
        %v1337 = vmul.f32 %v923, %v923
        %v1338 = vmul.f32 %v928, %v928
        %v1339 = vmul.f32 %v933, %v933
        %v1340 = vmul.f32 %v938, %v938
        %v1341 = vmul.f32 %v943, %v943
        %v1342 = vmul.f32 %v948, %v948
        %v1343 = vmul.f32 %v953, %v953
        %v1344 = vmul.f32 %v958, %v958
        %v1345 = vmul.f32 %v963, %v963
        %v1346 = vmul.f32 %v968, %v968
        %v1347 = vmul.f32 %v973, %v973
        %v1348 = vmul.f32 %v978, %v978
        %v1349 = vmul.f32 %v983, %v983
        %v1350 = vmul.f32 %v988, %v988
        %v1351 = vmul.f32 %v993, %v993
        %v1352 = vmul.f32 %v998, %v998
        %v1353 = vmul.f32 %v1003, %v1003
        %v1354 = vmul.f32 %v1008, %v1008
        %v1355 = vmul.f32 %v1013, %v1013
        %v1356 = vmul.f32 %v1018, %v1018
        %v1357 = vmul.f32 %v1023, %v1023
        %v1358 = vmul.f32 %v1028, %v1028
        %v1359 = vmul.f32 %v1033, %v1033
        %v1360 = vmul.f32 %v1038, %v1038
        %v1361 = vmul.f32 %v1043, %v1043
        %v1362 = vmul.f32 %v1048, %v1048
        %v1363 = vmul.f32 %v1053, %v1053
        %v1364 = vmul.f32 %v1058, %v1058
        %v1365 = vmul.f32 %v1063, %v1063
        %v1366 = vmul.f32 %v1068, %v1068
        %v1367 = vmul.f32 %v1073, %v1073
        %v1368 = vmul.f32 %v1078, %v1078
        %v1369 = vmul.f32 %v1083, %v1083
        %v1370 = vmul.f32 %v1088, %v1088
        %v1371 = vmul.f32 %v1093, %v1093
        %v1372 = vadd.f32 %v1244, %v1245
        %v1373 = vadd.f32 %v1372, %v1246
        %v1374 = vadd.f32 %v1373, %v1247
        %v1375 = vadd.f32 %v1374, %v1248
        %v1376 = vadd.f32 %v1375, %v1249
        %v1377 = vadd.f32 %v1376, %v1250
        %v1378 = vadd.f32 %v1377, %v1251
        %v1379 = vadd.f32 %v1378, %v1252
        %v1380 = vadd.f32 %v1379, %v1253
        %v1381 = vadd.f32 %v1380, %v1254
        %v1382 = vadd.f32 %v1381, %v1255
        %v1383 = vadd.f32 %v1382, %v1256
        %v1384 = vadd.f32 %v1383, %v1257
        %v1385 = vadd.f32 %v1384, %v1258
        %v1386 = vadd.f32 %v1385, %v1259
        %v1387 = vadd.f32 %v1386, %v1260
        %v1388 = vadd.f32 %v1387, %v1261
        %v1389 = vadd.f32 %v1388, %v1262
        %v1390 = vadd.f32 %v1389, %v1263
        %v1391 = vadd.f32 %v1390, %v1264
        %v1392 = vadd.f32 %v1391, %v1265
        %v1393 = vadd.f32 %v1392, %v1266
        %v1394 = vadd.f32 %v1393, %v1267
        %v1395 = vadd.f32 %v1394, %v1268
        %v1396 = vadd.f32 %v1395, %v1269
        %v1397 = vadd.f32 %v1396, %v1270
        %v1398 = vadd.f32 %v1397, %v1271
        %v1399 = vadd.f32 %v1398, %v1272
        %v1400 = vadd.f32 %v1399, %v1273
        %v1401 = vadd.f32 %v1400, %v1274
        %v1402 = vadd.f32 %v1401, %v1275
        %v1403 = vadd.f32 %v1402, %v1276
        %v1404 = vadd.f32 %v1403, %v1277
        %v1405 = vadd.f32 %v1404, %v1278
        %v1406 = vadd.f32 %v1405, %v1279
        %v1407 = vadd.f32 %v1406, %v1280
        %v1408 = vadd.f32 %v1407, %v1281
        %v1409 = vadd.f32 %v1408, %v1282
        %v1410 = vadd.f32 %v1409, %v1283
        %v1411 = vadd.f32 %v1410, %v1284
        %v1412 = vadd.f32 %v1411, %v1285
        %v1413 = vadd.f32 %v1412, %v1286
        %v1414 = vadd.f32 %v1413, %v1287
        %v1415 = vadd.f32 %v1414, %v1288
        %v1416 = vadd.f32 %v1415, %v1289
        %v1417 = vadd.f32 %v1416, %v1290
        %v1418 = vadd.f32 %v1417, %v1291
        %v1419 = vadd.f32 %v1418, %v1292
        %v1420 = vadd.f32 %v1419, %v1293
        %v1421 = vadd.f32 %v1420, %v1294
        %v1422 = vadd.f32 %v1421, %v1295
        %v1423 = vadd.f32 %v1422, %v1296
        %v1424 = vadd.f32 %v1423, %v1297
        %v1425 = vadd.f32 %v1424, %v1298
        %v1426 = vadd.f32 %v1425, %v1299
        %v1427 = vadd.f32 %v1426, %v1300
        %v1428 = vadd.f32 %v1427, %v1301
        %v1429 = vadd.f32 %v1428, %v1302
        %v1430 = vadd.f32 %v1429, %v1303
        %v1431 = vadd.f32 %v1430, %v1304
        %v1432 = vadd.f32 %v1431, %v1305
        %v1433 = vadd.f32 %v1432, %v1306
        %v1434 = vadd.f32 %v1433, %v1307
        %v1435 = vadd.f32 %v1434, %v1308
        %v1436 = vadd.f32 %v1435, %v1309
        %v1437 = vadd.f32 %v1436, %v1310
        %v1438 = vadd.f32 %v1437, %v1311
        %v1439 = vadd.f32 %v1438, %v1312
        %v1440 = vadd.f32 %v1439, %v1313
        %v1441 = vadd.f32 %v1440, %v1314
        %v1442 = vadd.f32 %v1441, %v1315
        %v1443 = vadd.f32 %v1442, %v1316
        %v1444 = vadd.f32 %v1443, %v1317
        %v1445 = vadd.f32 %v1444, %v1318
        %v1446 = vadd.f32 %v1445, %v1319
        %v1447 = vadd.f32 %v1446, %v1320
        %v1448 = vadd.f32 %v1447, %v1321
        %v1449 = vadd.f32 %v1448, %v1322
        %v1450 = vadd.f32 %v1449, %v1323
        %v1451 = vadd.f32 %v1450, %v1324
        %v1452 = vadd.f32 %v1451, %v1325
        %v1453 = vadd.f32 %v1452, %v1326
        %v1454 = vadd.f32 %v1453, %v1327
        %v1455 = vadd.f32 %v1454, %v1328
        %v1456 = vadd.f32 %v1455, %v1329
        %v1457 = vadd.f32 %v1456, %v1330
        %v1458 = vadd.f32 %v1457, %v1331
        %v1459 = vadd.f32 %v1458, %v1332
        %v1460 = vadd.f32 %v1459, %v1333
        %v1461 = vadd.f32 %v1460, %v1334
        %v1462 = vadd.f32 %v1461, %v1335
        %v1463 = vadd.f32 %v1462, %v1336
        %v1464 = vadd.f32 %v1463, %v1337
        %v1465 = vadd.f32 %v1464, %v1338
        %v1466 = vadd.f32 %v1465, %v1339
        %v1467 = vadd.f32 %v1466, %v1340
        %v1468 = vadd.f32 %v1467, %v1341
        %v1469 = vadd.f32 %v1468, %v1342
        %v1470 = vadd.f32 %v1469, %v1343
        %v1471 = vadd.f32 %v1470, %v1344
        %v1472 = vadd.f32 %v1471, %v1345
        %v1473 = vadd.f32 %v1472, %v1346
        %v1474 = vadd.f32 %v1473, %v1347
        %v1475 = vadd.f32 %v1474, %v1348
        %v1476 = vadd.f32 %v1475, %v1349
        %v1477 = vadd.f32 %v1476, %v1350
        %v1478 = vadd.f32 %v1477, %v1351
        %v1479 = vadd.f32 %v1478, %v1352
        %v1480 = vadd.f32 %v1479, %v1353
        %v1481 = vadd.f32 %v1480, %v1354
        %v1482 = vadd.f32 %v1481, %v1355
        %v1483 = vadd.f32 %v1482, %v1356
        %v1484 = vadd.f32 %v1483, %v1357
        %v1485 = vadd.f32 %v1484, %v1358
        %v1486 = vadd.f32 %v1485, %v1359
        %v1487 = vadd.f32 %v1486, %v1360
        %v1488 = vadd.f32 %v1487, %v1361
        %v1489 = vadd.f32 %v1488, %v1362
        %v1490 = vadd.f32 %v1489, %v1363
        %v1491 = vadd.f32 %v1490, %v1364
        %v1492 = vadd.f32 %v1491, %v1365
        %v1493 = vadd.f32 %v1492, %v1366
        %v1494 = vadd.f32 %v1493, %v1367
        %v1495 = vadd.f32 %v1494, %v1368
        %v1496 = vadd.f32 %v1495, %v1369
        %v1497 = vadd.f32 %v1496, %v1370
        %v1498 = vadd.f32 %v1497, %v1371
        %v1499 = vrot.slane %v1498, 4
        %v1500 = vadd.f32 %v1498, %v1499
        %v1501 = vrot.slane %v1500, 2
        %v1502 = vadd.f32 %v1500, %v1501
        %v1503 = vrot.slane %v1502, 1
        %v1504 = vadd.f32 %v1502, %v1503
        %v1505 = vadd.f32 %v1243, %v1504
        %1506 = vst [vmem:[#allocation3] sm:$0x1] %v1505
        %1507 = vst [vmem:[%s238] sm:$0xff] %v458
        %1508 = vst [vmem:[%s238 + $0x8] sm:$0xff] %v463
        %1509 = vst [vmem:[%s238 + $0x10] sm:$0xff] %v468
        %1510 = vst [vmem:[%s238 + $0x18] sm:$0xff] %v473
        %1511 = vst [vmem:[%s238 + $0x20] sm:$0xff] %v478
        %1512 = vst [vmem:[%s238 + $0x28] sm:$0xff] %v483
        %1513 = vst [vmem:[%s238 + $0x30] sm:$0xff] %v488
        %1514 = vst [vmem:[%s238 + $0x38] sm:$0xff] %v493
        %1515 = vst [vmem:[%s238 + $0x40] sm:$0xff] %v498
        %1516 = vst [vmem:[%s238 + $0x48] sm:$0xff] %v503
        %1517 = vst [vmem:[%s238 + $0x50] sm:$0xff] %v508
        %1518 = vst [vmem:[%s238 + $0x58] sm:$0xff] %v513
        %1519 = vst [vmem:[%s238 + $0x60] sm:$0xff] %v518
        %1520 = vst [vmem:[%s238 + $0x68] sm:$0xff] %v523
        %1521 = vst [vmem:[%s238 + $0x70] sm:$0xff] %v528
        %1522 = vst [vmem:[%s238 + $0x78] sm:$0xff] %v533
        %1523 = vst [vmem:[%s238 + $0x80] sm:$0xff] %v538
        %1524 = vst [vmem:[%s238 + $0x88] sm:$0xff] %v543
        %1525 = vst [vmem:[%s238 + $0x90] sm:$0xff] %v548
        %1526 = vst [vmem:[%s238 + $0x98] sm:$0xff] %v553
        %1527 = vst [vmem:[%s238 + $0xa0] sm:$0xff] %v558
        %1528 = vst [vmem:[%s238 + $0xa8] sm:$0xff] %v563
        %1529 = vst [vmem:[%s238 + $0xb0] sm:$0xff] %v568
        %1530 = vst [vmem:[%s238 + $0xb8] sm:$0xff] %v573
        %1531 = vst [vmem:[%s238 + $0xc0] sm:$0xff] %v578
        %1532 = vst [vmem:[%s238 + $0xc8] sm:$0xff] %v583
        %1533 = vst [vmem:[%s238 + $0xd0] sm:$0xff] %v588
        %1534 = vst [vmem:[%s238 + $0xd8] sm:$0xff] %v593
        %1535 = vst [vmem:[%s238 + $0xe0] sm:$0xff] %v598
        %1536 = vst [vmem:[%s238 + $0xe8] sm:$0xff] %v603
        %1537 = vst [vmem:[%s238 + $0xf0] sm:$0xff] %v608
        %1538 = vst [vmem:[%s238 + $0xf8] sm:$0xff] %v613
        %1539 = vst [vmem:[%s238 + $0x100] sm:$0xff] %v618
        %1540 = vst [vmem:[%s238 + $0x108] sm:$0xff] %v623
        %1541 = vst [vmem:[%s238 + $0x110] sm:$0xff] %v628
        %1542 = vst [vmem:[%s238 + $0x118] sm:$0xff] %v633
        %1543 = vst [vmem:[%s238 + $0x120] sm:$0xff] %v638
        %1544 = vst [vmem:[%s238 + $0x128] sm:$0xff] %v643
        %1545 = vst [vmem:[%s238 + $0x130] sm:$0xff] %v648
        %1546 = vst [vmem:[%s238 + $0x138] sm:$0xff] %v653
        %1547 = vst [vmem:[%s238 + $0x140] sm:$0xff] %v658
        %1548 = vst [vmem:[%s238 + $0x148] sm:$0xff] %v663
        %1549 = vst [vmem:[%s238 + $0x150] sm:$0xff] %v668
        %1550 = vst [vmem:[%s238 + $0x158] sm:$0xff] %v673
        %1551 = vst [vmem:[%s238 + $0x160] sm:$0xff] %v678
        %1552 = vst [vmem:[%s238 + $0x168] sm:$0xff] %v683
        %1553 = vst [vmem:[%s238 + $0x170] sm:$0xff] %v688
        %1554 = vst [vmem:[%s238 + $0x178] sm:$0xff] %v693
        %1555 = vst [vmem:[%s238 + $0x180] sm:$0xff] %v698
        %1556 = vst [vmem:[%s238 + $0x188] sm:$0xff] %v703
        %1557 = vst [vmem:[%s238 + $0x190] sm:$0xff] %v708
        %1558 = vst [vmem:[%s238 + $0x198] sm:$0xff] %v713
        %1559 = vst [vmem:[%s238 + $0x1a0] sm:$0xff] %v718
        %1560 = vst [vmem:[%s238 + $0x1a8] sm:$0xff] %v723
        %1561 = vst [vmem:[%s238 + $0x1b0] sm:$0xff] %v728
        %1562 = vst [vmem:[%s238 + $0x1b8] sm:$0xff] %v733
        %1563 = vst [vmem:[%s238 + $0x1c0] sm:$0xff] %v738
        %1564 = vst [vmem:[%s238 + $0x1c8] sm:$0xff] %v743
        %1565 = vst [vmem:[%s238 + $0x1d0] sm:$0xff] %v748
        %1566 = vst [vmem:[%s238 + $0x1d8] sm:$0xff] %v753
        %1567 = vst [vmem:[%s238 + $0x1e0] sm:$0xff] %v758
        %1568 = vst [vmem:[%s238 + $0x1e8] sm:$0xff] %v763
        %1569 = vst [vmem:[%s238 + $0x1f0] sm:$0xff] %v768
        %1570 = vst [vmem:[%s238 + $0x1f8] sm:$0xff] %v773
        %1571 = vst [vmem:[%s238 + $0x200] sm:$0xff] %v778
        %1572 = vst [vmem:[%s238 + $0x208] sm:$0xff] %v783
        %1573 = vst [vmem:[%s238 + $0x210] sm:$0xff] %v788
        %1574 = vst [vmem:[%s238 + $0x218] sm:$0xff] %v793
        %1575 = vst [vmem:[%s238 + $0x220] sm:$0xff] %v798
        %1576 = vst [vmem:[%s238 + $0x228] sm:$0xff] %v803
        %1577 = vst [vmem:[%s238 + $0x230] sm:$0xff] %v808
        %1578 = vst [vmem:[%s238 + $0x238] sm:$0xff] %v813
        %1579 = vst [vmem:[%s238 + $0x240] sm:$0xff] %v818
        %1580 = vst [vmem:[%s238 + $0x248] sm:$0xff] %v823
        %1581 = vst [vmem:[%s238 + $0x250] sm:$0xff] %v828
        %1582 = vst [vmem:[%s238 + $0x258] sm:$0xff] %v833
        %1583 = vst [vmem:[%s238 + $0x260] sm:$0xff] %v838
        %1584 = vst [vmem:[%s238 + $0x268] sm:$0xff] %v843
        %1585 = vst [vmem:[%s238 + $0x270] sm:$0xff] %v848
        %1586 = vst [vmem:[%s238 + $0x278] sm:$0xff] %v853
        %1587 = vst [vmem:[%s238 + $0x280] sm:$0xff] %v858
        %1588 = vst [vmem:[%s238 + $0x288] sm:$0xff] %v863
        %1589 = vst [vmem:[%s238 + $0x290] sm:$0xff] %v868
        %1590 = vst [vmem:[%s238 + $0x298] sm:$0xff] %v873
        %1591 = vst [vmem:[%s238 + $0x2a0] sm:$0xff] %v878
        %1592 = vst [vmem:[%s238 + $0x2a8] sm:$0xff] %v883
        %1593 = vst [vmem:[%s238 + $0x2b0] sm:$0xff] %v888
        %1594 = vst [vmem:[%s238 + $0x2b8] sm:$0xff] %v893
        %1595 = vst [vmem:[%s238 + $0x2c0] sm:$0xff] %v898
        %1596 = vst [vmem:[%s238 + $0x2c8] sm:$0xff] %v903
        %1597 = vst [vmem:[%s238 + $0x2d0] sm:$0xff] %v908
        %1598 = vst [vmem:[%s238 + $0x2d8] sm:$0xff] %v913
        %1599 = vst [vmem:[%s238 + $0x2e0] sm:$0xff] %v918
        %1600 = vst [vmem:[%s238 + $0x2e8] sm:$0xff] %v923
        %1601 = vst [vmem:[%s238 + $0x2f0] sm:$0xff] %v928
        %1602 = vst [vmem:[%s238 + $0x2f8] sm:$0xff] %v933
        %1603 = vst [vmem:[%s238 + $0x300] sm:$0xff] %v938
        %1604 = vst [vmem:[%s238 + $0x308] sm:$0xff] %v943
        %1605 = vst [vmem:[%s238 + $0x310] sm:$0xff] %v948
        %1606 = vst [vmem:[%s238 + $0x318] sm:$0xff] %v953
        %1607 = vst [vmem:[%s238 + $0x320] sm:$0xff] %v958
        %1608 = vst [vmem:[%s238 + $0x328] sm:$0xff] %v963
        %1609 = vst [vmem:[%s238 + $0x330] sm:$0xff] %v968
        %1610 = vst [vmem:[%s238 + $0x338] sm:$0xff] %v973
        %1611 = vst [vmem:[%s238 + $0x340] sm:$0xff] %v978
        %1612 = vst [vmem:[%s238 + $0x348] sm:$0xff] %v983
        %1613 = vst [vmem:[%s238 + $0x350] sm:$0xff] %v988
        %1614 = vst [vmem:[%s238 + $0x358] sm:$0xff] %v993
        %1615 = vst [vmem:[%s238 + $0x360] sm:$0xff] %v998
        %1616 = vst [vmem:[%s238 + $0x368] sm:$0xff] %v1003
        %1617 = vst [vmem:[%s238 + $0x370] sm:$0xff] %v1008
        %1618 = vst [vmem:[%s238 + $0x378] sm:$0xff] %v1013
        %1619 = vst [vmem:[%s238 + $0x380] sm:$0xff] %v1018
        %1620 = vst [vmem:[%s238 + $0x388] sm:$0xff] %v1023
        %1621 = vst [vmem:[%s238 + $0x390] sm:$0xff] %v1028
        %1622 = vst [vmem:[%s238 + $0x398] sm:$0xff] %v1033
        %1623 = vst [vmem:[%s238 + $0x3a0] sm:$0xff] %v1038
        %1624 = vst [vmem:[%s238 + $0x3a8] sm:$0xff] %v1043
        %1625 = vst [vmem:[%s238 + $0x3b0] sm:$0xff] %v1048
        %1626 = vst [vmem:[%s238 + $0x3b8] sm:$0xff] %v1053
        %1627 = vst [vmem:[%s238 + $0x3c0] sm:$0xff] %v1058
        %1628 = vst [vmem:[%s238 + $0x3c8] sm:$0xff] %v1063
        %1629 = vst [vmem:[%s238 + $0x3d0] sm:$0xff] %v1068
        %1630 = vst [vmem:[%s238 + $0x3d8] sm:$0xff] %v1073
        %1631 = vst [vmem:[%s238 + $0x3e0] sm:$0xff] %v1078
        %1632 = vst [vmem:[%s238 + $0x3e8] sm:$0xff] %v1083
        %1633 = vst [vmem:[%s238 + $0x3f0] sm:$0xff] %v1088
        %1634 = vst [vmem:[%s238 + $0x3f8] sm:$0xff] %v1093
      $region48: #{dogs_cats_forward.5} parent=39 // pred_fallthru
        _
      %p1635 = scmp.eq.s32.totalorder %s20, 1
      // Predicated region
      $region49: #{dogs_cats_forward.5} parent=39 // pred_check
        %p1636 = pneg %p1635
      $region50: #{dogs_cats_forward.5} parent=39 // pred_check_branch
        %1638 = sbr.rel (%p1636) target = $region52
      $region51: #{dogs_cats_forward.5} parent=39 // pred_region
        %v1639 = vld [vmem:[#allocation2] sm:$0x1]
        %v1640 = vmul.f32 %v1639, 0.00048828125
        %v1641 = vld [vmem:[#allocation3] sm:$0x1]
        %v1642 = vmul.f32 %v1641, 0.00048828125
        %v1643 = vmul.f32 %v1640, %v1640
        %v1644 = vsub.f32 %v1642, %v1643
        %v1645 = vmax.f32 %v1644, 0.0
        %v1646 = vld [vmem:[%s3] sm:$0x1]
        %v1647 = vadd.f32 %v1645, 1e-05
        %v1648 = vrsqrt.pop %v1647
        %v1649 = vmul.f32 %v1646, %v1648
        %v1650 = vld [vmem:[%s4] sm:$0x1]
        %v1651 = vmul.f32 %v1640, %v1649
        %v1652 = vsub.f32 %v1650, %v1651
        %v1654 = vlaneseq
        %v1655 = vshrl.u32 %v1654, 7
        %v1656 = vsub.s32 0, %v1655
        %v1657 = vrot.slane %v1649, %v1656
        %v1659 = vmul.f32 %v458, %v1657
        %v1660 = vmul.f32 %v463, %v1657
        %v1661 = vmul.f32 %v468, %v1657
        %v1662 = vmul.f32 %v473, %v1657
        %v1663 = vmul.f32 %v478, %v1657
        %v1664 = vmul.f32 %v483, %v1657
        %v1665 = vmul.f32 %v488, %v1657
        %v1666 = vmul.f32 %v493, %v1657
        %v1667 = vmul.f32 %v498, %v1657
        %v1668 = vmul.f32 %v503, %v1657
        %v1669 = vmul.f32 %v508, %v1657
        %v1670 = vmul.f32 %v513, %v1657
        %v1671 = vmul.f32 %v518, %v1657
        %v1672 = vmul.f32 %v523, %v1657
        %v1673 = vmul.f32 %v528, %v1657
        %v1674 = vmul.f32 %v533, %v1657
        %v1675 = vmul.f32 %v538, %v1657
        %v1676 = vmul.f32 %v543, %v1657
        %v1677 = vmul.f32 %v548, %v1657
        %v1678 = vmul.f32 %v553, %v1657
        %v1679 = vmul.f32 %v558, %v1657
        %v1680 = vmul.f32 %v563, %v1657
        %v1681 = vmul.f32 %v568, %v1657
        %v1682 = vmul.f32 %v573, %v1657
        %v1683 = vmul.f32 %v578, %v1657
        %v1684 = vmul.f32 %v583, %v1657
        %v1685 = vmul.f32 %v588, %v1657
        %v1686 = vmul.f32 %v593, %v1657
        %v1687 = vmul.f32 %v598, %v1657
        %v1688 = vmul.f32 %v603, %v1657
        %v1689 = vmul.f32 %v608, %v1657
        %v1690 = vmul.f32 %v613, %v1657
        %v1691 = vmul.f32 %v618, %v1657
        %v1692 = vmul.f32 %v623, %v1657
        %v1693 = vmul.f32 %v628, %v1657
        %v1694 = vmul.f32 %v633, %v1657
        %v1695 = vmul.f32 %v638, %v1657
        %v1696 = vmul.f32 %v643, %v1657
        %v1697 = vmul.f32 %v648, %v1657
        %v1698 = vmul.f32 %v653, %v1657
        %v1699 = vmul.f32 %v658, %v1657
        %v1700 = vmul.f32 %v663, %v1657
        %v1701 = vmul.f32 %v668, %v1657
        %v1702 = vmul.f32 %v673, %v1657
        %v1703 = vmul.f32 %v678, %v1657
        %v1704 = vmul.f32 %v683, %v1657
        %v1705 = vmul.f32 %v688, %v1657
        %v1706 = vmul.f32 %v693, %v1657
        %v1707 = vmul.f32 %v698, %v1657
        %v1708 = vmul.f32 %v703, %v1657
        %v1709 = vmul.f32 %v708, %v1657
        %v1710 = vmul.f32 %v713, %v1657
        %v1711 = vmul.f32 %v718, %v1657
        %v1712 = vmul.f32 %v723, %v1657
        %v1713 = vmul.f32 %v728, %v1657
        %v1714 = vmul.f32 %v733, %v1657
        %v1715 = vmul.f32 %v738, %v1657
        %v1716 = vmul.f32 %v743, %v1657
        %v1717 = vmul.f32 %v748, %v1657
        %v1718 = vmul.f32 %v753, %v1657
        %v1719 = vmul.f32 %v758, %v1657
        %v1720 = vmul.f32 %v763, %v1657
        %v1721 = vmul.f32 %v768, %v1657
        %v1722 = vmul.f32 %v773, %v1657
        %v1723 = vmul.f32 %v778, %v1657
        %v1724 = vmul.f32 %v783, %v1657
        %v1725 = vmul.f32 %v788, %v1657
        %v1726 = vmul.f32 %v793, %v1657
        %v1727 = vmul.f32 %v798, %v1657
        %v1728 = vmul.f32 %v803, %v1657
        %v1729 = vmul.f32 %v808, %v1657
        %v1730 = vmul.f32 %v813, %v1657
        %v1731 = vmul.f32 %v818, %v1657
        %v1732 = vmul.f32 %v823, %v1657
        %v1733 = vmul.f32 %v828, %v1657
        %v1734 = vmul.f32 %v833, %v1657
        %v1735 = vmul.f32 %v838, %v1657
        %v1736 = vmul.f32 %v843, %v1657
        %v1737 = vmul.f32 %v848, %v1657
        %v1738 = vmul.f32 %v853, %v1657
        %v1739 = vmul.f32 %v858, %v1657
        %v1740 = vmul.f32 %v863, %v1657
        %v1741 = vmul.f32 %v868, %v1657
        %v1742 = vmul.f32 %v873, %v1657
        %v1743 = vmul.f32 %v878, %v1657
        %v1744 = vmul.f32 %v883, %v1657
        %v1745 = vmul.f32 %v888, %v1657
        %v1746 = vmul.f32 %v893, %v1657
        %v1747 = vmul.f32 %v898, %v1657
        %v1748 = vmul.f32 %v903, %v1657
        %v1749 = vmul.f32 %v908, %v1657
        %v1750 = vmul.f32 %v913, %v1657
        %v1751 = vmul.f32 %v918, %v1657
        %v1752 = vmul.f32 %v923, %v1657
        %v1753 = vmul.f32 %v928, %v1657
        %v1754 = vmul.f32 %v933, %v1657
        %v1755 = vmul.f32 %v938, %v1657
        %v1756 = vmul.f32 %v943, %v1657
        %v1757 = vmul.f32 %v948, %v1657
        %v1758 = vmul.f32 %v953, %v1657
        %v1759 = vmul.f32 %v958, %v1657
        %v1760 = vmul.f32 %v963, %v1657
        %v1761 = vmul.f32 %v968, %v1657
        %v1762 = vmul.f32 %v973, %v1657
        %v1763 = vmul.f32 %v978, %v1657
        %v1764 = vmul.f32 %v983, %v1657
        %v1765 = vmul.f32 %v988, %v1657
        %v1766 = vmul.f32 %v993, %v1657
        %v1767 = vmul.f32 %v998, %v1657
        %v1768 = vmul.f32 %v1003, %v1657
        %v1769 = vmul.f32 %v1008, %v1657
        %v1770 = vmul.f32 %v1013, %v1657
        %v1771 = vmul.f32 %v1018, %v1657
        %v1772 = vmul.f32 %v1023, %v1657
        %v1773 = vmul.f32 %v1028, %v1657
        %v1774 = vmul.f32 %v1033, %v1657
        %v1775 = vmul.f32 %v1038, %v1657
        %v1776 = vmul.f32 %v1043, %v1657
        %v1777 = vmul.f32 %v1048, %v1657
        %v1778 = vmul.f32 %v1053, %v1657
        %v1779 = vmul.f32 %v1058, %v1657
        %v1780 = vmul.f32 %v1063, %v1657
        %v1781 = vmul.f32 %v1068, %v1657
        %v1782 = vmul.f32 %v1073, %v1657
        %v1783 = vmul.f32 %v1078, %v1657
        %v1784 = vmul.f32 %v1083, %v1657
        %v1785 = vmul.f32 %v1088, %v1657
        %v1786 = vmul.f32 %v1093, %v1657
        %v1788 = vlaneseq
        %v1789 = vshrl.u32 %v1788, 7
        %v1790 = vsub.s32 0, %v1789
        %v1791 = vrot.slane %v1652, %v1790
        %v1793 = vadd.f32 %v1659, %v1791
        %v1794 = vadd.f32 %v1660, %v1791
        %v1795 = vadd.f32 %v1661, %v1791
        %v1796 = vadd.f32 %v1662, %v1791
        %v1797 = vadd.f32 %v1663, %v1791
        %v1798 = vadd.f32 %v1664, %v1791
        %v1799 = vadd.f32 %v1665, %v1791
        %v1800 = vadd.f32 %v1666, %v1791
        %v1801 = vadd.f32 %v1667, %v1791
        %v1802 = vadd.f32 %v1668, %v1791
        %v1803 = vadd.f32 %v1669, %v1791
        %v1804 = vadd.f32 %v1670, %v1791
        %v1805 = vadd.f32 %v1671, %v1791
        %v1806 = vadd.f32 %v1672, %v1791
        %v1807 = vadd.f32 %v1673, %v1791
        %v1808 = vadd.f32 %v1674, %v1791
        %v1809 = vadd.f32 %v1675, %v1791
        %v1810 = vadd.f32 %v1676, %v1791
        %v1811 = vadd.f32 %v1677, %v1791
        %v1812 = vadd.f32 %v1678, %v1791
        %v1813 = vadd.f32 %v1679, %v1791
        %v1814 = vadd.f32 %v1680, %v1791
        %v1815 = vadd.f32 %v1681, %v1791
        %v1816 = vadd.f32 %v1682, %v1791
        %v1817 = vadd.f32 %v1683, %v1791
        %v1818 = vadd.f32 %v1684, %v1791
        %v1819 = vadd.f32 %v1685, %v1791
        %v1820 = vadd.f32 %v1686, %v1791
        %v1821 = vadd.f32 %v1687, %v1791
        %v1822 = vadd.f32 %v1688, %v1791
        %v1823 = vadd.f32 %v1689, %v1791
        %v1824 = vadd.f32 %v1690, %v1791
        %v1825 = vadd.f32 %v1691, %v1791
        %v1826 = vadd.f32 %v1692, %v1791
        %v1827 = vadd.f32 %v1693, %v1791
        %v1828 = vadd.f32 %v1694, %v1791
        %v1829 = vadd.f32 %v1695, %v1791
        %v1830 = vadd.f32 %v1696, %v1791
        %v1831 = vadd.f32 %v1697, %v1791
        %v1832 = vadd.f32 %v1698, %v1791
        %v1833 = vadd.f32 %v1699, %v1791
        %v1834 = vadd.f32 %v1700, %v1791
        %v1835 = vadd.f32 %v1701, %v1791
        %v1836 = vadd.f32 %v1702, %v1791
        %v1837 = vadd.f32 %v1703, %v1791
        %v1838 = vadd.f32 %v1704, %v1791
        %v1839 = vadd.f32 %v1705, %v1791
        %v1840 = vadd.f32 %v1706, %v1791
        %v1841 = vadd.f32 %v1707, %v1791
        %v1842 = vadd.f32 %v1708, %v1791
        %v1843 = vadd.f32 %v1709, %v1791
        %v1844 = vadd.f32 %v1710, %v1791
        %v1845 = vadd.f32 %v1711, %v1791
        %v1846 = vadd.f32 %v1712, %v1791
        %v1847 = vadd.f32 %v1713, %v1791
        %v1848 = vadd.f32 %v1714, %v1791
        %v1849 = vadd.f32 %v1715, %v1791
        %v1850 = vadd.f32 %v1716, %v1791
        %v1851 = vadd.f32 %v1717, %v1791
        %v1852 = vadd.f32 %v1718, %v1791
        %v1853 = vadd.f32 %v1719, %v1791
        %v1854 = vadd.f32 %v1720, %v1791
        %v1855 = vadd.f32 %v1721, %v1791
        %v1856 = vadd.f32 %v1722, %v1791
        %v1857 = vadd.f32 %v1723, %v1791
        %v1858 = vadd.f32 %v1724, %v1791
        %v1859 = vadd.f32 %v1725, %v1791
        %v1860 = vadd.f32 %v1726, %v1791
        %v1861 = vadd.f32 %v1727, %v1791
        %v1862 = vadd.f32 %v1728, %v1791
        %v1863 = vadd.f32 %v1729, %v1791
        %v1864 = vadd.f32 %v1730, %v1791
        %v1865 = vadd.f32 %v1731, %v1791
        %v1866 = vadd.f32 %v1732, %v1791
        %v1867 = vadd.f32 %v1733, %v1791
        %v1868 = vadd.f32 %v1734, %v1791
        %v1869 = vadd.f32 %v1735, %v1791
        %v1870 = vadd.f32 %v1736, %v1791
        %v1871 = vadd.f32 %v1737, %v1791
        %v1872 = vadd.f32 %v1738, %v1791
        %v1873 = vadd.f32 %v1739, %v1791
        %v1874 = vadd.f32 %v1740, %v1791
        %v1875 = vadd.f32 %v1741, %v1791
        %v1876 = vadd.f32 %v1742, %v1791
        %v1877 = vadd.f32 %v1743, %v1791
        %v1878 = vadd.f32 %v1744, %v1791
        %v1879 = vadd.f32 %v1745, %v1791
        %v1880 = vadd.f32 %v1746, %v1791
        %v1881 = vadd.f32 %v1747, %v1791
        %v1882 = vadd.f32 %v1748, %v1791
        %v1883 = vadd.f32 %v1749, %v1791
        %v1884 = vadd.f32 %v1750, %v1791
        %v1885 = vadd.f32 %v1751, %v1791
        %v1886 = vadd.f32 %v1752, %v1791
        %v1887 = vadd.f32 %v1753, %v1791
        %v1888 = vadd.f32 %v1754, %v1791
        %v1889 = vadd.f32 %v1755, %v1791
        %v1890 = vadd.f32 %v1756, %v1791
        %v1891 = vadd.f32 %v1757, %v1791
        %v1892 = vadd.f32 %v1758, %v1791
        %v1893 = vadd.f32 %v1759, %v1791
        %v1894 = vadd.f32 %v1760, %v1791
        %v1895 = vadd.f32 %v1761, %v1791
        %v1896 = vadd.f32 %v1762, %v1791
        %v1897 = vadd.f32 %v1763, %v1791
        %v1898 = vadd.f32 %v1764, %v1791
        %v1899 = vadd.f32 %v1765, %v1791
        %v1900 = vadd.f32 %v1766, %v1791
        %v1901 = vadd.f32 %v1767, %v1791
        %v1902 = vadd.f32 %v1768, %v1791
        %v1903 = vadd.f32 %v1769, %v1791
        %v1904 = vadd.f32 %v1770, %v1791
        %v1905 = vadd.f32 %v1771, %v1791
        %v1906 = vadd.f32 %v1772, %v1791
        %v1907 = vadd.f32 %v1773, %v1791
        %v1908 = vadd.f32 %v1774, %v1791
        %v1909 = vadd.f32 %v1775, %v1791
        %v1910 = vadd.f32 %v1776, %v1791
        %v1911 = vadd.f32 %v1777, %v1791
        %v1912 = vadd.f32 %v1778, %v1791
        %v1913 = vadd.f32 %v1779, %v1791
        %v1914 = vadd.f32 %v1780, %v1791
        %v1915 = vadd.f32 %v1781, %v1791
        %v1916 = vadd.f32 %v1782, %v1791
        %v1917 = vadd.f32 %v1783, %v1791
        %v1918 = vadd.f32 %v1784, %v1791
        %v1919 = vadd.f32 %v1785, %v1791
        %v1920 = vadd.f32 %v1786, %v1791
        %v1921 = vmax.f32 %v1793, 0.0
        %v1922 = vmax.f32 %v1794, 0.0
        %v1923 = vmax.f32 %v1795, 0.0
        %v1924 = vmax.f32 %v1796, 0.0
        %v1925 = vmax.f32 %v1797, 0.0
        %v1926 = vmax.f32 %v1798, 0.0
        %v1927 = vmax.f32 %v1799, 0.0
        %v1928 = vmax.f32 %v1800, 0.0
        %v1929 = vmax.f32 %v1801, 0.0
        %v1930 = vmax.f32 %v1802, 0.0
        %v1931 = vmax.f32 %v1803, 0.0
        %v1932 = vmax.f32 %v1804, 0.0
        %v1933 = vmax.f32 %v1805, 0.0
        %v1934 = vmax.f32 %v1806, 0.0
        %v1935 = vmax.f32 %v1807, 0.0
        %v1936 = vmax.f32 %v1808, 0.0
        %v1937 = vmax.f32 %v1809, 0.0
        %v1938 = vmax.f32 %v1810, 0.0
        %v1939 = vmax.f32 %v1811, 0.0
        %v1940 = vmax.f32 %v1812, 0.0
        %v1941 = vmax.f32 %v1813, 0.0
        %v1942 = vmax.f32 %v1814, 0.0
        %v1943 = vmax.f32 %v1815, 0.0
        %v1944 = vmax.f32 %v1816, 0.0
        %v1945 = vmax.f32 %v1817, 0.0
        %v1946 = vmax.f32 %v1818, 0.0
        %v1947 = vmax.f32 %v1819, 0.0
        %v1948 = vmax.f32 %v1820, 0.0
        %v1949 = vmax.f32 %v1821, 0.0
        %v1950 = vmax.f32 %v1822, 0.0
        %v1951 = vmax.f32 %v1823, 0.0
        %v1952 = vmax.f32 %v1824, 0.0
        %v1953 = vmax.f32 %v1825, 0.0
        %v1954 = vmax.f32 %v1826, 0.0
        %v1955 = vmax.f32 %v1827, 0.0
        %v1956 = vmax.f32 %v1828, 0.0
        %v1957 = vmax.f32 %v1829, 0.0
        %v1958 = vmax.f32 %v1830, 0.0
        %v1959 = vmax.f32 %v1831, 0.0
        %v1960 = vmax.f32 %v1832, 0.0
        %v1961 = vmax.f32 %v1833, 0.0
        %v1962 = vmax.f32 %v1834, 0.0
        %v1963 = vmax.f32 %v1835, 0.0
        %v1964 = vmax.f32 %v1836, 0.0
        %v1965 = vmax.f32 %v1837, 0.0
        %v1966 = vmax.f32 %v1838, 0.0
        %v1967 = vmax.f32 %v1839, 0.0
        %v1968 = vmax.f32 %v1840, 0.0
        %v1969 = vmax.f32 %v1841, 0.0
        %v1970 = vmax.f32 %v1842, 0.0
        %v1971 = vmax.f32 %v1843, 0.0
        %v1972 = vmax.f32 %v1844, 0.0
        %v1973 = vmax.f32 %v1845, 0.0
        %v1974 = vmax.f32 %v1846, 0.0
        %v1975 = vmax.f32 %v1847, 0.0
        %v1976 = vmax.f32 %v1848, 0.0
        %v1977 = vmax.f32 %v1849, 0.0
        %v1978 = vmax.f32 %v1850, 0.0
        %v1979 = vmax.f32 %v1851, 0.0
        %v1980 = vmax.f32 %v1852, 0.0
        %v1981 = vmax.f32 %v1853, 0.0
        %v1982 = vmax.f32 %v1854, 0.0
        %v1983 = vmax.f32 %v1855, 0.0
        %v1984 = vmax.f32 %v1856, 0.0
        %v1985 = vmax.f32 %v1857, 0.0
        %v1986 = vmax.f32 %v1858, 0.0
        %v1987 = vmax.f32 %v1859, 0.0
        %v1988 = vmax.f32 %v1860, 0.0
        %v1989 = vmax.f32 %v1861, 0.0
        %v1990 = vmax.f32 %v1862, 0.0
        %v1991 = vmax.f32 %v1863, 0.0
        %v1992 = vmax.f32 %v1864, 0.0
        %v1993 = vmax.f32 %v1865, 0.0
        %v1994 = vmax.f32 %v1866, 0.0
        %v1995 = vmax.f32 %v1867, 0.0
        %v1996 = vmax.f32 %v1868, 0.0
        %v1997 = vmax.f32 %v1869, 0.0
        %v1998 = vmax.f32 %v1870, 0.0
        %v1999 = vmax.f32 %v1871, 0.0
        %v2000 = vmax.f32 %v1872, 0.0
        %v2001 = vmax.f32 %v1873, 0.0
        %v2002 = vmax.f32 %v1874, 0.0
        %v2003 = vmax.f32 %v1875, 0.0
        %v2004 = vmax.f32 %v1876, 0.0
        %v2005 = vmax.f32 %v1877, 0.0
        %v2006 = vmax.f32 %v1878, 0.0
        %v2007 = vmax.f32 %v1879, 0.0
        %v2008 = vmax.f32 %v1880, 0.0
        %v2009 = vmax.f32 %v1881, 0.0
        %v2010 = vmax.f32 %v1882, 0.0
        %v2011 = vmax.f32 %v1883, 0.0
        %v2012 = vmax.f32 %v1884, 0.0
        %v2013 = vmax.f32 %v1885, 0.0
        %v2014 = vmax.f32 %v1886, 0.0
        %v2015 = vmax.f32 %v1887, 0.0
        %v2016 = vmax.f32 %v1888, 0.0
        %v2017 = vmax.f32 %v1889, 0.0
        %v2018 = vmax.f32 %v1890, 0.0
        %v2019 = vmax.f32 %v1891, 0.0
        %v2020 = vmax.f32 %v1892, 0.0
        %v2021 = vmax.f32 %v1893, 0.0
        %v2022 = vmax.f32 %v1894, 0.0
        %v2023 = vmax.f32 %v1895, 0.0
        %v2024 = vmax.f32 %v1896, 0.0
        %v2025 = vmax.f32 %v1897, 0.0
        %v2026 = vmax.f32 %v1898, 0.0
        %v2027 = vmax.f32 %v1899, 0.0
        %v2028 = vmax.f32 %v1900, 0.0
        %v2029 = vmax.f32 %v1901, 0.0
        %v2030 = vmax.f32 %v1902, 0.0
        %v2031 = vmax.f32 %v1903, 0.0
        %v2032 = vmax.f32 %v1904, 0.0
        %v2033 = vmax.f32 %v1905, 0.0
        %v2034 = vmax.f32 %v1906, 0.0
        %v2035 = vmax.f32 %v1907, 0.0
        %v2036 = vmax.f32 %v1908, 0.0
        %v2037 = vmax.f32 %v1909, 0.0
        %v2038 = vmax.f32 %v1910, 0.0
        %v2039 = vmax.f32 %v1911, 0.0
        %v2040 = vmax.f32 %v1912, 0.0
        %v2041 = vmax.f32 %v1913, 0.0
        %v2042 = vmax.f32 %v1914, 0.0
        %v2043 = vmax.f32 %v1915, 0.0
        %v2044 = vmax.f32 %v1916, 0.0
        %v2045 = vmax.f32 %v1917, 0.0
        %v2046 = vmax.f32 %v1918, 0.0
        %v2047 = vmax.f32 %v1919, 0.0
        %v2048 = vmax.f32 %v1920, 0.0
        %2049 = vst [vmem:[%s238] sm:$0xff] %v1921
        %2050 = vst [vmem:[%s238 + $0x8] sm:$0xff] %v1922
        %2051 = vst [vmem:[%s238 + $0x10] sm:$0xff] %v1923
        %2052 = vst [vmem:[%s238 + $0x18] sm:$0xff] %v1924
        %2053 = vst [vmem:[%s238 + $0x20] sm:$0xff] %v1925
        %2054 = vst [vmem:[%s238 + $0x28] sm:$0xff] %v1926
        %2055 = vst [vmem:[%s238 + $0x30] sm:$0xff] %v1927
        %2056 = vst [vmem:[%s238 + $0x38] sm:$0xff] %v1928
        %2057 = vst [vmem:[%s238 + $0x40] sm:$0xff] %v1929
        %2058 = vst [vmem:[%s238 + $0x48] sm:$0xff] %v1930
        %2059 = vst [vmem:[%s238 + $0x50] sm:$0xff] %v1931
        %2060 = vst [vmem:[%s238 + $0x58] sm:$0xff] %v1932
        %2061 = vst [vmem:[%s238 + $0x60] sm:$0xff] %v1933
        %2062 = vst [vmem:[%s238 + $0x68] sm:$0xff] %v1934
        %2063 = vst [vmem:[%s238 + $0x70] sm:$0xff] %v1935
        %2064 = vst [vmem:[%s238 + $0x78] sm:$0xff] %v1936
        %2065 = vst [vmem:[%s238 + $0x80] sm:$0xff] %v1937
        %2066 = vst [vmem:[%s238 + $0x88] sm:$0xff] %v1938
        %2067 = vst [vmem:[%s238 + $0x90] sm:$0xff] %v1939
        %2068 = vst [vmem:[%s238 + $0x98] sm:$0xff] %v1940
        %2069 = vst [vmem:[%s238 + $0xa0] sm:$0xff] %v1941
        %2070 = vst [vmem:[%s238 + $0xa8] sm:$0xff] %v1942
        %2071 = vst [vmem:[%s238 + $0xb0] sm:$0xff] %v1943
        %2072 = vst [vmem:[%s238 + $0xb8] sm:$0xff] %v1944
        %2073 = vst [vmem:[%s238 + $0xc0] sm:$0xff] %v1945
        %2074 = vst [vmem:[%s238 + $0xc8] sm:$0xff] %v1946
        %2075 = vst [vmem:[%s238 + $0xd0] sm:$0xff] %v1947
        %2076 = vst [vmem:[%s238 + $0xd8] sm:$0xff] %v1948
        %2077 = vst [vmem:[%s238 + $0xe0] sm:$0xff] %v1949
        %2078 = vst [vmem:[%s238 + $0xe8] sm:$0xff] %v1950
        %2079 = vst [vmem:[%s238 + $0xf0] sm:$0xff] %v1951
        %2080 = vst [vmem:[%s238 + $0xf8] sm:$0xff] %v1952
        %2081 = vst [vmem:[%s238 + $0x100] sm:$0xff] %v1953
        %2082 = vst [vmem:[%s238 + $0x108] sm:$0xff] %v1954
        %2083 = vst [vmem:[%s238 + $0x110] sm:$0xff] %v1955
        %2084 = vst [vmem:[%s238 + $0x118] sm:$0xff] %v1956
        %2085 = vst [vmem:[%s238 + $0x120] sm:$0xff] %v1957
        %2086 = vst [vmem:[%s238 + $0x128] sm:$0xff] %v1958
        %2087 = vst [vmem:[%s238 + $0x130] sm:$0xff] %v1959
        %2088 = vst [vmem:[%s238 + $0x138] sm:$0xff] %v1960
        %2089 = vst [vmem:[%s238 + $0x140] sm:$0xff] %v1961
        %2090 = vst [vmem:[%s238 + $0x148] sm:$0xff] %v1962
        %2091 = vst [vmem:[%s238 + $0x150] sm:$0xff] %v1963
        %2092 = vst [vmem:[%s238 + $0x158] sm:$0xff] %v1964
        %2093 = vst [vmem:[%s238 + $0x160] sm:$0xff] %v1965
        %2094 = vst [vmem:[%s238 + $0x168] sm:$0xff] %v1966
        %2095 = vst [vmem:[%s238 + $0x170] sm:$0xff] %v1967
        %2096 = vst [vmem:[%s238 + $0x178] sm:$0xff] %v1968
        %2097 = vst [vmem:[%s238 + $0x180] sm:$0xff] %v1969
        %2098 = vst [vmem:[%s238 + $0x188] sm:$0xff] %v1970
        %2099 = vst [vmem:[%s238 + $0x190] sm:$0xff] %v1971
        %2100 = vst [vmem:[%s238 + $0x198] sm:$0xff] %v1972
        %2101 = vst [vmem:[%s238 + $0x1a0] sm:$0xff] %v1973
        %2102 = vst [vmem:[%s238 + $0x1a8] sm:$0xff] %v1974
        %2103 = vst [vmem:[%s238 + $0x1b0] sm:$0xff] %v1975
        %2104 = vst [vmem:[%s238 + $0x1b8] sm:$0xff] %v1976
        %2105 = vst [vmem:[%s238 + $0x1c0] sm:$0xff] %v1977
        %2106 = vst [vmem:[%s238 + $0x1c8] sm:$0xff] %v1978
        %2107 = vst [vmem:[%s238 + $0x1d0] sm:$0xff] %v1979
        %2108 = vst [vmem:[%s238 + $0x1d8] sm:$0xff] %v1980
        %2109 = vst [vmem:[%s238 + $0x1e0] sm:$0xff] %v1981
        %2110 = vst [vmem:[%s238 + $0x1e8] sm:$0xff] %v1982
        %2111 = vst [vmem:[%s238 + $0x1f0] sm:$0xff] %v1983
        %2112 = vst [vmem:[%s238 + $0x1f8] sm:$0xff] %v1984
        %2113 = vst [vmem:[%s238 + $0x200] sm:$0xff] %v1985
        %2114 = vst [vmem:[%s238 + $0x208] sm:$0xff] %v1986
        %2115 = vst [vmem:[%s238 + $0x210] sm:$0xff] %v1987
        %2116 = vst [vmem:[%s238 + $0x218] sm:$0xff] %v1988
        %2117 = vst [vmem:[%s238 + $0x220] sm:$0xff] %v1989
        %2118 = vst [vmem:[%s238 + $0x228] sm:$0xff] %v1990
        %2119 = vst [vmem:[%s238 + $0x230] sm:$0xff] %v1991
        %2120 = vst [vmem:[%s238 + $0x238] sm:$0xff] %v1992
        %2121 = vst [vmem:[%s238 + $0x240] sm:$0xff] %v1993
        %2122 = vst [vmem:[%s238 + $0x248] sm:$0xff] %v1994
        %2123 = vst [vmem:[%s238 + $0x250] sm:$0xff] %v1995
        %2124 = vst [vmem:[%s238 + $0x258] sm:$0xff] %v1996
        %2125 = vst [vmem:[%s238 + $0x260] sm:$0xff] %v1997
        %2126 = vst [vmem:[%s238 + $0x268] sm:$0xff] %v1998
        %2127 = vst [vmem:[%s238 + $0x270] sm:$0xff] %v1999
        %2128 = vst [vmem:[%s238 + $0x278] sm:$0xff] %v2000
        %2129 = vst [vmem:[%s238 + $0x280] sm:$0xff] %v2001
        %2130 = vst [vmem:[%s238 + $0x288] sm:$0xff] %v2002
        %2131 = vst [vmem:[%s238 + $0x290] sm:$0xff] %v2003
        %2132 = vst [vmem:[%s238 + $0x298] sm:$0xff] %v2004
        %2133 = vst [vmem:[%s238 + $0x2a0] sm:$0xff] %v2005
        %2134 = vst [vmem:[%s238 + $0x2a8] sm:$0xff] %v2006
        %2135 = vst [vmem:[%s238 + $0x2b0] sm:$0xff] %v2007
        %2136 = vst [vmem:[%s238 + $0x2b8] sm:$0xff] %v2008
        %2137 = vst [vmem:[%s238 + $0x2c0] sm:$0xff] %v2009
        %2138 = vst [vmem:[%s238 + $0x2c8] sm:$0xff] %v2010
        %2139 = vst [vmem:[%s238 + $0x2d0] sm:$0xff] %v2011
        %2140 = vst [vmem:[%s238 + $0x2d8] sm:$0xff] %v2012
        %2141 = vst [vmem:[%s238 + $0x2e0] sm:$0xff] %v2013
        %2142 = vst [vmem:[%s238 + $0x2e8] sm:$0xff] %v2014
        %2143 = vst [vmem:[%s238 + $0x2f0] sm:$0xff] %v2015
        %2144 = vst [vmem:[%s238 + $0x2f8] sm:$0xff] %v2016
        %2145 = vst [vmem:[%s238 + $0x300] sm:$0xff] %v2017
        %2146 = vst [vmem:[%s238 + $0x308] sm:$0xff] %v2018
        %2147 = vst [vmem:[%s238 + $0x310] sm:$0xff] %v2019
        %2148 = vst [vmem:[%s238 + $0x318] sm:$0xff] %v2020
        %2149 = vst [vmem:[%s238 + $0x320] sm:$0xff] %v2021
        %2150 = vst [vmem:[%s238 + $0x328] sm:$0xff] %v2022
        %2151 = vst [vmem:[%s238 + $0x330] sm:$0xff] %v2023
        %2152 = vst [vmem:[%s238 + $0x338] sm:$0xff] %v2024
        %2153 = vst [vmem:[%s238 + $0x340] sm:$0xff] %v2025
        %2154 = vst [vmem:[%s238 + $0x348] sm:$0xff] %v2026
        %2155 = vst [vmem:[%s238 + $0x350] sm:$0xff] %v2027
        %2156 = vst [vmem:[%s238 + $0x358] sm:$0xff] %v2028
        %2157 = vst [vmem:[%s238 + $0x360] sm:$0xff] %v2029
        %2158 = vst [vmem:[%s238 + $0x368] sm:$0xff] %v2030
        %2159 = vst [vmem:[%s238 + $0x370] sm:$0xff] %v2031
        %2160 = vst [vmem:[%s238 + $0x378] sm:$0xff] %v2032
        %2161 = vst [vmem:[%s238 + $0x380] sm:$0xff] %v2033
        %2162 = vst [vmem:[%s238 + $0x388] sm:$0xff] %v2034
        %2163 = vst [vmem:[%s238 + $0x390] sm:$0xff] %v2035
        %2164 = vst [vmem:[%s238 + $0x398] sm:$0xff] %v2036
        %2165 = vst [vmem:[%s238 + $0x3a0] sm:$0xff] %v2037
        %2166 = vst [vmem:[%s238 + $0x3a8] sm:$0xff] %v2038
        %2167 = vst [vmem:[%s238 + $0x3b0] sm:$0xff] %v2039
        %2168 = vst [vmem:[%s238 + $0x3b8] sm:$0xff] %v2040
        %2169 = vst [vmem:[%s238 + $0x3c0] sm:$0xff] %v2041
        %2170 = vst [vmem:[%s238 + $0x3c8] sm:$0xff] %v2042
        %2171 = vst [vmem:[%s238 + $0x3d0] sm:$0xff] %v2043
        %2172 = vst [vmem:[%s238 + $0x3d8] sm:$0xff] %v2044
        %2173 = vst [vmem:[%s238 + $0x3e0] sm:$0xff] %v2045
        %2174 = vst [vmem:[%s238 + $0x3e8] sm:$0xff] %v2046
        %2175 = vst [vmem:[%s238 + $0x3f0] sm:$0xff] %v2047
        %2176 = vst [vmem:[%s238 + $0x3f8] sm:$0xff] %v2048
      $region52: #{dogs_cats_forward.5} parent=39 // pred_fallthru
        _
      %s2177 = smul.u32 128, %s21
      %p2178 = scmp.lt.s32.totalorder %s2177, 255
      %s2179 = scalar_select %p2178, %s2177, 255
      %s2180 = smul.addr %s2179, 8
      %s2181 = scalar_lea.vmem %s5, %s2180
      // Predicated region
      $region53: #{dogs_cats_forward.5} parent=39 // pred_check
        %p2182 = pneg %p156
      $region54: #{dogs_cats_forward.5} parent=39 // pred_check_branch
        %2184 = sbr.rel (%p2182) target = $region56
      $region55: #{dogs_cats_forward.5} parent=39 // pred_region
        %s2185 = smul.u32 128, %s21
      $region56: #{dogs_cats_forward.5} parent=39 // pred_fallthru
        _
    $region40: #{dogs_cats_forward.5} parent=5 // pred_fallthru
      _
    %p2186 = scmp.le.s32.totalorder 2, %s11
    // Predicated region
    $region57: #{dogs_cats_forward.5} parent=5 // pred_check
      %p2187 = pneg %p2186
    $region58: #{dogs_cats_forward.5} parent=5 // pred_check_branch
      %2189 = sbr.rel (%p2187) target = $region60
    $region59: #{dogs_cats_forward.5} parent=5 // pred_region
      %s2190 = ssub.s32 %s11, 2
      // Predicated region
      $region61: #{dogs_cats_forward.5} parent=59 // pred_check
        %p2191 = pneg %p162
      $region62: #{dogs_cats_forward.5} parent=59 // pred_check_branch
        %2193 = sbr.rel (%p2191) target = $region64
      $region63: #{dogs_cats_forward.5} parent=59 // pred_region
        %s2194 = smul.u32 128, %s23
        %p2195 = scmp.lt.s32.totalorder %s2194, 255
        %s2196 = scalar_select %p2195, %s2194, 255
        %s2197 = smul.addr %s2196, 8
        %s2198 = scalar_lea.vmem %s5, %s2197
      $region64: #{dogs_cats_forward.5} parent=59 // pred_fallthru
        _
    $region60: #{dogs_cats_forward.5} parent=5 // pred_fallthru
      _
  $region6: #{dogs_cats_forward.5} parent=0 // loop_footer
    %s15 = sadd.s32 1, %s11
  $region7: #{dogs_cats_forward.5} parent=0 // loop_footer_branch
    %10 = sbr.rel target = $region3
  $region8: #{dogs_cats_forward.5} parent=0 // loop_exit
    _

// kernel: dogs_cats_forward.6
$region0: #{dogs_cats_forward.6}
  #allocation0 [shape = 'u32[]', space=smem, size = 0x4, offset = 0x4, fixed_abs, tag = 'smem constant byte address 0x4 - core index']
  #allocation1 [shape = 'u32[144,128]{1,0:T(1,128)}', space=vmem, size = 0x12000, scoped, tag = 'internal scratch']
  #allocation2 [shape = 'f32[1,128]{1,0:T(1,128)}', space=vmem, size = 0x200, scoped, tag = 'scratch operand']
  #allocation3 [shape = 'f32[1,128]{1,0:T(1,128)}', space=vmem, size = 0x200, scoped, tag = 'scratch operand']
  %s0 = inlined_call_operand.vmem [shape: f32[512,256], index: 0, kind: input, shape index: {}]
  %s1 = inlined_call_operand.vmem [shape: f32[256,128], index: 1, kind: input, shape index: {}]
  %s2 = inlined_call_operand.vmem [shape: f32[1,128], index: 2, kind: input, shape index: {}]
  %s3 = inlined_call_operand.vmem [shape: f32[1,128], index: 3, kind: input, shape index: {}]
  %s4 = inlined_call_operand.vmem [shape: f32[1,128], index: 4, kind: input, shape index: {}]
  %s5 = inlined_call_operand.vmem [shape: f32[512,128], index: 5, kind: output, shape index: {}]
  %s6 = sld [smem:[#allocation0]]
  $region65: #{dogs_cats_forward.6} parent=0
    _
  %s8 = ssub.s32 1, %s6
  %s9 = scalar_select 0, %s8, %s6
  loop: start=0, step=1, limit=4
  $region2: #{dogs_cats_forward.6} parent=0 // loop_pre_header
    _
  $region3: #{dogs_cats_forward.6} parent=0 // loop_header
    %s11 = sphi 0, %s15
    %p12 = scmp.ge.s32.totalorder %s11, 4
    %s18 = sphi 0, %s30
    %s19 = sphi 0, %s26
    %s20 = sphi 0, %s18
    %s21 = sphi 0, %s19
    %s22 = sphi 0, %s20
    %s23 = sphi 0, %s21
    %s33 = sphi 0, %s35
    %s36 = sphi 0, %s33
    %s37 = sphi 0, %s36
    %s53 = sphi 0, %s37
    %s57 = sphi 0, %s57
    %s59 = sphi 0, %s57
    %s60 = sphi 0, %s59
    %s74 = sphi 0, %s60
    %s78 = sphi 0, %s78
    %s80 = sphi 0, %s78
    %s81 = sphi 0, %s80
    %s95 = sphi 0, %s81
    %s99 = sphi 0, %s99
    %s101 = sphi 0, %s99
    %s102 = sphi 0, %s101
    %s116 = sphi 0, %s102
    %s120 = sphi 0, %s120
    %s122 = sphi 0, %s120
    %s123 = sphi 0, %s122
    %s137 = sphi 0, %s123
    %s143 = sphi 0, %s145
    %s146 = sphi 0, %s143
    %s147 = sphi 0, %s146
    %s163 = sphi 0, %s147
  $region4: #{dogs_cats_forward.6} parent=0 // loop_header_branch
    %14 = sbr.rel (%p12) target = $region8
  $region5: #{dogs_cats_forward.6} parent=0 // loop_body
    %s16 = ssub.s32 %s11, 1
    %s17 = ssub.s32 %s11, 2
    %s24 = sadd.s32 1, %s19
    %p25 = scmp.ge.s32.totalorder %s24, 1
    %s26 = scalar_select %p25, 0, %s24
    %s27 = sadd.s32 1, %s18
    %s28 = scalar_select %p25, %s27, %s18
    %p29 = scmp.ge.s32.totalorder %s28, 2
    %s30 = scalar_select %p29, 0, %s28
    %s31 = ssub.s32 %s19, %s26
    %p32 = scmp.eq.s32.totalorder %s31, 0
    %s34 = sadd.s32 %s33, 1
    %s35 = scalar_select %p32, %s33, %s34
    %p38 = pneg %p32
    %p39 = scmp.eq.s32.totalorder %s11, 1
    %p40 = por %p38, %p39
    %p41 = scmp.ne.s32.totalorder %s33, %s36
    %p42 = scmp.eq.s32.totalorder %s11, 0
    %p43 = por %p41, %p42
    %p44 = scmp.ne.s32.totalorder %s33, %s36
    %p45 = scmp.eq.s32.totalorder %s16, 1
    %p46 = por %p44, %p45
    %p47 = scmp.ne.s32.totalorder %s36, %s37
    %p48 = scmp.eq.s32.totalorder %s16, 0
    %p49 = por %p47, %p48
    %p50 = scmp.ne.s32.totalorder %s36, %s37
    %p51 = scmp.eq.s32.totalorder %s17, 1
    %p52 = por %p50, %p51
    %p54 = scmp.ne.s32.totalorder %s37, %s53
    %p55 = scmp.eq.s32.totalorder %s17, 0
    %p56 = por %p54, %p55
    %s58 = sadd.s32 %s57, 1
    %p61 = scmp.eq.s32.totalorder %s11, 1
    %p62 = scmp.ne.s32.totalorder %s57, %s59
    %p63 = scmp.eq.s32.totalorder %s11, 0
    %p64 = por %p62, %p63
    %p65 = scmp.ne.s32.totalorder %s57, %s59
    %p66 = scmp.eq.s32.totalorder %s16, 1
    %p67 = por %p65, %p66
    %p68 = scmp.ne.s32.totalorder %s59, %s60
    %p69 = scmp.eq.s32.totalorder %s16, 0
    %p70 = por %p68, %p69
    %p71 = scmp.ne.s32.totalorder %s59, %s60
    %p72 = scmp.eq.s32.totalorder %s17, 1
    %p73 = por %p71, %p72
    %p75 = scmp.ne.s32.totalorder %s60, %s74
    %p76 = scmp.eq.s32.totalorder %s17, 0
    %p77 = por %p75, %p76
    %s79 = sadd.s32 %s78, 1
    %p82 = scmp.eq.s32.totalorder %s11, 1
    %p83 = scmp.ne.s32.totalorder %s78, %s80
    %p84 = scmp.eq.s32.totalorder %s11, 0
    %p85 = por %p83, %p84
    %p86 = scmp.ne.s32.totalorder %s78, %s80
    %p87 = scmp.eq.s32.totalorder %s16, 1
    %p88 = por %p86, %p87
    %p89 = scmp.ne.s32.totalorder %s80, %s81
    %p90 = scmp.eq.s32.totalorder %s16, 0
    %p91 = por %p89, %p90
    %p92 = scmp.ne.s32.totalorder %s80, %s81
    %p93 = scmp.eq.s32.totalorder %s17, 1
    %p94 = por %p92, %p93
    %p96 = scmp.ne.s32.totalorder %s81, %s95
    %p97 = scmp.eq.s32.totalorder %s17, 0
    %p98 = por %p96, %p97
    %s100 = sadd.s32 %s99, 1
    %p103 = scmp.eq.s32.totalorder %s11, 1
    %p104 = scmp.ne.s32.totalorder %s99, %s101
    %p105 = scmp.eq.s32.totalorder %s11, 0
    %p106 = por %p104, %p105
    %p107 = scmp.ne.s32.totalorder %s99, %s101
    %p108 = scmp.eq.s32.totalorder %s16, 1
    %p109 = por %p107, %p108
    %p110 = scmp.ne.s32.totalorder %s101, %s102
    %p111 = scmp.eq.s32.totalorder %s16, 0
    %p112 = por %p110, %p111
    %p113 = scmp.ne.s32.totalorder %s101, %s102
    %p114 = scmp.eq.s32.totalorder %s17, 1
    %p115 = por %p113, %p114
    %p117 = scmp.ne.s32.totalorder %s102, %s116
    %p118 = scmp.eq.s32.totalorder %s17, 0
    %p119 = por %p117, %p118
    %s121 = sadd.s32 %s120, 1
    %p124 = scmp.eq.s32.totalorder %s11, 1
    %p125 = scmp.ne.s32.totalorder %s120, %s122
    %p126 = scmp.eq.s32.totalorder %s11, 0
    %p127 = por %p125, %p126
    %p128 = scmp.ne.s32.totalorder %s120, %s122
    %p129 = scmp.eq.s32.totalorder %s16, 1
    %p130 = por %p128, %p129
    %p131 = scmp.ne.s32.totalorder %s122, %s123
    %p132 = scmp.eq.s32.totalorder %s16, 0
    %p133 = por %p131, %p132
    %p134 = scmp.ne.s32.totalorder %s122, %s123
    %p135 = scmp.eq.s32.totalorder %s17, 1
    %p136 = por %p134, %p135
    %p138 = scmp.ne.s32.totalorder %s123, %s137
    %p139 = scmp.eq.s32.totalorder %s17, 0
    %p140 = por %p138, %p139
    %s141 = ssub.s32 %s19, %s26
    %p142 = scmp.eq.s32.totalorder %s141, 0
    %s144 = sadd.s32 %s143, 1
    %s145 = scalar_select %p142, %s143, %s144
    %p148 = pneg %p142
    %p149 = scmp.eq.s32.totalorder %s11, 1
    %p150 = por %p148, %p149
    %p151 = scmp.ne.s32.totalorder %s143, %s146
    %p152 = scmp.eq.s32.totalorder %s11, 0
    %p153 = por %p151, %p152
    %p154 = scmp.ne.s32.totalorder %s143, %s146
    %p155 = scmp.eq.s32.totalorder %s16, 1
    %p156 = por %p154, %p155
    %p157 = scmp.ne.s32.totalorder %s146, %s147
    %p158 = scmp.eq.s32.totalorder %s16, 0
    %p159 = por %p157, %p158
    %p160 = scmp.ne.s32.totalorder %s146, %s147
    %p161 = scmp.eq.s32.totalorder %s17, 1
    %p162 = por %p160, %p161
    %p164 = scmp.ne.s32.totalorder %s147, %s163
    %p165 = scmp.eq.s32.totalorder %s17, 0
    %p166 = por %p164, %p165
    %p167 = scmp.le.s32.totalorder 1, %s11
    %p168 = scmp.lt.s32.totalorder %s11, 3
    %p169 = pnand %p167, %p168
    %p170 = pneg %p169
    // Predicated region
    $region9: #{dogs_cats_forward.6} parent=5 // pred_check
      _
    $region10: #{dogs_cats_forward.6} parent=5 // pred_check_branch
      %172 = sbr.rel (%p169) target = $region12
    $region11: #{dogs_cats_forward.6} parent=5 // pred_region
      %s173 = ssub.s32 %s11, 1
      // Predicated region
      $region13: #{dogs_cats_forward.6} parent=11 // pred_check
        %p174 = pneg %p49
      $region14: #{dogs_cats_forward.6} parent=11 // pred_check_branch
        %176 = sbr.rel (%p174) target = $region16
      $region15: #{dogs_cats_forward.6} parent=11 // pred_region
        %s177 = smul.u32 64, %s21
        %p178 = scmp.lt.s32.totalorder %s177, 63
        %s179 = scalar_select %p178, %s177, 63
        %s180 = smul.addr %s179, 2
        %s181 = smul.addr %s180, 8
        %s182 = scalar_lea.vmem %s0, %s181
        %s183 = smul.u32 64, %s21
      $region16: #{dogs_cats_forward.6} parent=11 // pred_fallthru
        _
      // Predicated region
      $region17: #{dogs_cats_forward.6} parent=11 // pred_check
        %p184 = pneg %p70
      $region18: #{dogs_cats_forward.6} parent=11 // pred_check_branch
        %186 = sbr.rel (%p184) target = $region20
      $region19: #{dogs_cats_forward.6} parent=11 // pred_region
        _
      $region20: #{dogs_cats_forward.6} parent=11 // pred_fallthru
        _
      // Predicated region
      $region21: #{dogs_cats_forward.6} parent=11 // pred_check
        %p187 = pneg %p91
      $region22: #{dogs_cats_forward.6} parent=11 // pred_check_branch
        %189 = sbr.rel (%p187) target = $region24
      $region23: #{dogs_cats_forward.6} parent=11 // pred_region
        _
      $region24: #{dogs_cats_forward.6} parent=11 // pred_fallthru
        _
      // Predicated region
      $region25: #{dogs_cats_forward.6} parent=11 // pred_check
        %p190 = pneg %p112
      $region26: #{dogs_cats_forward.6} parent=11 // pred_check_branch
        %192 = sbr.rel (%p190) target = $region28
      $region27: #{dogs_cats_forward.6} parent=11 // pred_region
        _
      $region28: #{dogs_cats_forward.6} parent=11 // pred_fallthru
        _
      // Predicated region
      $region29: #{dogs_cats_forward.6} parent=11 // pred_check
        %p193 = pneg %p133
      $region30: #{dogs_cats_forward.6} parent=11 // pred_check_branch
        %195 = sbr.rel (%p193) target = $region32
      $region31: #{dogs_cats_forward.6} parent=11 // pred_region
        _
      $region32: #{dogs_cats_forward.6} parent=11 // pred_fallthru
        _
    $region12: #{dogs_cats_forward.6} parent=5 // pred_fallthru
      _
    %p196 = scmp.lt.s32.totalorder %s11, 2
    // Predicated region
    $region33: #{dogs_cats_forward.6} parent=5 // pred_check
      %p197 = pneg %p196
    $region34: #{dogs_cats_forward.6} parent=5 // pred_check_branch
      %199 = sbr.rel (%p197) target = $region36
    $region35: #{dogs_cats_forward.6} parent=5 // pred_region
      _
    $region36: #{dogs_cats_forward.6} parent=5 // pred_fallthru
      _
    %p200 = scmp.le.s32.totalorder 1, %s11
    %p201 = scmp.lt.s32.totalorder %s11, 3
    %p202 = pnand %p200, %p201
    %p203 = pneg %p202
    // Predicated region
    $region37: #{dogs_cats_forward.6} parent=5 // pred_check
      _
    $region38: #{dogs_cats_forward.6} parent=5 // pred_check_branch
      %205 = sbr.rel (%p202) target = $region40
    $region39: #{dogs_cats_forward.6} parent=5 // pred_region
      %s206 = ssub.s32 %s11, 1
      %s207 = smul.u32 64, %s21
      %p208 = scmp.lt.s32.totalorder %s207, 63
      %s209 = scalar_select %p208, %s207, 63
      %s210 = smul.addr %s209, 2
      %s211 = smul.addr %s210, 8
      %s212 = scalar_lea.vmem %s0, %s211
      %p213 = pneg %p49
      %p214 = pneg %p46
      %p215 = pneg %p70
      %p216 = pneg %p67
      %p217 = pneg %p91
      %p218 = pneg %p88
      %p219 = pneg %p112
      %p220 = pneg %p109
      %p221 = pneg %p133
      %p222 = pneg %p130
      %p223 = pneg %p159
      %p224 = pneg %p156
      %s225 = smul.u32 64, %s21
      %p226 = scmp.lt.s32.totalorder %s225, 63
      %s227 = scalar_select %p226, %s225, 63
      %s228 = smul.addr %s227, 8
      %s229 = scalar_lea.vmem %s5, %s228
      %s230 = smul.u32 64, %s21
      %p231 = scmp.lt.s32.totalorder %s230, 63
      %s232 = scalar_select %p231, %s230, 63
      %s233 = smul.addr %s232, 2
      %s234 = smul.addr %s233, 8
      %s235 = scalar_lea.vmem %s0, %s234
      %s236 = smul.u32 64, %s21
      %s237 = smul.u32 64, %s21
      %p238 = scmp.lt.s32.totalorder %s237, 63
      %s239 = scalar_select %p238, %s237, 63
      %s240 = smul.addr %s239, 8
      %s241 = scalar_lea.vmem %s5, %s240
      %s242 = smul.u32 64, %s21
      %v243 = vld [vmem:[%s235] sm:$0xff]
      %v244 = vld [vmem:[%s235 + $0x8] sm:$0xff]
      %v245 = vld [vmem:[%s235 + $0x10] sm:$0xff]
      %v246 = vld [vmem:[%s235 + $0x18] sm:$0xff]
      %v247 = vld [vmem:[%s235 + $0x20] sm:$0xff]
      %v248 = vld [vmem:[%s235 + $0x28] sm:$0xff]
      %v249 = vld [vmem:[%s235 + $0x30] sm:$0xff]
      %v250 = vld [vmem:[%s235 + $0x38] sm:$0xff]
      %v251 = vld [vmem:[%s235 + $0x40] sm:$0xff]
      %v252 = vld [vmem:[%s235 + $0x48] sm:$0xff]
      %v253 = vld [vmem:[%s235 + $0x50] sm:$0xff]
      %v254 = vld [vmem:[%s235 + $0x58] sm:$0xff]
      %v255 = vld [vmem:[%s235 + $0x60] sm:$0xff]
      %v256 = vld [vmem:[%s235 + $0x68] sm:$0xff]
      %v257 = vld [vmem:[%s235 + $0x70] sm:$0xff]
      %v258 = vld [vmem:[%s235 + $0x78] sm:$0xff]
      %v259 = vld [vmem:[%s235 + $0x80] sm:$0xff]
      %v260 = vld [vmem:[%s235 + $0x88] sm:$0xff]
      %v261 = vld [vmem:[%s235 + $0x90] sm:$0xff]
      %v262 = vld [vmem:[%s235 + $0x98] sm:$0xff]
      %v263 = vld [vmem:[%s235 + $0xa0] sm:$0xff]
      %v264 = vld [vmem:[%s235 + $0xa8] sm:$0xff]
      %v265 = vld [vmem:[%s235 + $0xb0] sm:$0xff]
      %v266 = vld [vmem:[%s235 + $0xb8] sm:$0xff]
      %v267 = vld [vmem:[%s235 + $0xc0] sm:$0xff]
      %v268 = vld [vmem:[%s235 + $0xc8] sm:$0xff]
      %v269 = vld [vmem:[%s235 + $0xd0] sm:$0xff]
      %v270 = vld [vmem:[%s235 + $0xd8] sm:$0xff]
      %v271 = vld [vmem:[%s235 + $0xe0] sm:$0xff]
      %v272 = vld [vmem:[%s235 + $0xe8] sm:$0xff]
      %v273 = vld [vmem:[%s235 + $0xf0] sm:$0xff]
      %v274 = vld [vmem:[%s235 + $0xf8] sm:$0xff]
      %v275 = vld [vmem:[%s235 + $0x100] sm:$0xff]
      %v276 = vld [vmem:[%s235 + $0x108] sm:$0xff]
      %v277 = vld [vmem:[%s235 + $0x110] sm:$0xff]
      %v278 = vld [vmem:[%s235 + $0x118] sm:$0xff]
      %v279 = vld [vmem:[%s235 + $0x120] sm:$0xff]
      %v280 = vld [vmem:[%s235 + $0x128] sm:$0xff]
      %v281 = vld [vmem:[%s235 + $0x130] sm:$0xff]
      %v282 = vld [vmem:[%s235 + $0x138] sm:$0xff]
      %v283 = vld [vmem:[%s235 + $0x140] sm:$0xff]
      %v284 = vld [vmem:[%s235 + $0x148] sm:$0xff]
      %v285 = vld [vmem:[%s235 + $0x150] sm:$0xff]
      %v286 = vld [vmem:[%s235 + $0x158] sm:$0xff]
      %v287 = vld [vmem:[%s235 + $0x160] sm:$0xff]
      %v288 = vld [vmem:[%s235 + $0x168] sm:$0xff]
      %v289 = vld [vmem:[%s235 + $0x170] sm:$0xff]
      %v290 = vld [vmem:[%s235 + $0x178] sm:$0xff]
      %v291 = vld [vmem:[%s235 + $0x180] sm:$0xff]
      %v292 = vld [vmem:[%s235 + $0x188] sm:$0xff]
      %v293 = vld [vmem:[%s235 + $0x190] sm:$0xff]
      %v294 = vld [vmem:[%s235 + $0x198] sm:$0xff]
      %v295 = vld [vmem:[%s235 + $0x1a0] sm:$0xff]
      %v296 = vld [vmem:[%s235 + $0x1a8] sm:$0xff]
      %v297 = vld [vmem:[%s235 + $0x1b0] sm:$0xff]
      %v298 = vld [vmem:[%s235 + $0x1b8] sm:$0xff]
      %v299 = vld [vmem:[%s235 + $0x1c0] sm:$0xff]
      %v300 = vld [vmem:[%s235 + $0x1c8] sm:$0xff]
      %v301 = vld [vmem:[%s235 + $0x1d0] sm:$0xff]
      %v302 = vld [vmem:[%s235 + $0x1d8] sm:$0xff]
      %v303 = vld [vmem:[%s235 + $0x1e0] sm:$0xff]
      %v304 = vld [vmem:[%s235 + $0x1e8] sm:$0xff]
      %v305 = vld [vmem:[%s235 + $0x1f0] sm:$0xff]
      %v306 = vld [vmem:[%s235 + $0x1f8] sm:$0xff]
      %v307 = vld [vmem:[%s235 + $0x200] sm:$0xff]
      %v308 = vld [vmem:[%s235 + $0x208] sm:$0xff]
      %v309 = vld [vmem:[%s235 + $0x210] sm:$0xff]
      %v310 = vld [vmem:[%s235 + $0x218] sm:$0xff]
      %v311 = vld [vmem:[%s235 + $0x220] sm:$0xff]
      %v312 = vld [vmem:[%s235 + $0x228] sm:$0xff]
      %v313 = vld [vmem:[%s235 + $0x230] sm:$0xff]
      %v314 = vld [vmem:[%s235 + $0x238] sm:$0xff]
      %v315 = vld [vmem:[%s235 + $0x240] sm:$0xff]
      %v316 = vld [vmem:[%s235 + $0x248] sm:$0xff]
      %v317 = vld [vmem:[%s235 + $0x250] sm:$0xff]
      %v318 = vld [vmem:[%s235 + $0x258] sm:$0xff]
      %v319 = vld [vmem:[%s235 + $0x260] sm:$0xff]
      %v320 = vld [vmem:[%s235 + $0x268] sm:$0xff]
      %v321 = vld [vmem:[%s235 + $0x270] sm:$0xff]
      %v322 = vld [vmem:[%s235 + $0x278] sm:$0xff]
      %v323 = vld [vmem:[%s235 + $0x280] sm:$0xff]
      %v324 = vld [vmem:[%s235 + $0x288] sm:$0xff]
      %v325 = vld [vmem:[%s235 + $0x290] sm:$0xff]
      %v326 = vld [vmem:[%s235 + $0x298] sm:$0xff]
      %v327 = vld [vmem:[%s235 + $0x2a0] sm:$0xff]
      %v328 = vld [vmem:[%s235 + $0x2a8] sm:$0xff]
      %v329 = vld [vmem:[%s235 + $0x2b0] sm:$0xff]
      %v330 = vld [vmem:[%s235 + $0x2b8] sm:$0xff]
      %v331 = vld [vmem:[%s235 + $0x2c0] sm:$0xff]
      %v332 = vld [vmem:[%s235 + $0x2c8] sm:$0xff]
      %v333 = vld [vmem:[%s235 + $0x2d0] sm:$0xff]
      %v334 = vld [vmem:[%s235 + $0x2d8] sm:$0xff]
      %v335 = vld [vmem:[%s235 + $0x2e0] sm:$0xff]
      %v336 = vld [vmem:[%s235 + $0x2e8] sm:$0xff]
      %v337 = vld [vmem:[%s235 + $0x2f0] sm:$0xff]
      %v338 = vld [vmem:[%s235 + $0x2f8] sm:$0xff]
      %v339 = vld [vmem:[%s235 + $0x300] sm:$0xff]
      %v340 = vld [vmem:[%s235 + $0x308] sm:$0xff]
      %v341 = vld [vmem:[%s235 + $0x310] sm:$0xff]
      %v342 = vld [vmem:[%s235 + $0x318] sm:$0xff]
      %v343 = vld [vmem:[%s235 + $0x320] sm:$0xff]
      %v344 = vld [vmem:[%s235 + $0x328] sm:$0xff]
      %v345 = vld [vmem:[%s235 + $0x330] sm:$0xff]
      %v346 = vld [vmem:[%s235 + $0x338] sm:$0xff]
      %v347 = vld [vmem:[%s235 + $0x340] sm:$0xff]
      %v348 = vld [vmem:[%s235 + $0x348] sm:$0xff]
      %v349 = vld [vmem:[%s235 + $0x350] sm:$0xff]
      %v350 = vld [vmem:[%s235 + $0x358] sm:$0xff]
      %v351 = vld [vmem:[%s235 + $0x360] sm:$0xff]
      %v352 = vld [vmem:[%s235 + $0x368] sm:$0xff]
      %v353 = vld [vmem:[%s235 + $0x370] sm:$0xff]
      %v354 = vld [vmem:[%s235 + $0x378] sm:$0xff]
      %v355 = vld [vmem:[%s235 + $0x380] sm:$0xff]
      %v356 = vld [vmem:[%s235 + $0x388] sm:$0xff]
      %v357 = vld [vmem:[%s235 + $0x390] sm:$0xff]
      %v358 = vld [vmem:[%s235 + $0x398] sm:$0xff]
      %v359 = vld [vmem:[%s235 + $0x3a0] sm:$0xff]
      %v360 = vld [vmem:[%s235 + $0x3a8] sm:$0xff]
      %v361 = vld [vmem:[%s235 + $0x3b0] sm:$0xff]
      %v362 = vld [vmem:[%s235 + $0x3b8] sm:$0xff]
      %v363 = vld [vmem:[%s235 + $0x3c0] sm:$0xff]
      %v364 = vld [vmem:[%s235 + $0x3c8] sm:$0xff]
      %v365 = vld [vmem:[%s235 + $0x3d0] sm:$0xff]
      %v366 = vld [vmem:[%s235 + $0x3d8] sm:$0xff]
      %v367 = vld [vmem:[%s235 + $0x3e0] sm:$0xff]
      %v368 = vld [vmem:[%s235 + $0x3e8] sm:$0xff]
      %v369 = vld [vmem:[%s235 + $0x3f0] sm:$0xff]
      %v370 = vld [vmem:[%s235 + $0x3f8] sm:$0xff]
      %v371 = vld [vmem:[%s1] sm:$0xff]
      %v372 = vld [vmem:[%s1 + $0x8] sm:$0xff]
      %v373 = vld [vmem:[%s1 + $0x10] sm:$0xff]
      %v374 = vld [vmem:[%s1 + $0x18] sm:$0xff]
      %v375 = vld [vmem:[%s1 + $0x20] sm:$0xff]
      %v376 = vld [vmem:[%s1 + $0x28] sm:$0xff]
      %v377 = vld [vmem:[%s1 + $0x30] sm:$0xff]
      %v378 = vld [vmem:[%s1 + $0x38] sm:$0xff]
      %v379 = vld [vmem:[%s1 + $0x40] sm:$0xff]
      %v380 = vld [vmem:[%s1 + $0x48] sm:$0xff]
      %v381 = vld [vmem:[%s1 + $0x50] sm:$0xff]
      %v382 = vld [vmem:[%s1 + $0x58] sm:$0xff]
      %v383 = vld [vmem:[%s1 + $0x60] sm:$0xff]
      %v384 = vld [vmem:[%s1 + $0x68] sm:$0xff]
      %v385 = vld [vmem:[%s1 + $0x70] sm:$0xff]
      %v386 = vld [vmem:[%s1 + $0x78] sm:$0xff]
      %v387 = vld [vmem:[%s1 + $0x80] sm:$0xff]
      %v388 = vld [vmem:[%s1 + $0x88] sm:$0xff]
      %v389 = vld [vmem:[%s1 + $0x90] sm:$0xff]
      %v390 = vld [vmem:[%s1 + $0x98] sm:$0xff]
      %v391 = vld [vmem:[%s1 + $0xa0] sm:$0xff]
      %v392 = vld [vmem:[%s1 + $0xa8] sm:$0xff]
      %v393 = vld [vmem:[%s1 + $0xb0] sm:$0xff]
      %v394 = vld [vmem:[%s1 + $0xb8] sm:$0xff]
      %v395 = vld [vmem:[%s1 + $0xc0] sm:$0xff]
      %v396 = vld [vmem:[%s1 + $0xc8] sm:$0xff]
      %v397 = vld [vmem:[%s1 + $0xd0] sm:$0xff]
      %v398 = vld [vmem:[%s1 + $0xd8] sm:$0xff]
      %v399 = vld [vmem:[%s1 + $0xe0] sm:$0xff]
      %v400 = vld [vmem:[%s1 + $0xe8] sm:$0xff]
      %v401 = vld [vmem:[%s1 + $0xf0] sm:$0xff]
      %v402 = vld [vmem:[%s1 + $0xf8] sm:$0xff]
      %v403 = vld [vmem:[%s2] sm:$0x1]
      %v405 = vlaneseq
      %v406 = vshrl.u32 %v405, 7
      %v407 = vsub.s32 0, %v406
      %v408 = vrot.slane %v403, %v407
      %410 = vmatprep.subr.mxu0 0.0
      %411 = vmatpush1.msra.mxu0 %v371
      %412 = vmatprep.subr.mxu0 0.0
      %413 = vmatpush1.msra.mxu0 %v372
      %414 = vmatprep.subr.mxu0 0.0
      %415 = vmatpush1.msra.mxu0 %v373
      %416 = vmatprep.subr.mxu0 0.0
      %417 = vmatpush1.msra.mxu0 %v374
      %418 = vmatprep.subr.mxu0 0.0
      %419 = vmatpush1.msra.mxu0 %v375
      %420 = vmatprep.subr.mxu0 0.0
      %421 = vmatpush1.msra.mxu0 %v376
      %422 = vmatprep.subr.mxu0 0.0
      %423 = vmatpush1.msra.mxu0 %v377
      %424 = vmatprep.subr.mxu0 0.0
      %425 = vmatpush1.msra.mxu0 %v378
      %426 = vmatprep.subr.mxu0 0.0
      %427 = vmatpush1.msra.mxu0 %v379
      %428 = vmatprep.subr.mxu0 0.0
      %429 = vmatpush1.msra.mxu0 %v380
      %430 = vmatprep.subr.mxu0 0.0
      %431 = vmatpush1.msra.mxu0 %v381
      %432 = vmatprep.subr.mxu0 0.0
      %433 = vmatpush1.msra.mxu0 %v382
      %434 = vmatprep.subr.mxu0 0.0
      %435 = vmatpush1.msra.mxu0 %v383
      %436 = vmatprep.subr.mxu0 0.0
      %437 = vmatpush1.msra.mxu0 %v384
      %438 = vmatprep.subr.mxu0 0.0
      %439 = vmatpush1.msra.mxu0 %v385
      %440 = vmatprep.subr.mxu0 0.0
      %441 = vmatpush1.msra.mxu0 %v386
      %442 = vmatprep.subr.mxu0 0.0
      %443 = vmatpush1.msra.mxu0 %v387
      %444 = vmatprep.subr.mxu0 0.0
      %445 = vmatpush1.msra.mxu0 %v388
      %446 = vmatprep.subr.mxu0 0.0
      %447 = vmatpush1.msra.mxu0 %v389
      %448 = vmatprep.subr.mxu0 0.0
      %449 = vmatpush1.msra.mxu0 %v390
      %450 = vmatprep.subr.mxu0 0.0
      %451 = vmatpush1.msra.mxu0 %v391
      %452 = vmatprep.subr.mxu0 0.0
      %453 = vmatpush1.msra.mxu0 %v392
      %454 = vmatprep.subr.mxu0 0.0
      %455 = vmatpush1.msra.mxu0 %v393
      %456 = vmatprep.subr.mxu0 0.0
      %457 = vmatpush1.msra.mxu0 %v394
      %458 = vmatprep.subr.mxu0 0.0
      %459 = vmatpush1.msra.mxu0 %v395
      %460 = vmatprep.subr.mxu0 0.0
      %461 = vmatpush1.msra.mxu0 %v396
      %462 = vmatprep.subr.mxu0 0.0
      %463 = vmatpush1.msra.mxu0 %v397
      %464 = vmatprep.subr.mxu0 0.0
      %465 = vmatpush1.msra.mxu0 %v398
      %466 = vmatprep.subr.mxu0 0.0
      %467 = vmatpush1.msra.mxu0 %v399
      %468 = vmatprep.subr.mxu0 0.0
      %469 = vmatpush1.msra.mxu0 %v400
      %470 = vmatprep.subr.mxu0 0.0
      %471 = vmatpush1.msra.mxu0 %v401
      %472 = vmatprep.subr.mxu0 0.0
      %473 = vmatpush1.msra.mxu0 %v402
      %474 = vmatprep.mubr.f32.mxu0 %v244
      %475 = vmatmul.mubr.f32.gmra.mrb[0].mxu0 %v243
      %v476 = vpop.f32.mrb[0].mxu0
      %v477 = vadd.f32 %v408, %v476
      %v478 = vpop.f32.mrb[0].mxu0
      %479 = vmatprep.mubr.f32.mxu0 %v246
      %480 = vmatmul.mubr.f32.gmra.mrb[0].mxu0 %v245
      %v481 = vpop.f32.mrb[0].mxu0
      %v482 = vadd.f32 %v408, %v481
      %v483 = vpop.f32.mrb[0].mxu0
      %484 = vmatprep.mubr.f32.mxu0 %v248
      %485 = vmatmul.mubr.f32.gmra.mrb[0].mxu0 %v247
      %v486 = vpop.f32.mrb[0].mxu0
      %v487 = vadd.f32 %v408, %v486
      %v488 = vpop.f32.mrb[0].mxu0
      %489 = vmatprep.mubr.f32.mxu0 %v250
      %490 = vmatmul.mubr.f32.gmra.mrb[0].mxu0 %v249
      %v491 = vpop.f32.mrb[0].mxu0
      %v492 = vadd.f32 %v408, %v491
      %v493 = vpop.f32.mrb[0].mxu0
      %494 = vmatprep.mubr.f32.mxu0 %v252
      %495 = vmatmul.mubr.f32.gmra.mrb[0].mxu0 %v251
      %v496 = vpop.f32.mrb[0].mxu0
      %v497 = vadd.f32 %v408, %v496
      %v498 = vpop.f32.mrb[0].mxu0
      %499 = vmatprep.mubr.f32.mxu0 %v254
      %500 = vmatmul.mubr.f32.gmra.mrb[0].mxu0 %v253
      %v501 = vpop.f32.mrb[0].mxu0
      %v502 = vadd.f32 %v408, %v501
      %v503 = vpop.f32.mrb[0].mxu0
      %504 = vmatprep.mubr.f32.mxu0 %v256
      %505 = vmatmul.mubr.f32.gmra.mrb[0].mxu0 %v255
      %v506 = vpop.f32.mrb[0].mxu0
      %v507 = vadd.f32 %v408, %v506
      %v508 = vpop.f32.mrb[0].mxu0
      %509 = vmatprep.mubr.f32.mxu0 %v258
      %510 = vmatmul.mubr.f32.gmra.mrb[0].mxu0 %v257
      %v511 = vpop.f32.mrb[0].mxu0
      %v512 = vadd.f32 %v408, %v511
      %v513 = vpop.f32.mrb[0].mxu0
      %514 = vmatprep.mubr.f32.mxu0 %v260
      %515 = vmatmul.mubr.f32.gmra.mrb[0].mxu0 %v259
      %v516 = vpop.f32.mrb[0].mxu0
      %v517 = vadd.f32 %v408, %v516
      %v518 = vpop.f32.mrb[0].mxu0
      %519 = vmatprep.mubr.f32.mxu0 %v262
      %520 = vmatmul.mubr.f32.gmra.mrb[0].mxu0 %v261
      %v521 = vpop.f32.mrb[0].mxu0
      %v522 = vadd.f32 %v408, %v521
      %v523 = vpop.f32.mrb[0].mxu0
      %524 = vmatprep.mubr.f32.mxu0 %v264
      %525 = vmatmul.mubr.f32.gmra.mrb[0].mxu0 %v263
      %v526 = vpop.f32.mrb[0].mxu0
      %v527 = vadd.f32 %v408, %v526
      %v528 = vpop.f32.mrb[0].mxu0
      %529 = vmatprep.mubr.f32.mxu0 %v266
      %530 = vmatmul.mubr.f32.gmra.mrb[0].mxu0 %v265
      %v531 = vpop.f32.mrb[0].mxu0
      %v532 = vadd.f32 %v408, %v531
      %v533 = vpop.f32.mrb[0].mxu0
      %534 = vmatprep.mubr.f32.mxu0 %v268
      %535 = vmatmul.mubr.f32.gmra.mrb[0].mxu0 %v267
      %v536 = vpop.f32.mrb[0].mxu0
      %v537 = vadd.f32 %v408, %v536
      %v538 = vpop.f32.mrb[0].mxu0
      %539 = vmatprep.mubr.f32.mxu0 %v270
      %540 = vmatmul.mubr.f32.gmra.mrb[0].mxu0 %v269
      %v541 = vpop.f32.mrb[0].mxu0
      %v542 = vadd.f32 %v408, %v541
      %v543 = vpop.f32.mrb[0].mxu0
      %544 = vmatprep.mubr.f32.mxu0 %v272
      %545 = vmatmul.mubr.f32.gmra.mrb[0].mxu0 %v271
      %v546 = vpop.f32.mrb[0].mxu0
      %v547 = vadd.f32 %v408, %v546
      %v548 = vpop.f32.mrb[0].mxu0
      %549 = vmatprep.mubr.f32.mxu0 %v274
      %550 = vmatmul.mubr.f32.gmra.mrb[0].mxu0 %v273
      %v551 = vpop.f32.mrb[0].mxu0
      %v552 = vadd.f32 %v408, %v551
      %v553 = vpop.f32.mrb[0].mxu0
      %554 = vmatprep.mubr.f32.mxu0 %v276
      %555 = vmatmul.mubr.f32.gmra.mrb[0].mxu0 %v275
      %v556 = vpop.f32.mrb[0].mxu0
      %v557 = vadd.f32 %v408, %v556
      %v558 = vpop.f32.mrb[0].mxu0
      %559 = vmatprep.mubr.f32.mxu0 %v278
      %560 = vmatmul.mubr.f32.gmra.mrb[0].mxu0 %v277
      %v561 = vpop.f32.mrb[0].mxu0
      %v562 = vadd.f32 %v408, %v561
      %v563 = vpop.f32.mrb[0].mxu0
      %564 = vmatprep.mubr.f32.mxu0 %v280
      %565 = vmatmul.mubr.f32.gmra.mrb[0].mxu0 %v279
      %v566 = vpop.f32.mrb[0].mxu0
      %v567 = vadd.f32 %v408, %v566
      %v568 = vpop.f32.mrb[0].mxu0
      %569 = vmatprep.mubr.f32.mxu0 %v282
      %570 = vmatmul.mubr.f32.gmra.mrb[0].mxu0 %v281
      %v571 = vpop.f32.mrb[0].mxu0
      %v572 = vadd.f32 %v408, %v571
      %v573 = vpop.f32.mrb[0].mxu0
      %574 = vmatprep.mubr.f32.mxu0 %v284
      %575 = vmatmul.mubr.f32.gmra.mrb[0].mxu0 %v283
      %v576 = vpop.f32.mrb[0].mxu0
      %v577 = vadd.f32 %v408, %v576
      %v578 = vpop.f32.mrb[0].mxu0
      %579 = vmatprep.mubr.f32.mxu0 %v286
      %580 = vmatmul.mubr.f32.gmra.mrb[0].mxu0 %v285
      %v581 = vpop.f32.mrb[0].mxu0
      %v582 = vadd.f32 %v408, %v581
      %v583 = vpop.f32.mrb[0].mxu0
      %584 = vmatprep.mubr.f32.mxu0 %v288
      %585 = vmatmul.mubr.f32.gmra.mrb[0].mxu0 %v287
      %v586 = vpop.f32.mrb[0].mxu0
      %v587 = vadd.f32 %v408, %v586
      %v588 = vpop.f32.mrb[0].mxu0
      %589 = vmatprep.mubr.f32.mxu0 %v290
      %590 = vmatmul.mubr.f32.gmra.mrb[0].mxu0 %v289
      %v591 = vpop.f32.mrb[0].mxu0
      %v592 = vadd.f32 %v408, %v591
      %v593 = vpop.f32.mrb[0].mxu0
      %594 = vmatprep.mubr.f32.mxu0 %v292
      %595 = vmatmul.mubr.f32.gmra.mrb[0].mxu0 %v291
      %v596 = vpop.f32.mrb[0].mxu0
      %v597 = vadd.f32 %v408, %v596
      %v598 = vpop.f32.mrb[0].mxu0
      %599 = vmatprep.mubr.f32.mxu0 %v294
      %600 = vmatmul.mubr.f32.gmra.mrb[0].mxu0 %v293
      %v601 = vpop.f32.mrb[0].mxu0
      %v602 = vadd.f32 %v408, %v601
      %v603 = vpop.f32.mrb[0].mxu0
      %604 = vmatprep.mubr.f32.mxu0 %v296
      %605 = vmatmul.mubr.f32.gmra.mrb[0].mxu0 %v295
      %v606 = vpop.f32.mrb[0].mxu0
      %v607 = vadd.f32 %v408, %v606
      %v608 = vpop.f32.mrb[0].mxu0
      %609 = vmatprep.mubr.f32.mxu0 %v298
      %610 = vmatmul.mubr.f32.gmra.mrb[0].mxu0 %v297
      %v611 = vpop.f32.mrb[0].mxu0
      %v612 = vadd.f32 %v408, %v611
      %v613 = vpop.f32.mrb[0].mxu0
      %614 = vmatprep.mubr.f32.mxu0 %v300
      %615 = vmatmul.mubr.f32.gmra.mrb[0].mxu0 %v299
      %v616 = vpop.f32.mrb[0].mxu0
      %v617 = vadd.f32 %v408, %v616
      %v618 = vpop.f32.mrb[0].mxu0
      %619 = vmatprep.mubr.f32.mxu0 %v302
      %620 = vmatmul.mubr.f32.gmra.mrb[0].mxu0 %v301
      %v621 = vpop.f32.mrb[0].mxu0
      %v622 = vadd.f32 %v408, %v621
      %v623 = vpop.f32.mrb[0].mxu0
      %624 = vmatprep.mubr.f32.mxu0 %v304
      %625 = vmatmul.mubr.f32.gmra.mrb[0].mxu0 %v303
      %v626 = vpop.f32.mrb[0].mxu0
      %v627 = vadd.f32 %v408, %v626
      %v628 = vpop.f32.mrb[0].mxu0
      %629 = vmatprep.mubr.f32.mxu0 %v306
      %630 = vmatmul.mubr.f32.gmra.mrb[0].mxu0 %v305
      %v631 = vpop.f32.mrb[0].mxu0
      %v632 = vadd.f32 %v408, %v631
      %v633 = vpop.f32.mrb[0].mxu0
      %634 = vmatprep.mubr.f32.mxu0 %v308
      %635 = vmatmul.mubr.f32.gmra.mrb[0].mxu0 %v307
      %v636 = vpop.f32.mrb[0].mxu0
      %v637 = vadd.f32 %v408, %v636
      %v638 = vpop.f32.mrb[0].mxu0
      %639 = vmatprep.mubr.f32.mxu0 %v310
      %640 = vmatmul.mubr.f32.gmra.mrb[0].mxu0 %v309
      %v641 = vpop.f32.mrb[0].mxu0
      %v642 = vadd.f32 %v408, %v641
      %v643 = vpop.f32.mrb[0].mxu0
      %644 = vmatprep.mubr.f32.mxu0 %v312
      %645 = vmatmul.mubr.f32.gmra.mrb[0].mxu0 %v311
      %v646 = vpop.f32.mrb[0].mxu0
      %v647 = vadd.f32 %v408, %v646
      %v648 = vpop.f32.mrb[0].mxu0
      %649 = vmatprep.mubr.f32.mxu0 %v314
      %650 = vmatmul.mubr.f32.gmra.mrb[0].mxu0 %v313
      %v651 = vpop.f32.mrb[0].mxu0
      %v652 = vadd.f32 %v408, %v651
      %v653 = vpop.f32.mrb[0].mxu0
      %654 = vmatprep.mubr.f32.mxu0 %v316
      %655 = vmatmul.mubr.f32.gmra.mrb[0].mxu0 %v315
      %v656 = vpop.f32.mrb[0].mxu0
      %v657 = vadd.f32 %v408, %v656
      %v658 = vpop.f32.mrb[0].mxu0
      %659 = vmatprep.mubr.f32.mxu0 %v318
      %660 = vmatmul.mubr.f32.gmra.mrb[0].mxu0 %v317
      %v661 = vpop.f32.mrb[0].mxu0
      %v662 = vadd.f32 %v408, %v661
      %v663 = vpop.f32.mrb[0].mxu0
      %664 = vmatprep.mubr.f32.mxu0 %v320
      %665 = vmatmul.mubr.f32.gmra.mrb[0].mxu0 %v319
      %v666 = vpop.f32.mrb[0].mxu0
      %v667 = vadd.f32 %v408, %v666
      %v668 = vpop.f32.mrb[0].mxu0
      %669 = vmatprep.mubr.f32.mxu0 %v322
      %670 = vmatmul.mubr.f32.gmra.mrb[0].mxu0 %v321
      %v671 = vpop.f32.mrb[0].mxu0
      %v672 = vadd.f32 %v408, %v671
      %v673 = vpop.f32.mrb[0].mxu0
      %674 = vmatprep.mubr.f32.mxu0 %v324
      %675 = vmatmul.mubr.f32.gmra.mrb[0].mxu0 %v323
      %v676 = vpop.f32.mrb[0].mxu0
      %v677 = vadd.f32 %v408, %v676
      %v678 = vpop.f32.mrb[0].mxu0
      %679 = vmatprep.mubr.f32.mxu0 %v326
      %680 = vmatmul.mubr.f32.gmra.mrb[0].mxu0 %v325
      %v681 = vpop.f32.mrb[0].mxu0
      %v682 = vadd.f32 %v408, %v681
      %v683 = vpop.f32.mrb[0].mxu0
      %684 = vmatprep.mubr.f32.mxu0 %v328
      %685 = vmatmul.mubr.f32.gmra.mrb[0].mxu0 %v327
      %v686 = vpop.f32.mrb[0].mxu0
      %v687 = vadd.f32 %v408, %v686
      %v688 = vpop.f32.mrb[0].mxu0
      %689 = vmatprep.mubr.f32.mxu0 %v330
      %690 = vmatmul.mubr.f32.gmra.mrb[0].mxu0 %v329
      %v691 = vpop.f32.mrb[0].mxu0
      %v692 = vadd.f32 %v408, %v691
      %v693 = vpop.f32.mrb[0].mxu0
      %694 = vmatprep.mubr.f32.mxu0 %v332
      %695 = vmatmul.mubr.f32.gmra.mrb[0].mxu0 %v331
      %v696 = vpop.f32.mrb[0].mxu0
      %v697 = vadd.f32 %v408, %v696
      %v698 = vpop.f32.mrb[0].mxu0
      %699 = vmatprep.mubr.f32.mxu0 %v334
      %700 = vmatmul.mubr.f32.gmra.mrb[0].mxu0 %v333
      %v701 = vpop.f32.mrb[0].mxu0
      %v702 = vadd.f32 %v408, %v701
      %v703 = vpop.f32.mrb[0].mxu0
      %704 = vmatprep.mubr.f32.mxu0 %v336
      %705 = vmatmul.mubr.f32.gmra.mrb[0].mxu0 %v335
      %v706 = vpop.f32.mrb[0].mxu0
      %v707 = vadd.f32 %v408, %v706
      %v708 = vpop.f32.mrb[0].mxu0
      %709 = vmatprep.mubr.f32.mxu0 %v338
      %710 = vmatmul.mubr.f32.gmra.mrb[0].mxu0 %v337
      %v711 = vpop.f32.mrb[0].mxu0
      %v712 = vadd.f32 %v408, %v711
      %v713 = vpop.f32.mrb[0].mxu0
      %714 = vmatprep.mubr.f32.mxu0 %v340
      %715 = vmatmul.mubr.f32.gmra.mrb[0].mxu0 %v339
      %v716 = vpop.f32.mrb[0].mxu0
      %v717 = vadd.f32 %v408, %v716
      %v718 = vpop.f32.mrb[0].mxu0
      %719 = vmatprep.mubr.f32.mxu0 %v342
      %720 = vmatmul.mubr.f32.gmra.mrb[0].mxu0 %v341
      %v721 = vpop.f32.mrb[0].mxu0
      %v722 = vadd.f32 %v408, %v721
      %v723 = vpop.f32.mrb[0].mxu0
      %724 = vmatprep.mubr.f32.mxu0 %v344
      %725 = vmatmul.mubr.f32.gmra.mrb[0].mxu0 %v343
      %v726 = vpop.f32.mrb[0].mxu0
      %v727 = vadd.f32 %v408, %v726
      %v728 = vpop.f32.mrb[0].mxu0
      %729 = vmatprep.mubr.f32.mxu0 %v346
      %730 = vmatmul.mubr.f32.gmra.mrb[0].mxu0 %v345
      %v731 = vpop.f32.mrb[0].mxu0
      %v732 = vadd.f32 %v408, %v731
      %v733 = vpop.f32.mrb[0].mxu0
      %734 = vmatprep.mubr.f32.mxu0 %v348
      %735 = vmatmul.mubr.f32.gmra.mrb[0].mxu0 %v347
      %v736 = vpop.f32.mrb[0].mxu0
      %v737 = vadd.f32 %v408, %v736
      %v738 = vpop.f32.mrb[0].mxu0
      %739 = vmatprep.mubr.f32.mxu0 %v350
      %740 = vmatmul.mubr.f32.gmra.mrb[0].mxu0 %v349
      %v741 = vpop.f32.mrb[0].mxu0
      %v742 = vadd.f32 %v408, %v741
      %v743 = vpop.f32.mrb[0].mxu0
      %744 = vmatprep.mubr.f32.mxu0 %v352
      %745 = vmatmul.mubr.f32.gmra.mrb[0].mxu0 %v351
      %v746 = vpop.f32.mrb[0].mxu0
      %v747 = vadd.f32 %v408, %v746
      %v748 = vpop.f32.mrb[0].mxu0
      %749 = vmatprep.mubr.f32.mxu0 %v354
      %750 = vmatmul.mubr.f32.gmra.mrb[0].mxu0 %v353
      %v751 = vpop.f32.mrb[0].mxu0
      %v752 = vadd.f32 %v408, %v751
      %v753 = vpop.f32.mrb[0].mxu0
      %754 = vmatprep.mubr.f32.mxu0 %v356
      %755 = vmatmul.mubr.f32.gmra.mrb[0].mxu0 %v355
      %v756 = vpop.f32.mrb[0].mxu0
      %v757 = vadd.f32 %v408, %v756
      %v758 = vpop.f32.mrb[0].mxu0
      %759 = vmatprep.mubr.f32.mxu0 %v358
      %760 = vmatmul.mubr.f32.gmra.mrb[0].mxu0 %v357
      %v761 = vpop.f32.mrb[0].mxu0
      %v762 = vadd.f32 %v408, %v761
      %v763 = vpop.f32.mrb[0].mxu0
      %764 = vmatprep.mubr.f32.mxu0 %v360
      %765 = vmatmul.mubr.f32.gmra.mrb[0].mxu0 %v359
      %v766 = vpop.f32.mrb[0].mxu0
      %v767 = vadd.f32 %v408, %v766
      %v768 = vpop.f32.mrb[0].mxu0
      %769 = vmatprep.mubr.f32.mxu0 %v362
      %770 = vmatmul.mubr.f32.gmra.mrb[0].mxu0 %v361
      %v771 = vpop.f32.mrb[0].mxu0
      %v772 = vadd.f32 %v408, %v771
      %v773 = vpop.f32.mrb[0].mxu0
      %774 = vmatprep.mubr.f32.mxu0 %v364
      %775 = vmatmul.mubr.f32.gmra.mrb[0].mxu0 %v363
      %v776 = vpop.f32.mrb[0].mxu0
      %v777 = vadd.f32 %v408, %v776
      %v778 = vpop.f32.mrb[0].mxu0
      %779 = vmatprep.mubr.f32.mxu0 %v366
      %780 = vmatmul.mubr.f32.gmra.mrb[0].mxu0 %v365
      %v781 = vpop.f32.mrb[0].mxu0
      %v782 = vadd.f32 %v408, %v781
      %v783 = vpop.f32.mrb[0].mxu0
      %784 = vmatprep.mubr.f32.mxu0 %v368
      %785 = vmatmul.mubr.f32.gmra.mrb[0].mxu0 %v367
      %v786 = vpop.f32.mrb[0].mxu0
      %v787 = vadd.f32 %v408, %v786
      %v788 = vpop.f32.mrb[0].mxu0
      %789 = vmatprep.mubr.f32.mxu0 %v370
      %790 = vmatmul.mubr.f32.gmra.mrb[0].mxu0 %v369
      %v791 = vpop.f32.mrb[0].mxu0
      %v792 = vadd.f32 %v408, %v791
      %v793 = vpop.f32.mrb[0].mxu0
      %794 = vdwg.mxu0
      %p795 = scmp.eq.s32.totalorder %s20, 0
      %p796 = scmp.eq.s32.totalorder %s21, 0
      %p797 = pnand %p795, %p796
      %p798 = pneg %p797
      // Predicated region
      $region41: #{dogs_cats_forward.6} parent=39 // pred_check
        _
      $region42: #{dogs_cats_forward.6} parent=39 // pred_check_branch
        %800 = sbr.rel (%p797) target = $region44
      $region43: #{dogs_cats_forward.6} parent=39 // pred_region
        %801 = vst [vmem:[#allocation2] sm:$0x1] 0.0
        %802 = vst [vmem:[#allocation3] sm:$0x1] 0.0
      $region44: #{dogs_cats_forward.6} parent=39 // pred_fallthru
        _
      // Predicated region
      $region45: #{dogs_cats_forward.6} parent=39 // pred_check
        %p803 = pneg %p795
      $region46: #{dogs_cats_forward.6} parent=39 // pred_check_branch
        %805 = sbr.rel (%p803) target = $region48
      $region47: #{dogs_cats_forward.6} parent=39 // pred_region
        %v806 = vld [vmem:[#allocation2] sm:$0x1]
        %v807 = vadd.f32 %v477, %v482
        %v808 = vadd.f32 %v807, %v487
        %v809 = vadd.f32 %v808, %v492
        %v810 = vadd.f32 %v809, %v497
        %v811 = vadd.f32 %v810, %v502
        %v812 = vadd.f32 %v811, %v507
        %v813 = vadd.f32 %v812, %v512
        %v814 = vadd.f32 %v813, %v517
        %v815 = vadd.f32 %v814, %v522
        %v816 = vadd.f32 %v815, %v527
        %v817 = vadd.f32 %v816, %v532
        %v818 = vadd.f32 %v817, %v537
        %v819 = vadd.f32 %v818, %v542
        %v820 = vadd.f32 %v819, %v547
        %v821 = vadd.f32 %v820, %v552
        %v822 = vadd.f32 %v821, %v557
        %v823 = vadd.f32 %v822, %v562
        %v824 = vadd.f32 %v823, %v567
        %v825 = vadd.f32 %v824, %v572
        %v826 = vadd.f32 %v825, %v577
        %v827 = vadd.f32 %v826, %v582
        %v828 = vadd.f32 %v827, %v587
        %v829 = vadd.f32 %v828, %v592
        %v830 = vadd.f32 %v829, %v597
        %v831 = vadd.f32 %v830, %v602
        %v832 = vadd.f32 %v831, %v607
        %v833 = vadd.f32 %v832, %v612
        %v834 = vadd.f32 %v833, %v617
        %v835 = vadd.f32 %v834, %v622
        %v836 = vadd.f32 %v835, %v627
        %v837 = vadd.f32 %v836, %v632
        %v838 = vadd.f32 %v837, %v637
        %v839 = vadd.f32 %v838, %v642
        %v840 = vadd.f32 %v839, %v647
        %v841 = vadd.f32 %v840, %v652
        %v842 = vadd.f32 %v841, %v657
        %v843 = vadd.f32 %v842, %v662
        %v844 = vadd.f32 %v843, %v667
        %v845 = vadd.f32 %v844, %v672
        %v846 = vadd.f32 %v845, %v677
        %v847 = vadd.f32 %v846, %v682
        %v848 = vadd.f32 %v847, %v687
        %v849 = vadd.f32 %v848, %v692
        %v850 = vadd.f32 %v849, %v697
        %v851 = vadd.f32 %v850, %v702
        %v852 = vadd.f32 %v851, %v707
        %v853 = vadd.f32 %v852, %v712
        %v854 = vadd.f32 %v853, %v717
        %v855 = vadd.f32 %v854, %v722
        %v856 = vadd.f32 %v855, %v727
        %v857 = vadd.f32 %v856, %v732
        %v858 = vadd.f32 %v857, %v737
        %v859 = vadd.f32 %v858, %v742
        %v860 = vadd.f32 %v859, %v747
        %v861 = vadd.f32 %v860, %v752
        %v862 = vadd.f32 %v861, %v757
        %v863 = vadd.f32 %v862, %v762
        %v864 = vadd.f32 %v863, %v767
        %v865 = vadd.f32 %v864, %v772
        %v866 = vadd.f32 %v865, %v777
        %v867 = vadd.f32 %v866, %v782
        %v868 = vadd.f32 %v867, %v787
        %v869 = vadd.f32 %v868, %v792
        %v870 = vrot.slane %v869, 4
        %v871 = vadd.f32 %v869, %v870
        %v872 = vrot.slane %v871, 2
        %v873 = vadd.f32 %v871, %v872
        %v874 = vrot.slane %v873, 1
        %v875 = vadd.f32 %v873, %v874
        %v876 = vadd.f32 %v806, %v875
        %877 = vst [vmem:[#allocation2] sm:$0x1] %v876
        %v878 = vld [vmem:[#allocation3] sm:$0x1]
        %v879 = vmul.f32 %v477, %v477
        %v880 = vmul.f32 %v482, %v482
        %v881 = vmul.f32 %v487, %v487
        %v882 = vmul.f32 %v492, %v492
        %v883 = vmul.f32 %v497, %v497
        %v884 = vmul.f32 %v502, %v502
        %v885 = vmul.f32 %v507, %v507
        %v886 = vmul.f32 %v512, %v512
        %v887 = vmul.f32 %v517, %v517
        %v888 = vmul.f32 %v522, %v522
        %v889 = vmul.f32 %v527, %v527
        %v890 = vmul.f32 %v532, %v532
        %v891 = vmul.f32 %v537, %v537
        %v892 = vmul.f32 %v542, %v542
        %v893 = vmul.f32 %v547, %v547
        %v894 = vmul.f32 %v552, %v552
        %v895 = vmul.f32 %v557, %v557
        %v896 = vmul.f32 %v562, %v562
        %v897 = vmul.f32 %v567, %v567
        %v898 = vmul.f32 %v572, %v572
        %v899 = vmul.f32 %v577, %v577
        %v900 = vmul.f32 %v582, %v582
        %v901 = vmul.f32 %v587, %v587
        %v902 = vmul.f32 %v592, %v592
        %v903 = vmul.f32 %v597, %v597
        %v904 = vmul.f32 %v602, %v602
        %v905 = vmul.f32 %v607, %v607
        %v906 = vmul.f32 %v612, %v612
        %v907 = vmul.f32 %v617, %v617
        %v908 = vmul.f32 %v622, %v622
        %v909 = vmul.f32 %v627, %v627
        %v910 = vmul.f32 %v632, %v632
        %v911 = vmul.f32 %v637, %v637
        %v912 = vmul.f32 %v642, %v642
        %v913 = vmul.f32 %v647, %v647
        %v914 = vmul.f32 %v652, %v652
        %v915 = vmul.f32 %v657, %v657
        %v916 = vmul.f32 %v662, %v662
        %v917 = vmul.f32 %v667, %v667
        %v918 = vmul.f32 %v672, %v672
        %v919 = vmul.f32 %v677, %v677
        %v920 = vmul.f32 %v682, %v682
        %v921 = vmul.f32 %v687, %v687
        %v922 = vmul.f32 %v692, %v692
        %v923 = vmul.f32 %v697, %v697
        %v924 = vmul.f32 %v702, %v702
        %v925 = vmul.f32 %v707, %v707
        %v926 = vmul.f32 %v712, %v712
        %v927 = vmul.f32 %v717, %v717
        %v928 = vmul.f32 %v722, %v722
        %v929 = vmul.f32 %v727, %v727
        %v930 = vmul.f32 %v732, %v732
        %v931 = vmul.f32 %v737, %v737
        %v932 = vmul.f32 %v742, %v742
        %v933 = vmul.f32 %v747, %v747
        %v934 = vmul.f32 %v752, %v752
        %v935 = vmul.f32 %v757, %v757
        %v936 = vmul.f32 %v762, %v762
        %v937 = vmul.f32 %v767, %v767
        %v938 = vmul.f32 %v772, %v772
        %v939 = vmul.f32 %v777, %v777
        %v940 = vmul.f32 %v782, %v782
        %v941 = vmul.f32 %v787, %v787
        %v942 = vmul.f32 %v792, %v792
        %v943 = vadd.f32 %v879, %v880
        %v944 = vadd.f32 %v943, %v881
        %v945 = vadd.f32 %v944, %v882
        %v946 = vadd.f32 %v945, %v883
        %v947 = vadd.f32 %v946, %v884
        %v948 = vadd.f32 %v947, %v885
        %v949 = vadd.f32 %v948, %v886
        %v950 = vadd.f32 %v949, %v887
        %v951 = vadd.f32 %v950, %v888
        %v952 = vadd.f32 %v951, %v889
        %v953 = vadd.f32 %v952, %v890
        %v954 = vadd.f32 %v953, %v891
        %v955 = vadd.f32 %v954, %v892
        %v956 = vadd.f32 %v955, %v893
        %v957 = vadd.f32 %v956, %v894
        %v958 = vadd.f32 %v957, %v895
        %v959 = vadd.f32 %v958, %v896
        %v960 = vadd.f32 %v959, %v897
        %v961 = vadd.f32 %v960, %v898
        %v962 = vadd.f32 %v961, %v899
        %v963 = vadd.f32 %v962, %v900
        %v964 = vadd.f32 %v963, %v901
        %v965 = vadd.f32 %v964, %v902
        %v966 = vadd.f32 %v965, %v903
        %v967 = vadd.f32 %v966, %v904
        %v968 = vadd.f32 %v967, %v905
        %v969 = vadd.f32 %v968, %v906
        %v970 = vadd.f32 %v969, %v907
        %v971 = vadd.f32 %v970, %v908
        %v972 = vadd.f32 %v971, %v909
        %v973 = vadd.f32 %v972, %v910
        %v974 = vadd.f32 %v973, %v911
        %v975 = vadd.f32 %v974, %v912
        %v976 = vadd.f32 %v975, %v913
        %v977 = vadd.f32 %v976, %v914
        %v978 = vadd.f32 %v977, %v915
        %v979 = vadd.f32 %v978, %v916
        %v980 = vadd.f32 %v979, %v917
        %v981 = vadd.f32 %v980, %v918
        %v982 = vadd.f32 %v981, %v919
        %v983 = vadd.f32 %v982, %v920
        %v984 = vadd.f32 %v983, %v921
        %v985 = vadd.f32 %v984, %v922
        %v986 = vadd.f32 %v985, %v923
        %v987 = vadd.f32 %v986, %v924
        %v988 = vadd.f32 %v987, %v925
        %v989 = vadd.f32 %v988, %v926
        %v990 = vadd.f32 %v989, %v927
        %v991 = vadd.f32 %v990, %v928
        %v992 = vadd.f32 %v991, %v929
        %v993 = vadd.f32 %v992, %v930
        %v994 = vadd.f32 %v993, %v931
        %v995 = vadd.f32 %v994, %v932
        %v996 = vadd.f32 %v995, %v933
        %v997 = vadd.f32 %v996, %v934
        %v998 = vadd.f32 %v997, %v935
        %v999 = vadd.f32 %v998, %v936
        %v1000 = vadd.f32 %v999, %v937
        %v1001 = vadd.f32 %v1000, %v938
        %v1002 = vadd.f32 %v1001, %v939
        %v1003 = vadd.f32 %v1002, %v940
        %v1004 = vadd.f32 %v1003, %v941
        %v1005 = vadd.f32 %v1004, %v942
        %v1006 = vrot.slane %v1005, 4
        %v1007 = vadd.f32 %v1005, %v1006
        %v1008 = vrot.slane %v1007, 2
        %v1009 = vadd.f32 %v1007, %v1008
        %v1010 = vrot.slane %v1009, 1
        %v1011 = vadd.f32 %v1009, %v1010
        %v1012 = vadd.f32 %v878, %v1011
        %1013 = vst [vmem:[#allocation3] sm:$0x1] %v1012
        %1014 = vst [vmem:[%s241] sm:$0xff] %v477
        %1015 = vst [vmem:[%s241 + $0x8] sm:$0xff] %v482
        %1016 = vst [vmem:[%s241 + $0x10] sm:$0xff] %v487
        %1017 = vst [vmem:[%s241 + $0x18] sm:$0xff] %v492
        %1018 = vst [vmem:[%s241 + $0x20] sm:$0xff] %v497
        %1019 = vst [vmem:[%s241 + $0x28] sm:$0xff] %v502
        %1020 = vst [vmem:[%s241 + $0x30] sm:$0xff] %v507
        %1021 = vst [vmem:[%s241 + $0x38] sm:$0xff] %v512
        %1022 = vst [vmem:[%s241 + $0x40] sm:$0xff] %v517
        %1023 = vst [vmem:[%s241 + $0x48] sm:$0xff] %v522
        %1024 = vst [vmem:[%s241 + $0x50] sm:$0xff] %v527
        %1025 = vst [vmem:[%s241 + $0x58] sm:$0xff] %v532
        %1026 = vst [vmem:[%s241 + $0x60] sm:$0xff] %v537
        %1027 = vst [vmem:[%s241 + $0x68] sm:$0xff] %v542
        %1028 = vst [vmem:[%s241 + $0x70] sm:$0xff] %v547
        %1029 = vst [vmem:[%s241 + $0x78] sm:$0xff] %v552
        %1030 = vst [vmem:[%s241 + $0x80] sm:$0xff] %v557
        %1031 = vst [vmem:[%s241 + $0x88] sm:$0xff] %v562
        %1032 = vst [vmem:[%s241 + $0x90] sm:$0xff] %v567
        %1033 = vst [vmem:[%s241 + $0x98] sm:$0xff] %v572
        %1034 = vst [vmem:[%s241 + $0xa0] sm:$0xff] %v577
        %1035 = vst [vmem:[%s241 + $0xa8] sm:$0xff] %v582
        %1036 = vst [vmem:[%s241 + $0xb0] sm:$0xff] %v587
        %1037 = vst [vmem:[%s241 + $0xb8] sm:$0xff] %v592
        %1038 = vst [vmem:[%s241 + $0xc0] sm:$0xff] %v597
        %1039 = vst [vmem:[%s241 + $0xc8] sm:$0xff] %v602
        %1040 = vst [vmem:[%s241 + $0xd0] sm:$0xff] %v607
        %1041 = vst [vmem:[%s241 + $0xd8] sm:$0xff] %v612
        %1042 = vst [vmem:[%s241 + $0xe0] sm:$0xff] %v617
        %1043 = vst [vmem:[%s241 + $0xe8] sm:$0xff] %v622
        %1044 = vst [vmem:[%s241 + $0xf0] sm:$0xff] %v627
        %1045 = vst [vmem:[%s241 + $0xf8] sm:$0xff] %v632
        %1046 = vst [vmem:[%s241 + $0x100] sm:$0xff] %v637
        %1047 = vst [vmem:[%s241 + $0x108] sm:$0xff] %v642
        %1048 = vst [vmem:[%s241 + $0x110] sm:$0xff] %v647
        %1049 = vst [vmem:[%s241 + $0x118] sm:$0xff] %v652
        %1050 = vst [vmem:[%s241 + $0x120] sm:$0xff] %v657
        %1051 = vst [vmem:[%s241 + $0x128] sm:$0xff] %v662
        %1052 = vst [vmem:[%s241 + $0x130] sm:$0xff] %v667
        %1053 = vst [vmem:[%s241 + $0x138] sm:$0xff] %v672
        %1054 = vst [vmem:[%s241 + $0x140] sm:$0xff] %v677
        %1055 = vst [vmem:[%s241 + $0x148] sm:$0xff] %v682
        %1056 = vst [vmem:[%s241 + $0x150] sm:$0xff] %v687
        %1057 = vst [vmem:[%s241 + $0x158] sm:$0xff] %v692
        %1058 = vst [vmem:[%s241 + $0x160] sm:$0xff] %v697
        %1059 = vst [vmem:[%s241 + $0x168] sm:$0xff] %v702
        %1060 = vst [vmem:[%s241 + $0x170] sm:$0xff] %v707
        %1061 = vst [vmem:[%s241 + $0x178] sm:$0xff] %v712
        %1062 = vst [vmem:[%s241 + $0x180] sm:$0xff] %v717
        %1063 = vst [vmem:[%s241 + $0x188] sm:$0xff] %v722
        %1064 = vst [vmem:[%s241 + $0x190] sm:$0xff] %v727
        %1065 = vst [vmem:[%s241 + $0x198] sm:$0xff] %v732
        %1066 = vst [vmem:[%s241 + $0x1a0] sm:$0xff] %v737
        %1067 = vst [vmem:[%s241 + $0x1a8] sm:$0xff] %v742
        %1068 = vst [vmem:[%s241 + $0x1b0] sm:$0xff] %v747
        %1069 = vst [vmem:[%s241 + $0x1b8] sm:$0xff] %v752
        %1070 = vst [vmem:[%s241 + $0x1c0] sm:$0xff] %v757
        %1071 = vst [vmem:[%s241 + $0x1c8] sm:$0xff] %v762
        %1072 = vst [vmem:[%s241 + $0x1d0] sm:$0xff] %v767
        %1073 = vst [vmem:[%s241 + $0x1d8] sm:$0xff] %v772
        %1074 = vst [vmem:[%s241 + $0x1e0] sm:$0xff] %v777
        %1075 = vst [vmem:[%s241 + $0x1e8] sm:$0xff] %v782
        %1076 = vst [vmem:[%s241 + $0x1f0] sm:$0xff] %v787
        %1077 = vst [vmem:[%s241 + $0x1f8] sm:$0xff] %v792
      $region48: #{dogs_cats_forward.6} parent=39 // pred_fallthru
        _
      %p1078 = scmp.eq.s32.totalorder %s20, 1
      // Predicated region
      $region49: #{dogs_cats_forward.6} parent=39 // pred_check
        %p1079 = pneg %p1078
      $region50: #{dogs_cats_forward.6} parent=39 // pred_check_branch
        %1081 = sbr.rel (%p1079) target = $region52
      $region51: #{dogs_cats_forward.6} parent=39 // pred_region
        %v1082 = vld [vmem:[#allocation2] sm:$0x1]
        %v1083 = vmul.f32 %v1082, 0.001953125
        %v1084 = vld [vmem:[#allocation3] sm:$0x1]
        %v1085 = vmul.f32 %v1084, 0.001953125
        %v1086 = vmul.f32 %v1083, %v1083
        %v1087 = vsub.f32 %v1085, %v1086
        %v1088 = vmax.f32 %v1087, 0.0
        %v1089 = vld [vmem:[%s3] sm:$0x1]
        %v1090 = vadd.f32 %v1088, 1e-05
        %v1091 = vrsqrt.pop %v1090
        %v1092 = vmul.f32 %v1089, %v1091
        %v1093 = vld [vmem:[%s4] sm:$0x1]
        %v1094 = vmul.f32 %v1083, %v1092
        %v1095 = vsub.f32 %v1093, %v1094
        %v1097 = vlaneseq
        %v1098 = vshrl.u32 %v1097, 7
        %v1099 = vsub.s32 0, %v1098
        %v1100 = vrot.slane %v1092, %v1099
        %v1102 = vmul.f32 %v477, %v1100
        %v1103 = vmul.f32 %v482, %v1100
        %v1104 = vmul.f32 %v487, %v1100
        %v1105 = vmul.f32 %v492, %v1100
        %v1106 = vmul.f32 %v497, %v1100
        %v1107 = vmul.f32 %v502, %v1100
        %v1108 = vmul.f32 %v507, %v1100
        %v1109 = vmul.f32 %v512, %v1100
        %v1110 = vmul.f32 %v517, %v1100
        %v1111 = vmul.f32 %v522, %v1100
        %v1112 = vmul.f32 %v527, %v1100
        %v1113 = vmul.f32 %v532, %v1100
        %v1114 = vmul.f32 %v537, %v1100
        %v1115 = vmul.f32 %v542, %v1100
        %v1116 = vmul.f32 %v547, %v1100
        %v1117 = vmul.f32 %v552, %v1100
        %v1118 = vmul.f32 %v557, %v1100
        %v1119 = vmul.f32 %v562, %v1100
        %v1120 = vmul.f32 %v567, %v1100
        %v1121 = vmul.f32 %v572, %v1100
        %v1122 = vmul.f32 %v577, %v1100
        %v1123 = vmul.f32 %v582, %v1100
        %v1124 = vmul.f32 %v587, %v1100
        %v1125 = vmul.f32 %v592, %v1100
        %v1126 = vmul.f32 %v597, %v1100
        %v1127 = vmul.f32 %v602, %v1100
        %v1128 = vmul.f32 %v607, %v1100
        %v1129 = vmul.f32 %v612, %v1100
        %v1130 = vmul.f32 %v617, %v1100
        %v1131 = vmul.f32 %v622, %v1100
        %v1132 = vmul.f32 %v627, %v1100
        %v1133 = vmul.f32 %v632, %v1100
        %v1134 = vmul.f32 %v637, %v1100
        %v1135 = vmul.f32 %v642, %v1100
        %v1136 = vmul.f32 %v647, %v1100
        %v1137 = vmul.f32 %v652, %v1100
        %v1138 = vmul.f32 %v657, %v1100
        %v1139 = vmul.f32 %v662, %v1100
        %v1140 = vmul.f32 %v667, %v1100
        %v1141 = vmul.f32 %v672, %v1100
        %v1142 = vmul.f32 %v677, %v1100
        %v1143 = vmul.f32 %v682, %v1100
        %v1144 = vmul.f32 %v687, %v1100
        %v1145 = vmul.f32 %v692, %v1100
        %v1146 = vmul.f32 %v697, %v1100
        %v1147 = vmul.f32 %v702, %v1100
        %v1148 = vmul.f32 %v707, %v1100
        %v1149 = vmul.f32 %v712, %v1100
        %v1150 = vmul.f32 %v717, %v1100
        %v1151 = vmul.f32 %v722, %v1100
        %v1152 = vmul.f32 %v727, %v1100
        %v1153 = vmul.f32 %v732, %v1100
        %v1154 = vmul.f32 %v737, %v1100
        %v1155 = vmul.f32 %v742, %v1100
        %v1156 = vmul.f32 %v747, %v1100
        %v1157 = vmul.f32 %v752, %v1100
        %v1158 = vmul.f32 %v757, %v1100
        %v1159 = vmul.f32 %v762, %v1100
        %v1160 = vmul.f32 %v767, %v1100
        %v1161 = vmul.f32 %v772, %v1100
        %v1162 = vmul.f32 %v777, %v1100
        %v1163 = vmul.f32 %v782, %v1100
        %v1164 = vmul.f32 %v787, %v1100
        %v1165 = vmul.f32 %v792, %v1100
        %v1167 = vlaneseq
        %v1168 = vshrl.u32 %v1167, 7
        %v1169 = vsub.s32 0, %v1168
        %v1170 = vrot.slane %v1095, %v1169
        %v1172 = vadd.f32 %v1102, %v1170
        %v1173 = vadd.f32 %v1103, %v1170
        %v1174 = vadd.f32 %v1104, %v1170
        %v1175 = vadd.f32 %v1105, %v1170
        %v1176 = vadd.f32 %v1106, %v1170
        %v1177 = vadd.f32 %v1107, %v1170
        %v1178 = vadd.f32 %v1108, %v1170
        %v1179 = vadd.f32 %v1109, %v1170
        %v1180 = vadd.f32 %v1110, %v1170
        %v1181 = vadd.f32 %v1111, %v1170
        %v1182 = vadd.f32 %v1112, %v1170
        %v1183 = vadd.f32 %v1113, %v1170
        %v1184 = vadd.f32 %v1114, %v1170
        %v1185 = vadd.f32 %v1115, %v1170
        %v1186 = vadd.f32 %v1116, %v1170
        %v1187 = vadd.f32 %v1117, %v1170
        %v1188 = vadd.f32 %v1118, %v1170
        %v1189 = vadd.f32 %v1119, %v1170
        %v1190 = vadd.f32 %v1120, %v1170
        %v1191 = vadd.f32 %v1121, %v1170
        %v1192 = vadd.f32 %v1122, %v1170
        %v1193 = vadd.f32 %v1123, %v1170
        %v1194 = vadd.f32 %v1124, %v1170
        %v1195 = vadd.f32 %v1125, %v1170
        %v1196 = vadd.f32 %v1126, %v1170
        %v1197 = vadd.f32 %v1127, %v1170
        %v1198 = vadd.f32 %v1128, %v1170
        %v1199 = vadd.f32 %v1129, %v1170
        %v1200 = vadd.f32 %v1130, %v1170
        %v1201 = vadd.f32 %v1131, %v1170
        %v1202 = vadd.f32 %v1132, %v1170
        %v1203 = vadd.f32 %v1133, %v1170
        %v1204 = vadd.f32 %v1134, %v1170
        %v1205 = vadd.f32 %v1135, %v1170
        %v1206 = vadd.f32 %v1136, %v1170
        %v1207 = vadd.f32 %v1137, %v1170
        %v1208 = vadd.f32 %v1138, %v1170
        %v1209 = vadd.f32 %v1139, %v1170
        %v1210 = vadd.f32 %v1140, %v1170
        %v1211 = vadd.f32 %v1141, %v1170
        %v1212 = vadd.f32 %v1142, %v1170
        %v1213 = vadd.f32 %v1143, %v1170
        %v1214 = vadd.f32 %v1144, %v1170
        %v1215 = vadd.f32 %v1145, %v1170
        %v1216 = vadd.f32 %v1146, %v1170
        %v1217 = vadd.f32 %v1147, %v1170
        %v1218 = vadd.f32 %v1148, %v1170
        %v1219 = vadd.f32 %v1149, %v1170
        %v1220 = vadd.f32 %v1150, %v1170
        %v1221 = vadd.f32 %v1151, %v1170
        %v1222 = vadd.f32 %v1152, %v1170
        %v1223 = vadd.f32 %v1153, %v1170
        %v1224 = vadd.f32 %v1154, %v1170
        %v1225 = vadd.f32 %v1155, %v1170
        %v1226 = vadd.f32 %v1156, %v1170
        %v1227 = vadd.f32 %v1157, %v1170
        %v1228 = vadd.f32 %v1158, %v1170
        %v1229 = vadd.f32 %v1159, %v1170
        %v1230 = vadd.f32 %v1160, %v1170
        %v1231 = vadd.f32 %v1161, %v1170
        %v1232 = vadd.f32 %v1162, %v1170
        %v1233 = vadd.f32 %v1163, %v1170
        %v1234 = vadd.f32 %v1164, %v1170
        %v1235 = vadd.f32 %v1165, %v1170
        %v1236 = vmax.f32 %v1172, 0.0
        %v1237 = vmax.f32 %v1173, 0.0
        %v1238 = vmax.f32 %v1174, 0.0
        %v1239 = vmax.f32 %v1175, 0.0
        %v1240 = vmax.f32 %v1176, 0.0
        %v1241 = vmax.f32 %v1177, 0.0
        %v1242 = vmax.f32 %v1178, 0.0
        %v1243 = vmax.f32 %v1179, 0.0
        %v1244 = vmax.f32 %v1180, 0.0
        %v1245 = vmax.f32 %v1181, 0.0
        %v1246 = vmax.f32 %v1182, 0.0
        %v1247 = vmax.f32 %v1183, 0.0
        %v1248 = vmax.f32 %v1184, 0.0
        %v1249 = vmax.f32 %v1185, 0.0
        %v1250 = vmax.f32 %v1186, 0.0
        %v1251 = vmax.f32 %v1187, 0.0
        %v1252 = vmax.f32 %v1188, 0.0
        %v1253 = vmax.f32 %v1189, 0.0
        %v1254 = vmax.f32 %v1190, 0.0
        %v1255 = vmax.f32 %v1191, 0.0
        %v1256 = vmax.f32 %v1192, 0.0
        %v1257 = vmax.f32 %v1193, 0.0
        %v1258 = vmax.f32 %v1194, 0.0
        %v1259 = vmax.f32 %v1195, 0.0
        %v1260 = vmax.f32 %v1196, 0.0
        %v1261 = vmax.f32 %v1197, 0.0
        %v1262 = vmax.f32 %v1198, 0.0
        %v1263 = vmax.f32 %v1199, 0.0
        %v1264 = vmax.f32 %v1200, 0.0
        %v1265 = vmax.f32 %v1201, 0.0
        %v1266 = vmax.f32 %v1202, 0.0
        %v1267 = vmax.f32 %v1203, 0.0
        %v1268 = vmax.f32 %v1204, 0.0
        %v1269 = vmax.f32 %v1205, 0.0
        %v1270 = vmax.f32 %v1206, 0.0
        %v1271 = vmax.f32 %v1207, 0.0
        %v1272 = vmax.f32 %v1208, 0.0
        %v1273 = vmax.f32 %v1209, 0.0
        %v1274 = vmax.f32 %v1210, 0.0
        %v1275 = vmax.f32 %v1211, 0.0
        %v1276 = vmax.f32 %v1212, 0.0
        %v1277 = vmax.f32 %v1213, 0.0
        %v1278 = vmax.f32 %v1214, 0.0
        %v1279 = vmax.f32 %v1215, 0.0
        %v1280 = vmax.f32 %v1216, 0.0
        %v1281 = vmax.f32 %v1217, 0.0
        %v1282 = vmax.f32 %v1218, 0.0
        %v1283 = vmax.f32 %v1219, 0.0
        %v1284 = vmax.f32 %v1220, 0.0
        %v1285 = vmax.f32 %v1221, 0.0
        %v1286 = vmax.f32 %v1222, 0.0
        %v1287 = vmax.f32 %v1223, 0.0
        %v1288 = vmax.f32 %v1224, 0.0
        %v1289 = vmax.f32 %v1225, 0.0
        %v1290 = vmax.f32 %v1226, 0.0
        %v1291 = vmax.f32 %v1227, 0.0
        %v1292 = vmax.f32 %v1228, 0.0
        %v1293 = vmax.f32 %v1229, 0.0
        %v1294 = vmax.f32 %v1230, 0.0
        %v1295 = vmax.f32 %v1231, 0.0
        %v1296 = vmax.f32 %v1232, 0.0
        %v1297 = vmax.f32 %v1233, 0.0
        %v1298 = vmax.f32 %v1234, 0.0
        %v1299 = vmax.f32 %v1235, 0.0
        %1300 = vst [vmem:[%s241] sm:$0xff] %v1236
        %1301 = vst [vmem:[%s241 + $0x8] sm:$0xff] %v1237
        %1302 = vst [vmem:[%s241 + $0x10] sm:$0xff] %v1238
        %1303 = vst [vmem:[%s241 + $0x18] sm:$0xff] %v1239
        %1304 = vst [vmem:[%s241 + $0x20] sm:$0xff] %v1240
        %1305 = vst [vmem:[%s241 + $0x28] sm:$0xff] %v1241
        %1306 = vst [vmem:[%s241 + $0x30] sm:$0xff] %v1242
        %1307 = vst [vmem:[%s241 + $0x38] sm:$0xff] %v1243
        %1308 = vst [vmem:[%s241 + $0x40] sm:$0xff] %v1244
        %1309 = vst [vmem:[%s241 + $0x48] sm:$0xff] %v1245
        %1310 = vst [vmem:[%s241 + $0x50] sm:$0xff] %v1246
        %1311 = vst [vmem:[%s241 + $0x58] sm:$0xff] %v1247
        %1312 = vst [vmem:[%s241 + $0x60] sm:$0xff] %v1248
        %1313 = vst [vmem:[%s241 + $0x68] sm:$0xff] %v1249
        %1314 = vst [vmem:[%s241 + $0x70] sm:$0xff] %v1250
        %1315 = vst [vmem:[%s241 + $0x78] sm:$0xff] %v1251
        %1316 = vst [vmem:[%s241 + $0x80] sm:$0xff] %v1252
        %1317 = vst [vmem:[%s241 + $0x88] sm:$0xff] %v1253
        %1318 = vst [vmem:[%s241 + $0x90] sm:$0xff] %v1254
        %1319 = vst [vmem:[%s241 + $0x98] sm:$0xff] %v1255
        %1320 = vst [vmem:[%s241 + $0xa0] sm:$0xff] %v1256
        %1321 = vst [vmem:[%s241 + $0xa8] sm:$0xff] %v1257
        %1322 = vst [vmem:[%s241 + $0xb0] sm:$0xff] %v1258
        %1323 = vst [vmem:[%s241 + $0xb8] sm:$0xff] %v1259
        %1324 = vst [vmem:[%s241 + $0xc0] sm:$0xff] %v1260
        %1325 = vst [vmem:[%s241 + $0xc8] sm:$0xff] %v1261
        %1326 = vst [vmem:[%s241 + $0xd0] sm:$0xff] %v1262
        %1327 = vst [vmem:[%s241 + $0xd8] sm:$0xff] %v1263
        %1328 = vst [vmem:[%s241 + $0xe0] sm:$0xff] %v1264
        %1329 = vst [vmem:[%s241 + $0xe8] sm:$0xff] %v1265
        %1330 = vst [vmem:[%s241 + $0xf0] sm:$0xff] %v1266
        %1331 = vst [vmem:[%s241 + $0xf8] sm:$0xff] %v1267
        %1332 = vst [vmem:[%s241 + $0x100] sm:$0xff] %v1268
        %1333 = vst [vmem:[%s241 + $0x108] sm:$0xff] %v1269
        %1334 = vst [vmem:[%s241 + $0x110] sm:$0xff] %v1270
        %1335 = vst [vmem:[%s241 + $0x118] sm:$0xff] %v1271
        %1336 = vst [vmem:[%s241 + $0x120] sm:$0xff] %v1272
        %1337 = vst [vmem:[%s241 + $0x128] sm:$0xff] %v1273
        %1338 = vst [vmem:[%s241 + $0x130] sm:$0xff] %v1274
        %1339 = vst [vmem:[%s241 + $0x138] sm:$0xff] %v1275
        %1340 = vst [vmem:[%s241 + $0x140] sm:$0xff] %v1276
        %1341 = vst [vmem:[%s241 + $0x148] sm:$0xff] %v1277
        %1342 = vst [vmem:[%s241 + $0x150] sm:$0xff] %v1278
        %1343 = vst [vmem:[%s241 + $0x158] sm:$0xff] %v1279
        %1344 = vst [vmem:[%s241 + $0x160] sm:$0xff] %v1280
        %1345 = vst [vmem:[%s241 + $0x168] sm:$0xff] %v1281
        %1346 = vst [vmem:[%s241 + $0x170] sm:$0xff] %v1282
        %1347 = vst [vmem:[%s241 + $0x178] sm:$0xff] %v1283
        %1348 = vst [vmem:[%s241 + $0x180] sm:$0xff] %v1284
        %1349 = vst [vmem:[%s241 + $0x188] sm:$0xff] %v1285
        %1350 = vst [vmem:[%s241 + $0x190] sm:$0xff] %v1286
        %1351 = vst [vmem:[%s241 + $0x198] sm:$0xff] %v1287
        %1352 = vst [vmem:[%s241 + $0x1a0] sm:$0xff] %v1288
        %1353 = vst [vmem:[%s241 + $0x1a8] sm:$0xff] %v1289
        %1354 = vst [vmem:[%s241 + $0x1b0] sm:$0xff] %v1290
        %1355 = vst [vmem:[%s241 + $0x1b8] sm:$0xff] %v1291
        %1356 = vst [vmem:[%s241 + $0x1c0] sm:$0xff] %v1292
        %1357 = vst [vmem:[%s241 + $0x1c8] sm:$0xff] %v1293
        %1358 = vst [vmem:[%s241 + $0x1d0] sm:$0xff] %v1294
        %1359 = vst [vmem:[%s241 + $0x1d8] sm:$0xff] %v1295
        %1360 = vst [vmem:[%s241 + $0x1e0] sm:$0xff] %v1296
        %1361 = vst [vmem:[%s241 + $0x1e8] sm:$0xff] %v1297
        %1362 = vst [vmem:[%s241 + $0x1f0] sm:$0xff] %v1298
        %1363 = vst [vmem:[%s241 + $0x1f8] sm:$0xff] %v1299
      $region52: #{dogs_cats_forward.6} parent=39 // pred_fallthru
        _
      %s1364 = smul.u32 64, %s21
      %p1365 = scmp.lt.s32.totalorder %s1364, 63
      %s1366 = scalar_select %p1365, %s1364, 63
      %s1367 = smul.addr %s1366, 8
      %s1368 = scalar_lea.vmem %s5, %s1367
      // Predicated region
      $region53: #{dogs_cats_forward.6} parent=39 // pred_check
        %p1369 = pneg %p156
      $region54: #{dogs_cats_forward.6} parent=39 // pred_check_branch
        %1371 = sbr.rel (%p1369) target = $region56
      $region55: #{dogs_cats_forward.6} parent=39 // pred_region
        %s1372 = smul.u32 64, %s21
      $region56: #{dogs_cats_forward.6} parent=39 // pred_fallthru
        _
      // Predicated region
      $region57: #{dogs_cats_forward.6} parent=39 // pred_check
        %p1373 = pneg %p156
      $region58: #{dogs_cats_forward.6} parent=39 // pred_check_branch
        %1375 = sbr.rel (%p1373) target = $region60
      $region59: #{dogs_cats_forward.6} parent=39 // pred_region
        %s1376 = smul.u32 64, %s21
        %p1377 = scmp.lt.s32.totalorder %s1376, 63
        %s1378 = scalar_select %p1377, %s1376, 63
        %s1379 = smul.addr %s1378, 8
        %s1380 = scalar_lea.vmem %s5, %s1379
      $region60: #{dogs_cats_forward.6} parent=39 // pred_fallthru
        _
    $region40: #{dogs_cats_forward.6} parent=5 // pred_fallthru
      _
    %p1381 = scmp.le.s32.totalorder 2, %s11
    // Predicated region
    $region61: #{dogs_cats_forward.6} parent=5 // pred_check
      %p1382 = pneg %p1381
    $region62: #{dogs_cats_forward.6} parent=5 // pred_check_branch
      %1384 = sbr.rel (%p1382) target = $region64
    $region63: #{dogs_cats_forward.6} parent=5 // pred_region
      %s1385 = ssub.s32 %s11, 2
    $region64: #{dogs_cats_forward.6} parent=5 // pred_fallthru
      _
  $region6: #{dogs_cats_forward.6} parent=0 // loop_footer
    %s15 = sadd.s32 1, %s11
  $region7: #{dogs_cats_forward.6} parent=0 // loop_footer_branch
    %10 = sbr.rel target = $region3
  $region8: #{dogs_cats_forward.6} parent=0 // loop_exit
    _

// kernel: dogs_cats_forward.7
$region0: #{dogs_cats_forward.7}
  #allocation0 [shape = 'u32[]', space=smem, size = 0x4, offset = 0x4, fixed_abs, tag = 'smem constant byte address 0x4 - core index']
  #allocation1 [shape = 'u32[144,128]{1,0:T(1,128)}', space=vmem, size = 0x12000, scoped, tag = 'internal scratch']
  #allocation2 [shape = 'f32[1,128]{1,0:T(1,128)}', space=vmem, size = 0x200, scoped, tag = 'scratch operand']
  #allocation3 [shape = 'f32[1,128]{1,0:T(1,128)}', space=vmem, size = 0x200, scoped, tag = 'scratch operand']
  #allocation4 [shape = 'f32[1,1]{1,0:T(1,128)S(1)}', space=vmem, size = 0x200, scoped, tag = 'scoped memory for dogs_cats_forward.7']
  %s0 = inlined_call_operand.vmem [shape: f32[128,384], index: 0, kind: input, shape index: {}]
  %s1 = inlined_call_operand.vmem [shape: f32[384,128], index: 1, kind: input, shape index: {}]
  %s2 = inlined_call_operand.vmem [shape: f32[1,128], index: 2, kind: input, shape index: {}]
  %s3 = inlined_call_operand.vmem [shape: f32[1,128], index: 3, kind: input, shape index: {}]
  %s4 = inlined_call_operand.vmem [shape: f32[1,128], index: 4, kind: input, shape index: {}]
  %s5 = inlined_call_operand.vmem [shape: f32[64,128], index: 5, kind: input, shape index: {}]
  %s6 = inlined_call_operand.<no memory space> [shape: f32[1,1], index: 6, kind: input, shape index: {}]
  %s7 = inlined_call_operand.vmem [shape: f32[2,1], index: 7, kind: output, shape index: {0}]
  %s8 = inlined_call_operand.vmem [shape: f32[2,1], index: 8, kind: output, shape index: {1}]
  %9 = xla_tuple %s7, %s8
  %s10 = sld [smem:[#allocation0]]
  $region77: #{dogs_cats_forward.7} parent=0
    _
  %s12 = ssub.s32 1, %s10
  %s13 = scalar_select 0, %s12, %s10
  %v14 = vstv %s6
  %15 = vst [vmem:[#allocation4] sm:$0x1] %v14
  loop: start=0, step=1, limit=4
  $region2: #{dogs_cats_forward.7} parent=0 // loop_pre_header
    _
  $region3: #{dogs_cats_forward.7} parent=0 // loop_header
    %s17 = sphi 0, %s21
    %p18 = scmp.ge.s32.totalorder %s17, 4
    %s25 = sphi 0, %s25
    %s27 = sphi 0, %s25
    %s28 = sphi 0, %s27
    %s42 = sphi 0, %s28
    %s46 = sphi 0, %s46
    %s48 = sphi 0, %s46
    %s49 = sphi 0, %s48
    %s63 = sphi 0, %s49
    %s67 = sphi 0, %s67
    %s69 = sphi 0, %s67
    %s70 = sphi 0, %s69
    %s84 = sphi 0, %s70
    %s88 = sphi 0, %s88
    %s90 = sphi 0, %s88
    %s91 = sphi 0, %s90
    %s105 = sphi 0, %s91
    %s109 = sphi 0, %s109
    %s111 = sphi 0, %s109
    %s112 = sphi 0, %s111
    %s126 = sphi 0, %s112
    %s130 = sphi 0, %s130
    %s132 = sphi 0, %s130
    %s133 = sphi 0, %s132
    %s147 = sphi 0, %s133
    %s151 = sphi 0, %s151
    %s153 = sphi 0, %s151
    %s154 = sphi 0, %s153
    %s168 = sphi 0, %s154
    %s172 = sphi 0, %s172
    %s174 = sphi 0, %s172
    %s175 = sphi 0, %s174
    %s189 = sphi 0, %s175
    %s193 = sphi 0, %s193
    %s195 = sphi 0, %s193
    %s196 = sphi 0, %s195
    %s210 = sphi 0, %s196
  $region4: #{dogs_cats_forward.7} parent=0 // loop_header_branch
    %20 = sbr.rel (%p18) target = $region8
  $region5: #{dogs_cats_forward.7} parent=0 // loop_body
    %s22 = ssub.s32 %s17, 1
    %s23 = ssub.s32 %s17, 2
    %s24 = sadd.s32 %s17, 1
    %s26 = sadd.s32 %s25, 1
    %p29 = scmp.eq.s32.totalorder %s17, 1
    %p30 = scmp.ne.s32.totalorder %s25, %s27
    %p31 = scmp.eq.s32.totalorder %s17, 0
    %p32 = por %p30, %p31
    %p33 = scmp.ne.s32.totalorder %s25, %s27
    %p34 = scmp.eq.s32.totalorder %s22, 1
    %p35 = por %p33, %p34
    %p36 = scmp.ne.s32.totalorder %s27, %s28
    %p37 = scmp.eq.s32.totalorder %s22, 0
    %p38 = por %p36, %p37
    %p39 = scmp.ne.s32.totalorder %s27, %s28
    %p40 = scmp.eq.s32.totalorder %s23, 1
    %p41 = por %p39, %p40
    %p43 = scmp.ne.s32.totalorder %s28, %s42
    %p44 = scmp.eq.s32.totalorder %s23, 0
    %p45 = por %p43, %p44
    %s47 = sadd.s32 %s46, 1
    %p50 = scmp.eq.s32.totalorder %s17, 1
    %p51 = scmp.ne.s32.totalorder %s46, %s48
    %p52 = scmp.eq.s32.totalorder %s17, 0
    %p53 = por %p51, %p52
    %p54 = scmp.ne.s32.totalorder %s46, %s48
    %p55 = scmp.eq.s32.totalorder %s22, 1
    %p56 = por %p54, %p55
    %p57 = scmp.ne.s32.totalorder %s48, %s49
    %p58 = scmp.eq.s32.totalorder %s22, 0
    %p59 = por %p57, %p58
    %p60 = scmp.ne.s32.totalorder %s48, %s49
    %p61 = scmp.eq.s32.totalorder %s23, 1
    %p62 = por %p60, %p61
    %p64 = scmp.ne.s32.totalorder %s49, %s63
    %p65 = scmp.eq.s32.totalorder %s23, 0
    %p66 = por %p64, %p65
    %s68 = sadd.s32 %s67, 1
    %p71 = scmp.eq.s32.totalorder %s17, 1
    %p72 = scmp.ne.s32.totalorder %s67, %s69
    %p73 = scmp.eq.s32.totalorder %s17, 0
    %p74 = por %p72, %p73
    %p75 = scmp.ne.s32.totalorder %s67, %s69
    %p76 = scmp.eq.s32.totalorder %s22, 1
    %p77 = por %p75, %p76
    %p78 = scmp.ne.s32.totalorder %s69, %s70
    %p79 = scmp.eq.s32.totalorder %s22, 0
    %p80 = por %p78, %p79
    %p81 = scmp.ne.s32.totalorder %s69, %s70
    %p82 = scmp.eq.s32.totalorder %s23, 1
    %p83 = por %p81, %p82
    %p85 = scmp.ne.s32.totalorder %s70, %s84
    %p86 = scmp.eq.s32.totalorder %s23, 0
    %p87 = por %p85, %p86
    %s89 = sadd.s32 %s88, 1
    %p92 = scmp.eq.s32.totalorder %s17, 1
    %p93 = scmp.ne.s32.totalorder %s88, %s90
    %p94 = scmp.eq.s32.totalorder %s17, 0
    %p95 = por %p93, %p94
    %p96 = scmp.ne.s32.totalorder %s88, %s90
    %p97 = scmp.eq.s32.totalorder %s22, 1
    %p98 = por %p96, %p97
    %p99 = scmp.ne.s32.totalorder %s90, %s91
    %p100 = scmp.eq.s32.totalorder %s22, 0
    %p101 = por %p99, %p100
    %p102 = scmp.ne.s32.totalorder %s90, %s91
    %p103 = scmp.eq.s32.totalorder %s23, 1
    %p104 = por %p102, %p103
    %p106 = scmp.ne.s32.totalorder %s91, %s105
    %p107 = scmp.eq.s32.totalorder %s23, 0
    %p108 = por %p106, %p107
    %s110 = sadd.s32 %s109, 1
    %p113 = scmp.eq.s32.totalorder %s17, 1
    %p114 = scmp.ne.s32.totalorder %s109, %s111
    %p115 = scmp.eq.s32.totalorder %s17, 0
    %p116 = por %p114, %p115
    %p117 = scmp.ne.s32.totalorder %s109, %s111
    %p118 = scmp.eq.s32.totalorder %s22, 1
    %p119 = por %p117, %p118
    %p120 = scmp.ne.s32.totalorder %s111, %s112
    %p121 = scmp.eq.s32.totalorder %s22, 0
    %p122 = por %p120, %p121
    %p123 = scmp.ne.s32.totalorder %s111, %s112
    %p124 = scmp.eq.s32.totalorder %s23, 1
    %p125 = por %p123, %p124
    %p127 = scmp.ne.s32.totalorder %s112, %s126
    %p128 = scmp.eq.s32.totalorder %s23, 0
    %p129 = por %p127, %p128
    %s131 = sadd.s32 %s130, 1
    %p134 = scmp.eq.s32.totalorder %s17, 1
    %p135 = scmp.ne.s32.totalorder %s130, %s132
    %p136 = scmp.eq.s32.totalorder %s17, 0
    %p137 = por %p135, %p136
    %p138 = scmp.ne.s32.totalorder %s130, %s132
    %p139 = scmp.eq.s32.totalorder %s22, 1
    %p140 = por %p138, %p139
    %p141 = scmp.ne.s32.totalorder %s132, %s133
    %p142 = scmp.eq.s32.totalorder %s22, 0
    %p143 = por %p141, %p142
    %p144 = scmp.ne.s32.totalorder %s132, %s133
    %p145 = scmp.eq.s32.totalorder %s23, 1
    %p146 = por %p144, %p145
    %p148 = scmp.ne.s32.totalorder %s133, %s147
    %p149 = scmp.eq.s32.totalorder %s23, 0
    %p150 = por %p148, %p149
    %s152 = sadd.s32 %s151, 1
    %p155 = scmp.eq.s32.totalorder %s17, 1
    %p156 = scmp.ne.s32.totalorder %s151, %s153
    %p157 = scmp.eq.s32.totalorder %s17, 0
    %p158 = por %p156, %p157
    %p159 = scmp.ne.s32.totalorder %s151, %s153
    %p160 = scmp.eq.s32.totalorder %s22, 1
    %p161 = por %p159, %p160
    %p162 = scmp.ne.s32.totalorder %s153, %s154
    %p163 = scmp.eq.s32.totalorder %s22, 0
    %p164 = por %p162, %p163
    %p165 = scmp.ne.s32.totalorder %s153, %s154
    %p166 = scmp.eq.s32.totalorder %s23, 1
    %p167 = por %p165, %p166
    %p169 = scmp.ne.s32.totalorder %s154, %s168
    %p170 = scmp.eq.s32.totalorder %s23, 0
    %p171 = por %p169, %p170
    %s173 = sadd.s32 %s172, 1
    %p176 = scmp.eq.s32.totalorder %s17, 1
    %p177 = scmp.ne.s32.totalorder %s172, %s174
    %p178 = scmp.eq.s32.totalorder %s17, 0
    %p179 = por %p177, %p178
    %p180 = scmp.ne.s32.totalorder %s172, %s174
    %p181 = scmp.eq.s32.totalorder %s22, 1
    %p182 = por %p180, %p181
    %p183 = scmp.ne.s32.totalorder %s174, %s175
    %p184 = scmp.eq.s32.totalorder %s22, 0
    %p185 = por %p183, %p184
    %p186 = scmp.ne.s32.totalorder %s174, %s175
    %p187 = scmp.eq.s32.totalorder %s23, 1
    %p188 = por %p186, %p187
    %p190 = scmp.ne.s32.totalorder %s175, %s189
    %p191 = scmp.eq.s32.totalorder %s23, 0
    %p192 = por %p190, %p191
    %s194 = sadd.s32 %s193, 1
    %p197 = scmp.eq.s32.totalorder %s17, 1
    %p198 = scmp.ne.s32.totalorder %s193, %s195
    %p199 = scmp.eq.s32.totalorder %s17, 0
    %p200 = por %p198, %p199
    %p201 = scmp.ne.s32.totalorder %s193, %s195
    %p202 = scmp.eq.s32.totalorder %s22, 1
    %p203 = por %p201, %p202
    %p204 = scmp.ne.s32.totalorder %s195, %s196
    %p205 = scmp.eq.s32.totalorder %s22, 0
    %p206 = por %p204, %p205
    %p207 = scmp.ne.s32.totalorder %s195, %s196
    %p208 = scmp.eq.s32.totalorder %s23, 1
    %p209 = por %p207, %p208
    %p211 = scmp.ne.s32.totalorder %s196, %s210
    %p212 = scmp.eq.s32.totalorder %s23, 0
    %p213 = por %p211, %p212
    %p214 = scmp.le.s32.totalorder 1, %s17
    %p215 = scmp.lt.s32.totalorder %s17, 3
    %p216 = pnand %p214, %p215
    %p217 = pneg %p216
    // Predicated region
    $region9: #{dogs_cats_forward.7} parent=5 // pred_check
      _
    $region10: #{dogs_cats_forward.7} parent=5 // pred_check_branch
      %219 = sbr.rel (%p216) target = $region12
    $region11: #{dogs_cats_forward.7} parent=5 // pred_region
      %s220 = ssub.s32 %s17, 1
      // Predicated region
      $region13: #{dogs_cats_forward.7} parent=11 // pred_check
        %p221 = pneg %p38
      $region14: #{dogs_cats_forward.7} parent=11 // pred_check_branch
        %223 = sbr.rel (%p221) target = $region16
      $region15: #{dogs_cats_forward.7} parent=11 // pred_region
        _
      $region16: #{dogs_cats_forward.7} parent=11 // pred_fallthru
        _
      // Predicated region
      $region17: #{dogs_cats_forward.7} parent=11 // pred_check
        %p224 = pneg %p59
      $region18: #{dogs_cats_forward.7} parent=11 // pred_check_branch
        %226 = sbr.rel (%p224) target = $region20
      $region19: #{dogs_cats_forward.7} parent=11 // pred_region
        _
      $region20: #{dogs_cats_forward.7} parent=11 // pred_fallthru
        _
      // Predicated region
      $region21: #{dogs_cats_forward.7} parent=11 // pred_check
        %p227 = pneg %p80
      $region22: #{dogs_cats_forward.7} parent=11 // pred_check_branch
        %229 = sbr.rel (%p227) target = $region24
      $region23: #{dogs_cats_forward.7} parent=11 // pred_region
        _
      $region24: #{dogs_cats_forward.7} parent=11 // pred_fallthru
        _
      // Predicated region
      $region25: #{dogs_cats_forward.7} parent=11 // pred_check
        %p230 = pneg %p101
      $region26: #{dogs_cats_forward.7} parent=11 // pred_check_branch
        %232 = sbr.rel (%p230) target = $region28
      $region27: #{dogs_cats_forward.7} parent=11 // pred_region
        _
      $region28: #{dogs_cats_forward.7} parent=11 // pred_fallthru
        _
      // Predicated region
      $region29: #{dogs_cats_forward.7} parent=11 // pred_check
        %p233 = pneg %p122
      $region30: #{dogs_cats_forward.7} parent=11 // pred_check_branch
        %235 = sbr.rel (%p233) target = $region32
      $region31: #{dogs_cats_forward.7} parent=11 // pred_region
        _
      $region32: #{dogs_cats_forward.7} parent=11 // pred_fallthru
        _
      // Predicated region
      $region33: #{dogs_cats_forward.7} parent=11 // pred_check
        %p236 = pneg %p143
      $region34: #{dogs_cats_forward.7} parent=11 // pred_check_branch
        %238 = sbr.rel (%p236) target = $region36
      $region35: #{dogs_cats_forward.7} parent=11 // pred_region
        _
      $region36: #{dogs_cats_forward.7} parent=11 // pred_fallthru
        _
      // Predicated region
      $region37: #{dogs_cats_forward.7} parent=11 // pred_check
        %p239 = pneg %p164
      $region38: #{dogs_cats_forward.7} parent=11 // pred_check_branch
        %241 = sbr.rel (%p239) target = $region40
      $region39: #{dogs_cats_forward.7} parent=11 // pred_region
        _
      $region40: #{dogs_cats_forward.7} parent=11 // pred_fallthru
        _
    $region12: #{dogs_cats_forward.7} parent=5 // pred_fallthru
      _
    %p242 = scmp.lt.s32.totalorder %s17, 2
    // Predicated region
    $region41: #{dogs_cats_forward.7} parent=5 // pred_check
      %p243 = pneg %p242
    $region42: #{dogs_cats_forward.7} parent=5 // pred_check_branch
      %245 = sbr.rel (%p243) target = $region44
    $region43: #{dogs_cats_forward.7} parent=5 // pred_region
      _
    $region44: #{dogs_cats_forward.7} parent=5 // pred_fallthru
      _
    %p246 = scmp.le.s32.totalorder 1, %s17
    %p247 = scmp.lt.s32.totalorder %s17, 3
    %p248 = pnand %p246, %p247
    %p249 = pneg %p248
    // Predicated region
    $region45: #{dogs_cats_forward.7} parent=5 // pred_check
      _
    $region46: #{dogs_cats_forward.7} parent=5 // pred_check_branch
      %251 = sbr.rel (%p248) target = $region48
    $region47: #{dogs_cats_forward.7} parent=5 // pred_region
      %s252 = ssub.s32 %s17, 1
      %p253 = pneg %p38
      %p254 = pneg %p35
      %p255 = pneg %p59
      %p256 = pneg %p56
      %p257 = pneg %p80
      %p258 = pneg %p77
      %p259 = pneg %p101
      %p260 = pneg %p98
      %p261 = pneg %p122
      %p262 = pneg %p119
      %p263 = pneg %p143
      %p264 = pneg %p140
      %p265 = pneg %p164
      %p266 = pneg %p161
      %p267 = pneg %p185
      %p268 = pneg %p182
      %p269 = pneg %p206
      %p270 = pneg %p203
      %v271 = vld [vmem:[%s0] sm:$0xff]
      %v272 = vld [vmem:[%s0 + $0x8] sm:$0xff]
      %v273 = vld [vmem:[%s0 + $0x10] sm:$0xff]
      %v274 = vld [vmem:[%s0 + $0x18] sm:$0xff]
      %v275 = vld [vmem:[%s0 + $0x20] sm:$0xff]
      %v276 = vld [vmem:[%s0 + $0x28] sm:$0xff]
      %v277 = vld [vmem:[%s0 + $0x30] sm:$0xff]
      %v278 = vld [vmem:[%s0 + $0x38] sm:$0xff]
      %v279 = vld [vmem:[%s0 + $0x40] sm:$0xff]
      %v280 = vld [vmem:[%s0 + $0x48] sm:$0xff]
      %v281 = vld [vmem:[%s0 + $0x50] sm:$0xff]
      %v282 = vld [vmem:[%s0 + $0x58] sm:$0xff]
      %v283 = vld [vmem:[%s0 + $0x60] sm:$0xff]
      %v284 = vld [vmem:[%s0 + $0x68] sm:$0xff]
      %v285 = vld [vmem:[%s0 + $0x70] sm:$0xff]
      %v286 = vld [vmem:[%s0 + $0x78] sm:$0xff]
      %v287 = vld [vmem:[%s0 + $0x80] sm:$0xff]
      %v288 = vld [vmem:[%s0 + $0x88] sm:$0xff]
      %v289 = vld [vmem:[%s0 + $0x90] sm:$0xff]
      %v290 = vld [vmem:[%s0 + $0x98] sm:$0xff]
      %v291 = vld [vmem:[%s0 + $0xa0] sm:$0xff]
      %v292 = vld [vmem:[%s0 + $0xa8] sm:$0xff]
      %v293 = vld [vmem:[%s0 + $0xb0] sm:$0xff]
      %v294 = vld [vmem:[%s0 + $0xb8] sm:$0xff]
      %v295 = vld [vmem:[%s0 + $0xc0] sm:$0xff]
      %v296 = vld [vmem:[%s0 + $0xc8] sm:$0xff]
      %v297 = vld [vmem:[%s0 + $0xd0] sm:$0xff]
      %v298 = vld [vmem:[%s0 + $0xd8] sm:$0xff]
      %v299 = vld [vmem:[%s0 + $0xe0] sm:$0xff]
      %v300 = vld [vmem:[%s0 + $0xe8] sm:$0xff]
      %v301 = vld [vmem:[%s0 + $0xf0] sm:$0xff]
      %v302 = vld [vmem:[%s0 + $0xf8] sm:$0xff]
      %v303 = vld [vmem:[%s0 + $0x100] sm:$0xff]
      %v304 = vld [vmem:[%s0 + $0x108] sm:$0xff]
      %v305 = vld [vmem:[%s0 + $0x110] sm:$0xff]
      %v306 = vld [vmem:[%s0 + $0x118] sm:$0xff]
      %v307 = vld [vmem:[%s0 + $0x120] sm:$0xff]
      %v308 = vld [vmem:[%s0 + $0x128] sm:$0xff]
      %v309 = vld [vmem:[%s0 + $0x130] sm:$0xff]
      %v310 = vld [vmem:[%s0 + $0x138] sm:$0xff]
      %v311 = vld [vmem:[%s0 + $0x140] sm:$0xff]
      %v312 = vld [vmem:[%s0 + $0x148] sm:$0xff]
      %v313 = vld [vmem:[%s0 + $0x150] sm:$0xff]
      %v314 = vld [vmem:[%s0 + $0x158] sm:$0xff]
      %v315 = vld [vmem:[%s0 + $0x160] sm:$0xff]
      %v316 = vld [vmem:[%s0 + $0x168] sm:$0xff]
      %v317 = vld [vmem:[%s0 + $0x170] sm:$0xff]
      %v318 = vld [vmem:[%s0 + $0x178] sm:$0xff]
      %v319 = vld [vmem:[%s1] sm:$0xff]
      %v320 = vld [vmem:[%s1 + $0x8] sm:$0xff]
      %v321 = vld [vmem:[%s1 + $0x10] sm:$0xff]
      %v322 = vld [vmem:[%s1 + $0x18] sm:$0xff]
      %v323 = vld [vmem:[%s1 + $0x20] sm:$0xff]
      %v324 = vld [vmem:[%s1 + $0x28] sm:$0xff]
      %v325 = vld [vmem:[%s1 + $0x30] sm:$0xff]
      %v326 = vld [vmem:[%s1 + $0x38] sm:$0xff]
      %v327 = vld [vmem:[%s1 + $0x40] sm:$0xff]
      %v328 = vld [vmem:[%s1 + $0x48] sm:$0xff]
      %v329 = vld [vmem:[%s1 + $0x50] sm:$0xff]
      %v330 = vld [vmem:[%s1 + $0x58] sm:$0xff]
      %v331 = vld [vmem:[%s1 + $0x60] sm:$0xff]
      %v332 = vld [vmem:[%s1 + $0x68] sm:$0xff]
      %v333 = vld [vmem:[%s1 + $0x70] sm:$0xff]
      %v334 = vld [vmem:[%s1 + $0x78] sm:$0xff]
      %v335 = vld [vmem:[%s1 + $0x80] sm:$0xff]
      %v336 = vld [vmem:[%s1 + $0x88] sm:$0xff]
      %v337 = vld [vmem:[%s1 + $0x90] sm:$0xff]
      %v338 = vld [vmem:[%s1 + $0x98] sm:$0xff]
      %v339 = vld [vmem:[%s1 + $0xa0] sm:$0xff]
      %v340 = vld [vmem:[%s1 + $0xa8] sm:$0xff]
      %v341 = vld [vmem:[%s1 + $0xb0] sm:$0xff]
      %v342 = vld [vmem:[%s1 + $0xb8] sm:$0xff]
      %v343 = vld [vmem:[%s1 + $0xc0] sm:$0xff]
      %v344 = vld [vmem:[%s1 + $0xc8] sm:$0xff]
      %v345 = vld [vmem:[%s1 + $0xd0] sm:$0xff]
      %v346 = vld [vmem:[%s1 + $0xd8] sm:$0xff]
      %v347 = vld [vmem:[%s1 + $0xe0] sm:$0xff]
      %v348 = vld [vmem:[%s1 + $0xe8] sm:$0xff]
      %v349 = vld [vmem:[%s1 + $0xf0] sm:$0xff]
      %v350 = vld [vmem:[%s1 + $0xf8] sm:$0xff]
      %v351 = vld [vmem:[%s1 + $0x100] sm:$0xff]
      %v352 = vld [vmem:[%s1 + $0x108] sm:$0xff]
      %v353 = vld [vmem:[%s1 + $0x110] sm:$0xff]
      %v354 = vld [vmem:[%s1 + $0x118] sm:$0xff]
      %v355 = vld [vmem:[%s1 + $0x120] sm:$0xff]
      %v356 = vld [vmem:[%s1 + $0x128] sm:$0xff]
      %v357 = vld [vmem:[%s1 + $0x130] sm:$0xff]
      %v358 = vld [vmem:[%s1 + $0x138] sm:$0xff]
      %v359 = vld [vmem:[%s1 + $0x140] sm:$0xff]
      %v360 = vld [vmem:[%s1 + $0x148] sm:$0xff]
      %v361 = vld [vmem:[%s1 + $0x150] sm:$0xff]
      %v362 = vld [vmem:[%s1 + $0x158] sm:$0xff]
      %v363 = vld [vmem:[%s1 + $0x160] sm:$0xff]
      %v364 = vld [vmem:[%s1 + $0x168] sm:$0xff]
      %v365 = vld [vmem:[%s1 + $0x170] sm:$0xff]
      %v366 = vld [vmem:[%s1 + $0x178] sm:$0xff]
      %v367 = vld [vmem:[%s2] sm:$0x1]
      %v369 = vlaneseq
      %v370 = vshrl.u32 %v369, 7
      %v371 = vsub.s32 0, %v370
      %v372 = vrot.slane %v367, %v371
      %374 = vmatprep.subr.mxu0 0.0
      %375 = vmatpush1.msra.mxu0 %v319
      %376 = vmatprep.subr.mxu0 0.0
      %377 = vmatpush1.msra.mxu0 %v320
      %378 = vmatprep.subr.mxu0 0.0
      %379 = vmatpush1.msra.mxu0 %v321
      %380 = vmatprep.subr.mxu0 0.0
      %381 = vmatpush1.msra.mxu0 %v322
      %382 = vmatprep.subr.mxu0 0.0
      %383 = vmatpush1.msra.mxu0 %v323
      %384 = vmatprep.subr.mxu0 0.0
      %385 = vmatpush1.msra.mxu0 %v324
      %386 = vmatprep.subr.mxu0 0.0
      %387 = vmatpush1.msra.mxu0 %v325
      %388 = vmatprep.subr.mxu0 0.0
      %389 = vmatpush1.msra.mxu0 %v326
      %390 = vmatprep.subr.mxu0 0.0
      %391 = vmatpush1.msra.mxu0 %v327
      %392 = vmatprep.subr.mxu0 0.0
      %393 = vmatpush1.msra.mxu0 %v328
      %394 = vmatprep.subr.mxu0 0.0
      %395 = vmatpush1.msra.mxu0 %v329
      %396 = vmatprep.subr.mxu0 0.0
      %397 = vmatpush1.msra.mxu0 %v330
      %398 = vmatprep.subr.mxu0 0.0
      %399 = vmatpush1.msra.mxu0 %v331
      %400 = vmatprep.subr.mxu0 0.0
      %401 = vmatpush1.msra.mxu0 %v332
      %402 = vmatprep.subr.mxu0 0.0
      %403 = vmatpush1.msra.mxu0 %v333
      %404 = vmatprep.subr.mxu0 0.0
      %405 = vmatpush1.msra.mxu0 %v334
      %406 = vmatprep.subr.mxu0 0.0
      %407 = vmatpush1.msra.mxu0 %v335
      %408 = vmatprep.subr.mxu0 0.0
      %409 = vmatpush1.msra.mxu0 %v336
      %410 = vmatprep.subr.mxu0 0.0
      %411 = vmatpush1.msra.mxu0 %v337
      %412 = vmatprep.subr.mxu0 0.0
      %413 = vmatpush1.msra.mxu0 %v338
      %414 = vmatprep.subr.mxu0 0.0
      %415 = vmatpush1.msra.mxu0 %v339
      %416 = vmatprep.subr.mxu0 0.0
      %417 = vmatpush1.msra.mxu0 %v340
      %418 = vmatprep.subr.mxu0 0.0
      %419 = vmatpush1.msra.mxu0 %v341
      %420 = vmatprep.subr.mxu0 0.0
      %421 = vmatpush1.msra.mxu0 %v342
      %422 = vmatprep.subr.mxu0 0.0
      %423 = vmatpush1.msra.mxu0 %v343
      %424 = vmatprep.subr.mxu0 0.0
      %425 = vmatpush1.msra.mxu0 %v344
      %426 = vmatprep.subr.mxu0 0.0
      %427 = vmatpush1.msra.mxu0 %v345
      %428 = vmatprep.subr.mxu0 0.0
      %429 = vmatpush1.msra.mxu0 %v346
      %430 = vmatprep.subr.mxu0 0.0
      %431 = vmatpush1.msra.mxu0 %v347
      %432 = vmatprep.subr.mxu0 0.0
      %433 = vmatpush1.msra.mxu0 %v348
      %434 = vmatprep.subr.mxu0 0.0
      %435 = vmatpush1.msra.mxu0 %v349
      %436 = vmatprep.subr.mxu0 0.0
      %437 = vmatpush1.msra.mxu0 %v350
      %438 = vmatprep.mubr.f32.mxu0 %v272
      %439 = vmatmul.mubr.f32.gmra.mrb[0].mxu0 %v271
      %v440 = vpop.f32.mrb[0].mxu0
      %v441 = vadd.f32 %v372, %v440
      %v442 = vpop.f32.mrb[0].mxu0
      %443 = vmatprep.mubr.f32.mxu0 %v275
      %444 = vmatmul.mubr.f32.gmra.mrb[0].mxu0 %v274
      %v445 = vpop.f32.mrb[0].mxu0
      %v446 = vadd.f32 %v372, %v445
      %v447 = vpop.f32.mrb[0].mxu0
      %448 = vmatprep.mubr.f32.mxu0 %v278
      %449 = vmatmul.mubr.f32.gmra.mrb[0].mxu0 %v277
      %v450 = vpop.f32.mrb[0].mxu0
      %v451 = vadd.f32 %v372, %v450
      %v452 = vpop.f32.mrb[0].mxu0
      %453 = vmatprep.mubr.f32.mxu0 %v281
      %454 = vmatmul.mubr.f32.gmra.mrb[0].mxu0 %v280
      %v455 = vpop.f32.mrb[0].mxu0
      %v456 = vadd.f32 %v372, %v455
      %v457 = vpop.f32.mrb[0].mxu0
      %458 = vmatprep.mubr.f32.mxu0 %v284
      %459 = vmatmul.mubr.f32.gmra.mrb[0].mxu0 %v283
      %v460 = vpop.f32.mrb[0].mxu0
      %v461 = vadd.f32 %v372, %v460
      %v462 = vpop.f32.mrb[0].mxu0
      %463 = vmatprep.mubr.f32.mxu0 %v287
      %464 = vmatmul.mubr.f32.gmra.mrb[0].mxu0 %v286
      %v465 = vpop.f32.mrb[0].mxu0
      %v466 = vadd.f32 %v372, %v465
      %v467 = vpop.f32.mrb[0].mxu0
      %468 = vmatprep.mubr.f32.mxu0 %v290
      %469 = vmatmul.mubr.f32.gmra.mrb[0].mxu0 %v289
      %v470 = vpop.f32.mrb[0].mxu0
      %v471 = vadd.f32 %v372, %v470
      %v472 = vpop.f32.mrb[0].mxu0
      %473 = vmatprep.mubr.f32.mxu0 %v293
      %474 = vmatmul.mubr.f32.gmra.mrb[0].mxu0 %v292
      %v475 = vpop.f32.mrb[0].mxu0
      %v476 = vadd.f32 %v372, %v475
      %v477 = vpop.f32.mrb[0].mxu0
      %478 = vmatprep.mubr.f32.mxu0 %v296
      %479 = vmatmul.mubr.f32.gmra.mrb[0].mxu0 %v295
      %v480 = vpop.f32.mrb[0].mxu0
      %v481 = vadd.f32 %v372, %v480
      %v482 = vpop.f32.mrb[0].mxu0
      %483 = vmatprep.mubr.f32.mxu0 %v299
      %484 = vmatmul.mubr.f32.gmra.mrb[0].mxu0 %v298
      %v485 = vpop.f32.mrb[0].mxu0
      %v486 = vadd.f32 %v372, %v485
      %v487 = vpop.f32.mrb[0].mxu0
      %488 = vmatprep.mubr.f32.mxu0 %v302
      %489 = vmatmul.mubr.f32.gmra.mrb[0].mxu0 %v301
      %v490 = vpop.f32.mrb[0].mxu0
      %v491 = vadd.f32 %v372, %v490
      %v492 = vpop.f32.mrb[0].mxu0
      %493 = vmatprep.mubr.f32.mxu0 %v305
      %494 = vmatmul.mubr.f32.gmra.mrb[0].mxu0 %v304
      %v495 = vpop.f32.mrb[0].mxu0
      %v496 = vadd.f32 %v372, %v495
      %v497 = vpop.f32.mrb[0].mxu0
      %498 = vmatprep.mubr.f32.mxu0 %v308
      %499 = vmatmul.mubr.f32.gmra.mrb[0].mxu0 %v307
      %v500 = vpop.f32.mrb[0].mxu0
      %v501 = vadd.f32 %v372, %v500
      %v502 = vpop.f32.mrb[0].mxu0
      %503 = vmatprep.mubr.f32.mxu0 %v311
      %504 = vmatmul.mubr.f32.gmra.mrb[0].mxu0 %v310
      %v505 = vpop.f32.mrb[0].mxu0
      %v506 = vadd.f32 %v372, %v505
      %v507 = vpop.f32.mrb[0].mxu0
      %508 = vmatprep.mubr.f32.mxu0 %v314
      %509 = vmatmul.mubr.f32.gmra.mrb[0].mxu0 %v313
      %v510 = vpop.f32.mrb[0].mxu0
      %v511 = vadd.f32 %v372, %v510
      %v512 = vpop.f32.mrb[0].mxu0
      %513 = vmatprep.mubr.f32.mxu0 %v317
      %514 = vmatmul.mubr.f32.gmra.mrb[0].mxu0 %v316
      %v515 = vpop.f32.mrb[0].mxu0
      %v516 = vadd.f32 %v372, %v515
      %v517 = vpop.f32.mrb[0].mxu0
      %518 = vdwg.mxu0
      %519 = vmatprep.subr.mxu0 0.0
      %520 = vmatpush1.msra.mxu0 %v351
      %521 = vmatprep.subr.mxu0 0.0
      %522 = vmatpush1.msra.mxu0 %v352
      %523 = vmatprep.subr.mxu0 0.0
      %524 = vmatpush1.msra.mxu0 %v353
      %525 = vmatprep.subr.mxu0 0.0
      %526 = vmatpush1.msra.mxu0 %v354
      %527 = vmatprep.subr.mxu0 0.0
      %528 = vmatpush1.msra.mxu0 %v355
      %529 = vmatprep.subr.mxu0 0.0
      %530 = vmatpush1.msra.mxu0 %v356
      %531 = vmatprep.subr.mxu0 0.0
      %532 = vmatpush1.msra.mxu0 %v357
      %533 = vmatprep.subr.mxu0 0.0
      %534 = vmatpush1.msra.mxu0 %v358
      %535 = vmatprep.subr.mxu0 0.0
      %536 = vmatpush1.msra.mxu0 %v359
      %537 = vmatprep.subr.mxu0 0.0
      %538 = vmatpush1.msra.mxu0 %v360
      %539 = vmatprep.subr.mxu0 0.0
      %540 = vmatpush1.msra.mxu0 %v361
      %541 = vmatprep.subr.mxu0 0.0
      %542 = vmatpush1.msra.mxu0 %v362
      %543 = vmatprep.subr.mxu0 0.0
      %544 = vmatpush1.msra.mxu0 %v363
      %545 = vmatprep.subr.mxu0 0.0
      %546 = vmatpush1.msra.mxu0 %v364
      %547 = vmatprep.subr.mxu0 0.0
      %548 = vmatpush1.msra.mxu0 %v365
      %549 = vmatprep.subr.mxu0 0.0
      %550 = vmatpush1.msra.mxu0 %v366
      %551 = vmatprep.subr.mxu0 0.0
      %552 = vmatpush1.msra.mxu0 0.0
      %553 = vmatprep.subr.mxu0 0.0
      %554 = vmatpush1.msra.mxu0 0.0
      %555 = vmatprep.subr.mxu0 0.0
      %556 = vmatpush1.msra.mxu0 0.0
      %557 = vmatprep.subr.mxu0 0.0
      %558 = vmatpush1.msra.mxu0 0.0
      %559 = vmatprep.subr.mxu0 0.0
      %560 = vmatpush1.msra.mxu0 0.0
      %561 = vmatprep.subr.mxu0 0.0
      %562 = vmatpush1.msra.mxu0 0.0
      %563 = vmatprep.subr.mxu0 0.0
      %564 = vmatpush1.msra.mxu0 0.0
      %565 = vmatprep.subr.mxu0 0.0
      %566 = vmatpush1.msra.mxu0 0.0
      %567 = vmatprep.subr.mxu0 0.0
      %568 = vmatpush1.msra.mxu0 0.0
      %569 = vmatprep.subr.mxu0 0.0
      %570 = vmatpush1.msra.mxu0 0.0
      %571 = vmatprep.subr.mxu0 0.0
      %572 = vmatpush1.msra.mxu0 0.0
      %573 = vmatprep.subr.mxu0 0.0
      %574 = vmatpush1.msra.mxu0 0.0
      %575 = vmatprep.subr.mxu0 0.0
      %576 = vmatpush1.msra.mxu0 0.0
      %577 = vmatprep.subr.mxu0 0.0
      %578 = vmatpush1.msra.mxu0 0.0
      %579 = vmatprep.subr.mxu0 0.0
      %580 = vmatpush1.msra.mxu0 0.0
      %581 = vmatprep.subr.mxu0 0.0
      %582 = vmatpush1.msra.mxu0 0.0
      %583 = vmatprep.mubr.f32.mxu0 0.0
      %584 = vmatmul.mubr.f32.gmra.mrb[0].mxu0 %v273
      %v585 = vpop.f32.mrb[0].mxu0
      %v586 = vadd.f32 %v441, %v585
      %v587 = vpop.f32.mrb[0].mxu0
      %588 = vmatprep.mubr.f32.mxu0 0.0
      %589 = vmatmul.mubr.f32.gmra.mrb[0].mxu0 %v276
      %v590 = vpop.f32.mrb[0].mxu0
      %v591 = vadd.f32 %v446, %v590
      %v592 = vpop.f32.mrb[0].mxu0
      %593 = vmatprep.mubr.f32.mxu0 0.0
      %594 = vmatmul.mubr.f32.gmra.mrb[0].mxu0 %v279
      %v595 = vpop.f32.mrb[0].mxu0
      %v596 = vadd.f32 %v451, %v595
      %v597 = vpop.f32.mrb[0].mxu0
      %598 = vmatprep.mubr.f32.mxu0 0.0
      %599 = vmatmul.mubr.f32.gmra.mrb[0].mxu0 %v282
      %v600 = vpop.f32.mrb[0].mxu0
      %v601 = vadd.f32 %v456, %v600
      %v602 = vpop.f32.mrb[0].mxu0
      %603 = vmatprep.mubr.f32.mxu0 0.0
      %604 = vmatmul.mubr.f32.gmra.mrb[0].mxu0 %v285
      %v605 = vpop.f32.mrb[0].mxu0
      %v606 = vadd.f32 %v461, %v605
      %v607 = vpop.f32.mrb[0].mxu0
      %608 = vmatprep.mubr.f32.mxu0 0.0
      %609 = vmatmul.mubr.f32.gmra.mrb[0].mxu0 %v288
      %v610 = vpop.f32.mrb[0].mxu0
      %v611 = vadd.f32 %v466, %v610
      %v612 = vpop.f32.mrb[0].mxu0
      %613 = vmatprep.mubr.f32.mxu0 0.0
      %614 = vmatmul.mubr.f32.gmra.mrb[0].mxu0 %v291
      %v615 = vpop.f32.mrb[0].mxu0
      %v616 = vadd.f32 %v471, %v615
      %v617 = vpop.f32.mrb[0].mxu0
      %618 = vmatprep.mubr.f32.mxu0 0.0
      %619 = vmatmul.mubr.f32.gmra.mrb[0].mxu0 %v294
      %v620 = vpop.f32.mrb[0].mxu0
      %v621 = vadd.f32 %v476, %v620
      %v622 = vpop.f32.mrb[0].mxu0
      %623 = vmatprep.mubr.f32.mxu0 0.0
      %624 = vmatmul.mubr.f32.gmra.mrb[0].mxu0 %v297
      %v625 = vpop.f32.mrb[0].mxu0
      %v626 = vadd.f32 %v481, %v625
      %v627 = vpop.f32.mrb[0].mxu0
      %628 = vmatprep.mubr.f32.mxu0 0.0
      %629 = vmatmul.mubr.f32.gmra.mrb[0].mxu0 %v300
      %v630 = vpop.f32.mrb[0].mxu0
      %v631 = vadd.f32 %v486, %v630
      %v632 = vpop.f32.mrb[0].mxu0
      %633 = vmatprep.mubr.f32.mxu0 0.0
      %634 = vmatmul.mubr.f32.gmra.mrb[0].mxu0 %v303
      %v635 = vpop.f32.mrb[0].mxu0
      %v636 = vadd.f32 %v491, %v635
      %v637 = vpop.f32.mrb[0].mxu0
      %638 = vmatprep.mubr.f32.mxu0 0.0
      %639 = vmatmul.mubr.f32.gmra.mrb[0].mxu0 %v306
      %v640 = vpop.f32.mrb[0].mxu0
      %v641 = vadd.f32 %v496, %v640
      %v642 = vpop.f32.mrb[0].mxu0
      %643 = vmatprep.mubr.f32.mxu0 0.0
      %644 = vmatmul.mubr.f32.gmra.mrb[0].mxu0 %v309
      %v645 = vpop.f32.mrb[0].mxu0
      %v646 = vadd.f32 %v501, %v645
      %v647 = vpop.f32.mrb[0].mxu0
      %648 = vmatprep.mubr.f32.mxu0 0.0
      %649 = vmatmul.mubr.f32.gmra.mrb[0].mxu0 %v312
      %v650 = vpop.f32.mrb[0].mxu0
      %v651 = vadd.f32 %v506, %v650
      %v652 = vpop.f32.mrb[0].mxu0
      %653 = vmatprep.mubr.f32.mxu0 0.0
      %654 = vmatmul.mubr.f32.gmra.mrb[0].mxu0 %v315
      %v655 = vpop.f32.mrb[0].mxu0
      %v656 = vadd.f32 %v511, %v655
      %v657 = vpop.f32.mrb[0].mxu0
      %658 = vmatprep.mubr.f32.mxu0 0.0
      %659 = vmatmul.mubr.f32.gmra.mrb[0].mxu0 %v318
      %v660 = vpop.f32.mrb[0].mxu0
      %v661 = vadd.f32 %v516, %v660
      %v662 = vpop.f32.mrb[0].mxu0
      %663 = vdwg.mxu0
      %p664 = scmp.eq.s32.totalorder %s22, 0
      // Predicated region
      $region49: #{dogs_cats_forward.7} parent=47 // pred_check
        %p665 = pneg %p664
      $region50: #{dogs_cats_forward.7} parent=47 // pred_check_branch
        %667 = sbr.rel (%p665) target = $region52
      $region51: #{dogs_cats_forward.7} parent=47 // pred_region
        %v668 = vadd.f32 %v586, %v591
        %v669 = vadd.f32 %v668, %v596
        %v670 = vadd.f32 %v669, %v601
        %v671 = vadd.f32 %v670, %v606
        %v672 = vadd.f32 %v671, %v611
        %v673 = vadd.f32 %v672, %v616
        %v674 = vadd.f32 %v673, %v621
        %v675 = vadd.f32 %v674, %v626
        %v676 = vadd.f32 %v675, %v631
        %v677 = vadd.f32 %v676, %v636
        %v678 = vadd.f32 %v677, %v641
        %v679 = vadd.f32 %v678, %v646
        %v680 = vadd.f32 %v679, %v651
        %v681 = vadd.f32 %v680, %v656
        %v682 = vadd.f32 %v681, %v661
        %v683 = vrot.slane %v682, 4
        %v684 = vadd.f32 %v682, %v683
        %v685 = vrot.slane %v684, 2
        %v686 = vadd.f32 %v684, %v685
        %v687 = vrot.slane %v686, 1
        %v688 = vadd.f32 %v686, %v687
        %689 = vst [vmem:[#allocation2] sm:$0x1] %v688
        %v690 = vmul.f32 %v586, %v586
        %v691 = vmul.f32 %v591, %v591
        %v692 = vmul.f32 %v596, %v596
        %v693 = vmul.f32 %v601, %v601
        %v694 = vmul.f32 %v606, %v606
        %v695 = vmul.f32 %v611, %v611
        %v696 = vmul.f32 %v616, %v616
        %v697 = vmul.f32 %v621, %v621
        %v698 = vmul.f32 %v626, %v626
        %v699 = vmul.f32 %v631, %v631
        %v700 = vmul.f32 %v636, %v636
        %v701 = vmul.f32 %v641, %v641
        %v702 = vmul.f32 %v646, %v646
        %v703 = vmul.f32 %v651, %v651
        %v704 = vmul.f32 %v656, %v656
        %v705 = vmul.f32 %v661, %v661
        %v706 = vadd.f32 %v690, %v691
        %v707 = vadd.f32 %v706, %v692
        %v708 = vadd.f32 %v707, %v693
        %v709 = vadd.f32 %v708, %v694
        %v710 = vadd.f32 %v709, %v695
        %v711 = vadd.f32 %v710, %v696
        %v712 = vadd.f32 %v711, %v697
        %v713 = vadd.f32 %v712, %v698
        %v714 = vadd.f32 %v713, %v699
        %v715 = vadd.f32 %v714, %v700
        %v716 = vadd.f32 %v715, %v701
        %v717 = vadd.f32 %v716, %v702
        %v718 = vadd.f32 %v717, %v703
        %v719 = vadd.f32 %v718, %v704
        %v720 = vadd.f32 %v719, %v705
        %v721 = vrot.slane %v720, 4
        %v722 = vadd.f32 %v720, %v721
        %v723 = vrot.slane %v722, 2
        %v724 = vadd.f32 %v722, %v723
        %v725 = vrot.slane %v724, 1
        %v726 = vadd.f32 %v724, %v725
        %727 = vst [vmem:[#allocation3] sm:$0x1] %v726
        %vm728 = vcmask 1024
        %729 = vst.msk [vmem:[%s7] sm:$0x3] %vm728, 0.0
        %730 = vst.msk [vmem:[%s8] sm:$0x3] %vm728, 0.0
      $region52: #{dogs_cats_forward.7} parent=47 // pred_fallthru
        _
      %p731 = scmp.eq.s32.totalorder %s22, 1
      // Predicated region
      $region53: #{dogs_cats_forward.7} parent=47 // pred_check
        %p732 = pneg %p731
      $region54: #{dogs_cats_forward.7} parent=47 // pred_check_branch
        %734 = sbr.rel (%p732) target = $region56
      $region55: #{dogs_cats_forward.7} parent=47 // pred_region
        %v735 = vld [vmem:[#allocation2] sm:$0x1]
        %v736 = vmul.f32 %v735, 0.0078125
        %v737 = vld [vmem:[#allocation3] sm:$0x1]
        %v738 = vmul.f32 %v737, 0.0078125
        %v739 = vmul.f32 %v736, %v736
        %v740 = vsub.f32 %v738, %v739
        %v741 = vmax.f32 %v740, 0.0
        %v742 = vld [vmem:[%s3] sm:$0x1]
        %v743 = vadd.f32 %v741, 1e-05
        %v744 = vrsqrt.pop %v743
        %v745 = vmul.f32 %v742, %v744
        %v746 = vld [vmem:[%s4] sm:$0x1]
        %v747 = vmul.f32 %v736, %v745
        %v748 = vsub.f32 %v746, %v747
        %v750 = vlaneseq
        %v751 = vshrl.u32 %v750, 7
        %v752 = vsub.s32 0, %v751
        %v753 = vrot.slane %v745, %v752
        %v755 = vmul.f32 %v586, %v753
        %v756 = vmul.f32 %v591, %v753
        %v757 = vmul.f32 %v596, %v753
        %v758 = vmul.f32 %v601, %v753
        %v759 = vmul.f32 %v606, %v753
        %v760 = vmul.f32 %v611, %v753
        %v761 = vmul.f32 %v616, %v753
        %v762 = vmul.f32 %v621, %v753
        %v763 = vmul.f32 %v626, %v753
        %v764 = vmul.f32 %v631, %v753
        %v765 = vmul.f32 %v636, %v753
        %v766 = vmul.f32 %v641, %v753
        %v767 = vmul.f32 %v646, %v753
        %v768 = vmul.f32 %v651, %v753
        %v769 = vmul.f32 %v656, %v753
        %v770 = vmul.f32 %v661, %v753
        %v772 = vlaneseq
        %v773 = vshrl.u32 %v772, 7
        %v774 = vsub.s32 0, %v773
        %v775 = vrot.slane %v748, %v774
        %v777 = vadd.f32 %v755, %v775
        %v778 = vadd.f32 %v756, %v775
        %v779 = vadd.f32 %v757, %v775
        %v780 = vadd.f32 %v758, %v775
        %v781 = vadd.f32 %v759, %v775
        %v782 = vadd.f32 %v760, %v775
        %v783 = vadd.f32 %v761, %v775
        %v784 = vadd.f32 %v762, %v775
        %v785 = vadd.f32 %v763, %v775
        %v786 = vadd.f32 %v764, %v775
        %v787 = vadd.f32 %v765, %v775
        %v788 = vadd.f32 %v766, %v775
        %v789 = vadd.f32 %v767, %v775
        %v790 = vadd.f32 %v768, %v775
        %v791 = vadd.f32 %v769, %v775
        %v792 = vadd.f32 %v770, %v775
        %v793 = vmax.f32 %v777, 0.0
        %v794 = vmax.f32 %v778, 0.0
        %v795 = vmax.f32 %v779, 0.0
        %v796 = vmax.f32 %v780, 0.0
        %v797 = vmax.f32 %v781, 0.0
        %v798 = vmax.f32 %v782, 0.0
        %v799 = vmax.f32 %v783, 0.0
        %v800 = vmax.f32 %v784, 0.0
        %v801 = vmax.f32 %v785, 0.0
        %v802 = vmax.f32 %v786, 0.0
        %v803 = vmax.f32 %v787, 0.0
        %v804 = vmax.f32 %v788, 0.0
        %v805 = vmax.f32 %v789, 0.0
        %v806 = vmax.f32 %v790, 0.0
        %v807 = vmax.f32 %v791, 0.0
        %v808 = vmax.f32 %v792, 0.0
        %v809 = vld [vmem:[%s5] sm:$0xff]
        %v810 = vld [vmem:[%s5 + $0x8] sm:$0xff]
        %v811 = vld [vmem:[%s5 + $0x10] sm:$0xff]
        %v812 = vld [vmem:[%s5 + $0x18] sm:$0xff]
        %v813 = vld [vmem:[%s5 + $0x20] sm:$0xff]
        %v814 = vld [vmem:[%s5 + $0x28] sm:$0xff]
        %v815 = vld [vmem:[%s5 + $0x30] sm:$0xff]
        %v816 = vld [vmem:[%s5 + $0x38] sm:$0xff]
        %v817 = vmul.f32 %v793, %v809
        %v818 = vmul.f32 %v794, %v810
        %v819 = vmul.f32 %v795, %v811
        %v820 = vmul.f32 %v796, %v812
        %v821 = vmul.f32 %v797, %v813
        %v822 = vmul.f32 %v798, %v814
        %v823 = vmul.f32 %v799, %v815
        %v824 = vmul.f32 %v800, %v816
        %v825 = vmul.f32 %v801, %v809
        %v826 = vmul.f32 %v802, %v810
        %v827 = vmul.f32 %v803, %v811
        %v828 = vmul.f32 %v804, %v812
        %v829 = vmul.f32 %v805, %v813
        %v830 = vmul.f32 %v806, %v814
        %v831 = vmul.f32 %v807, %v815
        %v832 = vmul.f32 %v808, %v816
        %833 = vadd.xlane.f32.xlu0 %v817
        %v834 = vpop.xlane.xlu0 %833
        %835 = vadd.xlane.f32.xlu0 %v818
        %v836 = vpop.xlane.xlu0 %835
        %837 = vadd.xlane.f32.xlu0 %v819
        %v838 = vpop.xlane.xlu0 %837
        %839 = vadd.xlane.f32.xlu0 %v820
        %v840 = vpop.xlane.xlu0 %839
        %841 = vadd.xlane.f32.xlu0 %v821
        %v842 = vpop.xlane.xlu0 %841
        %843 = vadd.xlane.f32.xlu0 %v822
        %v844 = vpop.xlane.xlu0 %843
        %845 = vadd.xlane.f32.xlu0 %v823
        %v846 = vpop.xlane.xlu0 %845
        %847 = vadd.xlane.f32.xlu0 %v824
        %v848 = vpop.xlane.xlu0 %847
        %849 = vadd.xlane.f32.xlu0 %v825
        %v850 = vpop.xlane.xlu0 %849
        %851 = vadd.xlane.f32.xlu0 %v826
        %v852 = vpop.xlane.xlu0 %851
        %853 = vadd.xlane.f32.xlu0 %v827
        %v854 = vpop.xlane.xlu0 %853
        %855 = vadd.xlane.f32.xlu0 %v828
        %v856 = vpop.xlane.xlu0 %855
        %857 = vadd.xlane.f32.xlu0 %v829
        %v858 = vpop.xlane.xlu0 %857
        %859 = vadd.xlane.f32.xlu0 %v830
        %v860 = vpop.xlane.xlu0 %859
        %861 = vadd.xlane.f32.xlu0 %v831
        %v862 = vpop.xlane.xlu0 %861
        %863 = vadd.xlane.f32.xlu0 %v832
        %v864 = vpop.xlane.xlu0 %863
        %v881 = vlaneseq
        %v882 = vand.u32 %v881, 127
        %v883 = vlaneseq
        %v884 = vshrl.u32 %v883, 7
        %v885 = vsub.s32 %v882, %v884
        %v886 = vrot.slane %v834, %v885
        %v887 = vadd.s32 %v882, 4294967288
        %v888 = vlaneseq
        %v889 = vshrl.u32 %v888, 7
        %v890 = vsub.s32 %v887, %v889
        %v891 = vrot.slane %v836, %v890
        %vm892 = vcmask 130112
        %v893 = vsel %vm892, %v891, %v886
        %v894 = vadd.s32 %v882, 4294967280
        %v895 = vlaneseq
        %v896 = vshrl.u32 %v895, 7
        %v897 = vsub.s32 %v894, %v896
        %v898 = vrot.slane %v838, %v897
        %vm899 = vcmask 195712
        %v900 = vsel %vm899, %v898, %v893
        %v901 = vadd.s32 %v882, 4294967272
        %v902 = vlaneseq
        %v903 = vshrl.u32 %v902, 7
        %v904 = vsub.s32 %v901, %v903
        %v905 = vrot.slane %v840, %v904
        %vm906 = vcmask 261312
        %v907 = vsel %vm906, %v905, %v900
        %v908 = vadd.s32 %v882, 4294967264
        %v909 = vlaneseq
        %v910 = vshrl.u32 %v909, 7
        %v911 = vsub.s32 %v908, %v910
        %v912 = vrot.slane %v842, %v911
        %vm913 = vcmask 326912
        %v914 = vsel %vm913, %v912, %v907
        %v915 = vadd.s32 %v882, 4294967256
        %v916 = vlaneseq
        %v917 = vshrl.u32 %v916, 7
        %v918 = vsub.s32 %v915, %v917
        %v919 = vrot.slane %v844, %v918
        %vm920 = vcmask 392512
        %v921 = vsel %vm920, %v919, %v914
        %v922 = vadd.s32 %v882, 4294967248
        %v923 = vlaneseq
        %v924 = vshrl.u32 %v923, 7
        %v925 = vsub.s32 %v922, %v924
        %v926 = vrot.slane %v846, %v925
        %vm927 = vcmask 458112
        %v928 = vsel %vm927, %v926, %v921
        %v929 = vadd.s32 %v882, 4294967240
        %v930 = vlaneseq
        %v931 = vshrl.u32 %v930, 7
        %v932 = vsub.s32 %v929, %v931
        %v933 = vrot.slane %v848, %v932
        %vm934 = vcmask 523712
        %v935 = vsel %vm934, %v933, %v928
        %v936 = vlaneseq
        %v937 = vshrl.u32 %v936, 7
        %v938 = vsub.s32 %v882, %v937
        %v939 = vrot.slane %v850, %v938
        %v940 = vlaneseq
        %v941 = vshrl.u32 %v940, 7
        %v942 = vsub.s32 %v887, %v941
        %v943 = vrot.slane %v852, %v942
        %v944 = vsel %vm892, %v943, %v939
        %v945 = vlaneseq
        %v946 = vshrl.u32 %v945, 7
        %v947 = vsub.s32 %v894, %v946
        %v948 = vrot.slane %v854, %v947
        %v949 = vsel %vm899, %v948, %v944
        %v950 = vlaneseq
        %v951 = vshrl.u32 %v950, 7
        %v952 = vsub.s32 %v901, %v951
        %v953 = vrot.slane %v856, %v952
        %v954 = vsel %vm906, %v953, %v949
        %v955 = vlaneseq
        %v956 = vshrl.u32 %v955, 7
        %v957 = vsub.s32 %v908, %v956
        %v958 = vrot.slane %v858, %v957
        %v959 = vsel %vm913, %v958, %v954
        %v960 = vlaneseq
        %v961 = vshrl.u32 %v960, 7
        %v962 = vsub.s32 %v915, %v961
        %v963 = vrot.slane %v860, %v962
        %v964 = vsel %vm920, %v963, %v959
        %v965 = vlaneseq
        %v966 = vshrl.u32 %v965, 7
        %v967 = vsub.s32 %v922, %v966
        %v968 = vrot.slane %v862, %v967
        %v969 = vsel %vm927, %v968, %v964
        %v970 = vlaneseq
        %v971 = vshrl.u32 %v970, 7
        %v972 = vsub.s32 %v929, %v971
        %v973 = vrot.slane %v864, %v972
        %v974 = vsel %vm934, %v973, %v969
        %vm975 = vcmask 1041409
        %v976 = vsel %vm975, %v974, %v935
        %vm978 = vcmask 517120
        %v979 = vsel %vm978, %v976, 0.0
        %980 = vadd.xlane.f32.xlu0 %v979
        %v981 = vpop.xlane.xlu0 %980
        %v982 = vld [vmem:[#allocation4] sm:$0x1]
        %v984 = vlaneseq
        %v985 = vshrl.u32 %v984, 7
        %v986 = vsub.s32 0, %v985
        %v987 = vrot.slane %v982, %v986
        %v989 = vadd.f32 %v981, %v987
        %vm990 = vcmask 1024
        %991 = vst.msk [vmem:[%s7] sm:$0x3] %vm990, %v989
        %v992 = vand.u32 2147483647, %v989
        %v993 = vsub.f32 0.0, %v992
        %v994 = vmul.f32 %v993, 1.442695
        %v995 = vpow.pop %v994
        %vm996 = vcmp.ge.f32.partialorder %v989, 0.0
        %v997 = vadd.f32 %v995, 1.0
        %v998 = vrcp.pop %v997
        %v999 = vmul.f32 1.0, %v998
        %v1000 = vmul.f32 %v995, %v998
        %v1001 = vsel %vm996, %v999, %v1000
        %1002 = vst.msk [vmem:[%s8] sm:$0x3] %vm990, %v1001
      $region56: #{dogs_cats_forward.7} parent=47 // pred_fallthru
        _
      // Predicated region
      $region57: #{dogs_cats_forward.7} parent=47 // pred_check
        %p1003 = pneg %p182
      $region58: #{dogs_cats_forward.7} parent=47 // pred_check_branch
        %1005 = sbr.rel (%p1003) target = $region60
      $region59: #{dogs_cats_forward.7} parent=47 // pred_region
        _
      $region60: #{dogs_cats_forward.7} parent=47 // pred_fallthru
        _
      // Predicated region
      $region61: #{dogs_cats_forward.7} parent=47 // pred_check
        %p1006 = pneg %p203
      $region62: #{dogs_cats_forward.7} parent=47 // pred_check_branch
        %1008 = sbr.rel (%p1006) target = $region64
      $region63: #{dogs_cats_forward.7} parent=47 // pred_region
        _
      $region64: #{dogs_cats_forward.7} parent=47 // pred_fallthru
        _
      // Predicated region
      $region65: #{dogs_cats_forward.7} parent=47 // pred_check
        %p1009 = pneg %p182
      $region66: #{dogs_cats_forward.7} parent=47 // pred_check_branch
        %1011 = sbr.rel (%p1009) target = $region68
      $region67: #{dogs_cats_forward.7} parent=47 // pred_region
        _
      $region68: #{dogs_cats_forward.7} parent=47 // pred_fallthru
        _
      // Predicated region
      $region69: #{dogs_cats_forward.7} parent=47 // pred_check
        %p1012 = pneg %p203
      $region70: #{dogs_cats_forward.7} parent=47 // pred_check_branch
        %1014 = sbr.rel (%p1012) target = $region72
      $region71: #{dogs_cats_forward.7} parent=47 // pred_region
        _
      $region72: #{dogs_cats_forward.7} parent=47 // pred_fallthru
        _
    $region48: #{dogs_cats_forward.7} parent=5 // pred_fallthru
      _
    %p1015 = scmp.le.s32.totalorder 2, %s17
    // Predicated region
    $region73: #{dogs_cats_forward.7} parent=5 // pred_check
      %p1016 = pneg %p1015
    $region74: #{dogs_cats_forward.7} parent=5 // pred_check_branch
      %1018 = sbr.rel (%p1016) target = $region76
    $region75: #{dogs_cats_forward.7} parent=5 // pred_region
      %s1019 = ssub.s32 %s17, 2
    $region76: #{dogs_cats_forward.7} parent=5 // pred_fallthru
      _
  $region6: #{dogs_cats_forward.7} parent=0 // loop_footer
    %s21 = sadd.s32 1, %s17
  $region7: #{dogs_cats_forward.7} parent=0 // loop_footer_branch
    %16 = sbr.rel target = $region3
  $region8: #{dogs_cats_forward.7} parent=0 // loop_exit
    _

</llo_original>
